<compile_context>
chip_gen: v7x
topology: tpu7x:2x2x1
jax: 0.10.0
libtpu: 0.0.40
codegen_flags: <defaults>
</compile_context>

<pallas_src>
import functools

import jax
import jax.numpy as jnp
from jax import lax
from jax.experimental import pallas as pl
from jax.experimental.pallas import tpu as pltpu

BN_EPS = 1e-5


# ---------------- fused Pallas kernel ----------------

def _basic_block_kernel(x_ref, w1_ref, b1_ref, w2_ref, b2_ref, o_ref, pad_ref,
                        *, H, W, PAD, compute_dtype):
    # x_ref : (H*W, C)  one image, NHWC flattened to rows x channels (also the identity)
    # w1_ref: (9, C, C) conv1 3x3 weights (BN1 scale folded), tap index k = ky*3 + kx
    # b1_ref: (1, C)    BN1 folded bias
    # w2_ref: (9, C, C) conv2 3x3 weights (BN2 scale folded)
    # b2_ref: (1, C)    BN2 folded bias
    # o_ref : (H*W, C)
    # pad_ref: VMEM scratch (H*W + 2*PAD, C) used as a halo-padded staging buffer
    HW = H * W
    C = x_ref.shape[-1]

    # Column masks for the width boundary: the flattened-row shift by dx = +/-1 would
    # otherwise wrap into the neighbouring image row.
    col = lax.broadcasted_iota(jnp.int32, (HW, 1), 0) % W
    m_left = (col > 0).astype(compute_dtype)       # kills x == 0     rows for dx = -1
    m_right = (col < W - 1).astype(compute_dtype)  # kills x == W - 1 rows for dx = +1

    zpad = jnp.zeros((PAD, C), compute_dtype)

    def conv3x3(src, w_ref):
        # Stage `src` so that image row r lives at scratch row PAD + r, with >= W+1
        # zero rows on each side (covers the +/- (W+1) flattened shifts of a 3x3 tap).
        pad_ref[0:PAD, :] = zpad
        pad_ref[PAD:PAD + HW, :] = src.astype(compute_dtype)
        pad_ref[PAD + HW:PAD + HW + PAD, :] = zpad

        acc = jnp.zeros((HW, w_ref.shape[-1]), jnp.float32)
        k = 0
        for dy in (-1, 0, 1):
            for dx in (-1, 0, 1):
                g = pad_ref[pl.ds(PAD + dy * W + dx, HW), :]
                if dx == -1:
                    g = g * m_left
                elif dx == 1:
                    g = g * m_right
                acc = acc + jnp.dot(g, w_ref[k], preferred_element_type=jnp.float32)
                k += 1
        return acc

    h1 = jnp.maximum(conv3x3(x_ref[...], w1_ref) + b1_ref[...], 0.0)  # conv1 + bn1 + relu
    h2 = conv3x3(h1, w2_ref) + b2_ref[...]                            # conv2 + bn2
    o_ref[...] = jnp.maximum(h2 + x_ref[...], 0.0)                    # + identity, relu


# ---------------- wrapper ----------------

def basic_block_forward(x_nchw, params, stride=1, compute_dtype=jnp.float32):
    # TODO(synk): stride > 1 and the optional external `downsample` module are not
    # implemented (module defaults: stride=1, downsample=None => in_planes == out_planes).
    assert stride == 1
    w1, w2, bn1, bn2 = params
    N, C, H, W = x_nchw.shape
    Cout = w1.shape[-1]
    assert Cout == C, "residual add requires in_planes == out_planes (downsample=None)"
    HW = H * W
    PAD = ((W + 1 + 7) // 8) * 8  # halo depth, rounded up to a sublane multiple

    # Fold inference-mode BatchNorm scale into the conv weights; keep only a bias.
    def fold(w, bn):
        g, b, m, v = bn
        s = g / jnp.sqrt(v + BN_EPS)
        wf = (w * s).reshape(9, C, Cout).astype(compute_dtype)   # HWIO -> (ky*3+kx, Ci, Co)
        bf = (b - m * s).reshape(1, Cout).astype(jnp.float32)
        return wf, bf

    w1f, b1 = fold(w1, bn1)
    w2f, b2 = fold(w2, bn2)

    x2d = jnp.transpose(x_nchw, (0, 2, 3, 1)).astype(jnp.float32).reshape(N * HW, C)

    kernel = functools.partial(_basic_block_kernel, H=H, W=W, PAD=PAD,
                               compute_dtype=compute_dtype)

    out2d = pl.pallas_call(
        kernel,
        out_shape=jax.ShapeDtypeStruct((N * HW, Cout), jnp.float32),
        grid_spec=pltpu.PrefetchScalarGridSpec(
            num_scalar_prefetch=0,
            grid=(N,),
            in_specs=[
                pl.BlockSpec((HW, C), lambda n: (n, 0)),
                pl.BlockSpec((9, C, Cout), lambda n: (0, 0, 0)),
                pl.BlockSpec((1, Cout), lambda n: (0, 0)),
                pl.BlockSpec((9, C, Cout), lambda n: (0, 0, 0)),
                pl.BlockSpec((1, Cout), lambda n: (0, 0)),
            ],
            out_specs=pl.BlockSpec((HW, Cout), lambda n: (n, 0)),
            scratch_shapes=[pltpu.VMEM((HW + 2 * PAD, C), compute_dtype)],
        ),
        compiler_params=pltpu.CompilerParams(dimension_semantics=("parallel",)),
    )(x2d, w1f, b1, w2f, b2)

    out = out2d.reshape(N, H, W, Cout)
    return jnp.transpose(out, (0, 3, 1, 2))  # back to NCHW


# ---------------- pure-JAX reference (for verification) ----------------

def reference_forward(x_nchw, params):
    w1, w2, bn1, bn2 = params

    def bn(h, p):
        g, b, m, v = p
        return (h - m) / jnp.sqrt(v + BN_EPS) * g + b

    x = jnp.transpose(x_nchw, (0, 2, 3, 1)).astype(jnp.float32)
    h = lax.conv_general_dilated(x, w1, (1, 1), 'SAME',
                                 dimension_numbers=('NHWC', 'HWIO', 'NHWC'),
                                 precision=lax.Precision.HIGHEST)
    h = jax.nn.relu(bn(h, bn1))
    h = lax.conv_general_dilated(h, w2, (1, 1), 'SAME',
                                 dimension_numbers=('NHWC', 'HWIO', 'NHWC'),
                                 precision=lax.Precision.HIGHEST)
    h = bn(h, bn2)
    out = jax.nn.relu(h + x)
    return jnp.transpose(out, (0, 3, 1, 2))


# ---------------- main ----------------

if __name__ == "__main__":
    key = jax.random.PRNGKey(0)
    keys = jax.random.split(key, 8)

    # BasicBlock defaults: stride=1, downsample=None => in_planes == out_planes.
    planes = 32
    N, H, W = 2, 16, 16

    # Conv weights in HWIO layout (ky, kx, Cin, Cout), no bias (bias=False in the module).
    w1 = jax.random.normal(keys[0], (3, 3, planes, planes), jnp.float32) * 0.1
    w2 = jax.random.normal(keys[1], (3, 3, planes, planes), jnp.float32) * 0.1

    def bn_params(k, c):
        k1, k2, k3, k4 = jax.random.split(k, 4)
        gamma = jax.random.uniform(k1, (c,), jnp.float32, 0.5, 1.5)
        beta = jax.random.normal(k2, (c,), jnp.float32) * 0.1
        mean = jax.random.normal(k3, (c,), jnp.float32) * 0.1
        var = jax.random.uniform(k4, (c,), jnp.float32, 0.5, 1.5)
        return gamma, beta, mean, var

    bn1 = bn_params(keys[2], planes)
    bn2 = bn_params(keys[3], planes)
    params = (w1, w2, bn1, bn2)

    x = jax.random.normal(keys[4], (N, planes, H, W), jnp.float32)  # NCHW like PyTorch

    ref = jax.block_until_ready(reference_forward(x, params))

    # f32 matmul inputs: tight check against the f32 XLA reference.
    out_f32 = jax.block_until_ready(basic_block_forward(x, params, compute_dtype=jnp.float32))
    assert out_f32.shape == (N, planes, H, W)
    assert jnp.allclose(out_f32, ref, atol=5e-4, rtol=5e-4), "f32 mismatch vs reference"

    # bf16 matmul inputs with f32 MXU accumulation (per perf guidance): looser tolerance.
    out_bf16 = jax.block_until_ready(basic_block_forward(x, params, compute_dtype=jnp.bfloat16))
    assert jnp.allclose(out_bf16, ref, atol=2e-1, rtol=5e-2), "bf16 mismatch vs reference"

    print("KERNEL_OK")
</pallas_src>

<mosaic_0001>
module attributes {stable_mosaic.version = 11 : i64} {
  func.func @_basic_block_kernel(%arg0: i32, %arg1: memref<256x32xf32, #tpu.memory_space<vmem>>, %arg2: memref<9x32x32xf32, #tpu.memory_space<vmem>>, %arg3: memref<1x32xf32, #tpu.memory_space<vmem>>, %arg4: memref<9x32x32xf32, #tpu.memory_space<vmem>>, %arg5: memref<1x32xf32, #tpu.memory_space<vmem>>, %arg6: memref<256x32xf32, #tpu.memory_space<vmem>>, %arg7: memref<304x32xf32, #tpu.memory_space<vmem>>) attributes {dimension_semantics = [#tpu.dimension_semantics<parallel>], iteration_bounds = array<i64: 2>, scalar_prefetch = 0 : i64, scratch_operands = 1 : i64, tpu.core_type = #tpu.core_type<tc>, window_params = [{transform_indices = @transform_0, window_bounds = array<i64: 256, 32>}, {pipeline_mode = #tpu.pipeline_mode<synchronous>, transform_indices = @transform_1, window_bounds = array<i64: 9, 32, 32>}, {pipeline_mode = #tpu.pipeline_mode<synchronous>, transform_indices = @transform_2, window_bounds = array<i64: 1, 32>}, {pipeline_mode = #tpu.pipeline_mode<synchronous>, transform_indices = @transform_3, window_bounds = array<i64: 9, 32, 32>}, {pipeline_mode = #tpu.pipeline_mode<synchronous>, transform_indices = @transform_4, window_bounds = array<i64: 1, 32>}, {transform_indices = @transform_5, window_bounds = array<i64: 256, 32>}]} {
    %0 = tpu.iota {dimensions = array<i32: 0>} : vector<256x1xi32>
    %c16_i32 = arith.constant 16 : i32
    %c0_i32 = arith.constant 0 : i32
    %1 = arith.cmpi eq, %c16_i32, %c0_i32 : i32
    %c1_i32 = arith.constant 1 : i32
    %2 = arith.select %1, %c1_i32, %c16_i32 : i32
    %3 = vector.broadcast %2 : i32 to vector<256x1xi32>
    %4 = arith.remsi %0, %3 : vector<256x1xi32>
    %c0_i32_0 = arith.constant 0 : i32
    %5 = vector.broadcast %c0_i32_0 : i32 to vector<256x1xi32>
    %6 = arith.cmpi ne, %4, %5 : vector<256x1xi32>
    %c0_i32_1 = arith.constant 0 : i32
    %7 = vector.broadcast %c0_i32_1 : i32 to vector<256x1xi32>
    %8 = arith.cmpi slt, %4, %7 : vector<256x1xi32>
    %c0_i32_2 = arith.constant 0 : i32
    %9 = arith.cmpi slt, %2, %c0_i32_2 : i32
    %10 = vector.broadcast %9 : i1 to vector<256x1xi1>
    %11 = vector.broadcast %10 : vector<256x1xi1> to vector<256x1xi1>
    %12 = arith.xori %8, %11 : vector<256x1xi1>
    %13 = arith.andi %12, %6 : vector<256x1xi1>
    %14 = vector.broadcast %2 : i32 to vector<256x1xi32>
    %15 = arith.addi %4, %14 : vector<256x1xi32>
    %16 = arith.select %13, %15, %4 : vector<256x1xi1>, vector<256x1xi32>
    %c0_i32_3 = arith.constant 0 : i32
    %17 = vector.broadcast %c0_i32_3 : i32 to vector<256x1xi32>
    %18 = arith.cmpi sgt, %16, %17 : vector<256x1xi32>
    %19 = arith.extui %18 : vector<256x1xi1> to vector<256x1xi32>
    %20 = arith.sitofp %19 : vector<256x1xi32> to vector<256x1xf32>
    %c15_i32 = arith.constant 15 : i32
    %21 = vector.broadcast %c15_i32 : i32 to vector<256x1xi32>
    %22 = arith.cmpi slt, %16, %21 : vector<256x1xi32>
    %23 = arith.extui %22 : vector<256x1xi1> to vector<256x1xi32>
    %24 = arith.sitofp %23 : vector<256x1xi32> to vector<256x1xf32>
    %cst = arith.constant 0.000000e+00 : f32
    %25 = vector.broadcast %cst : f32 to vector<24x32xf32>
    %c0 = arith.constant 0 : index
    %c0_4 = arith.constant 0 : index
    %26 = vector.load %arg1[%c0, %c0_4] : memref<256x32xf32, #tpu.memory_space<vmem>>, vector<256x32xf32>
    %c0_5 = arith.constant 0 : index
    %c0_6 = arith.constant 0 : index
    %27 = vector.load %arg7[%c0_5, %c0_6] : memref<304x32xf32, #tpu.memory_space<vmem>>, vector<24x32xf32>
    tpu.vector_store %arg7[%c0_5, %c0_6], %25 {strides = array<i32>} : memref<304x32xf32, #tpu.memory_space<vmem>>, vector<24x32xf32>,
    %c24 = arith.constant 24 : index
    %c0_7 = arith.constant 0 : index
    %28 = vector.load %arg7[%c24, %c0_7] : memref<304x32xf32, #tpu.memory_space<vmem>>, vector<256x32xf32>
    tpu.vector_store %arg7[%c24, %c0_7], %26 {strides = array<i32>} : memref<304x32xf32, #tpu.memory_space<vmem>>, vector<256x32xf32>,
    %c280 = arith.constant 280 : index
    %c0_8 = arith.constant 0 : index
    %29 = vector.load %arg7[%c280, %c0_8] : memref<304x32xf32, #tpu.memory_space<vmem>>, vector<24x32xf32>
    tpu.vector_store %arg7[%c280, %c0_8], %25 {strides = array<i32>} : memref<304x32xf32, #tpu.memory_space<vmem>>, vector<24x32xf32>,
    %cst_9 = arith.constant 0.000000e+00 : f32
    %30 = vector.broadcast %cst_9 : f32 to vector<256x32xf32>
    %c7 = arith.constant 7 : index
    %c0_10 = arith.constant 0 : index
    %31 = vector.load %arg7[%c7, %c0_10] : memref<304x32xf32, #tpu.memory_space<vmem>>, vector<256x32xf32>
    %32 = vector.broadcast %20 : vector<256x1xf32> to vector<256x32xf32>
    %33 = arith.mulf %31, %32 : vector<256x32xf32>
    %c0_11 = arith.constant 0 : index
    %c0_12 = arith.constant 0 : index
    %c0_13 = arith.constant 0 : index
    %34 = vector.load %arg2[%c0_11, %c0_12, %c0_13] : memref<9x32x32xf32, #tpu.memory_space<vmem>>, vector<1x32x32xf32>
    %35 = vector.shape_cast %34 : vector<1x32x32xf32> to vector<32x32xf32>
    %cst_14 = arith.constant dense<0.000000e+00> : vector<256x32xf32>
    %36 = tpu.matmul %33, %35, %cst_14 {dimension_numbers = #tpu.dot_dimension_numbers<[1], [0], [0], [1], [0, 0, 1, 1], [], []>} : vector<256x32xf32>, vector<32x32xf32>, vector<256x32xf32> -> vector<256x32xf32>
    %37 = arith.addf %30, %36 : vector<256x32xf32>
    %c8 = arith.constant 8 : index
    %c0_15 = arith.constant 0 : index
    %38 = vector.load %arg7[%c8, %c0_15] : memref<304x32xf32, #tpu.memory_space<vmem>>, vector<256x32xf32>
    %c1 = arith.constant 1 : index
    %c0_16 = arith.constant 0 : index
    %c0_17 = arith.constant 0 : index
    %39 = vector.load %arg2[%c1, %c0_16, %c0_17] : memref<9x32x32xf32, #tpu.memory_space<vmem>>, vector<1x32x32xf32>
    %40 = vector.shape_cast %39 : vector<1x32x32xf32> to vector<32x32xf32>
    %cst_18 = arith.constant dense<0.000000e+00> : vector<256x32xf32>
    %41 = tpu.matmul %38, %40, %cst_18 {dimension_numbers = #tpu.dot_dimension_numbers<[1], [0], [0], [1], [0, 0, 1, 1], [], []>} : vector<256x32xf32>, vector<32x32xf32>, vector<256x32xf32> -> vector<256x32xf32>
    %42 = arith.addf %37, %41 : vector<256x32xf32>
    %c9 = arith.constant 9 : index
    %c0_19 = arith.constant 0 : index
    %43 = vector.load %arg7[%c9, %c0_19] : memref<304x32xf32, #tpu.memory_space<vmem>>, vector<256x32xf32>
    %44 = vector.broadcast %24 : vector<256x1xf32> to vector<256x32xf32>
    %45 = arith.mulf %43, %44 : vector<256x32xf32>
    %c2 = arith.constant 2 : index
    %c0_20 = arith.constant 0 : index
    %c0_21 = arith.constant 0 : index
    %46 = vector.load %arg2[%c2, %c0_20, %c0_21] : memref<9x32x32xf32, #tpu.memory_space<vmem>>, vector<1x32x32xf32>
    %47 = vector.shape_cast %46 : vector<1x32x32xf32> to vector<32x32xf32>
    %cst_22 = arith.constant dense<0.000000e+00> : vector<256x32xf32>
    %48 = tpu.matmul %45, %47, %cst_22 {dimension_numbers = #tpu.dot_dimension_numbers<[1], [0], [0], [1], [0, 0, 1, 1], [], []>} : vector<256x32xf32>, vector<32x32xf32>, vector<256x32xf32> -> vector<256x32xf32>
    %49 = arith.addf %42, %48 : vector<256x32xf32>
    %c23 = arith.constant 23 : index
    %c0_23 = arith.constant 0 : index
    %50 = vector.load %arg7[%c23, %c0_23] : memref<304x32xf32, #tpu.memory_space<vmem>>, vector<256x32xf32>
    %51 = vector.broadcast %20 : vector<256x1xf32> to vector<256x32xf32>
    %52 = arith.mulf %50, %51 : vector<256x32xf32>
    %c3 = arith.constant 3 : index
    %c0_24 = arith.constant 0 : index
    %c0_25 = arith.constant 0 : index
    %53 = vector.load %arg2[%c3, %c0_24, %c0_25] : memref<9x32x32xf32, #tpu.memory_space<vmem>>, vector<1x32x32xf32>
    %54 = vector.shape_cast %53 : vector<1x32x32xf32> to vector<32x32xf32>
    %cst_26 = arith.constant dense<0.000000e+00> : vector<256x32xf32>
    %55 = tpu.matmul %52, %54, %cst_26 {dimension_numbers = #tpu.dot_dimension_numbers<[1], [0], [0], [1], [0, 0, 1, 1], [], []>} : vector<256x32xf32>, vector<32x32xf32>, vector<256x32xf32> -> vector<256x32xf32>
    %56 = arith.addf %49, %55 : vector<256x32xf32>
    %c24_27 = arith.constant 24 : index
    %c0_28 = arith.constant 0 : index
    %57 = vector.load %arg7[%c24_27, %c0_28] : memref<304x32xf32, #tpu.memory_space<vmem>>, vector<256x32xf32>
    %c4 = arith.constant 4 : index
    %c0_29 = arith.constant 0 : index
    %c0_30 = arith.constant 0 : index
    %58 = vector.load %arg2[%c4, %c0_29, %c0_30] : memref<9x32x32xf32, #tpu.memory_space<vmem>>, vector<1x32x32xf32>
    %59 = vector.shape_cast %58 : vector<1x32x32xf32> to vector<32x32xf32>
    %cst_31 = arith.constant dense<0.000000e+00> : vector<256x32xf32>
    %60 = tpu.matmul %57, %59, %cst_31 {dimension_numbers = #tpu.dot_dimension_numbers<[1], [0], [0], [1], [0, 0, 1, 1], [], []>} : vector<256x32xf32>, vector<32x32xf32>, vector<256x32xf32> -> vector<256x32xf32>
    %61 = arith.addf %56, %60 : vector<256x32xf32>
    %c25 = arith.constant 25 : index
    %c0_32 = arith.constant 0 : index
    %62 = vector.load %arg7[%c25, %c0_32] : memref<304x32xf32, #tpu.memory_space<vmem>>, vector<256x32xf32>
    %63 = vector.broadcast %24 : vector<256x1xf32> to vector<256x32xf32>
    %64 = arith.mulf %62, %63 : vector<256x32xf32>
    %c5 = arith.constant 5 : index
    %c0_33 = arith.constant 0 : index
    %c0_34 = arith.constant 0 : index
    %65 = vector.load %arg2[%c5, %c0_33, %c0_34] : memref<9x32x32xf32, #tpu.memory_space<vmem>>, vector<1x32x32xf32>
    %66 = vector.shape_cast %65 : vector<1x32x32xf32> to vector<32x32xf32>
    %cst_35 = arith.constant dense<0.000000e+00> : vector<256x32xf32>
    %67 = tpu.matmul %64, %66, %cst_35 {dimension_numbers = #tpu.dot_dimension_numbers<[1], [0], [0], [1], [0, 0, 1, 1], [], []>} : vector<256x32xf32>, vector<32x32xf32>, vector<256x32xf32> -> vector<256x32xf32>
    %68 = arith.addf %61, %67 : vector<256x32xf32>
    %c39 = arith.constant 39 : index
    %c0_36 = arith.constant 0 : index
    %69 = vector.load %arg7[%c39, %c0_36] : memref<304x32xf32, #tpu.memory_space<vmem>>, vector<256x32xf32>
    %70 = vector.broadcast %20 : vector<256x1xf32> to vector<256x32xf32>
    %71 = arith.mulf %69, %70 : vector<256x32xf32>
    %c6 = arith.constant 6 : index
    %c0_37 = arith.constant 0 : index
    %c0_38 = arith.constant 0 : index
    %72 = vector.load %arg2[%c6, %c0_37, %c0_38] : memref<9x32x32xf32, #tpu.memory_space<vmem>>, vector<1x32x32xf32>
    %73 = vector.shape_cast %72 : vector<1x32x32xf32> to vector<32x32xf32>
    %cst_39 = arith.constant dense<0.000000e+00> : vector<256x32xf32>
    %74 = tpu.matmul %71, %73, %cst_39 {dimension_numbers = #tpu.dot_dimension_numbers<[1], [0], [0], [1], [0, 0, 1, 1], [], []>} : vector<256x32xf32>, vector<32x32xf32>, vector<256x32xf32> -> vector<256x32xf32>
    %75 = arith.addf %68, %74 : vector<256x32xf32>
    %c40 = arith.constant 40 : index
    %c0_40 = arith.constant 0 : index
    %76 = vector.load %arg7[%c40, %c0_40] : memref<304x32xf32, #tpu.memory_space<vmem>>, vector<256x32xf32>
    %c7_41 = arith.constant 7 : index
    %c0_42 = arith.constant 0 : index
    %c0_43 = arith.constant 0 : index
    %77 = vector.load %arg2[%c7_41, %c0_42, %c0_43] : memref<9x32x32xf32, #tpu.memory_space<vmem>>, vector<1x32x32xf32>
    %78 = vector.shape_cast %77 : vector<1x32x32xf32> to vector<32x32xf32>
    %cst_44 = arith.constant dense<0.000000e+00> : vector<256x32xf32>
    %79 = tpu.matmul %76, %78, %cst_44 {dimension_numbers = #tpu.dot_dimension_numbers<[1], [0], [0], [1], [0, 0, 1, 1], [], []>} : vector<256x32xf32>, vector<32x32xf32>, vector<256x32xf32> -> vector<256x32xf32>
    %80 = arith.addf %75, %79 : vector<256x32xf32>
    %c41 = arith.constant 41 : index
    %c0_45 = arith.constant 0 : index
    %81 = vector.load %arg7[%c41, %c0_45] : memref<304x32xf32, #tpu.memory_space<vmem>>, vector<256x32xf32>
    %82 = vector.broadcast %24 : vector<256x1xf32> to vector<256x32xf32>
    %83 = arith.mulf %81, %82 : vector<256x32xf32>
    %c8_46 = arith.constant 8 : index
    %c0_47 = arith.constant 0 : index
    %c0_48 = arith.constant 0 : index
    %84 = vector.load %arg2[%c8_46, %c0_47, %c0_48] : memref<9x32x32xf32, #tpu.memory_space<vmem>>, vector<1x32x32xf32>
    %85 = vector.shape_cast %84 : vector<1x32x32xf32> to vector<32x32xf32>
    %cst_49 = arith.constant dense<0.000000e+00> : vector<256x32xf32>
    %86 = tpu.matmul %83, %85, %cst_49 {dimension_numbers = #tpu.dot_dimension_numbers<[1], [0], [0], [1], [0, 0, 1, 1], [], []>} : vector<256x32xf32>, vector<32x32xf32>, vector<256x32xf32> -> vector<256x32xf32>
    %87 = arith.addf %80, %86 : vector<256x32xf32>
    %c0_50 = arith.constant 0 : index
    %c0_51 = arith.constant 0 : index
    %88 = vector.load %arg3[%c0_50, %c0_51] : memref<1x32xf32, #tpu.memory_space<vmem>>, vector<1x32xf32>
    %89 = vector.broadcast %88 : vector<1x32xf32> to vector<256x32xf32>
    %90 = arith.addf %87, %89 : vector<256x32xf32>
    %cst_52 = arith.constant 0.000000e+00 : f32
    %91 = vector.broadcast %cst_52 : f32 to vector<256x32xf32>
    %92 = arith.maximumf %90, %91 : vector<256x32xf32>
    %c0_53 = arith.constant 0 : index
    %c0_54 = arith.constant 0 : index
    %93 = vector.load %arg7[%c0_53, %c0_54] : memref<304x32xf32, #tpu.memory_space<vmem>>, vector<24x32xf32>
    tpu.vector_store %arg7[%c0_53, %c0_54], %25 {strides = array<i32>} : memref<304x32xf32, #tpu.memory_space<vmem>>, vector<24x32xf32>,
    %c24_55 = arith.constant 24 : index
    %c0_56 = arith.constant 0 : index
    %94 = vector.load %arg7[%c24_55, %c0_56] : memref<304x32xf32, #tpu.memory_space<vmem>>, vector<256x32xf32>
    tpu.vector_store %arg7[%c24_55, %c0_56], %92 {strides = array<i32>} : memref<304x32xf32, #tpu.memory_space<vmem>>, vector<256x32xf32>,
    %c280_57 = arith.constant 280 : index
    %c0_58 = arith.constant 0 : index
    %95 = vector.load %arg7[%c280_57, %c0_58] : memref<304x32xf32, #tpu.memory_space<vmem>>, vector<24x32xf32>
    tpu.vector_store %arg7[%c280_57, %c0_58], %25 {strides = array<i32>} : memref<304x32xf32, #tpu.memory_space<vmem>>, vector<24x32xf32>,
    %cst_59 = arith.constant 0.000000e+00 : f32
    %96 = vector.broadcast %cst_59 : f32 to vector<256x32xf32>
    %c7_60 = arith.constant 7 : index
    %c0_61 = arith.constant 0 : index
    %97 = vector.load %arg7[%c7_60, %c0_61] : memref<304x32xf32, #tpu.memory_space<vmem>>, vector<256x32xf32>
    %98 = vector.broadcast %20 : vector<256x1xf32> to vector<256x32xf32>
    %99 = arith.mulf %97, %98 : vector<256x32xf32>
    %c0_62 = arith.constant 0 : index
    %c0_63 = arith.constant 0 : index
    %c0_64 = arith.constant 0 : index
    %100 = vector.load %arg4[%c0_62, %c0_63, %c0_64] : memref<9x32x32xf32, #tpu.memory_space<vmem>>, vector<1x32x32xf32>
    %101 = vector.shape_cast %100 : vector<1x32x32xf32> to vector<32x32xf32>
    %cst_65 = arith.constant dense<0.000000e+00> : vector<256x32xf32>
    %102 = tpu.matmul %99, %101, %cst_65 {dimension_numbers = #tpu.dot_dimension_numbers<[1], [0], [0], [1], [0, 0, 1, 1], [], []>} : vector<256x32xf32>, vector<32x32xf32>, vector<256x32xf32> -> vector<256x32xf32>
    %103 = arith.addf %96, %102 : vector<256x32xf32>
    %c8_66 = arith.constant 8 : index
    %c0_67 = arith.constant 0 : index
    %104 = vector.load %arg7[%c8_66, %c0_67] : memref<304x32xf32, #tpu.memory_space<vmem>>, vector<256x32xf32>
    %c1_68 = arith.constant 1 : index
    %c0_69 = arith.constant 0 : index
    %c0_70 = arith.constant 0 : index
    %105 = vector.load %arg4[%c1_68, %c0_69, %c0_70] : memref<9x32x32xf32, #tpu.memory_space<vmem>>, vector<1x32x32xf32>
    %106 = vector.shape_cast %105 : vector<1x32x32xf32> to vector<32x32xf32>
    %cst_71 = arith.constant dense<0.000000e+00> : vector<256x32xf32>
    %107 = tpu.matmul %104, %106, %cst_71 {dimension_numbers = #tpu.dot_dimension_numbers<[1], [0], [0], [1], [0, 0, 1, 1], [], []>} : vector<256x32xf32>, vector<32x32xf32>, vector<256x32xf32> -> vector<256x32xf32>
    %108 = arith.addf %103, %107 : vector<256x32xf32>
    %c9_72 = arith.constant 9 : index
    %c0_73 = arith.constant 0 : index
    %109 = vector.load %arg7[%c9_72, %c0_73] : memref<304x32xf32, #tpu.memory_space<vmem>>, vector<256x32xf32>
    %110 = vector.broadcast %24 : vector<256x1xf32> to vector<256x32xf32>
    %111 = arith.mulf %109, %110 : vector<256x32xf32>
    %c2_74 = arith.constant 2 : index
    %c0_75 = arith.constant 0 : index
    %c0_76 = arith.constant 0 : index
    %112 = vector.load %arg4[%c2_74, %c0_75, %c0_76] : memref<9x32x32xf32, #tpu.memory_space<vmem>>, vector<1x32x32xf32>
    %113 = vector.shape_cast %112 : vector<1x32x32xf32> to vector<32x32xf32>
    %cst_77 = arith.constant dense<0.000000e+00> : vector<256x32xf32>
    %114 = tpu.matmul %111, %113, %cst_77 {dimension_numbers = #tpu.dot_dimension_numbers<[1], [0], [0], [1], [0, 0, 1, 1], [], []>} : vector<256x32xf32>, vector<32x32xf32>, vector<256x32xf32> -> vector<256x32xf32>
    %115 = arith.addf %108, %114 : vector<256x32xf32>
    %c23_78 = arith.constant 23 : index
    %c0_79 = arith.constant 0 : index
    %116 = vector.load %arg7[%c23_78, %c0_79] : memref<304x32xf32, #tpu.memory_space<vmem>>, vector<256x32xf32>
    %117 = vector.broadcast %20 : vector<256x1xf32> to vector<256x32xf32>
    %118 = arith.mulf %116, %117 : vector<256x32xf32>
    %c3_80 = arith.constant 3 : index
    %c0_81 = arith.constant 0 : index
    %c0_82 = arith.constant 0 : index
    %119 = vector.load %arg4[%c3_80, %c0_81, %c0_82] : memref<9x32x32xf32, #tpu.memory_space<vmem>>, vector<1x32x32xf32>
    %120 = vector.shape_cast %119 : vector<1x32x32xf32> to vector<32x32xf32>
    %cst_83 = arith.constant dense<0.000000e+00> : vector<256x32xf32>
    %121 = tpu.matmul %118, %120, %cst_83 {dimension_numbers = #tpu.dot_dimension_numbers<[1], [0], [0], [1], [0, 0, 1, 1], [], []>} : vector<256x32xf32>, vector<32x32xf32>, vector<256x32xf32> -> vector<256x32xf32>
    %122 = arith.addf %115, %121 : vector<256x32xf32>
    %c24_84 = arith.constant 24 : index
    %c0_85 = arith.constant 0 : index
    %123 = vector.load %arg7[%c24_84, %c0_85] : memref<304x32xf32, #tpu.memory_space<vmem>>, vector<256x32xf32>
    %c4_86 = arith.constant 4 : index
    %c0_87 = arith.constant 0 : index
    %c0_88 = arith.constant 0 : index
    %124 = vector.load %arg4[%c4_86, %c0_87, %c0_88] : memref<9x32x32xf32, #tpu.memory_space<vmem>>, vector<1x32x32xf32>
    %125 = vector.shape_cast %124 : vector<1x32x32xf32> to vector<32x32xf32>
    %cst_89 = arith.constant dense<0.000000e+00> : vector<256x32xf32>
    %126 = tpu.matmul %123, %125, %cst_89 {dimension_numbers = #tpu.dot_dimension_numbers<[1], [0], [0], [1], [0, 0, 1, 1], [], []>} : vector<256x32xf32>, vector<32x32xf32>, vector<256x32xf32> -> vector<256x32xf32>
    %127 = arith.addf %122, %126 : vector<256x32xf32>
    %c25_90 = arith.constant 25 : index
    %c0_91 = arith.constant 0 : index
    %128 = vector.load %arg7[%c25_90, %c0_91] : memref<304x32xf32, #tpu.memory_space<vmem>>, vector<256x32xf32>
    %129 = vector.broadcast %24 : vector<256x1xf32> to vector<256x32xf32>
    %130 = arith.mulf %128, %129 : vector<256x32xf32>
    %c5_92 = arith.constant 5 : index
    %c0_93 = arith.constant 0 : index
    %c0_94 = arith.constant 0 : index
    %131 = vector.load %arg4[%c5_92, %c0_93, %c0_94] : memref<9x32x32xf32, #tpu.memory_space<vmem>>, vector<1x32x32xf32>
    %132 = vector.shape_cast %131 : vector<1x32x32xf32> to vector<32x32xf32>
    %cst_95 = arith.constant dense<0.000000e+00> : vector<256x32xf32>
    %133 = tpu.matmul %130, %132, %cst_95 {dimension_numbers = #tpu.dot_dimension_numbers<[1], [0], [0], [1], [0, 0, 1, 1], [], []>} : vector<256x32xf32>, vector<32x32xf32>, vector<256x32xf32> -> vector<256x32xf32>
    %134 = arith.addf %127, %133 : vector<256x32xf32>
    %c39_96 = arith.constant 39 : index
    %c0_97 = arith.constant 0 : index
    %135 = vector.load %arg7[%c39_96, %c0_97] : memref<304x32xf32, #tpu.memory_space<vmem>>, vector<256x32xf32>
    %136 = vector.broadcast %20 : vector<256x1xf32> to vector<256x32xf32>
    %137 = arith.mulf %135, %136 : vector<256x32xf32>
    %c6_98 = arith.constant 6 : index
    %c0_99 = arith.constant 0 : index
    %c0_100 = arith.constant 0 : index
    %138 = vector.load %arg4[%c6_98, %c0_99, %c0_100] : memref<9x32x32xf32, #tpu.memory_space<vmem>>, vector<1x32x32xf32>
    %139 = vector.shape_cast %138 : vector<1x32x32xf32> to vector<32x32xf32>
    %cst_101 = arith.constant dense<0.000000e+00> : vector<256x32xf32>
    %140 = tpu.matmul %137, %139, %cst_101 {dimension_numbers = #tpu.dot_dimension_numbers<[1], [0], [0], [1], [0, 0, 1, 1], [], []>} : vector<256x32xf32>, vector<32x32xf32>, vector<256x32xf32> -> vector<256x32xf32>
    %141 = arith.addf %134, %140 : vector<256x32xf32>
    %c40_102 = arith.constant 40 : index
    %c0_103 = arith.constant 0 : index
    %142 = vector.load %arg7[%c40_102, %c0_103] : memref<304x32xf32, #tpu.memory_space<vmem>>, vector<256x32xf32>
    %c7_104 = arith.constant 7 : index
    %c0_105 = arith.constant 0 : index
    %c0_106 = arith.constant 0 : index
    %143 = vector.load %arg4[%c7_104, %c0_105, %c0_106] : memref<9x32x32xf32, #tpu.memory_space<vmem>>, vector<1x32x32xf32>
    %144 = vector.shape_cast %143 : vector<1x32x32xf32> to vector<32x32xf32>
    %cst_107 = arith.constant dense<0.000000e+00> : vector<256x32xf32>
    %145 = tpu.matmul %142, %144, %cst_107 {dimension_numbers = #tpu.dot_dimension_numbers<[1], [0], [0], [1], [0, 0, 1, 1], [], []>} : vector<256x32xf32>, vector<32x32xf32>, vector<256x32xf32> -> vector<256x32xf32>
    %146 = arith.addf %141, %145 : vector<256x32xf32>
    %c41_108 = arith.constant 41 : index
    %c0_109 = arith.constant 0 : index
    %147 = vector.load %arg7[%c41_108, %c0_109] : memref<304x32xf32, #tpu.memory_space<vmem>>, vector<256x32xf32>
    %148 = vector.broadcast %24 : vector<256x1xf32> to vector<256x32xf32>
    %149 = arith.mulf %147, %148 : vector<256x32xf32>
    %c8_110 = arith.constant 8 : index
    %c0_111 = arith.constant 0 : index
    %c0_112 = arith.constant 0 : index
    %150 = vector.load %arg4[%c8_110, %c0_111, %c0_112] : memref<9x32x32xf32, #tpu.memory_space<vmem>>, vector<1x32x32xf32>
    %151 = vector.shape_cast %150 : vector<1x32x32xf32> to vector<32x32xf32>
    %cst_113 = arith.constant dense<0.000000e+00> : vector<256x32xf32>
    %152 = tpu.matmul %149, %151, %cst_113 {dimension_numbers = #tpu.dot_dimension_numbers<[1], [0], [0], [1], [0, 0, 1, 1], [], []>} : vector<256x32xf32>, vector<32x32xf32>, vector<256x32xf32> -> vector<256x32xf32>
    %153 = arith.addf %146, %152 : vector<256x32xf32>
    %c0_114 = arith.constant 0 : index
    %c0_115 = arith.constant 0 : index
    %154 = vector.load %arg5[%c0_114, %c0_115] : memref<1x32xf32, #tpu.memory_space<vmem>>, vector<1x32xf32>
    %155 = vector.broadcast %154 : vector<1x32xf32> to vector<256x32xf32>
    %156 = arith.addf %153, %155 : vector<256x32xf32>
    %c0_116 = arith.constant 0 : index
    %c0_117 = arith.constant 0 : index
    %157 = vector.load %arg1[%c0_116, %c0_117] : memref<256x32xf32, #tpu.memory_space<vmem>>, vector<256x32xf32>
    %158 = arith.addf %156, %157 : vector<256x32xf32>
    %cst_118 = arith.constant 0.000000e+00 : f32
    %159 = vector.broadcast %cst_118 : f32 to vector<256x32xf32>
    %160 = arith.maximumf %158, %159 : vector<256x32xf32>
    %c0_119 = arith.constant 0 : index
    %c0_120 = arith.constant 0 : index
    %161 = vector.load %arg6[%c0_119, %c0_120] : memref<256x32xf32, #tpu.memory_space<vmem>>, vector<256x32xf32>
    tpu.vector_store %arg6[%c0_119, %c0_120], %160 {strides = array<i32>} : memref<256x32xf32, #tpu.memory_space<vmem>>, vector<256x32xf32>,
    return
  }
  func.func @transform_0(%arg0: i32) -> (i32, i32) {
    %c0_i32 = arith.constant 0 : i32
    %c0_i32_0 = arith.constant 0 : i32
    return %arg0, %c0_i32 : i32, i32
  }
  func.func @transform_1(%arg0: i32) -> (i32, i32, i32) {
    %c0_i32 = arith.constant 0 : i32
    %c0_i32_0 = arith.constant 0 : i32
    %c0_i32_1 = arith.constant 0 : i32
    %c0_i32_2 = arith.constant 0 : i32
    return %c0_i32, %c0_i32_0, %c0_i32_1 : i32, i32, i32
  }
  func.func @transform_2(%arg0: i32) -> (i32, i32) {
    %c0_i32 = arith.constant 0 : i32
    %c0_i32_0 = arith.constant 0 : i32
    %c0_i32_1 = arith.constant 0 : i32
    return %c0_i32, %c0_i32_0 : i32, i32
  }
  func.func @transform_3(%arg0: i32) -> (i32, i32, i32) {
    %c0_i32 = arith.constant 0 : i32
    %c0_i32_0 = arith.constant 0 : i32
    %c0_i32_1 = arith.constant 0 : i32
    %c0_i32_2 = arith.constant 0 : i32
    return %c0_i32, %c0_i32_0, %c0_i32_1 : i32, i32, i32
  }
  func.func @transform_4(%arg0: i32) -> (i32, i32) {
    %c0_i32 = arith.constant 0 : i32
    %c0_i32_0 = arith.constant 0 : i32
    %c0_i32_1 = arith.constant 0 : i32
    return %c0_i32, %c0_i32_0 : i32, i32
  }
  func.func @transform_5(%arg0: i32) -> (i32, i32) {
    %c0_i32 = arith.constant 0 : i32
    %c0_i32_0 = arith.constant 0 : i32
    return %arg0, %c0_i32 : i32, i32
  }
}

</mosaic_0001>

<llo_original>
// kernel: tpu_custom_call.1
$region0: #{tpu_custom_call.1}
  #allocation0 [shape = 'u32[]', space=smem, size = 0x4, offset = 0x4, fixed_abs, tag = 'smem constant byte address 0x4 - core index']
  #allocation1 [shape = 'u32[144,128]{1,0:T(1,128)}', space=vmem, size = 0x12000, scoped, tag = 'internal scratch']
  #allocation2 [shape = 'f32[304,32]{1,0:T(8,128)}', space=vmem, size = 0x26000, scoped, tag = 'scratch operand']
  %s0 = inlined_call_operand.vmem [shape: f32[512,32], index: 0, kind: input, shape index: {}]
  %s1 = inlined_call_operand.vmem [shape: f32[9,32,32], index: 1, kind: input, shape index: {}]
  %s2 = inlined_call_operand.vmem [shape: f32[1,32], index: 2, kind: input, shape index: {}]
  %s3 = inlined_call_operand.vmem [shape: f32[9,32,32], index: 3, kind: input, shape index: {}]
  %s4 = inlined_call_operand.vmem [shape: f32[1,32], index: 4, kind: input, shape index: {}]
  %s5 = inlined_call_operand.vmem [shape: f32[512,32], index: 5, kind: output, shape index: {}]
  %s6 = sld [smem:[#allocation0]]
  $region53: #{tpu_custom_call.1} parent=0
    _
  %s8 = ssub.s32 1, %s6
  %s9 = scalar_select 0, %s8, %s6
  loop: start=0, step=1, limit=4
  $region2: #{tpu_custom_call.1} parent=0 // loop_pre_header
    _
  $region3: #{tpu_custom_call.1} parent=0 // loop_header
    %s11 = sphi 0, %s15
    %p12 = scmp.ge.s32.totalorder %s11, 4
    %s21 = sphi 0, %s23
    %s24 = sphi 0, %s21
    %s25 = sphi 0, %s24
    %s41 = sphi 0, %s25
    %s45 = sphi 0, %s45
    %s47 = sphi 0, %s45
    %s48 = sphi 0, %s47
    %s62 = sphi 0, %s48
    %s66 = sphi 0, %s66
    %s68 = sphi 0, %s66
    %s69 = sphi 0, %s68
    %s83 = sphi 0, %s69
    %s87 = sphi 0, %s87
    %s89 = sphi 0, %s87
    %s90 = sphi 0, %s89
    %s104 = sphi 0, %s90
    %s108 = sphi 0, %s108
    %s110 = sphi 0, %s108
    %s111 = sphi 0, %s110
    %s125 = sphi 0, %s111
    %s131 = sphi 0, %s133
    %s134 = sphi 0, %s131
    %s135 = sphi 0, %s134
    %s151 = sphi 0, %s135
  $region4: #{tpu_custom_call.1} parent=0 // loop_header_branch
    %14 = sbr.rel (%p12) target = $region8
  $region5: #{tpu_custom_call.1} parent=0 // loop_body
    %s16 = ssub.s32 %s11, 1
    %s17 = ssub.s32 %s11, 2
    %s18 = sadd.s32 %s11, 1
    %s19 = ssub.s32 %s11, %s18
    %p20 = scmp.eq.s32.totalorder %s19, 0
    %s22 = sadd.s32 %s21, 1
    %s23 = scalar_select %p20, %s21, %s22
    %p26 = pneg %p20
    %p27 = scmp.eq.s32.totalorder %s11, 1
    %p28 = por %p26, %p27
    %p29 = scmp.ne.s32.totalorder %s21, %s24
    %p30 = scmp.eq.s32.totalorder %s11, 0
    %p31 = por %p29, %p30
    %p32 = scmp.ne.s32.totalorder %s21, %s24
    %p33 = scmp.eq.s32.totalorder %s16, 1
    %p34 = por %p32, %p33
    %p35 = scmp.ne.s32.totalorder %s24, %s25
    %p36 = scmp.eq.s32.totalorder %s16, 0
    %p37 = por %p35, %p36
    %p38 = scmp.ne.s32.totalorder %s24, %s25
    %p39 = scmp.eq.s32.totalorder %s17, 1
    %p40 = por %p38, %p39
    %p42 = scmp.ne.s32.totalorder %s25, %s41
    %p43 = scmp.eq.s32.totalorder %s17, 0
    %p44 = por %p42, %p43
    %s46 = sadd.s32 %s45, 1
    %p49 = scmp.eq.s32.totalorder %s11, 1
    %p50 = scmp.ne.s32.totalorder %s45, %s47
    %p51 = scmp.eq.s32.totalorder %s11, 0
    %p52 = por %p50, %p51
    %p53 = scmp.ne.s32.totalorder %s45, %s47
    %p54 = scmp.eq.s32.totalorder %s16, 1
    %p55 = por %p53, %p54
    %p56 = scmp.ne.s32.totalorder %s47, %s48
    %p57 = scmp.eq.s32.totalorder %s16, 0
    %p58 = por %p56, %p57
    %p59 = scmp.ne.s32.totalorder %s47, %s48
    %p60 = scmp.eq.s32.totalorder %s17, 1
    %p61 = por %p59, %p60
    %p63 = scmp.ne.s32.totalorder %s48, %s62
    %p64 = scmp.eq.s32.totalorder %s17, 0
    %p65 = por %p63, %p64
    %s67 = sadd.s32 %s66, 1
    %p70 = scmp.eq.s32.totalorder %s11, 1
    %p71 = scmp.ne.s32.totalorder %s66, %s68
    %p72 = scmp.eq.s32.totalorder %s11, 0
    %p73 = por %p71, %p72
    %p74 = scmp.ne.s32.totalorder %s66, %s68
    %p75 = scmp.eq.s32.totalorder %s16, 1
    %p76 = por %p74, %p75
    %p77 = scmp.ne.s32.totalorder %s68, %s69
    %p78 = scmp.eq.s32.totalorder %s16, 0
    %p79 = por %p77, %p78
    %p80 = scmp.ne.s32.totalorder %s68, %s69
    %p81 = scmp.eq.s32.totalorder %s17, 1
    %p82 = por %p80, %p81
    %p84 = scmp.ne.s32.totalorder %s69, %s83
    %p85 = scmp.eq.s32.totalorder %s17, 0
    %p86 = por %p84, %p85
    %s88 = sadd.s32 %s87, 1
    %p91 = scmp.eq.s32.totalorder %s11, 1
    %p92 = scmp.ne.s32.totalorder %s87, %s89
    %p93 = scmp.eq.s32.totalorder %s11, 0
    %p94 = por %p92, %p93
    %p95 = scmp.ne.s32.totalorder %s87, %s89
    %p96 = scmp.eq.s32.totalorder %s16, 1
    %p97 = por %p95, %p96
    %p98 = scmp.ne.s32.totalorder %s89, %s90
    %p99 = scmp.eq.s32.totalorder %s16, 0
    %p100 = por %p98, %p99
    %p101 = scmp.ne.s32.totalorder %s89, %s90
    %p102 = scmp.eq.s32.totalorder %s17, 1
    %p103 = por %p101, %p102
    %p105 = scmp.ne.s32.totalorder %s90, %s104
    %p106 = scmp.eq.s32.totalorder %s17, 0
    %p107 = por %p105, %p106
    %s109 = sadd.s32 %s108, 1
    %p112 = scmp.eq.s32.totalorder %s11, 1
    %p113 = scmp.ne.s32.totalorder %s108, %s110
    %p114 = scmp.eq.s32.totalorder %s11, 0
    %p115 = por %p113, %p114
    %p116 = scmp.ne.s32.totalorder %s108, %s110
    %p117 = scmp.eq.s32.totalorder %s16, 1
    %p118 = por %p116, %p117
    %p119 = scmp.ne.s32.totalorder %s110, %s111
    %p120 = scmp.eq.s32.totalorder %s16, 0
    %p121 = por %p119, %p120
    %p122 = scmp.ne.s32.totalorder %s110, %s111
    %p123 = scmp.eq.s32.totalorder %s17, 1
    %p124 = por %p122, %p123
    %p126 = scmp.ne.s32.totalorder %s111, %s125
    %p127 = scmp.eq.s32.totalorder %s17, 0
    %p128 = por %p126, %p127
    %s129 = ssub.s32 %s11, %s18
    %p130 = scmp.eq.s32.totalorder %s129, 0
    %s132 = sadd.s32 %s131, 1
    %s133 = scalar_select %p130, %s131, %s132
    %p136 = pneg %p130
    %p137 = scmp.eq.s32.totalorder %s11, 1
    %p138 = por %p136, %p137
    %p139 = scmp.ne.s32.totalorder %s131, %s134
    %p140 = scmp.eq.s32.totalorder %s11, 0
    %p141 = por %p139, %p140
    %p142 = scmp.ne.s32.totalorder %s131, %s134
    %p143 = scmp.eq.s32.totalorder %s16, 1
    %p144 = por %p142, %p143
    %p145 = scmp.ne.s32.totalorder %s134, %s135
    %p146 = scmp.eq.s32.totalorder %s16, 0
    %p147 = por %p145, %p146
    %p148 = scmp.ne.s32.totalorder %s134, %s135
    %p149 = scmp.eq.s32.totalorder %s17, 1
    %p150 = por %p148, %p149
    %p152 = scmp.ne.s32.totalorder %s135, %s151
    %p153 = scmp.eq.s32.totalorder %s17, 0
    %p154 = por %p152, %p153
    %p155 = scmp.le.s32.totalorder 1, %s11
    %p156 = scmp.lt.s32.totalorder %s11, 3
    %p157 = pnand %p155, %p156
    %p158 = pneg %p157
    // Predicated region
    $region9: #{tpu_custom_call.1} parent=5 // pred_check
      _
    $region10: #{tpu_custom_call.1} parent=5 // pred_check_branch
      %160 = sbr.rel (%p157) target = $region12
    $region11: #{tpu_custom_call.1} parent=5 // pred_region
      %s161 = ssub.s32 %s11, 1
      // Predicated region
      $region13: #{tpu_custom_call.1} parent=11 // pred_check
        %p162 = pneg %p58
      $region14: #{tpu_custom_call.1} parent=11 // pred_check_branch
        %164 = sbr.rel (%p162) target = $region16
      $region15: #{tpu_custom_call.1} parent=11 // pred_region
        _
      $region16: #{tpu_custom_call.1} parent=11 // pred_fallthru
        _
      // Predicated region
      $region17: #{tpu_custom_call.1} parent=11 // pred_check
        %p165 = pneg %p79
      $region18: #{tpu_custom_call.1} parent=11 // pred_check_branch
        %167 = sbr.rel (%p165) target = $region20
      $region19: #{tpu_custom_call.1} parent=11 // pred_region
        _
      $region20: #{tpu_custom_call.1} parent=11 // pred_fallthru
        _
      // Predicated region
      $region21: #{tpu_custom_call.1} parent=11 // pred_check
        %p168 = pneg %p100
      $region22: #{tpu_custom_call.1} parent=11 // pred_check_branch
        %170 = sbr.rel (%p168) target = $region24
      $region23: #{tpu_custom_call.1} parent=11 // pred_region
        _
      $region24: #{tpu_custom_call.1} parent=11 // pred_fallthru
        _
      // Predicated region
      $region25: #{tpu_custom_call.1} parent=11 // pred_check
        %p171 = pneg %p121
      $region26: #{tpu_custom_call.1} parent=11 // pred_check_branch
        %173 = sbr.rel (%p171) target = $region28
      $region27: #{tpu_custom_call.1} parent=11 // pred_region
        _
      $region28: #{tpu_custom_call.1} parent=11 // pred_fallthru
        _
    $region12: #{tpu_custom_call.1} parent=5 // pred_fallthru
      _
    %p174 = scmp.lt.s32.totalorder %s11, 2
    // Predicated region
    $region29: #{tpu_custom_call.1} parent=5 // pred_check
      %p175 = pneg %p174
    $region30: #{tpu_custom_call.1} parent=5 // pred_check_branch
      %177 = sbr.rel (%p175) target = $region32
    $region31: #{tpu_custom_call.1} parent=5 // pred_region
      // Predicated region
      $region33: #{tpu_custom_call.1} parent=31 // pred_check
        %p178 = pneg %p31
      $region34: #{tpu_custom_call.1} parent=31 // pred_check_branch
        %180 = sbr.rel (%p178) target = $region36
      $region35: #{tpu_custom_call.1} parent=31 // pred_region
        %s181 = smul.u32 32, %s11
        %p182 = scmp.lt.s32.totalorder %s181, 63
        %s183 = scalar_select %p182, %s181, 63
        %s184 = smul.addr %s183, 8
        %s185 = scalar_lea.vmem %s0, %s184
        %s186 = smul.u32 32, %s11
      $region36: #{tpu_custom_call.1} parent=31 // pred_fallthru
        _
    $region32: #{tpu_custom_call.1} parent=5 // pred_fallthru
      _
    %p187 = scmp.le.s32.totalorder 1, %s11
    %p188 = scmp.lt.s32.totalorder %s11, 3
    %p189 = pnand %p187, %p188
    %p190 = pneg %p189
    // Predicated region
    $region37: #{tpu_custom_call.1} parent=5 // pred_check
      _
    $region38: #{tpu_custom_call.1} parent=5 // pred_check_branch
      %192 = sbr.rel (%p189) target = $region40
    $region39: #{tpu_custom_call.1} parent=5 // pred_region
      %s193 = ssub.s32 %s11, 1
      %s194 = smul.u32 32, %s16
      %p195 = scmp.lt.s32.totalorder %s194, 63
      %s196 = scalar_select %p195, %s194, 63
      %s197 = smul.addr %s196, 8
      %s198 = scalar_lea.vmem %s0, %s197
      %p199 = pneg %p37
      %p200 = pneg %p34
      %p201 = pneg %p58
      %p202 = pneg %p55
      %p203 = pneg %p79
      %p204 = pneg %p76
      %p205 = pneg %p100
      %p206 = pneg %p97
      %p207 = pneg %p121
      %p208 = pneg %p118
      %p209 = pneg %p147
      %p210 = pneg %p144
      %s211 = smul.u32 32, %s16
      %p212 = scmp.lt.s32.totalorder %s211, 63
      %s213 = scalar_select %p212, %s211, 63
      %s214 = smul.addr %s213, 8
      %s215 = scalar_lea.vmem %s5, %s214
      %s216 = smul.u32 32, %s16
      %p217 = scmp.lt.s32.totalorder %s216, 63
      %s218 = scalar_select %p217, %s216, 63
      %s219 = smul.addr %s218, 8
      %s220 = scalar_lea.vmem %s0, %s219
      %s221 = smul.u32 32, %s16
      %s222 = smul.u32 32, %s16
      %p223 = scmp.lt.s32.totalorder %s222, 63
      %s224 = scalar_select %p223, %s222, 63
      %s225 = smul.addr %s224, 8
      %s226 = scalar_lea.vmem %s5, %s225
      %s227 = smul.u32 32, %s16
      %v228 = vlaneseq
      %v229 = vshrl.u32 %v228, 7
      %v230 = vadd.s32 %v229, 8
      %v231 = vadd.s32 %v229, 16
      %v232 = vadd.s32 %v229, 24
      %v233 = vadd.s32 %v229, 32
      %v234 = vadd.s32 %v229, 40
      %v235 = vadd.s32 %v229, 48
      %v236 = vadd.s32 %v229, 56
      %v237 = vadd.s32 %v229, 64
      %v238 = vadd.s32 %v229, 72
      %v239 = vadd.s32 %v229, 80
      %v240 = vadd.s32 %v229, 88
      %v241 = vadd.s32 %v229, 96
      %v242 = vadd.s32 %v229, 104
      %v243 = vadd.s32 %v229, 112
      %v244 = vadd.s32 %v229, 120
      %v245 = vadd.s32 %v229, 128
      %v246 = vadd.s32 %v229, 136
      %v247 = vadd.s32 %v229, 144
      %v248 = vadd.s32 %v229, 152
      %v249 = vadd.s32 %v229, 160
      %v250 = vadd.s32 %v229, 168
      %v251 = vadd.s32 %v229, 176
      %v252 = vadd.s32 %v229, 184
      %v253 = vadd.s32 %v229, 192
      %v254 = vadd.s32 %v229, 200
      %v255 = vadd.s32 %v229, 208
      %v256 = vadd.s32 %v229, 216
      %v257 = vadd.s32 %v229, 224
      %v258 = vadd.s32 %v229, 232
      %v259 = vadd.s32 %v229, 240
      %v260 = vadd.s32 %v229, 248
      %vm261 = vcmp.lt.s32.totalorder %v229, 0
      %v262 = vsub.s32 0, %v229
      %v263 = vsel %vm261, %v262, %v229
      %v264 = vshrl.u32 %v263, 4
      %v265 = vand.u32 %v263, 15
      %v266 = vsub.s32 0, %v265
      %v267 = vsel %vm261, %v266, %v265
      %vm268 = vcmp.lt.s32.totalorder %v230, 0
      %v269 = vsub.s32 0, %v230
      %v270 = vsel %vm268, %v269, %v230
      %v271 = vshrl.u32 %v270, 4
      %v272 = vand.u32 %v270, 15
      %v273 = vsub.s32 0, %v272
      %v274 = vsel %vm268, %v273, %v272
      %vm275 = vcmp.lt.s32.totalorder %v231, 0
      %v276 = vsub.s32 0, %v231
      %v277 = vsel %vm275, %v276, %v231
      %v278 = vshrl.u32 %v277, 4
      %v279 = vand.u32 %v277, 15
      %v280 = vsub.s32 0, %v279
      %v281 = vsel %vm275, %v280, %v279
      %vm282 = vcmp.lt.s32.totalorder %v232, 0
      %v283 = vsub.s32 0, %v232
      %v284 = vsel %vm282, %v283, %v232
      %v285 = vshrl.u32 %v284, 4
      %v286 = vand.u32 %v284, 15
      %v287 = vsub.s32 0, %v286
      %v288 = vsel %vm282, %v287, %v286
      %vm289 = vcmp.lt.s32.totalorder %v233, 0
      %v290 = vsub.s32 0, %v233
      %v291 = vsel %vm289, %v290, %v233
      %v292 = vshrl.u32 %v291, 4
      %v293 = vand.u32 %v291, 15
      %v294 = vsub.s32 0, %v293
      %v295 = vsel %vm289, %v294, %v293
      %vm296 = vcmp.lt.s32.totalorder %v234, 0
      %v297 = vsub.s32 0, %v234
      %v298 = vsel %vm296, %v297, %v234
      %v299 = vshrl.u32 %v298, 4
      %v300 = vand.u32 %v298, 15
      %v301 = vsub.s32 0, %v300
      %v302 = vsel %vm296, %v301, %v300
      %vm303 = vcmp.lt.s32.totalorder %v235, 0
      %v304 = vsub.s32 0, %v235
      %v305 = vsel %vm303, %v304, %v235
      %v306 = vshrl.u32 %v305, 4
      %v307 = vand.u32 %v305, 15
      %v308 = vsub.s32 0, %v307
      %v309 = vsel %vm303, %v308, %v307
      %vm310 = vcmp.lt.s32.totalorder %v236, 0
      %v311 = vsub.s32 0, %v236
      %v312 = vsel %vm310, %v311, %v236
      %v313 = vshrl.u32 %v312, 4
      %v314 = vand.u32 %v312, 15
      %v315 = vsub.s32 0, %v314
      %v316 = vsel %vm310, %v315, %v314
      %vm317 = vcmp.lt.s32.totalorder %v237, 0
      %v318 = vsub.s32 0, %v237
      %v319 = vsel %vm317, %v318, %v237
      %v320 = vshrl.u32 %v319, 4
      %v321 = vand.u32 %v319, 15
      %v322 = vsub.s32 0, %v321
      %v323 = vsel %vm317, %v322, %v321
      %vm324 = vcmp.lt.s32.totalorder %v238, 0
      %v325 = vsub.s32 0, %v238
      %v326 = vsel %vm324, %v325, %v238
      %v327 = vshrl.u32 %v326, 4
      %v328 = vand.u32 %v326, 15
      %v329 = vsub.s32 0, %v328
      %v330 = vsel %vm324, %v329, %v328
      %vm331 = vcmp.lt.s32.totalorder %v239, 0
      %v332 = vsub.s32 0, %v239
      %v333 = vsel %vm331, %v332, %v239
      %v334 = vshrl.u32 %v333, 4
      %v335 = vand.u32 %v333, 15
      %v336 = vsub.s32 0, %v335
      %v337 = vsel %vm331, %v336, %v335
      %vm338 = vcmp.lt.s32.totalorder %v240, 0
      %v339 = vsub.s32 0, %v240
      %v340 = vsel %vm338, %v339, %v240
      %v341 = vshrl.u32 %v340, 4
      %v342 = vand.u32 %v340, 15
      %v343 = vsub.s32 0, %v342
      %v344 = vsel %vm338, %v343, %v342
      %vm345 = vcmp.lt.s32.totalorder %v241, 0
      %v346 = vsub.s32 0, %v241
      %v347 = vsel %vm345, %v346, %v241
      %v348 = vshrl.u32 %v347, 4
      %v349 = vand.u32 %v347, 15
      %v350 = vsub.s32 0, %v349
      %v351 = vsel %vm345, %v350, %v349
      %vm352 = vcmp.lt.s32.totalorder %v242, 0
      %v353 = vsub.s32 0, %v242
      %v354 = vsel %vm352, %v353, %v242
      %v355 = vshrl.u32 %v354, 4
      %v356 = vand.u32 %v354, 15
      %v357 = vsub.s32 0, %v356
      %v358 = vsel %vm352, %v357, %v356
      %vm359 = vcmp.lt.s32.totalorder %v243, 0
      %v360 = vsub.s32 0, %v243
      %v361 = vsel %vm359, %v360, %v243
      %v362 = vshrl.u32 %v361, 4
      %v363 = vand.u32 %v361, 15
      %v364 = vsub.s32 0, %v363
      %v365 = vsel %vm359, %v364, %v363
      %vm366 = vcmp.lt.s32.totalorder %v244, 0
      %v367 = vsub.s32 0, %v244
      %v368 = vsel %vm366, %v367, %v244
      %v369 = vshrl.u32 %v368, 4
      %v370 = vand.u32 %v368, 15
      %v371 = vsub.s32 0, %v370
      %v372 = vsel %vm366, %v371, %v370
      %vm373 = vcmp.lt.s32.totalorder %v245, 0
      %v374 = vsub.s32 0, %v245
      %v375 = vsel %vm373, %v374, %v245
      %v376 = vshrl.u32 %v375, 4
      %v377 = vand.u32 %v375, 15
      %v378 = vsub.s32 0, %v377
      %v379 = vsel %vm373, %v378, %v377
      %vm380 = vcmp.lt.s32.totalorder %v246, 0
      %v381 = vsub.s32 0, %v246
      %v382 = vsel %vm380, %v381, %v246
      %v383 = vshrl.u32 %v382, 4
      %v384 = vand.u32 %v382, 15
      %v385 = vsub.s32 0, %v384
      %v386 = vsel %vm380, %v385, %v384
      %vm387 = vcmp.lt.s32.totalorder %v247, 0
      %v388 = vsub.s32 0, %v247
      %v389 = vsel %vm387, %v388, %v247
      %v390 = vshrl.u32 %v389, 4
      %v391 = vand.u32 %v389, 15
      %v392 = vsub.s32 0, %v391
      %v393 = vsel %vm387, %v392, %v391
      %vm394 = vcmp.lt.s32.totalorder %v248, 0
      %v395 = vsub.s32 0, %v248
      %v396 = vsel %vm394, %v395, %v248
      %v397 = vshrl.u32 %v396, 4
      %v398 = vand.u32 %v396, 15
      %v399 = vsub.s32 0, %v398
      %v400 = vsel %vm394, %v399, %v398
      %vm401 = vcmp.lt.s32.totalorder %v249, 0
      %v402 = vsub.s32 0, %v249
      %v403 = vsel %vm401, %v402, %v249
      %v404 = vshrl.u32 %v403, 4
      %v405 = vand.u32 %v403, 15
      %v406 = vsub.s32 0, %v405
      %v407 = vsel %vm401, %v406, %v405
      %vm408 = vcmp.lt.s32.totalorder %v250, 0
      %v409 = vsub.s32 0, %v250
      %v410 = vsel %vm408, %v409, %v250
      %v411 = vshrl.u32 %v410, 4
      %v412 = vand.u32 %v410, 15
      %v413 = vsub.s32 0, %v412
      %v414 = vsel %vm408, %v413, %v412
      %vm415 = vcmp.lt.s32.totalorder %v251, 0
      %v416 = vsub.s32 0, %v251
      %v417 = vsel %vm415, %v416, %v251
      %v418 = vshrl.u32 %v417, 4
      %v419 = vand.u32 %v417, 15
      %v420 = vsub.s32 0, %v419
      %v421 = vsel %vm415, %v420, %v419
      %vm422 = vcmp.lt.s32.totalorder %v252, 0
      %v423 = vsub.s32 0, %v252
      %v424 = vsel %vm422, %v423, %v252
      %v425 = vshrl.u32 %v424, 4
      %v426 = vand.u32 %v424, 15
      %v427 = vsub.s32 0, %v426
      %v428 = vsel %vm422, %v427, %v426
      %vm429 = vcmp.lt.s32.totalorder %v253, 0
      %v430 = vsub.s32 0, %v253
      %v431 = vsel %vm429, %v430, %v253
      %v432 = vshrl.u32 %v431, 4
      %v433 = vand.u32 %v431, 15
      %v434 = vsub.s32 0, %v433
      %v435 = vsel %vm429, %v434, %v433
      %vm436 = vcmp.lt.s32.totalorder %v254, 0
      %v437 = vsub.s32 0, %v254
      %v438 = vsel %vm436, %v437, %v254
      %v439 = vshrl.u32 %v438, 4
      %v440 = vand.u32 %v438, 15
      %v441 = vsub.s32 0, %v440
      %v442 = vsel %vm436, %v441, %v440
      %vm443 = vcmp.lt.s32.totalorder %v255, 0
      %v444 = vsub.s32 0, %v255
      %v445 = vsel %vm443, %v444, %v255
      %v446 = vshrl.u32 %v445, 4
      %v447 = vand.u32 %v445, 15
      %v448 = vsub.s32 0, %v447
      %v449 = vsel %vm443, %v448, %v447
      %vm450 = vcmp.lt.s32.totalorder %v256, 0
      %v451 = vsub.s32 0, %v256
      %v452 = vsel %vm450, %v451, %v256
      %v453 = vshrl.u32 %v452, 4
      %v454 = vand.u32 %v452, 15
      %v455 = vsub.s32 0, %v454
      %v456 = vsel %vm450, %v455, %v454
      %vm457 = vcmp.lt.s32.totalorder %v257, 0
      %v458 = vsub.s32 0, %v257
      %v459 = vsel %vm457, %v458, %v257
      %v460 = vshrl.u32 %v459, 4
      %v461 = vand.u32 %v459, 15
      %v462 = vsub.s32 0, %v461
      %v463 = vsel %vm457, %v462, %v461
      %vm464 = vcmp.lt.s32.totalorder %v258, 0
      %v465 = vsub.s32 0, %v258
      %v466 = vsel %vm464, %v465, %v258
      %v467 = vshrl.u32 %v466, 4
      %v468 = vand.u32 %v466, 15
      %v469 = vsub.s32 0, %v468
      %v470 = vsel %vm464, %v469, %v468
      %vm471 = vcmp.lt.s32.totalorder %v259, 0
      %v472 = vsub.s32 0, %v259
      %v473 = vsel %vm471, %v472, %v259
      %v474 = vshrl.u32 %v473, 4
      %v475 = vand.u32 %v473, 15
      %v476 = vsub.s32 0, %v475
      %v477 = vsel %vm471, %v476, %v475
      %vm478 = vcmp.lt.s32.totalorder %v260, 0
      %v479 = vsub.s32 0, %v260
      %v480 = vsel %vm478, %v479, %v260
      %v481 = vshrl.u32 %v480, 4
      %v482 = vand.u32 %v480, 15
      %v483 = vsub.s32 0, %v482
      %v484 = vsel %vm478, %v483, %v482
      %vm485 = vcmp.ne.s32.totalorder %v267, 0
      %vm486 = vcmp.ne.s32.totalorder %v274, 0
      %vm487 = vcmp.ne.s32.totalorder %v281, 0
      %vm488 = vcmp.ne.s32.totalorder %v288, 0
      %vm489 = vcmp.ne.s32.totalorder %v295, 0
      %vm490 = vcmp.ne.s32.totalorder %v302, 0
      %vm491 = vcmp.ne.s32.totalorder %v309, 0
      %vm492 = vcmp.ne.s32.totalorder %v316, 0
      %vm493 = vcmp.ne.s32.totalorder %v323, 0
      %vm494 = vcmp.ne.s32.totalorder %v330, 0
      %vm495 = vcmp.ne.s32.totalorder %v337, 0
      %vm496 = vcmp.ne.s32.totalorder %v344, 0
      %vm497 = vcmp.ne.s32.totalorder %v351, 0
      %vm498 = vcmp.ne.s32.totalorder %v358, 0
      %vm499 = vcmp.ne.s32.totalorder %v365, 0
      %vm500 = vcmp.ne.s32.totalorder %v372, 0
      %vm501 = vcmp.ne.s32.totalorder %v379, 0
      %vm502 = vcmp.ne.s32.totalorder %v386, 0
      %vm503 = vcmp.ne.s32.totalorder %v393, 0
      %vm504 = vcmp.ne.s32.totalorder %v400, 0
      %vm505 = vcmp.ne.s32.totalorder %v407, 0
      %vm506 = vcmp.ne.s32.totalorder %v414, 0
      %vm507 = vcmp.ne.s32.totalorder %v421, 0
      %vm508 = vcmp.ne.s32.totalorder %v428, 0
      %vm509 = vcmp.ne.s32.totalorder %v435, 0
      %vm510 = vcmp.ne.s32.totalorder %v442, 0
      %vm511 = vcmp.ne.s32.totalorder %v449, 0
      %vm512 = vcmp.ne.s32.totalorder %v456, 0
      %vm513 = vcmp.ne.s32.totalorder %v463, 0
      %vm514 = vcmp.ne.s32.totalorder %v470, 0
      %vm515 = vcmp.ne.s32.totalorder %v477, 0
      %vm516 = vcmp.ne.s32.totalorder %v484, 0
      %vm517 = vcmp.lt.s32.totalorder %v267, 0
      %vm518 = vcmp.lt.s32.totalorder %v274, 0
      %vm519 = vcmp.lt.s32.totalorder %v281, 0
      %vm520 = vcmp.lt.s32.totalorder %v288, 0
      %vm521 = vcmp.lt.s32.totalorder %v295, 0
      %vm522 = vcmp.lt.s32.totalorder %v302, 0
      %vm523 = vcmp.lt.s32.totalorder %v309, 0
      %vm524 = vcmp.lt.s32.totalorder %v316, 0
      %vm525 = vcmp.lt.s32.totalorder %v323, 0
      %vm526 = vcmp.lt.s32.totalorder %v330, 0
      %vm527 = vcmp.lt.s32.totalorder %v337, 0
      %vm528 = vcmp.lt.s32.totalorder %v344, 0
      %vm529 = vcmp.lt.s32.totalorder %v351, 0
      %vm530 = vcmp.lt.s32.totalorder %v358, 0
      %vm531 = vcmp.lt.s32.totalorder %v365, 0
      %vm532 = vcmp.lt.s32.totalorder %v372, 0
      %vm533 = vcmp.lt.s32.totalorder %v379, 0
      %vm534 = vcmp.lt.s32.totalorder %v386, 0
      %vm535 = vcmp.lt.s32.totalorder %v393, 0
      %vm536 = vcmp.lt.s32.totalorder %v400, 0
      %vm537 = vcmp.lt.s32.totalorder %v407, 0
      %vm538 = vcmp.lt.s32.totalorder %v414, 0
      %vm539 = vcmp.lt.s32.totalorder %v421, 0
      %vm540 = vcmp.lt.s32.totalorder %v428, 0
      %vm541 = vcmp.lt.s32.totalorder %v435, 0
      %vm542 = vcmp.lt.s32.totalorder %v442, 0
      %vm543 = vcmp.lt.s32.totalorder %v449, 0
      %vm544 = vcmp.lt.s32.totalorder %v456, 0
      %vm545 = vcmp.lt.s32.totalorder %v463, 0
      %vm546 = vcmp.lt.s32.totalorder %v470, 0
      %vm547 = vcmp.lt.s32.totalorder %v477, 0
      %vm548 = vcmp.lt.s32.totalorder %v484, 0
      %vm549 = vmand %vm517, %vm485
      %vm550 = vmand %vm518, %vm486
      %vm551 = vmand %vm519, %vm487
      %vm552 = vmand %vm520, %vm488
      %vm553 = vmand %vm521, %vm489
      %vm554 = vmand %vm522, %vm490
      %vm555 = vmand %vm523, %vm491
      %vm556 = vmand %vm524, %vm492
      %vm557 = vmand %vm525, %vm493
      %vm558 = vmand %vm526, %vm494
      %vm559 = vmand %vm527, %vm495
      %vm560 = vmand %vm528, %vm496
      %vm561 = vmand %vm529, %vm497
      %vm562 = vmand %vm530, %vm498
      %vm563 = vmand %vm531, %vm499
      %vm564 = vmand %vm532, %vm500
      %vm565 = vmand %vm533, %vm501
      %vm566 = vmand %vm534, %vm502
      %vm567 = vmand %vm535, %vm503
      %vm568 = vmand %vm536, %vm504
      %vm569 = vmand %vm537, %vm505
      %vm570 = vmand %vm538, %vm506
      %vm571 = vmand %vm539, %vm507
      %vm572 = vmand %vm540, %vm508
      %vm573 = vmand %vm541, %vm509
      %vm574 = vmand %vm542, %vm510
      %vm575 = vmand %vm543, %vm511
      %vm576 = vmand %vm544, %vm512
      %vm577 = vmand %vm545, %vm513
      %vm578 = vmand %vm546, %vm514
      %vm579 = vmand %vm547, %vm515
      %vm580 = vmand %vm548, %vm516
      %v581 = vadd.s32 %v267, 16
      %v582 = vadd.s32 %v274, 16
      %v583 = vadd.s32 %v281, 16
      %v584 = vadd.s32 %v288, 16
      %v585 = vadd.s32 %v295, 16
      %v586 = vadd.s32 %v302, 16
      %v587 = vadd.s32 %v309, 16
      %v588 = vadd.s32 %v316, 16
      %v589 = vadd.s32 %v323, 16
      %v590 = vadd.s32 %v330, 16
      %v591 = vadd.s32 %v337, 16
      %v592 = vadd.s32 %v344, 16
      %v593 = vadd.s32 %v351, 16
      %v594 = vadd.s32 %v358, 16
      %v595 = vadd.s32 %v365, 16
      %v596 = vadd.s32 %v372, 16
      %v597 = vadd.s32 %v379, 16
      %v598 = vadd.s32 %v386, 16
      %v599 = vadd.s32 %v393, 16
      %v600 = vadd.s32 %v400, 16
      %v601 = vadd.s32 %v407, 16
      %v602 = vadd.s32 %v414, 16
      %v603 = vadd.s32 %v421, 16
      %v604 = vadd.s32 %v428, 16
      %v605 = vadd.s32 %v435, 16
      %v606 = vadd.s32 %v442, 16
      %v607 = vadd.s32 %v449, 16
      %v608 = vadd.s32 %v456, 16
      %v609 = vadd.s32 %v463, 16
      %v610 = vadd.s32 %v470, 16
      %v611 = vadd.s32 %v477, 16
      %v612 = vadd.s32 %v484, 16
      %v613 = vsel %vm549, %v581, %v267
      %v614 = vsel %vm550, %v582, %v274
      %v615 = vsel %vm551, %v583, %v281
      %v616 = vsel %vm552, %v584, %v288
      %v617 = vsel %vm553, %v585, %v295
      %v618 = vsel %vm554, %v586, %v302
      %v619 = vsel %vm555, %v587, %v309
      %v620 = vsel %vm556, %v588, %v316
      %v621 = vsel %vm557, %v589, %v323
      %v622 = vsel %vm558, %v590, %v330
      %v623 = vsel %vm559, %v591, %v337
      %v624 = vsel %vm560, %v592, %v344
      %v625 = vsel %vm561, %v593, %v351
      %v626 = vsel %vm562, %v594, %v358
      %v627 = vsel %vm563, %v595, %v365
      %v628 = vsel %vm564, %v596, %v372
      %v629 = vsel %vm565, %v597, %v379
      %v630 = vsel %vm566, %v598, %v386
      %v631 = vsel %vm567, %v599, %v393
      %v632 = vsel %vm568, %v600, %v400
      %v633 = vsel %vm569, %v601, %v407
      %v634 = vsel %vm570, %v602, %v414
      %v635 = vsel %vm571, %v603, %v421
      %v636 = vsel %vm572, %v604, %v428
      %v637 = vsel %vm573, %v605, %v435
      %v638 = vsel %vm574, %v606, %v442
      %v639 = vsel %vm575, %v607, %v449
      %v640 = vsel %vm576, %v608, %v456
      %v641 = vsel %vm577, %v609, %v463
      %v642 = vsel %vm578, %v610, %v470
      %v643 = vsel %vm579, %v611, %v477
      %v644 = vsel %vm580, %v612, %v484
      %vm645 = vcmp.gt.s32.totalorder %v613, 0
      %vm646 = vcmp.gt.s32.totalorder %v614, 0
      %vm647 = vcmp.gt.s32.totalorder %v615, 0
      %vm648 = vcmp.gt.s32.totalorder %v616, 0
      %vm649 = vcmp.gt.s32.totalorder %v617, 0
      %vm650 = vcmp.gt.s32.totalorder %v618, 0
      %vm651 = vcmp.gt.s32.totalorder %v619, 0
      %vm652 = vcmp.gt.s32.totalorder %v620, 0
      %vm653 = vcmp.gt.s32.totalorder %v621, 0
      %vm654 = vcmp.gt.s32.totalorder %v622, 0
      %vm655 = vcmp.gt.s32.totalorder %v623, 0
      %vm656 = vcmp.gt.s32.totalorder %v624, 0
      %vm657 = vcmp.gt.s32.totalorder %v625, 0
      %vm658 = vcmp.gt.s32.totalorder %v626, 0
      %vm659 = vcmp.gt.s32.totalorder %v627, 0
      %vm660 = vcmp.gt.s32.totalorder %v628, 0
      %vm661 = vcmp.gt.s32.totalorder %v629, 0
      %vm662 = vcmp.gt.s32.totalorder %v630, 0
      %vm663 = vcmp.gt.s32.totalorder %v631, 0
      %vm664 = vcmp.gt.s32.totalorder %v632, 0
      %vm665 = vcmp.gt.s32.totalorder %v633, 0
      %vm666 = vcmp.gt.s32.totalorder %v634, 0
      %vm667 = vcmp.gt.s32.totalorder %v635, 0
      %vm668 = vcmp.gt.s32.totalorder %v636, 0
      %vm669 = vcmp.gt.s32.totalorder %v637, 0
      %vm670 = vcmp.gt.s32.totalorder %v638, 0
      %vm671 = vcmp.gt.s32.totalorder %v639, 0
      %vm672 = vcmp.gt.s32.totalorder %v640, 0
      %vm673 = vcmp.gt.s32.totalorder %v641, 0
      %vm674 = vcmp.gt.s32.totalorder %v642, 0
      %vm675 = vcmp.gt.s32.totalorder %v643, 0
      %vm676 = vcmp.gt.s32.totalorder %v644, 0
      %v677 = vsel %vm645, 1, 0
      %v678 = vsel %vm646, 1, 0
      %v679 = vsel %vm647, 1, 0
      %v680 = vsel %vm648, 1, 0
      %v681 = vsel %vm649, 1, 0
      %v682 = vsel %vm650, 1, 0
      %v683 = vsel %vm651, 1, 0
      %v684 = vsel %vm652, 1, 0
      %v685 = vsel %vm653, 1, 0
      %v686 = vsel %vm654, 1, 0
      %v687 = vsel %vm655, 1, 0
      %v688 = vsel %vm656, 1, 0
      %v689 = vsel %vm657, 1, 0
      %v690 = vsel %vm658, 1, 0
      %v691 = vsel %vm659, 1, 0
      %v692 = vsel %vm660, 1, 0
      %v693 = vsel %vm661, 1, 0
      %v694 = vsel %vm662, 1, 0
      %v695 = vsel %vm663, 1, 0
      %v696 = vsel %vm664, 1, 0
      %v697 = vsel %vm665, 1, 0
      %v698 = vsel %vm666, 1, 0
      %v699 = vsel %vm667, 1, 0
      %v700 = vsel %vm668, 1, 0
      %v701 = vsel %vm669, 1, 0
      %v702 = vsel %vm670, 1, 0
      %v703 = vsel %vm671, 1, 0
      %v704 = vsel %vm672, 1, 0
      %v705 = vsel %vm673, 1, 0
      %v706 = vsel %vm674, 1, 0
      %v707 = vsel %vm675, 1, 0
      %v708 = vsel %vm676, 1, 0
      %v709 = vcvt.s32.f32 %v677
      %v710 = vcvt.s32.f32 %v678
      %v711 = vcvt.s32.f32 %v679
      %v712 = vcvt.s32.f32 %v680
      %v713 = vcvt.s32.f32 %v681
      %v714 = vcvt.s32.f32 %v682
      %v715 = vcvt.s32.f32 %v683
      %v716 = vcvt.s32.f32 %v684
      %v717 = vcvt.s32.f32 %v685
      %v718 = vcvt.s32.f32 %v686
      %v719 = vcvt.s32.f32 %v687
      %v720 = vcvt.s32.f32 %v688
      %v721 = vcvt.s32.f32 %v689
      %v722 = vcvt.s32.f32 %v690
      %v723 = vcvt.s32.f32 %v691
      %v724 = vcvt.s32.f32 %v692
      %v725 = vcvt.s32.f32 %v693
      %v726 = vcvt.s32.f32 %v694
      %v727 = vcvt.s32.f32 %v695
      %v728 = vcvt.s32.f32 %v696
      %v729 = vcvt.s32.f32 %v697
      %v730 = vcvt.s32.f32 %v698
      %v731 = vcvt.s32.f32 %v699
      %v732 = vcvt.s32.f32 %v700
      %v733 = vcvt.s32.f32 %v701
      %v734 = vcvt.s32.f32 %v702
      %v735 = vcvt.s32.f32 %v703
      %v736 = vcvt.s32.f32 %v704
      %v737 = vcvt.s32.f32 %v705
      %v738 = vcvt.s32.f32 %v706
      %v739 = vcvt.s32.f32 %v707
      %v740 = vcvt.s32.f32 %v708
      %vm741 = vcmp.lt.s32.totalorder %v613, 15
      %vm742 = vcmp.lt.s32.totalorder %v614, 15
      %vm743 = vcmp.lt.s32.totalorder %v615, 15
      %vm744 = vcmp.lt.s32.totalorder %v616, 15
      %vm745 = vcmp.lt.s32.totalorder %v617, 15
      %vm746 = vcmp.lt.s32.totalorder %v618, 15
      %vm747 = vcmp.lt.s32.totalorder %v619, 15
      %vm748 = vcmp.lt.s32.totalorder %v620, 15
      %vm749 = vcmp.lt.s32.totalorder %v621, 15
      %vm750 = vcmp.lt.s32.totalorder %v622, 15
      %vm751 = vcmp.lt.s32.totalorder %v623, 15
      %vm752 = vcmp.lt.s32.totalorder %v624, 15
      %vm753 = vcmp.lt.s32.totalorder %v625, 15
      %vm754 = vcmp.lt.s32.totalorder %v626, 15
      %vm755 = vcmp.lt.s32.totalorder %v627, 15
      %vm756 = vcmp.lt.s32.totalorder %v628, 15
      %vm757 = vcmp.lt.s32.totalorder %v629, 15
      %vm758 = vcmp.lt.s32.totalorder %v630, 15
      %vm759 = vcmp.lt.s32.totalorder %v631, 15
      %vm760 = vcmp.lt.s32.totalorder %v632, 15
      %vm761 = vcmp.lt.s32.totalorder %v633, 15
      %vm762 = vcmp.lt.s32.totalorder %v634, 15
      %vm763 = vcmp.lt.s32.totalorder %v635, 15
      %vm764 = vcmp.lt.s32.totalorder %v636, 15
      %vm765 = vcmp.lt.s32.totalorder %v637, 15
      %vm766 = vcmp.lt.s32.totalorder %v638, 15
      %vm767 = vcmp.lt.s32.totalorder %v639, 15
      %vm768 = vcmp.lt.s32.totalorder %v640, 15
      %vm769 = vcmp.lt.s32.totalorder %v641, 15
      %vm770 = vcmp.lt.s32.totalorder %v642, 15
      %vm771 = vcmp.lt.s32.totalorder %v643, 15
      %vm772 = vcmp.lt.s32.totalorder %v644, 15
      %v773 = vsel %vm741, 1, 0
      %v774 = vsel %vm742, 1, 0
      %v775 = vsel %vm743, 1, 0
      %v776 = vsel %vm744, 1, 0
      %v777 = vsel %vm745, 1, 0
      %v778 = vsel %vm746, 1, 0
      %v779 = vsel %vm747, 1, 0
      %v780 = vsel %vm748, 1, 0
      %v781 = vsel %vm749, 1, 0
      %v782 = vsel %vm750, 1, 0
      %v783 = vsel %vm751, 1, 0
      %v784 = vsel %vm752, 1, 0
      %v785 = vsel %vm753, 1, 0
      %v786 = vsel %vm754, 1, 0
      %v787 = vsel %vm755, 1, 0
      %v788 = vsel %vm756, 1, 0
      %v789 = vsel %vm757, 1, 0
      %v790 = vsel %vm758, 1, 0
      %v791 = vsel %vm759, 1, 0
      %v792 = vsel %vm760, 1, 0
      %v793 = vsel %vm761, 1, 0
      %v794 = vsel %vm762, 1, 0
      %v795 = vsel %vm763, 1, 0
      %v796 = vsel %vm764, 1, 0
      %v797 = vsel %vm765, 1, 0
      %v798 = vsel %vm766, 1, 0
      %v799 = vsel %vm767, 1, 0
      %v800 = vsel %vm768, 1, 0
      %v801 = vsel %vm769, 1, 0
      %v802 = vsel %vm770, 1, 0
      %v803 = vsel %vm771, 1, 0
      %v804 = vsel %vm772, 1, 0
      %v805 = vcvt.s32.f32 %v773
      %v806 = vcvt.s32.f32 %v774
      %v807 = vcvt.s32.f32 %v775
      %v808 = vcvt.s32.f32 %v776
      %v809 = vcvt.s32.f32 %v777
      %v810 = vcvt.s32.f32 %v778
      %v811 = vcvt.s32.f32 %v779
      %v812 = vcvt.s32.f32 %v780
      %v813 = vcvt.s32.f32 %v781
      %v814 = vcvt.s32.f32 %v782
      %v815 = vcvt.s32.f32 %v783
      %v816 = vcvt.s32.f32 %v784
      %v817 = vcvt.s32.f32 %v785
      %v818 = vcvt.s32.f32 %v786
      %v819 = vcvt.s32.f32 %v787
      %v820 = vcvt.s32.f32 %v788
      %v821 = vcvt.s32.f32 %v789
      %v822 = vcvt.s32.f32 %v790
      %v823 = vcvt.s32.f32 %v791
      %v824 = vcvt.s32.f32 %v792
      %v825 = vcvt.s32.f32 %v793
      %v826 = vcvt.s32.f32 %v794
      %v827 = vcvt.s32.f32 %v795
      %v828 = vcvt.s32.f32 %v796
      %v829 = vcvt.s32.f32 %v797
      %v830 = vcvt.s32.f32 %v798
      %v831 = vcvt.s32.f32 %v799
      %v832 = vcvt.s32.f32 %v800
      %v833 = vcvt.s32.f32 %v801
      %v834 = vcvt.s32.f32 %v802
      %v835 = vcvt.s32.f32 %v803
      %v836 = vcvt.s32.f32 %v804
      %v837 = vld [vmem:[%s220] sm:$0xff]
      %v838 = vld [vmem:[%s220 + $0x8] sm:$0xff]
      %v839 = vld [vmem:[%s220 + $0x10] sm:$0xff]
      %v840 = vld [vmem:[%s220 + $0x18] sm:$0xff]
      %v841 = vld [vmem:[%s220 + $0x20] sm:$0xff]
      %v842 = vld [vmem:[%s220 + $0x28] sm:$0xff]
      %v843 = vld [vmem:[%s220 + $0x30] sm:$0xff]
      %v844 = vld [vmem:[%s220 + $0x38] sm:$0xff]
      %v845 = vld [vmem:[%s220 + $0x40] sm:$0xff]
      %v846 = vld [vmem:[%s220 + $0x48] sm:$0xff]
      %v847 = vld [vmem:[%s220 + $0x50] sm:$0xff]
      %v848 = vld [vmem:[%s220 + $0x58] sm:$0xff]
      %v849 = vld [vmem:[%s220 + $0x60] sm:$0xff]
      %v850 = vld [vmem:[%s220 + $0x68] sm:$0xff]
      %v851 = vld [vmem:[%s220 + $0x70] sm:$0xff]
      %v852 = vld [vmem:[%s220 + $0x78] sm:$0xff]
      %v853 = vld [vmem:[%s220 + $0x80] sm:$0xff]
      %v854 = vld [vmem:[%s220 + $0x88] sm:$0xff]
      %v855 = vld [vmem:[%s220 + $0x90] sm:$0xff]
      %v856 = vld [vmem:[%s220 + $0x98] sm:$0xff]
      %v857 = vld [vmem:[%s220 + $0xa0] sm:$0xff]
      %v858 = vld [vmem:[%s220 + $0xa8] sm:$0xff]
      %v859 = vld [vmem:[%s220 + $0xb0] sm:$0xff]
      %v860 = vld [vmem:[%s220 + $0xb8] sm:$0xff]
      %v861 = vld [vmem:[%s220 + $0xc0] sm:$0xff]
      %v862 = vld [vmem:[%s220 + $0xc8] sm:$0xff]
      %v863 = vld [vmem:[%s220 + $0xd0] sm:$0xff]
      %v864 = vld [vmem:[%s220 + $0xd8] sm:$0xff]
      %v865 = vld [vmem:[%s220 + $0xe0] sm:$0xff]
      %v866 = vld [vmem:[%s220 + $0xe8] sm:$0xff]
      %v867 = vld [vmem:[%s220 + $0xf0] sm:$0xff]
      %v868 = vld [vmem:[%s220 + $0xf8] sm:$0xff]
      %vm869 = vcmask 261120
      %870 = vst.msk [vmem:[#allocation2] sm:$0xff] %vm869, 0.0
      %871 = vst.msk [vmem:[#allocation2 + $0x8] sm:$0xff] %vm869, 0.0
      %872 = vst.msk [vmem:[#allocation2 + $0x10] sm:$0xff] %vm869, 0.0
      %873 = vst.msk [vmem:[#allocation2 + $0x18] sm:$0xff] %vm869, %v837
      %874 = vst.msk [vmem:[#allocation2 + $0x20] sm:$0xff] %vm869, %v838
      %875 = vst.msk [vmem:[#allocation2 + $0x28] sm:$0xff] %vm869, %v839
      %876 = vst.msk [vmem:[#allocation2 + $0x30] sm:$0xff] %vm869, %v840
      %877 = vst.msk [vmem:[#allocation2 + $0x38] sm:$0xff] %vm869, %v841
      %878 = vst.msk [vmem:[#allocation2 + $0x40] sm:$0xff] %vm869, %v842
      %879 = vst.msk [vmem:[#allocation2 + $0x48] sm:$0xff] %vm869, %v843
      %880 = vst.msk [vmem:[#allocation2 + $0x50] sm:$0xff] %vm869, %v844
      %881 = vst.msk [vmem:[#allocation2 + $0x58] sm:$0xff] %vm869, %v845
      %882 = vst.msk [vmem:[#allocation2 + $0x60] sm:$0xff] %vm869, %v846
      %883 = vst.msk [vmem:[#allocation2 + $0x68] sm:$0xff] %vm869, %v847
      %884 = vst.msk [vmem:[#allocation2 + $0x70] sm:$0xff] %vm869, %v848
      %885 = vst.msk [vmem:[#allocation2 + $0x78] sm:$0xff] %vm869, %v849
      %886 = vst.msk [vmem:[#allocation2 + $0x80] sm:$0xff] %vm869, %v850
      %887 = vst.msk [vmem:[#allocation2 + $0x88] sm:$0xff] %vm869, %v851
      %888 = vst.msk [vmem:[#allocation2 + $0x90] sm:$0xff] %vm869, %v852
      %889 = vst.msk [vmem:[#allocation2 + $0x98] sm:$0xff] %vm869, %v853
      %890 = vst.msk [vmem:[#allocation2 + $0xa0] sm:$0xff] %vm869, %v854
      %891 = vst.msk [vmem:[#allocation2 + $0xa8] sm:$0xff] %vm869, %v855
      %892 = vst.msk [vmem:[#allocation2 + $0xb0] sm:$0xff] %vm869, %v856
      %893 = vst.msk [vmem:[#allocation2 + $0xb8] sm:$0xff] %vm869, %v857
      %894 = vst.msk [vmem:[#allocation2 + $0xc0] sm:$0xff] %vm869, %v858
      %895 = vst.msk [vmem:[#allocation2 + $0xc8] sm:$0xff] %vm869, %v859
      %896 = vst.msk [vmem:[#allocation2 + $0xd0] sm:$0xff] %vm869, %v860
      %897 = vst.msk [vmem:[#allocation2 + $0xd8] sm:$0xff] %vm869, %v861
      %898 = vst.msk [vmem:[#allocation2 + $0xe0] sm:$0xff] %vm869, %v862
      %899 = vst.msk [vmem:[#allocation2 + $0xe8] sm:$0xff] %vm869, %v863
      %900 = vst.msk [vmem:[#allocation2 + $0xf0] sm:$0xff] %vm869, %v864
      %901 = vst.msk [vmem:[#allocation2 + $0xf8] sm:$0xff] %vm869, %v865
      %902 = vst.msk [vmem:[#allocation2 + $0x100] sm:$0xff] %vm869, %v866
      %903 = vst.msk [vmem:[#allocation2 + $0x108] sm:$0xff] %vm869, %v867
      %904 = vst.msk [vmem:[#allocation2 + $0x110] sm:$0xff] %vm869, %v868
      %905 = vst.msk [vmem:[#allocation2 + $0x118] sm:$0xff] %vm869, 0.0
      %906 = vst.msk [vmem:[#allocation2 + $0x120] sm:$0xff] %vm869, 0.0
      %907 = vst.msk [vmem:[#allocation2 + $0x128] sm:$0xff] %vm869, 0.0
      %v908 = vld [vmem:[#allocation2 + $0x7] sm:$0xff]
      %v909 = vld [vmem:[#allocation2 + $0xf] sm:$0xff]
      %v910 = vld [vmem:[#allocation2 + $0x17] sm:$0xff]
      %v911 = vld [vmem:[#allocation2 + $0x1f] sm:$0xff]
      %v912 = vld [vmem:[#allocation2 + $0x27] sm:$0xff]
      %v913 = vld [vmem:[#allocation2 + $0x2f] sm:$0xff]
      %v914 = vld [vmem:[#allocation2 + $0x37] sm:$0xff]
      %v915 = vld [vmem:[#allocation2 + $0x3f] sm:$0xff]
      %v916 = vld [vmem:[#allocation2 + $0x47] sm:$0xff]
      %v917 = vld [vmem:[#allocation2 + $0x4f] sm:$0xff]
      %v918 = vld [vmem:[#allocation2 + $0x57] sm:$0xff]
      %v919 = vld [vmem:[#allocation2 + $0x5f] sm:$0xff]
      %v920 = vld [vmem:[#allocation2 + $0x67] sm:$0xff]
      %v921 = vld [vmem:[#allocation2 + $0x6f] sm:$0xff]
      %v922 = vld [vmem:[#allocation2 + $0x77] sm:$0xff]
      %v923 = vld [vmem:[#allocation2 + $0x7f] sm:$0xff]
      %v924 = vld [vmem:[#allocation2 + $0x87] sm:$0xff]
      %v925 = vld [vmem:[#allocation2 + $0x8f] sm:$0xff]
      %v926 = vld [vmem:[#allocation2 + $0x97] sm:$0xff]
      %v927 = vld [vmem:[#allocation2 + $0x9f] sm:$0xff]
      %v928 = vld [vmem:[#allocation2 + $0xa7] sm:$0xff]
      %v929 = vld [vmem:[#allocation2 + $0xaf] sm:$0xff]
      %v930 = vld [vmem:[#allocation2 + $0xb7] sm:$0xff]
      %v931 = vld [vmem:[#allocation2 + $0xbf] sm:$0xff]
      %v932 = vld [vmem:[#allocation2 + $0xc7] sm:$0xff]
      %v933 = vld [vmem:[#allocation2 + $0xcf] sm:$0xff]
      %v934 = vld [vmem:[#allocation2 + $0xd7] sm:$0xff]
      %v935 = vld [vmem:[#allocation2 + $0xdf] sm:$0xff]
      %v936 = vld [vmem:[#allocation2 + $0xe7] sm:$0xff]
      %v937 = vld [vmem:[#allocation2 + $0xef] sm:$0xff]
      %v938 = vld [vmem:[#allocation2 + $0xf7] sm:$0xff]
      %v939 = vld [vmem:[#allocation2 + $0xff] sm:$0xff]
      %v940 = vmul.f32 %v908, %v709
      %v941 = vmul.f32 %v909, %v710
      %v942 = vmul.f32 %v910, %v711
      %v943 = vmul.f32 %v911, %v712
      %v944 = vmul.f32 %v912, %v713
      %v945 = vmul.f32 %v913, %v714
      %v946 = vmul.f32 %v914, %v715
      %v947 = vmul.f32 %v915, %v716
      %v948 = vmul.f32 %v916, %v717
      %v949 = vmul.f32 %v917, %v718
      %v950 = vmul.f32 %v918, %v719
      %v951 = vmul.f32 %v919, %v720
      %v952 = vmul.f32 %v920, %v721
      %v953 = vmul.f32 %v921, %v722
      %v954 = vmul.f32 %v922, %v723
      %v955 = vmul.f32 %v923, %v724
      %v956 = vmul.f32 %v924, %v725
      %v957 = vmul.f32 %v925, %v726
      %v958 = vmul.f32 %v926, %v727
      %v959 = vmul.f32 %v927, %v728
      %v960 = vmul.f32 %v928, %v729
      %v961 = vmul.f32 %v929, %v730
      %v962 = vmul.f32 %v930, %v731
      %v963 = vmul.f32 %v931, %v732
      %v964 = vmul.f32 %v932, %v733
      %v965 = vmul.f32 %v933, %v734
      %v966 = vmul.f32 %v934, %v735
      %v967 = vmul.f32 %v935, %v736
      %v968 = vmul.f32 %v936, %v737
      %v969 = vmul.f32 %v937, %v738
      %v970 = vmul.f32 %v938, %v739
      %v971 = vmul.f32 %v939, %v740
      %v972 = vld [vmem:[%s1] sm:$0xff]
      %v973 = vld [vmem:[%s1 + $0x8] sm:$0xff]
      %v974 = vld [vmem:[%s1 + $0x10] sm:$0xff]
      %v975 = vld [vmem:[%s1 + $0x18] sm:$0xff]
      %v976 = vld [vmem:[#allocation2 + $0x8] sm:$0xff]
      %v977 = vld [vmem:[#allocation2 + $0x10] sm:$0xff]
      %v978 = vld [vmem:[#allocation2 + $0x18] sm:$0xff]
      %v979 = vld [vmem:[#allocation2 + $0x20] sm:$0xff]
      %v980 = vld [vmem:[#allocation2 + $0x28] sm:$0xff]
      %v981 = vld [vmem:[#allocation2 + $0x30] sm:$0xff]
      %v982 = vld [vmem:[#allocation2 + $0x38] sm:$0xff]
      %v983 = vld [vmem:[#allocation2 + $0x40] sm:$0xff]
      %v984 = vld [vmem:[#allocation2 + $0x48] sm:$0xff]
      %v985 = vld [vmem:[#allocation2 + $0x50] sm:$0xff]
      %v986 = vld [vmem:[#allocation2 + $0x58] sm:$0xff]
      %v987 = vld [vmem:[#allocation2 + $0x60] sm:$0xff]
      %v988 = vld [vmem:[#allocation2 + $0x68] sm:$0xff]
      %v989 = vld [vmem:[#allocation2 + $0x70] sm:$0xff]
      %v990 = vld [vmem:[#allocation2 + $0x78] sm:$0xff]
      %v991 = vld [vmem:[#allocation2 + $0x80] sm:$0xff]
      %v992 = vld [vmem:[#allocation2 + $0x88] sm:$0xff]
      %v993 = vld [vmem:[#allocation2 + $0x90] sm:$0xff]
      %v994 = vld [vmem:[#allocation2 + $0x98] sm:$0xff]
      %v995 = vld [vmem:[#allocation2 + $0xa0] sm:$0xff]
      %v996 = vld [vmem:[#allocation2 + $0xa8] sm:$0xff]
      %v997 = vld [vmem:[#allocation2 + $0xb0] sm:$0xff]
      %v998 = vld [vmem:[#allocation2 + $0xb8] sm:$0xff]
      %v999 = vld [vmem:[#allocation2 + $0xc0] sm:$0xff]
      %v1000 = vld [vmem:[#allocation2 + $0xc8] sm:$0xff]
      %v1001 = vld [vmem:[#allocation2 + $0xd0] sm:$0xff]
      %v1002 = vld [vmem:[#allocation2 + $0xd8] sm:$0xff]
      %v1003 = vld [vmem:[#allocation2 + $0xe0] sm:$0xff]
      %v1004 = vld [vmem:[#allocation2 + $0xe8] sm:$0xff]
      %v1005 = vld [vmem:[#allocation2 + $0xf0] sm:$0xff]
      %v1006 = vld [vmem:[#allocation2 + $0xf8] sm:$0xff]
      %v1007 = vld [vmem:[#allocation2 + $0x100] sm:$0xff]
      %s1008 = scalar_lea.vmem %s1, 32
      %v1009 = vld [vmem:[%s1008] sm:$0xff]
      %v1010 = vld [vmem:[%s1008 + $0x8] sm:$0xff]
      %v1011 = vld [vmem:[%s1008 + $0x10] sm:$0xff]
      %v1012 = vld [vmem:[%s1008 + $0x18] sm:$0xff]
      %v1014 = vsel %vm869, %v976, 0
      %v1017 = vsel %vm869, %v977, 0
      %v1020 = vsel %vm869, %v978, 0
      %v1023 = vsel %vm869, %v979, 0
      %v1026 = vsel %vm869, %v980, 0
      %v1029 = vsel %vm869, %v981, 0
      %v1032 = vsel %vm869, %v982, 0
      %v1035 = vsel %vm869, %v983, 0
      %v1038 = vsel %vm869, %v984, 0
      %v1041 = vsel %vm869, %v985, 0
      %v1044 = vsel %vm869, %v986, 0
      %v1047 = vsel %vm869, %v987, 0
      %v1050 = vsel %vm869, %v988, 0
      %v1053 = vsel %vm869, %v989, 0
      %v1056 = vsel %vm869, %v990, 0
      %v1059 = vsel %vm869, %v991, 0
      %v1062 = vsel %vm869, %v992, 0
      %v1065 = vsel %vm869, %v993, 0
      %v1068 = vsel %vm869, %v994, 0
      %v1071 = vsel %vm869, %v995, 0
      %v1074 = vsel %vm869, %v996, 0
      %v1077 = vsel %vm869, %v997, 0
      %v1080 = vsel %vm869, %v998, 0
      %v1083 = vsel %vm869, %v999, 0
      %v1086 = vsel %vm869, %v1000, 0
      %v1089 = vsel %vm869, %v1001, 0
      %v1092 = vsel %vm869, %v1002, 0
      %v1095 = vsel %vm869, %v1003, 0
      %v1098 = vsel %vm869, %v1004, 0
      %v1101 = vsel %vm869, %v1005, 0
      %v1104 = vsel %vm869, %v1006, 0
      %v1107 = vsel %vm869, %v1007, 0
      %1109 = vmatprep.subr.mxu0 0.0
      %1110 = vmatpush1.msra.mxu0 %v1009
      %1111 = vmatprep.subr.mxu0 0.0
      %1112 = vmatpush1.msra.mxu0 %v1010
      %1113 = vmatprep.subr.mxu0 0.0
      %1114 = vmatpush1.msra.mxu0 %v1011
      %1115 = vmatprep.subr.mxu0 0.0
      %1116 = vmatpush1.msra.mxu0 %v1012
      %1117 = vmatprep.subr.mxu0 0.0
      %1118 = vmatpush1.msra.mxu0 0.0
      %1119 = vmatprep.subr.mxu0 0.0
      %1120 = vmatpush1.msra.mxu0 0.0
      %1121 = vmatprep.subr.mxu0 0.0
      %1122 = vmatpush1.msra.mxu0 0.0
      %1123 = vmatprep.subr.mxu0 0.0
      %1124 = vmatpush1.msra.mxu0 0.0
      %1125 = vmatprep.subr.mxu0 0.0
      %1126 = vmatpush1.msra.mxu0 0.0
      %1127 = vmatprep.subr.mxu0 0.0
      %1128 = vmatpush1.msra.mxu0 0.0
      %1129 = vmatprep.subr.mxu0 0.0
      %1130 = vmatpush1.msra.mxu0 0.0
      %1131 = vmatprep.subr.mxu0 0.0
      %1132 = vmatpush1.msra.mxu0 0.0
      %1133 = vmatprep.subr.mxu0 0.0
      %1134 = vmatpush1.msra.mxu0 0.0
      %1135 = vmatprep.subr.mxu0 0.0
      %1136 = vmatpush1.msra.mxu0 0.0
      %1137 = vmatprep.subr.mxu0 0.0
      %1138 = vmatpush1.msra.mxu0 0.0
      %1139 = vmatprep.subr.mxu0 0.0
      %1140 = vmatpush1.msra.mxu0 0.0
      %1141 = vmatprep.subr.mxu0 0.0
      %1142 = vmatpush1.msra.mxu0 0.0
      %1143 = vmatprep.subr.mxu0 0.0
      %1144 = vmatpush1.msra.mxu0 0.0
      %1145 = vmatprep.subr.mxu0 0.0
      %1146 = vmatpush1.msra.mxu0 0.0
      %1147 = vmatprep.subr.mxu0 0.0
      %1148 = vmatpush1.msra.mxu0 0.0
      %1149 = vmatprep.subr.mxu0 0.0
      %1150 = vmatpush1.msra.mxu0 0.0
      %1151 = vmatprep.subr.mxu0 0.0
      %1152 = vmatpush1.msra.mxu0 0.0
      %1153 = vmatprep.subr.mxu0 0.0
      %1154 = vmatpush1.msra.mxu0 0.0
      %1155 = vmatprep.subr.mxu0 0.0
      %1156 = vmatpush1.msra.mxu0 0.0
      %1157 = vmatprep.subr.mxu0 0.0
      %1158 = vmatpush1.msra.mxu0 0.0
      %1159 = vmatprep.subr.mxu0 0.0
      %1160 = vmatpush1.msra.mxu0 0.0
      %1161 = vmatprep.subr.mxu0 0.0
      %1162 = vmatpush1.msra.mxu0 0.0
      %1163 = vmatprep.subr.mxu0 0.0
      %1164 = vmatpush1.msra.mxu0 0.0
      %1165 = vmatprep.subr.mxu0 0.0
      %1166 = vmatpush1.msra.mxu0 0.0
      %1167 = vmatprep.subr.mxu0 0.0
      %1168 = vmatpush1.msra.mxu0 0.0
      %1169 = vmatprep.subr.mxu0 0.0
      %1170 = vmatpush1.msra.mxu0 0.0
      %1171 = vmatprep.subr.mxu0 0.0
      %1172 = vmatpush1.msra.mxu0 0.0
      %1173 = vmatprep.mubr.f32.mxu0 0.0
      %1174 = vmatmul.mubr.f32.gmra.mrb[0].mxu0 %v1014
      %v1175 = vpop.f32.mrb[0].mxu0
      %v1176 = vadd.f32 0.0, %v1175
      %v1177 = vpop.f32.mrb[0].mxu0
      %1178 = vmatprep.mubr.f32.mxu0 0.0
      %1179 = vmatmul.mubr.f32.gmra.mrb[0].mxu0 %v1017
      %v1180 = vpop.f32.mrb[0].mxu0
      %v1181 = vadd.f32 0.0, %v1180
      %v1182 = vpop.f32.mrb[0].mxu0
      %1183 = vmatprep.mubr.f32.mxu0 0.0
      %1184 = vmatmul.mubr.f32.gmra.mrb[0].mxu0 %v1020
      %v1185 = vpop.f32.mrb[0].mxu0
      %v1186 = vadd.f32 0.0, %v1185
      %v1187 = vpop.f32.mrb[0].mxu0
      %1188 = vmatprep.mubr.f32.mxu0 0.0
      %1189 = vmatmul.mubr.f32.gmra.mrb[0].mxu0 %v1023
      %v1190 = vpop.f32.mrb[0].mxu0
      %v1191 = vadd.f32 0.0, %v1190
      %v1192 = vpop.f32.mrb[0].mxu0
      %1193 = vmatprep.mubr.f32.mxu0 0.0
      %1194 = vmatmul.mubr.f32.gmra.mrb[0].mxu0 %v1026
      %v1195 = vpop.f32.mrb[0].mxu0
      %v1196 = vadd.f32 0.0, %v1195
      %v1197 = vpop.f32.mrb[0].mxu0
      %1198 = vmatprep.mubr.f32.mxu0 0.0
      %1199 = vmatmul.mubr.f32.gmra.mrb[0].mxu0 %v1029
      %v1200 = vpop.f32.mrb[0].mxu0
      %v1201 = vadd.f32 0.0, %v1200
      %v1202 = vpop.f32.mrb[0].mxu0
      %1203 = vmatprep.mubr.f32.mxu0 0.0
      %1204 = vmatmul.mubr.f32.gmra.mrb[0].mxu0 %v1032
      %v1205 = vpop.f32.mrb[0].mxu0
      %v1206 = vadd.f32 0.0, %v1205
      %v1207 = vpop.f32.mrb[0].mxu0
      %1208 = vmatprep.mubr.f32.mxu0 0.0
      %1209 = vmatmul.mubr.f32.gmra.mrb[0].mxu0 %v1035
      %v1210 = vpop.f32.mrb[0].mxu0
      %v1211 = vadd.f32 0.0, %v1210
      %v1212 = vpop.f32.mrb[0].mxu0
      %1213 = vmatprep.mubr.f32.mxu0 0.0
      %1214 = vmatmul.mubr.f32.gmra.mrb[0].mxu0 %v1038
      %v1215 = vpop.f32.mrb[0].mxu0
      %v1216 = vadd.f32 0.0, %v1215
      %v1217 = vpop.f32.mrb[0].mxu0
      %1218 = vmatprep.mubr.f32.mxu0 0.0
      %1219 = vmatmul.mubr.f32.gmra.mrb[0].mxu0 %v1041
      %v1220 = vpop.f32.mrb[0].mxu0
      %v1221 = vadd.f32 0.0, %v1220
      %v1222 = vpop.f32.mrb[0].mxu0
      %1223 = vmatprep.mubr.f32.mxu0 0.0
      %1224 = vmatmul.mubr.f32.gmra.mrb[0].mxu0 %v1044
      %v1225 = vpop.f32.mrb[0].mxu0
      %v1226 = vadd.f32 0.0, %v1225
      %v1227 = vpop.f32.mrb[0].mxu0
      %1228 = vmatprep.mubr.f32.mxu0 0.0
      %1229 = vmatmul.mubr.f32.gmra.mrb[0].mxu0 %v1047
      %v1230 = vpop.f32.mrb[0].mxu0
      %v1231 = vadd.f32 0.0, %v1230
      %v1232 = vpop.f32.mrb[0].mxu0
      %1233 = vmatprep.mubr.f32.mxu0 0.0
      %1234 = vmatmul.mubr.f32.gmra.mrb[0].mxu0 %v1050
      %v1235 = vpop.f32.mrb[0].mxu0
      %v1236 = vadd.f32 0.0, %v1235
      %v1237 = vpop.f32.mrb[0].mxu0
      %1238 = vmatprep.mubr.f32.mxu0 0.0
      %1239 = vmatmul.mubr.f32.gmra.mrb[0].mxu0 %v1053
      %v1240 = vpop.f32.mrb[0].mxu0
      %v1241 = vadd.f32 0.0, %v1240
      %v1242 = vpop.f32.mrb[0].mxu0
      %1243 = vmatprep.mubr.f32.mxu0 0.0
      %1244 = vmatmul.mubr.f32.gmra.mrb[0].mxu0 %v1056
      %v1245 = vpop.f32.mrb[0].mxu0
      %v1246 = vadd.f32 0.0, %v1245
      %v1247 = vpop.f32.mrb[0].mxu0
      %1248 = vmatprep.mubr.f32.mxu0 0.0
      %1249 = vmatmul.mubr.f32.gmra.mrb[0].mxu0 %v1059
      %v1250 = vpop.f32.mrb[0].mxu0
      %v1251 = vadd.f32 0.0, %v1250
      %v1252 = vpop.f32.mrb[0].mxu0
      %1253 = vmatprep.mubr.f32.mxu0 0.0
      %1254 = vmatmul.mubr.f32.gmra.mrb[0].mxu0 %v1062
      %v1255 = vpop.f32.mrb[0].mxu0
      %v1256 = vadd.f32 0.0, %v1255
      %v1257 = vpop.f32.mrb[0].mxu0
      %1258 = vmatprep.mubr.f32.mxu0 0.0
      %1259 = vmatmul.mubr.f32.gmra.mrb[0].mxu0 %v1065
      %v1260 = vpop.f32.mrb[0].mxu0
      %v1261 = vadd.f32 0.0, %v1260
      %v1262 = vpop.f32.mrb[0].mxu0
      %1263 = vmatprep.mubr.f32.mxu0 0.0
      %1264 = vmatmul.mubr.f32.gmra.mrb[0].mxu0 %v1068
      %v1265 = vpop.f32.mrb[0].mxu0
      %v1266 = vadd.f32 0.0, %v1265
      %v1267 = vpop.f32.mrb[0].mxu0
      %1268 = vmatprep.mubr.f32.mxu0 0.0
      %1269 = vmatmul.mubr.f32.gmra.mrb[0].mxu0 %v1071
      %v1270 = vpop.f32.mrb[0].mxu0
      %v1271 = vadd.f32 0.0, %v1270
      %v1272 = vpop.f32.mrb[0].mxu0
      %1273 = vmatprep.mubr.f32.mxu0 0.0
      %1274 = vmatmul.mubr.f32.gmra.mrb[0].mxu0 %v1074
      %v1275 = vpop.f32.mrb[0].mxu0
      %v1276 = vadd.f32 0.0, %v1275
      %v1277 = vpop.f32.mrb[0].mxu0
      %1278 = vmatprep.mubr.f32.mxu0 0.0
      %1279 = vmatmul.mubr.f32.gmra.mrb[0].mxu0 %v1077
      %v1280 = vpop.f32.mrb[0].mxu0
      %v1281 = vadd.f32 0.0, %v1280
      %v1282 = vpop.f32.mrb[0].mxu0
      %1283 = vmatprep.mubr.f32.mxu0 0.0
      %1284 = vmatmul.mubr.f32.gmra.mrb[0].mxu0 %v1080
      %v1285 = vpop.f32.mrb[0].mxu0
      %v1286 = vadd.f32 0.0, %v1285
      %v1287 = vpop.f32.mrb[0].mxu0
      %1288 = vmatprep.mubr.f32.mxu0 0.0
      %1289 = vmatmul.mubr.f32.gmra.mrb[0].mxu0 %v1083
      %v1290 = vpop.f32.mrb[0].mxu0
      %v1291 = vadd.f32 0.0, %v1290
      %v1292 = vpop.f32.mrb[0].mxu0
      %1293 = vmatprep.mubr.f32.mxu0 0.0
      %1294 = vmatmul.mubr.f32.gmra.mrb[0].mxu0 %v1086
      %v1295 = vpop.f32.mrb[0].mxu0
      %v1296 = vadd.f32 0.0, %v1295
      %v1297 = vpop.f32.mrb[0].mxu0
      %1298 = vmatprep.mubr.f32.mxu0 0.0
      %1299 = vmatmul.mubr.f32.gmra.mrb[0].mxu0 %v1089
      %v1300 = vpop.f32.mrb[0].mxu0
      %v1301 = vadd.f32 0.0, %v1300
      %v1302 = vpop.f32.mrb[0].mxu0
      %1303 = vmatprep.mubr.f32.mxu0 0.0
      %1304 = vmatmul.mubr.f32.gmra.mrb[0].mxu0 %v1092
      %v1305 = vpop.f32.mrb[0].mxu0
      %v1306 = vadd.f32 0.0, %v1305
      %v1307 = vpop.f32.mrb[0].mxu0
      %1308 = vmatprep.mubr.f32.mxu0 0.0
      %1309 = vmatmul.mubr.f32.gmra.mrb[0].mxu0 %v1095
      %v1310 = vpop.f32.mrb[0].mxu0
      %v1311 = vadd.f32 0.0, %v1310
      %v1312 = vpop.f32.mrb[0].mxu0
      %1313 = vmatprep.mubr.f32.mxu0 0.0
      %1314 = vmatmul.mubr.f32.gmra.mrb[0].mxu0 %v1098
      %v1315 = vpop.f32.mrb[0].mxu0
      %v1316 = vadd.f32 0.0, %v1315
      %v1317 = vpop.f32.mrb[0].mxu0
      %1318 = vmatprep.mubr.f32.mxu0 0.0
      %1319 = vmatmul.mubr.f32.gmra.mrb[0].mxu0 %v1101
      %v1320 = vpop.f32.mrb[0].mxu0
      %v1321 = vadd.f32 0.0, %v1320
      %v1322 = vpop.f32.mrb[0].mxu0
      %1323 = vmatprep.mubr.f32.mxu0 0.0
      %1324 = vmatmul.mubr.f32.gmra.mrb[0].mxu0 %v1104
      %v1325 = vpop.f32.mrb[0].mxu0
      %v1326 = vadd.f32 0.0, %v1325
      %v1327 = vpop.f32.mrb[0].mxu0
      %1328 = vmatprep.mubr.f32.mxu0 0.0
      %1329 = vmatmul.mubr.f32.gmra.mrb[0].mxu0 %v1107
      %v1330 = vpop.f32.mrb[0].mxu0
      %v1331 = vadd.f32 0.0, %v1330
      %v1332 = vpop.f32.mrb[0].mxu0
      %1333 = vdwg.mxu0
      %v1335 = vsel %vm869, %v940, 0
      %v1338 = vsel %vm869, %v941, 0
      %v1341 = vsel %vm869, %v942, 0
      %v1344 = vsel %vm869, %v943, 0
      %v1347 = vsel %vm869, %v944, 0
      %v1350 = vsel %vm869, %v945, 0
      %v1353 = vsel %vm869, %v946, 0
      %v1356 = vsel %vm869, %v947, 0
      %v1359 = vsel %vm869, %v948, 0
      %v1362 = vsel %vm869, %v949, 0
      %v1365 = vsel %vm869, %v950, 0
      %v1368 = vsel %vm869, %v951, 0
      %v1371 = vsel %vm869, %v952, 0
      %v1374 = vsel %vm869, %v953, 0
      %v1377 = vsel %vm869, %v954, 0
      %v1380 = vsel %vm869, %v955, 0
      %v1383 = vsel %vm869, %v956, 0
      %v1386 = vsel %vm869, %v957, 0
      %v1389 = vsel %vm869, %v958, 0
      %v1392 = vsel %vm869, %v959, 0
      %v1395 = vsel %vm869, %v960, 0
      %v1398 = vsel %vm869, %v961, 0
      %v1401 = vsel %vm869, %v962, 0
      %v1404 = vsel %vm869, %v963, 0
      %v1407 = vsel %vm869, %v964, 0
      %v1410 = vsel %vm869, %v965, 0
      %v1413 = vsel %vm869, %v966, 0
      %v1416 = vsel %vm869, %v967, 0
      %v1419 = vsel %vm869, %v968, 0
      %v1422 = vsel %vm869, %v969, 0
      %v1425 = vsel %vm869, %v970, 0
      %v1428 = vsel %vm869, %v971, 0
      %1430 = vmatprep.subr.mxu0 0.0
      %1431 = vmatpush1.msra.mxu0 %v972
      %1432 = vmatprep.subr.mxu0 0.0
      %1433 = vmatpush1.msra.mxu0 %v973
      %1434 = vmatprep.subr.mxu0 0.0
      %1435 = vmatpush1.msra.mxu0 %v974
      %1436 = vmatprep.subr.mxu0 0.0
      %1437 = vmatpush1.msra.mxu0 %v975
      %1438 = vmatprep.subr.mxu0 0.0
      %1439 = vmatpush1.msra.mxu0 0.0
      %1440 = vmatprep.subr.mxu0 0.0
      %1441 = vmatpush1.msra.mxu0 0.0
      %1442 = vmatprep.subr.mxu0 0.0
      %1443 = vmatpush1.msra.mxu0 0.0
      %1444 = vmatprep.subr.mxu0 0.0
      %1445 = vmatpush1.msra.mxu0 0.0
      %1446 = vmatprep.subr.mxu0 0.0
      %1447 = vmatpush1.msra.mxu0 0.0
      %1448 = vmatprep.subr.mxu0 0.0
      %1449 = vmatpush1.msra.mxu0 0.0
      %1450 = vmatprep.subr.mxu0 0.0
      %1451 = vmatpush1.msra.mxu0 0.0
      %1452 = vmatprep.subr.mxu0 0.0
      %1453 = vmatpush1.msra.mxu0 0.0
      %1454 = vmatprep.subr.mxu0 0.0
      %1455 = vmatpush1.msra.mxu0 0.0
      %1456 = vmatprep.subr.mxu0 0.0
      %1457 = vmatpush1.msra.mxu0 0.0
      %1458 = vmatprep.subr.mxu0 0.0
      %1459 = vmatpush1.msra.mxu0 0.0
      %1460 = vmatprep.subr.mxu0 0.0
      %1461 = vmatpush1.msra.mxu0 0.0
      %1462 = vmatprep.subr.mxu0 0.0
      %1463 = vmatpush1.msra.mxu0 0.0
      %1464 = vmatprep.subr.mxu0 0.0
      %1465 = vmatpush1.msra.mxu0 0.0
      %1466 = vmatprep.subr.mxu0 0.0
      %1467 = vmatpush1.msra.mxu0 0.0
      %1468 = vmatprep.subr.mxu0 0.0
      %1469 = vmatpush1.msra.mxu0 0.0
      %1470 = vmatprep.subr.mxu0 0.0
      %1471 = vmatpush1.msra.mxu0 0.0
      %1472 = vmatprep.subr.mxu0 0.0
      %1473 = vmatpush1.msra.mxu0 0.0
      %1474 = vmatprep.subr.mxu0 0.0
      %1475 = vmatpush1.msra.mxu0 0.0
      %1476 = vmatprep.subr.mxu0 0.0
      %1477 = vmatpush1.msra.mxu0 0.0
      %1478 = vmatprep.subr.mxu0 0.0
      %1479 = vmatpush1.msra.mxu0 0.0
      %1480 = vmatprep.subr.mxu0 0.0
      %1481 = vmatpush1.msra.mxu0 0.0
      %1482 = vmatprep.subr.mxu0 0.0
      %1483 = vmatpush1.msra.mxu0 0.0
      %1484 = vmatprep.subr.mxu0 0.0
      %1485 = vmatpush1.msra.mxu0 0.0
      %1486 = vmatprep.subr.mxu0 0.0
      %1487 = vmatpush1.msra.mxu0 0.0
      %1488 = vmatprep.subr.mxu0 0.0
      %1489 = vmatpush1.msra.mxu0 0.0
      %1490 = vmatprep.subr.mxu0 0.0
      %1491 = vmatpush1.msra.mxu0 0.0
      %1492 = vmatprep.subr.mxu0 0.0
      %1493 = vmatpush1.msra.mxu0 0.0
      %1494 = vmatprep.mubr.f32.mxu0 0.0
      %1495 = vmatmul.mubr.f32.gmra.mrb[0].mxu0 %v1335
      %v1496 = vpop.f32.mrb[0].mxu0
      %v1497 = vadd.f32 %v1176, %v1496
      %v1498 = vpop.f32.mrb[0].mxu0
      %1499 = vmatprep.mubr.f32.mxu0 0.0
      %1500 = vmatmul.mubr.f32.gmra.mrb[0].mxu0 %v1338
      %v1501 = vpop.f32.mrb[0].mxu0
      %v1502 = vadd.f32 %v1181, %v1501
      %v1503 = vpop.f32.mrb[0].mxu0
      %1504 = vmatprep.mubr.f32.mxu0 0.0
      %1505 = vmatmul.mubr.f32.gmra.mrb[0].mxu0 %v1341
      %v1506 = vpop.f32.mrb[0].mxu0
      %v1507 = vadd.f32 %v1186, %v1506
      %v1508 = vpop.f32.mrb[0].mxu0
      %1509 = vmatprep.mubr.f32.mxu0 0.0
      %1510 = vmatmul.mubr.f32.gmra.mrb[0].mxu0 %v1344
      %v1511 = vpop.f32.mrb[0].mxu0
      %v1512 = vadd.f32 %v1191, %v1511
      %v1513 = vpop.f32.mrb[0].mxu0
      %1514 = vmatprep.mubr.f32.mxu0 0.0
      %1515 = vmatmul.mubr.f32.gmra.mrb[0].mxu0 %v1347
      %v1516 = vpop.f32.mrb[0].mxu0
      %v1517 = vadd.f32 %v1196, %v1516
      %v1518 = vpop.f32.mrb[0].mxu0
      %1519 = vmatprep.mubr.f32.mxu0 0.0
      %1520 = vmatmul.mubr.f32.gmra.mrb[0].mxu0 %v1350
      %v1521 = vpop.f32.mrb[0].mxu0
      %v1522 = vadd.f32 %v1201, %v1521
      %v1523 = vpop.f32.mrb[0].mxu0
      %1524 = vmatprep.mubr.f32.mxu0 0.0
      %1525 = vmatmul.mubr.f32.gmra.mrb[0].mxu0 %v1353
      %v1526 = vpop.f32.mrb[0].mxu0
      %v1527 = vadd.f32 %v1206, %v1526
      %v1528 = vpop.f32.mrb[0].mxu0
      %1529 = vmatprep.mubr.f32.mxu0 0.0
      %1530 = vmatmul.mubr.f32.gmra.mrb[0].mxu0 %v1356
      %v1531 = vpop.f32.mrb[0].mxu0
      %v1532 = vadd.f32 %v1211, %v1531
      %v1533 = vpop.f32.mrb[0].mxu0
      %1534 = vmatprep.mubr.f32.mxu0 0.0
      %1535 = vmatmul.mubr.f32.gmra.mrb[0].mxu0 %v1359
      %v1536 = vpop.f32.mrb[0].mxu0
      %v1537 = vadd.f32 %v1216, %v1536
      %v1538 = vpop.f32.mrb[0].mxu0
      %1539 = vmatprep.mubr.f32.mxu0 0.0
      %1540 = vmatmul.mubr.f32.gmra.mrb[0].mxu0 %v1362
      %v1541 = vpop.f32.mrb[0].mxu0
      %v1542 = vadd.f32 %v1221, %v1541
      %v1543 = vpop.f32.mrb[0].mxu0
      %1544 = vmatprep.mubr.f32.mxu0 0.0
      %1545 = vmatmul.mubr.f32.gmra.mrb[0].mxu0 %v1365
      %v1546 = vpop.f32.mrb[0].mxu0
      %v1547 = vadd.f32 %v1226, %v1546
      %v1548 = vpop.f32.mrb[0].mxu0
      %1549 = vmatprep.mubr.f32.mxu0 0.0
      %1550 = vmatmul.mubr.f32.gmra.mrb[0].mxu0 %v1368
      %v1551 = vpop.f32.mrb[0].mxu0
      %v1552 = vadd.f32 %v1231, %v1551
      %v1553 = vpop.f32.mrb[0].mxu0
      %1554 = vmatprep.mubr.f32.mxu0 0.0
      %1555 = vmatmul.mubr.f32.gmra.mrb[0].mxu0 %v1371
      %v1556 = vpop.f32.mrb[0].mxu0
      %v1557 = vadd.f32 %v1236, %v1556
      %v1558 = vpop.f32.mrb[0].mxu0
      %1559 = vmatprep.mubr.f32.mxu0 0.0
      %1560 = vmatmul.mubr.f32.gmra.mrb[0].mxu0 %v1374
      %v1561 = vpop.f32.mrb[0].mxu0
      %v1562 = vadd.f32 %v1241, %v1561
      %v1563 = vpop.f32.mrb[0].mxu0
      %1564 = vmatprep.mubr.f32.mxu0 0.0
      %1565 = vmatmul.mubr.f32.gmra.mrb[0].mxu0 %v1377
      %v1566 = vpop.f32.mrb[0].mxu0
      %v1567 = vadd.f32 %v1246, %v1566
      %v1568 = vpop.f32.mrb[0].mxu0
      %1569 = vmatprep.mubr.f32.mxu0 0.0
      %1570 = vmatmul.mubr.f32.gmra.mrb[0].mxu0 %v1380
      %v1571 = vpop.f32.mrb[0].mxu0
      %v1572 = vadd.f32 %v1251, %v1571
      %v1573 = vpop.f32.mrb[0].mxu0
      %1574 = vmatprep.mubr.f32.mxu0 0.0
      %1575 = vmatmul.mubr.f32.gmra.mrb[0].mxu0 %v1383
      %v1576 = vpop.f32.mrb[0].mxu0
      %v1577 = vadd.f32 %v1256, %v1576
      %v1578 = vpop.f32.mrb[0].mxu0
      %1579 = vmatprep.mubr.f32.mxu0 0.0
      %1580 = vmatmul.mubr.f32.gmra.mrb[0].mxu0 %v1386
      %v1581 = vpop.f32.mrb[0].mxu0
      %v1582 = vadd.f32 %v1261, %v1581
      %v1583 = vpop.f32.mrb[0].mxu0
      %1584 = vmatprep.mubr.f32.mxu0 0.0
      %1585 = vmatmul.mubr.f32.gmra.mrb[0].mxu0 %v1389
      %v1586 = vpop.f32.mrb[0].mxu0
      %v1587 = vadd.f32 %v1266, %v1586
      %v1588 = vpop.f32.mrb[0].mxu0
      %1589 = vmatprep.mubr.f32.mxu0 0.0
      %1590 = vmatmul.mubr.f32.gmra.mrb[0].mxu0 %v1392
      %v1591 = vpop.f32.mrb[0].mxu0
      %v1592 = vadd.f32 %v1271, %v1591
      %v1593 = vpop.f32.mrb[0].mxu0
      %1594 = vmatprep.mubr.f32.mxu0 0.0
      %1595 = vmatmul.mubr.f32.gmra.mrb[0].mxu0 %v1395
      %v1596 = vpop.f32.mrb[0].mxu0
      %v1597 = vadd.f32 %v1276, %v1596
      %v1598 = vpop.f32.mrb[0].mxu0
      %1599 = vmatprep.mubr.f32.mxu0 0.0
      %1600 = vmatmul.mubr.f32.gmra.mrb[0].mxu0 %v1398
      %v1601 = vpop.f32.mrb[0].mxu0
      %v1602 = vadd.f32 %v1281, %v1601
      %v1603 = vpop.f32.mrb[0].mxu0
      %1604 = vmatprep.mubr.f32.mxu0 0.0
      %1605 = vmatmul.mubr.f32.gmra.mrb[0].mxu0 %v1401
      %v1606 = vpop.f32.mrb[0].mxu0
      %v1607 = vadd.f32 %v1286, %v1606
      %v1608 = vpop.f32.mrb[0].mxu0
      %1609 = vmatprep.mubr.f32.mxu0 0.0
      %1610 = vmatmul.mubr.f32.gmra.mrb[0].mxu0 %v1404
      %v1611 = vpop.f32.mrb[0].mxu0
      %v1612 = vadd.f32 %v1291, %v1611
      %v1613 = vpop.f32.mrb[0].mxu0
      %1614 = vmatprep.mubr.f32.mxu0 0.0
      %1615 = vmatmul.mubr.f32.gmra.mrb[0].mxu0 %v1407
      %v1616 = vpop.f32.mrb[0].mxu0
      %v1617 = vadd.f32 %v1296, %v1616
      %v1618 = vpop.f32.mrb[0].mxu0
      %1619 = vmatprep.mubr.f32.mxu0 0.0
      %1620 = vmatmul.mubr.f32.gmra.mrb[0].mxu0 %v1410
      %v1621 = vpop.f32.mrb[0].mxu0
      %v1622 = vadd.f32 %v1301, %v1621
      %v1623 = vpop.f32.mrb[0].mxu0
      %1624 = vmatprep.mubr.f32.mxu0 0.0
      %1625 = vmatmul.mubr.f32.gmra.mrb[0].mxu0 %v1413
      %v1626 = vpop.f32.mrb[0].mxu0
      %v1627 = vadd.f32 %v1306, %v1626
      %v1628 = vpop.f32.mrb[0].mxu0
      %1629 = vmatprep.mubr.f32.mxu0 0.0
      %1630 = vmatmul.mubr.f32.gmra.mrb[0].mxu0 %v1416
      %v1631 = vpop.f32.mrb[0].mxu0
      %v1632 = vadd.f32 %v1311, %v1631
      %v1633 = vpop.f32.mrb[0].mxu0
      %1634 = vmatprep.mubr.f32.mxu0 0.0
      %1635 = vmatmul.mubr.f32.gmra.mrb[0].mxu0 %v1419
      %v1636 = vpop.f32.mrb[0].mxu0
      %v1637 = vadd.f32 %v1316, %v1636
      %v1638 = vpop.f32.mrb[0].mxu0
      %1639 = vmatprep.mubr.f32.mxu0 0.0
      %1640 = vmatmul.mubr.f32.gmra.mrb[0].mxu0 %v1422
      %v1641 = vpop.f32.mrb[0].mxu0
      %v1642 = vadd.f32 %v1321, %v1641
      %v1643 = vpop.f32.mrb[0].mxu0
      %1644 = vmatprep.mubr.f32.mxu0 0.0
      %1645 = vmatmul.mubr.f32.gmra.mrb[0].mxu0 %v1425
      %v1646 = vpop.f32.mrb[0].mxu0
      %v1647 = vadd.f32 %v1326, %v1646
      %v1648 = vpop.f32.mrb[0].mxu0
      %1649 = vmatprep.mubr.f32.mxu0 0.0
      %1650 = vmatmul.mubr.f32.gmra.mrb[0].mxu0 %v1428
      %v1651 = vpop.f32.mrb[0].mxu0
      %v1652 = vadd.f32 %v1331, %v1651
      %v1653 = vpop.f32.mrb[0].mxu0
      %1654 = vdwg.mxu0
      %v1655 = vld [vmem:[#allocation2 + $0x9] sm:$0xff]
      %v1656 = vld [vmem:[#allocation2 + $0x11] sm:$0xff]
      %v1657 = vld [vmem:[#allocation2 + $0x19] sm:$0xff]
      %v1658 = vld [vmem:[#allocation2 + $0x21] sm:$0xff]
      %v1659 = vld [vmem:[#allocation2 + $0x29] sm:$0xff]
      %v1660 = vld [vmem:[#allocation2 + $0x31] sm:$0xff]
      %v1661 = vld [vmem:[#allocation2 + $0x39] sm:$0xff]
      %v1662 = vld [vmem:[#allocation2 + $0x41] sm:$0xff]
      %v1663 = vld [vmem:[#allocation2 + $0x49] sm:$0xff]
      %v1664 = vld [vmem:[#allocation2 + $0x51] sm:$0xff]
      %v1665 = vld [vmem:[#allocation2 + $0x59] sm:$0xff]
      %v1666 = vld [vmem:[#allocation2 + $0x61] sm:$0xff]
      %v1667 = vld [vmem:[#allocation2 + $0x69] sm:$0xff]
      %v1668 = vld [vmem:[#allocation2 + $0x71] sm:$0xff]
      %v1669 = vld [vmem:[#allocation2 + $0x79] sm:$0xff]
      %v1670 = vld [vmem:[#allocation2 + $0x81] sm:$0xff]
      %v1671 = vld [vmem:[#allocation2 + $0x89] sm:$0xff]
      %v1672 = vld [vmem:[#allocation2 + $0x91] sm:$0xff]
      %v1673 = vld [vmem:[#allocation2 + $0x99] sm:$0xff]
      %v1674 = vld [vmem:[#allocation2 + $0xa1] sm:$0xff]
      %v1675 = vld [vmem:[#allocation2 + $0xa9] sm:$0xff]
      %v1676 = vld [vmem:[#allocation2 + $0xb1] sm:$0xff]
      %v1677 = vld [vmem:[#allocation2 + $0xb9] sm:$0xff]
      %v1678 = vld [vmem:[#allocation2 + $0xc1] sm:$0xff]
      %v1679 = vld [vmem:[#allocation2 + $0xc9] sm:$0xff]
      %v1680 = vld [vmem:[#allocation2 + $0xd1] sm:$0xff]
      %v1681 = vld [vmem:[#allocation2 + $0xd9] sm:$0xff]
      %v1682 = vld [vmem:[#allocation2 + $0xe1] sm:$0xff]
      %v1683 = vld [vmem:[#allocation2 + $0xe9] sm:$0xff]
      %v1684 = vld [vmem:[#allocation2 + $0xf1] sm:$0xff]
      %v1685 = vld [vmem:[#allocation2 + $0xf9] sm:$0xff]
      %v1686 = vld [vmem:[#allocation2 + $0x101] sm:$0xff]
      %v1687 = vmul.f32 %v1655, %v805
      %v1688 = vmul.f32 %v1656, %v806
      %v1689 = vmul.f32 %v1657, %v807
      %v1690 = vmul.f32 %v1658, %v808
      %v1691 = vmul.f32 %v1659, %v809
      %v1692 = vmul.f32 %v1660, %v810
      %v1693 = vmul.f32 %v1661, %v811
      %v1694 = vmul.f32 %v1662, %v812
      %v1695 = vmul.f32 %v1663, %v813
      %v1696 = vmul.f32 %v1664, %v814
      %v1697 = vmul.f32 %v1665, %v815
      %v1698 = vmul.f32 %v1666, %v816
      %v1699 = vmul.f32 %v1667, %v817
      %v1700 = vmul.f32 %v1668, %v818
      %v1701 = vmul.f32 %v1669, %v819
      %v1702 = vmul.f32 %v1670, %v820
      %v1703 = vmul.f32 %v1671, %v821
      %v1704 = vmul.f32 %v1672, %v822
      %v1705 = vmul.f32 %v1673, %v823
      %v1706 = vmul.f32 %v1674, %v824
      %v1707 = vmul.f32 %v1675, %v825
      %v1708 = vmul.f32 %v1676, %v826
      %v1709 = vmul.f32 %v1677, %v827
      %v1710 = vmul.f32 %v1678, %v828
      %v1711 = vmul.f32 %v1679, %v829
      %v1712 = vmul.f32 %v1680, %v830
      %v1713 = vmul.f32 %v1681, %v831
      %v1714 = vmul.f32 %v1682, %v832
      %v1715 = vmul.f32 %v1683, %v833
      %v1716 = vmul.f32 %v1684, %v834
      %v1717 = vmul.f32 %v1685, %v835
      %v1718 = vmul.f32 %v1686, %v836
      %s1719 = scalar_lea.vmem %s1, 64
      %v1720 = vld [vmem:[%s1719] sm:$0xff]
      %v1721 = vld [vmem:[%s1719 + $0x8] sm:$0xff]
      %v1722 = vld [vmem:[%s1719 + $0x10] sm:$0xff]
      %v1723 = vld [vmem:[%s1719 + $0x18] sm:$0xff]
      %v1725 = vsel %vm869, %v1687, 0
      %v1728 = vsel %vm869, %v1688, 0
      %v1731 = vsel %vm869, %v1689, 0
      %v1734 = vsel %vm869, %v1690, 0
      %v1737 = vsel %vm869, %v1691, 0
      %v1740 = vsel %vm869, %v1692, 0
      %v1743 = vsel %vm869, %v1693, 0
      %v1746 = vsel %vm869, %v1694, 0
      %v1749 = vsel %vm869, %v1695, 0
      %v1752 = vsel %vm869, %v1696, 0
      %v1755 = vsel %vm869, %v1697, 0
      %v1758 = vsel %vm869, %v1698, 0
      %v1761 = vsel %vm869, %v1699, 0
      %v1764 = vsel %vm869, %v1700, 0
      %v1767 = vsel %vm869, %v1701, 0
      %v1770 = vsel %vm869, %v1702, 0
      %v1773 = vsel %vm869, %v1703, 0
      %v1776 = vsel %vm869, %v1704, 0
      %v1779 = vsel %vm869, %v1705, 0
      %v1782 = vsel %vm869, %v1706, 0
      %v1785 = vsel %vm869, %v1707, 0
      %v1788 = vsel %vm869, %v1708, 0
      %v1791 = vsel %vm869, %v1709, 0
      %v1794 = vsel %vm869, %v1710, 0
      %v1797 = vsel %vm869, %v1711, 0
      %v1800 = vsel %vm869, %v1712, 0
      %v1803 = vsel %vm869, %v1713, 0
      %v1806 = vsel %vm869, %v1714, 0
      %v1809 = vsel %vm869, %v1715, 0
      %v1812 = vsel %vm869, %v1716, 0
      %v1815 = vsel %vm869, %v1717, 0
      %v1818 = vsel %vm869, %v1718, 0
      %1820 = vmatprep.subr.mxu0 0.0
      %1821 = vmatpush1.msra.mxu0 %v1720
      %1822 = vmatprep.subr.mxu0 0.0
      %1823 = vmatpush1.msra.mxu0 %v1721
      %1824 = vmatprep.subr.mxu0 0.0
      %1825 = vmatpush1.msra.mxu0 %v1722
      %1826 = vmatprep.subr.mxu0 0.0
      %1827 = vmatpush1.msra.mxu0 %v1723
      %1828 = vmatprep.subr.mxu0 0.0
      %1829 = vmatpush1.msra.mxu0 0.0
      %1830 = vmatprep.subr.mxu0 0.0
      %1831 = vmatpush1.msra.mxu0 0.0
      %1832 = vmatprep.subr.mxu0 0.0
      %1833 = vmatpush1.msra.mxu0 0.0
      %1834 = vmatprep.subr.mxu0 0.0
      %1835 = vmatpush1.msra.mxu0 0.0
      %1836 = vmatprep.subr.mxu0 0.0
      %1837 = vmatpush1.msra.mxu0 0.0
      %1838 = vmatprep.subr.mxu0 0.0
      %1839 = vmatpush1.msra.mxu0 0.0
      %1840 = vmatprep.subr.mxu0 0.0
      %1841 = vmatpush1.msra.mxu0 0.0
      %1842 = vmatprep.subr.mxu0 0.0
      %1843 = vmatpush1.msra.mxu0 0.0
      %1844 = vmatprep.subr.mxu0 0.0
      %1845 = vmatpush1.msra.mxu0 0.0
      %1846 = vmatprep.subr.mxu0 0.0
      %1847 = vmatpush1.msra.mxu0 0.0
      %1848 = vmatprep.subr.mxu0 0.0
      %1849 = vmatpush1.msra.mxu0 0.0
      %1850 = vmatprep.subr.mxu0 0.0
      %1851 = vmatpush1.msra.mxu0 0.0
      %1852 = vmatprep.subr.mxu0 0.0
      %1853 = vmatpush1.msra.mxu0 0.0
      %1854 = vmatprep.subr.mxu0 0.0
      %1855 = vmatpush1.msra.mxu0 0.0
      %1856 = vmatprep.subr.mxu0 0.0
      %1857 = vmatpush1.msra.mxu0 0.0
      %1858 = vmatprep.subr.mxu0 0.0
      %1859 = vmatpush1.msra.mxu0 0.0
      %1860 = vmatprep.subr.mxu0 0.0
      %1861 = vmatpush1.msra.mxu0 0.0
      %1862 = vmatprep.subr.mxu0 0.0
      %1863 = vmatpush1.msra.mxu0 0.0
      %1864 = vmatprep.subr.mxu0 0.0
      %1865 = vmatpush1.msra.mxu0 0.0
      %1866 = vmatprep.subr.mxu0 0.0
      %1867 = vmatpush1.msra.mxu0 0.0
      %1868 = vmatprep.subr.mxu0 0.0
      %1869 = vmatpush1.msra.mxu0 0.0
      %1870 = vmatprep.subr.mxu0 0.0
      %1871 = vmatpush1.msra.mxu0 0.0
      %1872 = vmatprep.subr.mxu0 0.0
      %1873 = vmatpush1.msra.mxu0 0.0
      %1874 = vmatprep.subr.mxu0 0.0
      %1875 = vmatpush1.msra.mxu0 0.0
      %1876 = vmatprep.subr.mxu0 0.0
      %1877 = vmatpush1.msra.mxu0 0.0
      %1878 = vmatprep.subr.mxu0 0.0
      %1879 = vmatpush1.msra.mxu0 0.0
      %1880 = vmatprep.subr.mxu0 0.0
      %1881 = vmatpush1.msra.mxu0 0.0
      %1882 = vmatprep.subr.mxu0 0.0
      %1883 = vmatpush1.msra.mxu0 0.0
      %1884 = vmatprep.mubr.f32.mxu0 0.0
      %1885 = vmatmul.mubr.f32.gmra.mrb[0].mxu0 %v1725
      %v1886 = vpop.f32.mrb[0].mxu0
      %v1887 = vadd.f32 0.0, %v1886
      %v1888 = vpop.f32.mrb[0].mxu0
      %1889 = vmatprep.mubr.f32.mxu0 0.0
      %1890 = vmatmul.mubr.f32.gmra.mrb[0].mxu0 %v1728
      %v1891 = vpop.f32.mrb[0].mxu0
      %v1892 = vadd.f32 0.0, %v1891
      %v1893 = vpop.f32.mrb[0].mxu0
      %1894 = vmatprep.mubr.f32.mxu0 0.0
      %1895 = vmatmul.mubr.f32.gmra.mrb[0].mxu0 %v1731
      %v1896 = vpop.f32.mrb[0].mxu0
      %v1897 = vadd.f32 0.0, %v1896
      %v1898 = vpop.f32.mrb[0].mxu0
      %1899 = vmatprep.mubr.f32.mxu0 0.0
      %1900 = vmatmul.mubr.f32.gmra.mrb[0].mxu0 %v1734
      %v1901 = vpop.f32.mrb[0].mxu0
      %v1902 = vadd.f32 0.0, %v1901
      %v1903 = vpop.f32.mrb[0].mxu0
      %1904 = vmatprep.mubr.f32.mxu0 0.0
      %1905 = vmatmul.mubr.f32.gmra.mrb[0].mxu0 %v1737
      %v1906 = vpop.f32.mrb[0].mxu0
      %v1907 = vadd.f32 0.0, %v1906
      %v1908 = vpop.f32.mrb[0].mxu0
      %1909 = vmatprep.mubr.f32.mxu0 0.0
      %1910 = vmatmul.mubr.f32.gmra.mrb[0].mxu0 %v1740
      %v1911 = vpop.f32.mrb[0].mxu0
      %v1912 = vadd.f32 0.0, %v1911
      %v1913 = vpop.f32.mrb[0].mxu0
      %1914 = vmatprep.mubr.f32.mxu0 0.0
      %1915 = vmatmul.mubr.f32.gmra.mrb[0].mxu0 %v1743
      %v1916 = vpop.f32.mrb[0].mxu0
      %v1917 = vadd.f32 0.0, %v1916
      %v1918 = vpop.f32.mrb[0].mxu0
      %1919 = vmatprep.mubr.f32.mxu0 0.0
      %1920 = vmatmul.mubr.f32.gmra.mrb[0].mxu0 %v1746
      %v1921 = vpop.f32.mrb[0].mxu0
      %v1922 = vadd.f32 0.0, %v1921
      %v1923 = vpop.f32.mrb[0].mxu0
      %1924 = vmatprep.mubr.f32.mxu0 0.0
      %1925 = vmatmul.mubr.f32.gmra.mrb[0].mxu0 %v1749
      %v1926 = vpop.f32.mrb[0].mxu0
      %v1927 = vadd.f32 0.0, %v1926
      %v1928 = vpop.f32.mrb[0].mxu0
      %1929 = vmatprep.mubr.f32.mxu0 0.0
      %1930 = vmatmul.mubr.f32.gmra.mrb[0].mxu0 %v1752
      %v1931 = vpop.f32.mrb[0].mxu0
      %v1932 = vadd.f32 0.0, %v1931
      %v1933 = vpop.f32.mrb[0].mxu0
      %1934 = vmatprep.mubr.f32.mxu0 0.0
      %1935 = vmatmul.mubr.f32.gmra.mrb[0].mxu0 %v1755
      %v1936 = vpop.f32.mrb[0].mxu0
      %v1937 = vadd.f32 0.0, %v1936
      %v1938 = vpop.f32.mrb[0].mxu0
      %1939 = vmatprep.mubr.f32.mxu0 0.0
      %1940 = vmatmul.mubr.f32.gmra.mrb[0].mxu0 %v1758
      %v1941 = vpop.f32.mrb[0].mxu0
      %v1942 = vadd.f32 0.0, %v1941
      %v1943 = vpop.f32.mrb[0].mxu0
      %1944 = vmatprep.mubr.f32.mxu0 0.0
      %1945 = vmatmul.mubr.f32.gmra.mrb[0].mxu0 %v1761
      %v1946 = vpop.f32.mrb[0].mxu0
      %v1947 = vadd.f32 0.0, %v1946
      %v1948 = vpop.f32.mrb[0].mxu0
      %1949 = vmatprep.mubr.f32.mxu0 0.0
      %1950 = vmatmul.mubr.f32.gmra.mrb[0].mxu0 %v1764
      %v1951 = vpop.f32.mrb[0].mxu0
      %v1952 = vadd.f32 0.0, %v1951
      %v1953 = vpop.f32.mrb[0].mxu0
      %1954 = vmatprep.mubr.f32.mxu0 0.0
      %1955 = vmatmul.mubr.f32.gmra.mrb[0].mxu0 %v1767
      %v1956 = vpop.f32.mrb[0].mxu0
      %v1957 = vadd.f32 0.0, %v1956
      %v1958 = vpop.f32.mrb[0].mxu0
      %1959 = vmatprep.mubr.f32.mxu0 0.0
      %1960 = vmatmul.mubr.f32.gmra.mrb[0].mxu0 %v1770
      %v1961 = vpop.f32.mrb[0].mxu0
      %v1962 = vadd.f32 0.0, %v1961
      %v1963 = vpop.f32.mrb[0].mxu0
      %1964 = vmatprep.mubr.f32.mxu0 0.0
      %1965 = vmatmul.mubr.f32.gmra.mrb[0].mxu0 %v1773
      %v1966 = vpop.f32.mrb[0].mxu0
      %v1967 = vadd.f32 0.0, %v1966
      %v1968 = vpop.f32.mrb[0].mxu0
      %1969 = vmatprep.mubr.f32.mxu0 0.0
      %1970 = vmatmul.mubr.f32.gmra.mrb[0].mxu0 %v1776
      %v1971 = vpop.f32.mrb[0].mxu0
      %v1972 = vadd.f32 0.0, %v1971
      %v1973 = vpop.f32.mrb[0].mxu0
      %1974 = vmatprep.mubr.f32.mxu0 0.0
      %1975 = vmatmul.mubr.f32.gmra.mrb[0].mxu0 %v1779
      %v1976 = vpop.f32.mrb[0].mxu0
      %v1977 = vadd.f32 0.0, %v1976
      %v1978 = vpop.f32.mrb[0].mxu0
      %1979 = vmatprep.mubr.f32.mxu0 0.0
      %1980 = vmatmul.mubr.f32.gmra.mrb[0].mxu0 %v1782
      %v1981 = vpop.f32.mrb[0].mxu0
      %v1982 = vadd.f32 0.0, %v1981
      %v1983 = vpop.f32.mrb[0].mxu0
      %1984 = vmatprep.mubr.f32.mxu0 0.0
      %1985 = vmatmul.mubr.f32.gmra.mrb[0].mxu0 %v1785
      %v1986 = vpop.f32.mrb[0].mxu0
      %v1987 = vadd.f32 0.0, %v1986
      %v1988 = vpop.f32.mrb[0].mxu0
      %1989 = vmatprep.mubr.f32.mxu0 0.0
      %1990 = vmatmul.mubr.f32.gmra.mrb[0].mxu0 %v1788
      %v1991 = vpop.f32.mrb[0].mxu0
      %v1992 = vadd.f32 0.0, %v1991
      %v1993 = vpop.f32.mrb[0].mxu0
      %1994 = vmatprep.mubr.f32.mxu0 0.0
      %1995 = vmatmul.mubr.f32.gmra.mrb[0].mxu0 %v1791
      %v1996 = vpop.f32.mrb[0].mxu0
      %v1997 = vadd.f32 0.0, %v1996
      %v1998 = vpop.f32.mrb[0].mxu0
      %1999 = vmatprep.mubr.f32.mxu0 0.0
      %2000 = vmatmul.mubr.f32.gmra.mrb[0].mxu0 %v1794
      %v2001 = vpop.f32.mrb[0].mxu0
      %v2002 = vadd.f32 0.0, %v2001
      %v2003 = vpop.f32.mrb[0].mxu0
      %2004 = vmatprep.mubr.f32.mxu0 0.0
      %2005 = vmatmul.mubr.f32.gmra.mrb[0].mxu0 %v1797
      %v2006 = vpop.f32.mrb[0].mxu0
      %v2007 = vadd.f32 0.0, %v2006
      %v2008 = vpop.f32.mrb[0].mxu0
      %2009 = vmatprep.mubr.f32.mxu0 0.0
      %2010 = vmatmul.mubr.f32.gmra.mrb[0].mxu0 %v1800
      %v2011 = vpop.f32.mrb[0].mxu0
      %v2012 = vadd.f32 0.0, %v2011
      %v2013 = vpop.f32.mrb[0].mxu0
      %2014 = vmatprep.mubr.f32.mxu0 0.0
      %2015 = vmatmul.mubr.f32.gmra.mrb[0].mxu0 %v1803
      %v2016 = vpop.f32.mrb[0].mxu0
      %v2017 = vadd.f32 0.0, %v2016
      %v2018 = vpop.f32.mrb[0].mxu0
      %2019 = vmatprep.mubr.f32.mxu0 0.0
      %2020 = vmatmul.mubr.f32.gmra.mrb[0].mxu0 %v1806
      %v2021 = vpop.f32.mrb[0].mxu0
      %v2022 = vadd.f32 0.0, %v2021
      %v2023 = vpop.f32.mrb[0].mxu0
      %2024 = vmatprep.mubr.f32.mxu0 0.0
      %2025 = vmatmul.mubr.f32.gmra.mrb[0].mxu0 %v1809
      %v2026 = vpop.f32.mrb[0].mxu0
      %v2027 = vadd.f32 0.0, %v2026
      %v2028 = vpop.f32.mrb[0].mxu0
      %2029 = vmatprep.mubr.f32.mxu0 0.0
      %2030 = vmatmul.mubr.f32.gmra.mrb[0].mxu0 %v1812
      %v2031 = vpop.f32.mrb[0].mxu0
      %v2032 = vadd.f32 0.0, %v2031
      %v2033 = vpop.f32.mrb[0].mxu0
      %2034 = vmatprep.mubr.f32.mxu0 0.0
      %2035 = vmatmul.mubr.f32.gmra.mrb[0].mxu0 %v1815
      %v2036 = vpop.f32.mrb[0].mxu0
      %v2037 = vadd.f32 0.0, %v2036
      %v2038 = vpop.f32.mrb[0].mxu0
      %2039 = vmatprep.mubr.f32.mxu0 0.0
      %2040 = vmatmul.mubr.f32.gmra.mrb[0].mxu0 %v1818
      %v2041 = vpop.f32.mrb[0].mxu0
      %v2042 = vadd.f32 0.0, %v2041
      %v2043 = vpop.f32.mrb[0].mxu0
      %2044 = vdwg.mxu0
      %v2045 = vadd.f32 %v1497, %v1887
      %v2046 = vadd.f32 %v1502, %v1892
      %v2047 = vadd.f32 %v1507, %v1897
      %v2048 = vadd.f32 %v1512, %v1902
      %v2049 = vadd.f32 %v1517, %v1907
      %v2050 = vadd.f32 %v1522, %v1912
      %v2051 = vadd.f32 %v1527, %v1917
      %v2052 = vadd.f32 %v1532, %v1922
      %v2053 = vadd.f32 %v1537, %v1927
      %v2054 = vadd.f32 %v1542, %v1932
      %v2055 = vadd.f32 %v1547, %v1937
      %v2056 = vadd.f32 %v1552, %v1942
      %v2057 = vadd.f32 %v1557, %v1947
      %v2058 = vadd.f32 %v1562, %v1952
      %v2059 = vadd.f32 %v1567, %v1957
      %v2060 = vadd.f32 %v1572, %v1962
      %v2061 = vadd.f32 %v1577, %v1967
      %v2062 = vadd.f32 %v1582, %v1972
      %v2063 = vadd.f32 %v1587, %v1977
      %v2064 = vadd.f32 %v1592, %v1982
      %v2065 = vadd.f32 %v1597, %v1987
      %v2066 = vadd.f32 %v1602, %v1992
      %v2067 = vadd.f32 %v1607, %v1997
      %v2068 = vadd.f32 %v1612, %v2002
      %v2069 = vadd.f32 %v1617, %v2007
      %v2070 = vadd.f32 %v1622, %v2012
      %v2071 = vadd.f32 %v1627, %v2017
      %v2072 = vadd.f32 %v1632, %v2022
      %v2073 = vadd.f32 %v1637, %v2027
      %v2074 = vadd.f32 %v1642, %v2032
      %v2075 = vadd.f32 %v1647, %v2037
      %v2076 = vadd.f32 %v1652, %v2042
      %v2077 = vld [vmem:[#allocation2 + $0x17] sm:$0xff]
      %v2078 = vld [vmem:[#allocation2 + $0x1f] sm:$0xff]
      %v2079 = vld [vmem:[#allocation2 + $0x27] sm:$0xff]
      %v2080 = vld [vmem:[#allocation2 + $0x2f] sm:$0xff]
      %v2081 = vld [vmem:[#allocation2 + $0x37] sm:$0xff]
      %v2082 = vld [vmem:[#allocation2 + $0x3f] sm:$0xff]
      %v2083 = vld [vmem:[#allocation2 + $0x47] sm:$0xff]
      %v2084 = vld [vmem:[#allocation2 + $0x4f] sm:$0xff]
      %v2085 = vld [vmem:[#allocation2 + $0x57] sm:$0xff]
      %v2086 = vld [vmem:[#allocation2 + $0x5f] sm:$0xff]
      %v2087 = vld [vmem:[#allocation2 + $0x67] sm:$0xff]
      %v2088 = vld [vmem:[#allocation2 + $0x6f] sm:$0xff]
      %v2089 = vld [vmem:[#allocation2 + $0x77] sm:$0xff]
      %v2090 = vld [vmem:[#allocation2 + $0x7f] sm:$0xff]
      %v2091 = vld [vmem:[#allocation2 + $0x87] sm:$0xff]
      %v2092 = vld [vmem:[#allocation2 + $0x8f] sm:$0xff]
      %v2093 = vld [vmem:[#allocation2 + $0x97] sm:$0xff]
      %v2094 = vld [vmem:[#allocation2 + $0x9f] sm:$0xff]
      %v2095 = vld [vmem:[#allocation2 + $0xa7] sm:$0xff]
      %v2096 = vld [vmem:[#allocation2 + $0xaf] sm:$0xff]
      %v2097 = vld [vmem:[#allocation2 + $0xb7] sm:$0xff]
      %v2098 = vld [vmem:[#allocation2 + $0xbf] sm:$0xff]
      %v2099 = vld [vmem:[#allocation2 + $0xc7] sm:$0xff]
      %v2100 = vld [vmem:[#allocation2 + $0xcf] sm:$0xff]
      %v2101 = vld [vmem:[#allocation2 + $0xd7] sm:$0xff]
      %v2102 = vld [vmem:[#allocation2 + $0xdf] sm:$0xff]
      %v2103 = vld [vmem:[#allocation2 + $0xe7] sm:$0xff]
      %v2104 = vld [vmem:[#allocation2 + $0xef] sm:$0xff]
      %v2105 = vld [vmem:[#allocation2 + $0xf7] sm:$0xff]
      %v2106 = vld [vmem:[#allocation2 + $0xff] sm:$0xff]
      %v2107 = vld [vmem:[#allocation2 + $0x107] sm:$0xff]
      %v2108 = vld [vmem:[#allocation2 + $0x10f] sm:$0xff]
      %v2109 = vmul.f32 %v2077, %v709
      %v2110 = vmul.f32 %v2078, %v710
      %v2111 = vmul.f32 %v2079, %v711
      %v2112 = vmul.f32 %v2080, %v712
      %v2113 = vmul.f32 %v2081, %v713
      %v2114 = vmul.f32 %v2082, %v714
      %v2115 = vmul.f32 %v2083, %v715
      %v2116 = vmul.f32 %v2084, %v716
      %v2117 = vmul.f32 %v2085, %v717
      %v2118 = vmul.f32 %v2086, %v718
      %v2119 = vmul.f32 %v2087, %v719
      %v2120 = vmul.f32 %v2088, %v720
      %v2121 = vmul.f32 %v2089, %v721
      %v2122 = vmul.f32 %v2090, %v722
      %v2123 = vmul.f32 %v2091, %v723
      %v2124 = vmul.f32 %v2092, %v724
      %v2125 = vmul.f32 %v2093, %v725
      %v2126 = vmul.f32 %v2094, %v726
      %v2127 = vmul.f32 %v2095, %v727
      %v2128 = vmul.f32 %v2096, %v728
      %v2129 = vmul.f32 %v2097, %v729
      %v2130 = vmul.f32 %v2098, %v730
      %v2131 = vmul.f32 %v2099, %v731
      %v2132 = vmul.f32 %v2100, %v732
      %v2133 = vmul.f32 %v2101, %v733
      %v2134 = vmul.f32 %v2102, %v734
      %v2135 = vmul.f32 %v2103, %v735
      %v2136 = vmul.f32 %v2104, %v736
      %v2137 = vmul.f32 %v2105, %v737
      %v2138 = vmul.f32 %v2106, %v738
      %v2139 = vmul.f32 %v2107, %v739
      %v2140 = vmul.f32 %v2108, %v740
      %s2141 = scalar_lea.vmem %s1, 96
      %v2142 = vld [vmem:[%s2141] sm:$0xff]
      %v2143 = vld [vmem:[%s2141 + $0x8] sm:$0xff]
      %v2144 = vld [vmem:[%s2141 + $0x10] sm:$0xff]
      %v2145 = vld [vmem:[%s2141 + $0x18] sm:$0xff]
      %v2147 = vsel %vm869, %v2109, 0
      %v2150 = vsel %vm869, %v2110, 0
      %v2153 = vsel %vm869, %v2111, 0
      %v2156 = vsel %vm869, %v2112, 0
      %v2159 = vsel %vm869, %v2113, 0
      %v2162 = vsel %vm869, %v2114, 0
      %v2165 = vsel %vm869, %v2115, 0
      %v2168 = vsel %vm869, %v2116, 0
      %v2171 = vsel %vm869, %v2117, 0
      %v2174 = vsel %vm869, %v2118, 0
      %v2177 = vsel %vm869, %v2119, 0
      %v2180 = vsel %vm869, %v2120, 0
      %v2183 = vsel %vm869, %v2121, 0
      %v2186 = vsel %vm869, %v2122, 0
      %v2189 = vsel %vm869, %v2123, 0
      %v2192 = vsel %vm869, %v2124, 0
      %v2195 = vsel %vm869, %v2125, 0
      %v2198 = vsel %vm869, %v2126, 0
      %v2201 = vsel %vm869, %v2127, 0
      %v2204 = vsel %vm869, %v2128, 0
      %v2207 = vsel %vm869, %v2129, 0
      %v2210 = vsel %vm869, %v2130, 0
      %v2213 = vsel %vm869, %v2131, 0
      %v2216 = vsel %vm869, %v2132, 0
      %v2219 = vsel %vm869, %v2133, 0
      %v2222 = vsel %vm869, %v2134, 0
      %v2225 = vsel %vm869, %v2135, 0
      %v2228 = vsel %vm869, %v2136, 0
      %v2231 = vsel %vm869, %v2137, 0
      %v2234 = vsel %vm869, %v2138, 0
      %v2237 = vsel %vm869, %v2139, 0
      %v2240 = vsel %vm869, %v2140, 0
      %2242 = vmatprep.subr.mxu0 0.0
      %2243 = vmatpush1.msra.mxu0 %v2142
      %2244 = vmatprep.subr.mxu0 0.0
      %2245 = vmatpush1.msra.mxu0 %v2143
      %2246 = vmatprep.subr.mxu0 0.0
      %2247 = vmatpush1.msra.mxu0 %v2144
      %2248 = vmatprep.subr.mxu0 0.0
      %2249 = vmatpush1.msra.mxu0 %v2145
      %2250 = vmatprep.subr.mxu0 0.0
      %2251 = vmatpush1.msra.mxu0 0.0
      %2252 = vmatprep.subr.mxu0 0.0
      %2253 = vmatpush1.msra.mxu0 0.0
      %2254 = vmatprep.subr.mxu0 0.0
      %2255 = vmatpush1.msra.mxu0 0.0
      %2256 = vmatprep.subr.mxu0 0.0
      %2257 = vmatpush1.msra.mxu0 0.0
      %2258 = vmatprep.subr.mxu0 0.0
      %2259 = vmatpush1.msra.mxu0 0.0
      %2260 = vmatprep.subr.mxu0 0.0
      %2261 = vmatpush1.msra.mxu0 0.0
      %2262 = vmatprep.subr.mxu0 0.0
      %2263 = vmatpush1.msra.mxu0 0.0
      %2264 = vmatprep.subr.mxu0 0.0
      %2265 = vmatpush1.msra.mxu0 0.0
      %2266 = vmatprep.subr.mxu0 0.0
      %2267 = vmatpush1.msra.mxu0 0.0
      %2268 = vmatprep.subr.mxu0 0.0
      %2269 = vmatpush1.msra.mxu0 0.0
      %2270 = vmatprep.subr.mxu0 0.0
      %2271 = vmatpush1.msra.mxu0 0.0
      %2272 = vmatprep.subr.mxu0 0.0
      %2273 = vmatpush1.msra.mxu0 0.0
      %2274 = vmatprep.subr.mxu0 0.0
      %2275 = vmatpush1.msra.mxu0 0.0
      %2276 = vmatprep.subr.mxu0 0.0
      %2277 = vmatpush1.msra.mxu0 0.0
      %2278 = vmatprep.subr.mxu0 0.0
      %2279 = vmatpush1.msra.mxu0 0.0
      %2280 = vmatprep.subr.mxu0 0.0
      %2281 = vmatpush1.msra.mxu0 0.0
      %2282 = vmatprep.subr.mxu0 0.0
      %2283 = vmatpush1.msra.mxu0 0.0
      %2284 = vmatprep.subr.mxu0 0.0
      %2285 = vmatpush1.msra.mxu0 0.0
      %2286 = vmatprep.subr.mxu0 0.0
      %2287 = vmatpush1.msra.mxu0 0.0
      %2288 = vmatprep.subr.mxu0 0.0
      %2289 = vmatpush1.msra.mxu0 0.0
      %2290 = vmatprep.subr.mxu0 0.0
      %2291 = vmatpush1.msra.mxu0 0.0
      %2292 = vmatprep.subr.mxu0 0.0
      %2293 = vmatpush1.msra.mxu0 0.0
      %2294 = vmatprep.subr.mxu0 0.0
      %2295 = vmatpush1.msra.mxu0 0.0
      %2296 = vmatprep.subr.mxu0 0.0
      %2297 = vmatpush1.msra.mxu0 0.0
      %2298 = vmatprep.subr.mxu0 0.0
      %2299 = vmatpush1.msra.mxu0 0.0
      %2300 = vmatprep.subr.mxu0 0.0
      %2301 = vmatpush1.msra.mxu0 0.0
      %2302 = vmatprep.subr.mxu0 0.0
      %2303 = vmatpush1.msra.mxu0 0.0
      %2304 = vmatprep.subr.mxu0 0.0
      %2305 = vmatpush1.msra.mxu0 0.0
      %2306 = vmatprep.mubr.f32.mxu0 0.0
      %2307 = vmatmul.mubr.f32.gmra.mrb[0].mxu0 %v2147
      %v2308 = vpop.f32.mrb[0].mxu0
      %v2309 = vadd.f32 0.0, %v2308
      %v2310 = vpop.f32.mrb[0].mxu0
      %2311 = vmatprep.mubr.f32.mxu0 0.0
      %2312 = vmatmul.mubr.f32.gmra.mrb[0].mxu0 %v2150
      %v2313 = vpop.f32.mrb[0].mxu0
      %v2314 = vadd.f32 0.0, %v2313
      %v2315 = vpop.f32.mrb[0].mxu0
      %2316 = vmatprep.mubr.f32.mxu0 0.0
      %2317 = vmatmul.mubr.f32.gmra.mrb[0].mxu0 %v2153
      %v2318 = vpop.f32.mrb[0].mxu0
      %v2319 = vadd.f32 0.0, %v2318
      %v2320 = vpop.f32.mrb[0].mxu0
      %2321 = vmatprep.mubr.f32.mxu0 0.0
      %2322 = vmatmul.mubr.f32.gmra.mrb[0].mxu0 %v2156
      %v2323 = vpop.f32.mrb[0].mxu0
      %v2324 = vadd.f32 0.0, %v2323
      %v2325 = vpop.f32.mrb[0].mxu0
      %2326 = vmatprep.mubr.f32.mxu0 0.0
      %2327 = vmatmul.mubr.f32.gmra.mrb[0].mxu0 %v2159
      %v2328 = vpop.f32.mrb[0].mxu0
      %v2329 = vadd.f32 0.0, %v2328
      %v2330 = vpop.f32.mrb[0].mxu0
      %2331 = vmatprep.mubr.f32.mxu0 0.0
      %2332 = vmatmul.mubr.f32.gmra.mrb[0].mxu0 %v2162
      %v2333 = vpop.f32.mrb[0].mxu0
      %v2334 = vadd.f32 0.0, %v2333
      %v2335 = vpop.f32.mrb[0].mxu0
      %2336 = vmatprep.mubr.f32.mxu0 0.0
      %2337 = vmatmul.mubr.f32.gmra.mrb[0].mxu0 %v2165
      %v2338 = vpop.f32.mrb[0].mxu0
      %v2339 = vadd.f32 0.0, %v2338
      %v2340 = vpop.f32.mrb[0].mxu0
      %2341 = vmatprep.mubr.f32.mxu0 0.0
      %2342 = vmatmul.mubr.f32.gmra.mrb[0].mxu0 %v2168
      %v2343 = vpop.f32.mrb[0].mxu0
      %v2344 = vadd.f32 0.0, %v2343
      %v2345 = vpop.f32.mrb[0].mxu0
      %2346 = vmatprep.mubr.f32.mxu0 0.0
      %2347 = vmatmul.mubr.f32.gmra.mrb[0].mxu0 %v2171
      %v2348 = vpop.f32.mrb[0].mxu0
      %v2349 = vadd.f32 0.0, %v2348
      %v2350 = vpop.f32.mrb[0].mxu0
      %2351 = vmatprep.mubr.f32.mxu0 0.0
      %2352 = vmatmul.mubr.f32.gmra.mrb[0].mxu0 %v2174
      %v2353 = vpop.f32.mrb[0].mxu0
      %v2354 = vadd.f32 0.0, %v2353
      %v2355 = vpop.f32.mrb[0].mxu0
      %2356 = vmatprep.mubr.f32.mxu0 0.0
      %2357 = vmatmul.mubr.f32.gmra.mrb[0].mxu0 %v2177
      %v2358 = vpop.f32.mrb[0].mxu0
      %v2359 = vadd.f32 0.0, %v2358
      %v2360 = vpop.f32.mrb[0].mxu0
      %2361 = vmatprep.mubr.f32.mxu0 0.0
      %2362 = vmatmul.mubr.f32.gmra.mrb[0].mxu0 %v2180
      %v2363 = vpop.f32.mrb[0].mxu0
      %v2364 = vadd.f32 0.0, %v2363
      %v2365 = vpop.f32.mrb[0].mxu0
      %2366 = vmatprep.mubr.f32.mxu0 0.0
      %2367 = vmatmul.mubr.f32.gmra.mrb[0].mxu0 %v2183
      %v2368 = vpop.f32.mrb[0].mxu0
      %v2369 = vadd.f32 0.0, %v2368
      %v2370 = vpop.f32.mrb[0].mxu0
      %2371 = vmatprep.mubr.f32.mxu0 0.0
      %2372 = vmatmul.mubr.f32.gmra.mrb[0].mxu0 %v2186
      %v2373 = vpop.f32.mrb[0].mxu0
      %v2374 = vadd.f32 0.0, %v2373
      %v2375 = vpop.f32.mrb[0].mxu0
      %2376 = vmatprep.mubr.f32.mxu0 0.0
      %2377 = vmatmul.mubr.f32.gmra.mrb[0].mxu0 %v2189
      %v2378 = vpop.f32.mrb[0].mxu0
      %v2379 = vadd.f32 0.0, %v2378
      %v2380 = vpop.f32.mrb[0].mxu0
      %2381 = vmatprep.mubr.f32.mxu0 0.0
      %2382 = vmatmul.mubr.f32.gmra.mrb[0].mxu0 %v2192
      %v2383 = vpop.f32.mrb[0].mxu0
      %v2384 = vadd.f32 0.0, %v2383
      %v2385 = vpop.f32.mrb[0].mxu0
      %2386 = vmatprep.mubr.f32.mxu0 0.0
      %2387 = vmatmul.mubr.f32.gmra.mrb[0].mxu0 %v2195
      %v2388 = vpop.f32.mrb[0].mxu0
      %v2389 = vadd.f32 0.0, %v2388
      %v2390 = vpop.f32.mrb[0].mxu0
      %2391 = vmatprep.mubr.f32.mxu0 0.0
      %2392 = vmatmul.mubr.f32.gmra.mrb[0].mxu0 %v2198
      %v2393 = vpop.f32.mrb[0].mxu0
      %v2394 = vadd.f32 0.0, %v2393
      %v2395 = vpop.f32.mrb[0].mxu0
      %2396 = vmatprep.mubr.f32.mxu0 0.0
      %2397 = vmatmul.mubr.f32.gmra.mrb[0].mxu0 %v2201
      %v2398 = vpop.f32.mrb[0].mxu0
      %v2399 = vadd.f32 0.0, %v2398
      %v2400 = vpop.f32.mrb[0].mxu0
      %2401 = vmatprep.mubr.f32.mxu0 0.0
      %2402 = vmatmul.mubr.f32.gmra.mrb[0].mxu0 %v2204
      %v2403 = vpop.f32.mrb[0].mxu0
      %v2404 = vadd.f32 0.0, %v2403
      %v2405 = vpop.f32.mrb[0].mxu0
      %2406 = vmatprep.mubr.f32.mxu0 0.0
      %2407 = vmatmul.mubr.f32.gmra.mrb[0].mxu0 %v2207
      %v2408 = vpop.f32.mrb[0].mxu0
      %v2409 = vadd.f32 0.0, %v2408
      %v2410 = vpop.f32.mrb[0].mxu0
      %2411 = vmatprep.mubr.f32.mxu0 0.0
      %2412 = vmatmul.mubr.f32.gmra.mrb[0].mxu0 %v2210
      %v2413 = vpop.f32.mrb[0].mxu0
      %v2414 = vadd.f32 0.0, %v2413
      %v2415 = vpop.f32.mrb[0].mxu0
      %2416 = vmatprep.mubr.f32.mxu0 0.0
      %2417 = vmatmul.mubr.f32.gmra.mrb[0].mxu0 %v2213
      %v2418 = vpop.f32.mrb[0].mxu0
      %v2419 = vadd.f32 0.0, %v2418
      %v2420 = vpop.f32.mrb[0].mxu0
      %2421 = vmatprep.mubr.f32.mxu0 0.0
      %2422 = vmatmul.mubr.f32.gmra.mrb[0].mxu0 %v2216
      %v2423 = vpop.f32.mrb[0].mxu0
      %v2424 = vadd.f32 0.0, %v2423
      %v2425 = vpop.f32.mrb[0].mxu0
      %2426 = vmatprep.mubr.f32.mxu0 0.0
      %2427 = vmatmul.mubr.f32.gmra.mrb[0].mxu0 %v2219
      %v2428 = vpop.f32.mrb[0].mxu0
      %v2429 = vadd.f32 0.0, %v2428
      %v2430 = vpop.f32.mrb[0].mxu0
      %2431 = vmatprep.mubr.f32.mxu0 0.0
      %2432 = vmatmul.mubr.f32.gmra.mrb[0].mxu0 %v2222
      %v2433 = vpop.f32.mrb[0].mxu0
      %v2434 = vadd.f32 0.0, %v2433
      %v2435 = vpop.f32.mrb[0].mxu0
      %2436 = vmatprep.mubr.f32.mxu0 0.0
      %2437 = vmatmul.mubr.f32.gmra.mrb[0].mxu0 %v2225
      %v2438 = vpop.f32.mrb[0].mxu0
      %v2439 = vadd.f32 0.0, %v2438
      %v2440 = vpop.f32.mrb[0].mxu0
      %2441 = vmatprep.mubr.f32.mxu0 0.0
      %2442 = vmatmul.mubr.f32.gmra.mrb[0].mxu0 %v2228
      %v2443 = vpop.f32.mrb[0].mxu0
      %v2444 = vadd.f32 0.0, %v2443
      %v2445 = vpop.f32.mrb[0].mxu0
      %2446 = vmatprep.mubr.f32.mxu0 0.0
      %2447 = vmatmul.mubr.f32.gmra.mrb[0].mxu0 %v2231
      %v2448 = vpop.f32.mrb[0].mxu0
      %v2449 = vadd.f32 0.0, %v2448
      %v2450 = vpop.f32.mrb[0].mxu0
      %2451 = vmatprep.mubr.f32.mxu0 0.0
      %2452 = vmatmul.mubr.f32.gmra.mrb[0].mxu0 %v2234
      %v2453 = vpop.f32.mrb[0].mxu0
      %v2454 = vadd.f32 0.0, %v2453
      %v2455 = vpop.f32.mrb[0].mxu0
      %2456 = vmatprep.mubr.f32.mxu0 0.0
      %2457 = vmatmul.mubr.f32.gmra.mrb[0].mxu0 %v2237
      %v2458 = vpop.f32.mrb[0].mxu0
      %v2459 = vadd.f32 0.0, %v2458
      %v2460 = vpop.f32.mrb[0].mxu0
      %2461 = vmatprep.mubr.f32.mxu0 0.0
      %2462 = vmatmul.mubr.f32.gmra.mrb[0].mxu0 %v2240
      %v2463 = vpop.f32.mrb[0].mxu0
      %v2464 = vadd.f32 0.0, %v2463
      %v2465 = vpop.f32.mrb[0].mxu0
      %2466 = vdwg.mxu0
      %v2467 = vadd.f32 %v2045, %v2309
      %v2468 = vadd.f32 %v2046, %v2314
      %v2469 = vadd.f32 %v2047, %v2319
      %v2470 = vadd.f32 %v2048, %v2324
      %v2471 = vadd.f32 %v2049, %v2329
      %v2472 = vadd.f32 %v2050, %v2334
      %v2473 = vadd.f32 %v2051, %v2339
      %v2474 = vadd.f32 %v2052, %v2344
      %v2475 = vadd.f32 %v2053, %v2349
      %v2476 = vadd.f32 %v2054, %v2354
      %v2477 = vadd.f32 %v2055, %v2359
      %v2478 = vadd.f32 %v2056, %v2364
      %v2479 = vadd.f32 %v2057, %v2369
      %v2480 = vadd.f32 %v2058, %v2374
      %v2481 = vadd.f32 %v2059, %v2379
      %v2482 = vadd.f32 %v2060, %v2384
      %v2483 = vadd.f32 %v2061, %v2389
      %v2484 = vadd.f32 %v2062, %v2394
      %v2485 = vadd.f32 %v2063, %v2399
      %v2486 = vadd.f32 %v2064, %v2404
      %v2487 = vadd.f32 %v2065, %v2409
      %v2488 = vadd.f32 %v2066, %v2414
      %v2489 = vadd.f32 %v2067, %v2419
      %v2490 = vadd.f32 %v2068, %v2424
      %v2491 = vadd.f32 %v2069, %v2429
      %v2492 = vadd.f32 %v2070, %v2434
      %v2493 = vadd.f32 %v2071, %v2439
      %v2494 = vadd.f32 %v2072, %v2444
      %v2495 = vadd.f32 %v2073, %v2449
      %v2496 = vadd.f32 %v2074, %v2454
      %v2497 = vadd.f32 %v2075, %v2459
      %v2498 = vadd.f32 %v2076, %v2464
      %v2499 = vld [vmem:[#allocation2 + $0x18] sm:$0xff]
      %v2500 = vld [vmem:[#allocation2 + $0x20] sm:$0xff]
      %v2501 = vld [vmem:[#allocation2 + $0x28] sm:$0xff]
      %v2502 = vld [vmem:[#allocation2 + $0x30] sm:$0xff]
      %v2503 = vld [vmem:[#allocation2 + $0x38] sm:$0xff]
      %v2504 = vld [vmem:[#allocation2 + $0x40] sm:$0xff]
      %v2505 = vld [vmem:[#allocation2 + $0x48] sm:$0xff]
      %v2506 = vld [vmem:[#allocation2 + $0x50] sm:$0xff]
      %v2507 = vld [vmem:[#allocation2 + $0x58] sm:$0xff]
      %v2508 = vld [vmem:[#allocation2 + $0x60] sm:$0xff]
      %v2509 = vld [vmem:[#allocation2 + $0x68] sm:$0xff]
      %v2510 = vld [vmem:[#allocation2 + $0x70] sm:$0xff]
      %v2511 = vld [vmem:[#allocation2 + $0x78] sm:$0xff]
      %v2512 = vld [vmem:[#allocation2 + $0x80] sm:$0xff]
      %v2513 = vld [vmem:[#allocation2 + $0x88] sm:$0xff]
      %v2514 = vld [vmem:[#allocation2 + $0x90] sm:$0xff]
      %v2515 = vld [vmem:[#allocation2 + $0x98] sm:$0xff]
      %v2516 = vld [vmem:[#allocation2 + $0xa0] sm:$0xff]
      %v2517 = vld [vmem:[#allocation2 + $0xa8] sm:$0xff]
      %v2518 = vld [vmem:[#allocation2 + $0xb0] sm:$0xff]
      %v2519 = vld [vmem:[#allocation2 + $0xb8] sm:$0xff]
      %v2520 = vld [vmem:[#allocation2 + $0xc0] sm:$0xff]
      %v2521 = vld [vmem:[#allocation2 + $0xc8] sm:$0xff]
      %v2522 = vld [vmem:[#allocation2 + $0xd0] sm:$0xff]
      %v2523 = vld [vmem:[#allocation2 + $0xd8] sm:$0xff]
      %v2524 = vld [vmem:[#allocation2 + $0xe0] sm:$0xff]
      %v2525 = vld [vmem:[#allocation2 + $0xe8] sm:$0xff]
      %v2526 = vld [vmem:[#allocation2 + $0xf0] sm:$0xff]
      %v2527 = vld [vmem:[#allocation2 + $0xf8] sm:$0xff]
      %v2528 = vld [vmem:[#allocation2 + $0x100] sm:$0xff]
      %v2529 = vld [vmem:[#allocation2 + $0x108] sm:$0xff]
      %v2530 = vld [vmem:[#allocation2 + $0x110] sm:$0xff]
      %s2531 = scalar_lea.vmem %s1, 128
      %v2532 = vld [vmem:[%s2531] sm:$0xff]
      %v2533 = vld [vmem:[%s2531 + $0x8] sm:$0xff]
      %v2534 = vld [vmem:[%s2531 + $0x10] sm:$0xff]
      %v2535 = vld [vmem:[%s2531 + $0x18] sm:$0xff]
      %v2537 = vsel %vm869, %v2499, 0
      %v2540 = vsel %vm869, %v2500, 0
      %v2543 = vsel %vm869, %v2501, 0
      %v2546 = vsel %vm869, %v2502, 0
      %v2549 = vsel %vm869, %v2503, 0
      %v2552 = vsel %vm869, %v2504, 0
      %v2555 = vsel %vm869, %v2505, 0
      %v2558 = vsel %vm869, %v2506, 0
      %v2561 = vsel %vm869, %v2507, 0
      %v2564 = vsel %vm869, %v2508, 0
      %v2567 = vsel %vm869, %v2509, 0
      %v2570 = vsel %vm869, %v2510, 0
      %v2573 = vsel %vm869, %v2511, 0
      %v2576 = vsel %vm869, %v2512, 0
      %v2579 = vsel %vm869, %v2513, 0
      %v2582 = vsel %vm869, %v2514, 0
      %v2585 = vsel %vm869, %v2515, 0
      %v2588 = vsel %vm869, %v2516, 0
      %v2591 = vsel %vm869, %v2517, 0
      %v2594 = vsel %vm869, %v2518, 0
      %v2597 = vsel %vm869, %v2519, 0
      %v2600 = vsel %vm869, %v2520, 0
      %v2603 = vsel %vm869, %v2521, 0
      %v2606 = vsel %vm869, %v2522, 0
      %v2609 = vsel %vm869, %v2523, 0
      %v2612 = vsel %vm869, %v2524, 0
      %v2615 = vsel %vm869, %v2525, 0
      %v2618 = vsel %vm869, %v2526, 0
      %v2621 = vsel %vm869, %v2527, 0
      %v2624 = vsel %vm869, %v2528, 0
      %v2627 = vsel %vm869, %v2529, 0
      %v2630 = vsel %vm869, %v2530, 0
      %2632 = vmatprep.subr.mxu0 0.0
      %2633 = vmatpush1.msra.mxu0 %v2532
      %2634 = vmatprep.subr.mxu0 0.0
      %2635 = vmatpush1.msra.mxu0 %v2533
      %2636 = vmatprep.subr.mxu0 0.0
      %2637 = vmatpush1.msra.mxu0 %v2534
      %2638 = vmatprep.subr.mxu0 0.0
      %2639 = vmatpush1.msra.mxu0 %v2535
      %2640 = vmatprep.subr.mxu0 0.0
      %2641 = vmatpush1.msra.mxu0 0.0
      %2642 = vmatprep.subr.mxu0 0.0
      %2643 = vmatpush1.msra.mxu0 0.0
      %2644 = vmatprep.subr.mxu0 0.0
      %2645 = vmatpush1.msra.mxu0 0.0
      %2646 = vmatprep.subr.mxu0 0.0
      %2647 = vmatpush1.msra.mxu0 0.0
      %2648 = vmatprep.subr.mxu0 0.0
      %2649 = vmatpush1.msra.mxu0 0.0
      %2650 = vmatprep.subr.mxu0 0.0
      %2651 = vmatpush1.msra.mxu0 0.0
      %2652 = vmatprep.subr.mxu0 0.0
      %2653 = vmatpush1.msra.mxu0 0.0
      %2654 = vmatprep.subr.mxu0 0.0
      %2655 = vmatpush1.msra.mxu0 0.0
      %2656 = vmatprep.subr.mxu0 0.0
      %2657 = vmatpush1.msra.mxu0 0.0
      %2658 = vmatprep.subr.mxu0 0.0
      %2659 = vmatpush1.msra.mxu0 0.0
      %2660 = vmatprep.subr.mxu0 0.0
      %2661 = vmatpush1.msra.mxu0 0.0
      %2662 = vmatprep.subr.mxu0 0.0
      %2663 = vmatpush1.msra.mxu0 0.0
      %2664 = vmatprep.subr.mxu0 0.0
      %2665 = vmatpush1.msra.mxu0 0.0
      %2666 = vmatprep.subr.mxu0 0.0
      %2667 = vmatpush1.msra.mxu0 0.0
      %2668 = vmatprep.subr.mxu0 0.0
      %2669 = vmatpush1.msra.mxu0 0.0
      %2670 = vmatprep.subr.mxu0 0.0
      %2671 = vmatpush1.msra.mxu0 0.0
      %2672 = vmatprep.subr.mxu0 0.0
      %2673 = vmatpush1.msra.mxu0 0.0
      %2674 = vmatprep.subr.mxu0 0.0
      %2675 = vmatpush1.msra.mxu0 0.0
      %2676 = vmatprep.subr.mxu0 0.0
      %2677 = vmatpush1.msra.mxu0 0.0
      %2678 = vmatprep.subr.mxu0 0.0
      %2679 = vmatpush1.msra.mxu0 0.0
      %2680 = vmatprep.subr.mxu0 0.0
      %2681 = vmatpush1.msra.mxu0 0.0
      %2682 = vmatprep.subr.mxu0 0.0
      %2683 = vmatpush1.msra.mxu0 0.0
      %2684 = vmatprep.subr.mxu0 0.0
      %2685 = vmatpush1.msra.mxu0 0.0
      %2686 = vmatprep.subr.mxu0 0.0
      %2687 = vmatpush1.msra.mxu0 0.0
      %2688 = vmatprep.subr.mxu0 0.0
      %2689 = vmatpush1.msra.mxu0 0.0
      %2690 = vmatprep.subr.mxu0 0.0
      %2691 = vmatpush1.msra.mxu0 0.0
      %2692 = vmatprep.subr.mxu0 0.0
      %2693 = vmatpush1.msra.mxu0 0.0
      %2694 = vmatprep.subr.mxu0 0.0
      %2695 = vmatpush1.msra.mxu0 0.0
      %2696 = vmatprep.mubr.f32.mxu0 0.0
      %2697 = vmatmul.mubr.f32.gmra.mrb[0].mxu0 %v2537
      %v2698 = vpop.f32.mrb[0].mxu0
      %v2699 = vadd.f32 0.0, %v2698
      %v2700 = vpop.f32.mrb[0].mxu0
      %2701 = vmatprep.mubr.f32.mxu0 0.0
      %2702 = vmatmul.mubr.f32.gmra.mrb[0].mxu0 %v2540
      %v2703 = vpop.f32.mrb[0].mxu0
      %v2704 = vadd.f32 0.0, %v2703
      %v2705 = vpop.f32.mrb[0].mxu0
      %2706 = vmatprep.mubr.f32.mxu0 0.0
      %2707 = vmatmul.mubr.f32.gmra.mrb[0].mxu0 %v2543
      %v2708 = vpop.f32.mrb[0].mxu0
      %v2709 = vadd.f32 0.0, %v2708
      %v2710 = vpop.f32.mrb[0].mxu0
      %2711 = vmatprep.mubr.f32.mxu0 0.0
      %2712 = vmatmul.mubr.f32.gmra.mrb[0].mxu0 %v2546
      %v2713 = vpop.f32.mrb[0].mxu0
      %v2714 = vadd.f32 0.0, %v2713
      %v2715 = vpop.f32.mrb[0].mxu0
      %2716 = vmatprep.mubr.f32.mxu0 0.0
      %2717 = vmatmul.mubr.f32.gmra.mrb[0].mxu0 %v2549
      %v2718 = vpop.f32.mrb[0].mxu0
      %v2719 = vadd.f32 0.0, %v2718
      %v2720 = vpop.f32.mrb[0].mxu0
      %2721 = vmatprep.mubr.f32.mxu0 0.0
      %2722 = vmatmul.mubr.f32.gmra.mrb[0].mxu0 %v2552
      %v2723 = vpop.f32.mrb[0].mxu0
      %v2724 = vadd.f32 0.0, %v2723
      %v2725 = vpop.f32.mrb[0].mxu0
      %2726 = vmatprep.mubr.f32.mxu0 0.0
      %2727 = vmatmul.mubr.f32.gmra.mrb[0].mxu0 %v2555
      %v2728 = vpop.f32.mrb[0].mxu0
      %v2729 = vadd.f32 0.0, %v2728
      %v2730 = vpop.f32.mrb[0].mxu0
      %2731 = vmatprep.mubr.f32.mxu0 0.0
      %2732 = vmatmul.mubr.f32.gmra.mrb[0].mxu0 %v2558
      %v2733 = vpop.f32.mrb[0].mxu0
      %v2734 = vadd.f32 0.0, %v2733
      %v2735 = vpop.f32.mrb[0].mxu0
      %2736 = vmatprep.mubr.f32.mxu0 0.0
      %2737 = vmatmul.mubr.f32.gmra.mrb[0].mxu0 %v2561
      %v2738 = vpop.f32.mrb[0].mxu0
      %v2739 = vadd.f32 0.0, %v2738
      %v2740 = vpop.f32.mrb[0].mxu0
      %2741 = vmatprep.mubr.f32.mxu0 0.0
      %2742 = vmatmul.mubr.f32.gmra.mrb[0].mxu0 %v2564
      %v2743 = vpop.f32.mrb[0].mxu0
      %v2744 = vadd.f32 0.0, %v2743
      %v2745 = vpop.f32.mrb[0].mxu0
      %2746 = vmatprep.mubr.f32.mxu0 0.0
      %2747 = vmatmul.mubr.f32.gmra.mrb[0].mxu0 %v2567
      %v2748 = vpop.f32.mrb[0].mxu0
      %v2749 = vadd.f32 0.0, %v2748
      %v2750 = vpop.f32.mrb[0].mxu0
      %2751 = vmatprep.mubr.f32.mxu0 0.0
      %2752 = vmatmul.mubr.f32.gmra.mrb[0].mxu0 %v2570
      %v2753 = vpop.f32.mrb[0].mxu0
      %v2754 = vadd.f32 0.0, %v2753
      %v2755 = vpop.f32.mrb[0].mxu0
      %2756 = vmatprep.mubr.f32.mxu0 0.0
      %2757 = vmatmul.mubr.f32.gmra.mrb[0].mxu0 %v2573
      %v2758 = vpop.f32.mrb[0].mxu0
      %v2759 = vadd.f32 0.0, %v2758
      %v2760 = vpop.f32.mrb[0].mxu0
      %2761 = vmatprep.mubr.f32.mxu0 0.0
      %2762 = vmatmul.mubr.f32.gmra.mrb[0].mxu0 %v2576
      %v2763 = vpop.f32.mrb[0].mxu0
      %v2764 = vadd.f32 0.0, %v2763
      %v2765 = vpop.f32.mrb[0].mxu0
      %2766 = vmatprep.mubr.f32.mxu0 0.0
      %2767 = vmatmul.mubr.f32.gmra.mrb[0].mxu0 %v2579
      %v2768 = vpop.f32.mrb[0].mxu0
      %v2769 = vadd.f32 0.0, %v2768
      %v2770 = vpop.f32.mrb[0].mxu0
      %2771 = vmatprep.mubr.f32.mxu0 0.0
      %2772 = vmatmul.mubr.f32.gmra.mrb[0].mxu0 %v2582
      %v2773 = vpop.f32.mrb[0].mxu0
      %v2774 = vadd.f32 0.0, %v2773
      %v2775 = vpop.f32.mrb[0].mxu0
      %2776 = vmatprep.mubr.f32.mxu0 0.0
      %2777 = vmatmul.mubr.f32.gmra.mrb[0].mxu0 %v2585
      %v2778 = vpop.f32.mrb[0].mxu0
      %v2779 = vadd.f32 0.0, %v2778
      %v2780 = vpop.f32.mrb[0].mxu0
      %2781 = vmatprep.mubr.f32.mxu0 0.0
      %2782 = vmatmul.mubr.f32.gmra.mrb[0].mxu0 %v2588
      %v2783 = vpop.f32.mrb[0].mxu0
      %v2784 = vadd.f32 0.0, %v2783
      %v2785 = vpop.f32.mrb[0].mxu0
      %2786 = vmatprep.mubr.f32.mxu0 0.0
      %2787 = vmatmul.mubr.f32.gmra.mrb[0].mxu0 %v2591
      %v2788 = vpop.f32.mrb[0].mxu0
      %v2789 = vadd.f32 0.0, %v2788
      %v2790 = vpop.f32.mrb[0].mxu0
      %2791 = vmatprep.mubr.f32.mxu0 0.0
      %2792 = vmatmul.mubr.f32.gmra.mrb[0].mxu0 %v2594
      %v2793 = vpop.f32.mrb[0].mxu0
      %v2794 = vadd.f32 0.0, %v2793
      %v2795 = vpop.f32.mrb[0].mxu0
      %2796 = vmatprep.mubr.f32.mxu0 0.0
      %2797 = vmatmul.mubr.f32.gmra.mrb[0].mxu0 %v2597
      %v2798 = vpop.f32.mrb[0].mxu0
      %v2799 = vadd.f32 0.0, %v2798
      %v2800 = vpop.f32.mrb[0].mxu0
      %2801 = vmatprep.mubr.f32.mxu0 0.0
      %2802 = vmatmul.mubr.f32.gmra.mrb[0].mxu0 %v2600
      %v2803 = vpop.f32.mrb[0].mxu0
      %v2804 = vadd.f32 0.0, %v2803
      %v2805 = vpop.f32.mrb[0].mxu0
      %2806 = vmatprep.mubr.f32.mxu0 0.0
      %2807 = vmatmul.mubr.f32.gmra.mrb[0].mxu0 %v2603
      %v2808 = vpop.f32.mrb[0].mxu0
      %v2809 = vadd.f32 0.0, %v2808
      %v2810 = vpop.f32.mrb[0].mxu0
      %2811 = vmatprep.mubr.f32.mxu0 0.0
      %2812 = vmatmul.mubr.f32.gmra.mrb[0].mxu0 %v2606
      %v2813 = vpop.f32.mrb[0].mxu0
      %v2814 = vadd.f32 0.0, %v2813
      %v2815 = vpop.f32.mrb[0].mxu0
      %2816 = vmatprep.mubr.f32.mxu0 0.0
      %2817 = vmatmul.mubr.f32.gmra.mrb[0].mxu0 %v2609
      %v2818 = vpop.f32.mrb[0].mxu0
      %v2819 = vadd.f32 0.0, %v2818
      %v2820 = vpop.f32.mrb[0].mxu0
      %2821 = vmatprep.mubr.f32.mxu0 0.0
      %2822 = vmatmul.mubr.f32.gmra.mrb[0].mxu0 %v2612
      %v2823 = vpop.f32.mrb[0].mxu0
      %v2824 = vadd.f32 0.0, %v2823
      %v2825 = vpop.f32.mrb[0].mxu0
      %2826 = vmatprep.mubr.f32.mxu0 0.0
      %2827 = vmatmul.mubr.f32.gmra.mrb[0].mxu0 %v2615
      %v2828 = vpop.f32.mrb[0].mxu0
      %v2829 = vadd.f32 0.0, %v2828
      %v2830 = vpop.f32.mrb[0].mxu0
      %2831 = vmatprep.mubr.f32.mxu0 0.0
      %2832 = vmatmul.mubr.f32.gmra.mrb[0].mxu0 %v2618
      %v2833 = vpop.f32.mrb[0].mxu0
      %v2834 = vadd.f32 0.0, %v2833
      %v2835 = vpop.f32.mrb[0].mxu0
      %2836 = vmatprep.mubr.f32.mxu0 0.0
      %2837 = vmatmul.mubr.f32.gmra.mrb[0].mxu0 %v2621
      %v2838 = vpop.f32.mrb[0].mxu0
      %v2839 = vadd.f32 0.0, %v2838
      %v2840 = vpop.f32.mrb[0].mxu0
      %2841 = vmatprep.mubr.f32.mxu0 0.0
      %2842 = vmatmul.mubr.f32.gmra.mrb[0].mxu0 %v2624
      %v2843 = vpop.f32.mrb[0].mxu0
      %v2844 = vadd.f32 0.0, %v2843
      %v2845 = vpop.f32.mrb[0].mxu0
      %2846 = vmatprep.mubr.f32.mxu0 0.0
      %2847 = vmatmul.mubr.f32.gmra.mrb[0].mxu0 %v2627
      %v2848 = vpop.f32.mrb[0].mxu0
      %v2849 = vadd.f32 0.0, %v2848
      %v2850 = vpop.f32.mrb[0].mxu0
      %2851 = vmatprep.mubr.f32.mxu0 0.0
      %2852 = vmatmul.mubr.f32.gmra.mrb[0].mxu0 %v2630
      %v2853 = vpop.f32.mrb[0].mxu0
      %v2854 = vadd.f32 0.0, %v2853
      %v2855 = vpop.f32.mrb[0].mxu0
      %2856 = vdwg.mxu0
      %v2857 = vadd.f32 %v2467, %v2699
      %v2858 = vadd.f32 %v2468, %v2704
      %v2859 = vadd.f32 %v2469, %v2709
      %v2860 = vadd.f32 %v2470, %v2714
      %v2861 = vadd.f32 %v2471, %v2719
      %v2862 = vadd.f32 %v2472, %v2724
      %v2863 = vadd.f32 %v2473, %v2729
      %v2864 = vadd.f32 %v2474, %v2734
      %v2865 = vadd.f32 %v2475, %v2739
      %v2866 = vadd.f32 %v2476, %v2744
      %v2867 = vadd.f32 %v2477, %v2749
      %v2868 = vadd.f32 %v2478, %v2754
      %v2869 = vadd.f32 %v2479, %v2759
      %v2870 = vadd.f32 %v2480, %v2764
      %v2871 = vadd.f32 %v2481, %v2769
      %v2872 = vadd.f32 %v2482, %v2774
      %v2873 = vadd.f32 %v2483, %v2779
      %v2874 = vadd.f32 %v2484, %v2784
      %v2875 = vadd.f32 %v2485, %v2789
      %v2876 = vadd.f32 %v2486, %v2794
      %v2877 = vadd.f32 %v2487, %v2799
      %v2878 = vadd.f32 %v2488, %v2804
      %v2879 = vadd.f32 %v2489, %v2809
      %v2880 = vadd.f32 %v2490, %v2814
      %v2881 = vadd.f32 %v2491, %v2819
      %v2882 = vadd.f32 %v2492, %v2824
      %v2883 = vadd.f32 %v2493, %v2829
      %v2884 = vadd.f32 %v2494, %v2834
      %v2885 = vadd.f32 %v2495, %v2839
      %v2886 = vadd.f32 %v2496, %v2844
      %v2887 = vadd.f32 %v2497, %v2849
      %v2888 = vadd.f32 %v2498, %v2854
      %v2889 = vld [vmem:[#allocation2 + $0x19] sm:$0xff]
      %v2890 = vld [vmem:[#allocation2 + $0x21] sm:$0xff]
      %v2891 = vld [vmem:[#allocation2 + $0x29] sm:$0xff]
      %v2892 = vld [vmem:[#allocation2 + $0x31] sm:$0xff]
      %v2893 = vld [vmem:[#allocation2 + $0x39] sm:$0xff]
      %v2894 = vld [vmem:[#allocation2 + $0x41] sm:$0xff]
      %v2895 = vld [vmem:[#allocation2 + $0x49] sm:$0xff]
      %v2896 = vld [vmem:[#allocation2 + $0x51] sm:$0xff]
      %v2897 = vld [vmem:[#allocation2 + $0x59] sm:$0xff]
      %v2898 = vld [vmem:[#allocation2 + $0x61] sm:$0xff]
      %v2899 = vld [vmem:[#allocation2 + $0x69] sm:$0xff]
      %v2900 = vld [vmem:[#allocation2 + $0x71] sm:$0xff]
      %v2901 = vld [vmem:[#allocation2 + $0x79] sm:$0xff]
      %v2902 = vld [vmem:[#allocation2 + $0x81] sm:$0xff]
      %v2903 = vld [vmem:[#allocation2 + $0x89] sm:$0xff]
      %v2904 = vld [vmem:[#allocation2 + $0x91] sm:$0xff]
      %v2905 = vld [vmem:[#allocation2 + $0x99] sm:$0xff]
      %v2906 = vld [vmem:[#allocation2 + $0xa1] sm:$0xff]
      %v2907 = vld [vmem:[#allocation2 + $0xa9] sm:$0xff]
      %v2908 = vld [vmem:[#allocation2 + $0xb1] sm:$0xff]
      %v2909 = vld [vmem:[#allocation2 + $0xb9] sm:$0xff]
      %v2910 = vld [vmem:[#allocation2 + $0xc1] sm:$0xff]
      %v2911 = vld [vmem:[#allocation2 + $0xc9] sm:$0xff]
      %v2912 = vld [vmem:[#allocation2 + $0xd1] sm:$0xff]
      %v2913 = vld [vmem:[#allocation2 + $0xd9] sm:$0xff]
      %v2914 = vld [vmem:[#allocation2 + $0xe1] sm:$0xff]
      %v2915 = vld [vmem:[#allocation2 + $0xe9] sm:$0xff]
      %v2916 = vld [vmem:[#allocation2 + $0xf1] sm:$0xff]
      %v2917 = vld [vmem:[#allocation2 + $0xf9] sm:$0xff]
      %v2918 = vld [vmem:[#allocation2 + $0x101] sm:$0xff]
      %v2919 = vld [vmem:[#allocation2 + $0x109] sm:$0xff]
      %v2920 = vld [vmem:[#allocation2 + $0x111] sm:$0xff]
      %v2921 = vmul.f32 %v2889, %v805
      %v2922 = vmul.f32 %v2890, %v806
      %v2923 = vmul.f32 %v2891, %v807
      %v2924 = vmul.f32 %v2892, %v808
      %v2925 = vmul.f32 %v2893, %v809
      %v2926 = vmul.f32 %v2894, %v810
      %v2927 = vmul.f32 %v2895, %v811
      %v2928 = vmul.f32 %v2896, %v812
      %v2929 = vmul.f32 %v2897, %v813
      %v2930 = vmul.f32 %v2898, %v814
      %v2931 = vmul.f32 %v2899, %v815
      %v2932 = vmul.f32 %v2900, %v816
      %v2933 = vmul.f32 %v2901, %v817
      %v2934 = vmul.f32 %v2902, %v818
      %v2935 = vmul.f32 %v2903, %v819
      %v2936 = vmul.f32 %v2904, %v820
      %v2937 = vmul.f32 %v2905, %v821
      %v2938 = vmul.f32 %v2906, %v822
      %v2939 = vmul.f32 %v2907, %v823
      %v2940 = vmul.f32 %v2908, %v824
      %v2941 = vmul.f32 %v2909, %v825
      %v2942 = vmul.f32 %v2910, %v826
      %v2943 = vmul.f32 %v2911, %v827
      %v2944 = vmul.f32 %v2912, %v828
      %v2945 = vmul.f32 %v2913, %v829
      %v2946 = vmul.f32 %v2914, %v830
      %v2947 = vmul.f32 %v2915, %v831
      %v2948 = vmul.f32 %v2916, %v832
      %v2949 = vmul.f32 %v2917, %v833
      %v2950 = vmul.f32 %v2918, %v834
      %v2951 = vmul.f32 %v2919, %v835
      %v2952 = vmul.f32 %v2920, %v836
      %s2953 = scalar_lea.vmem %s1, 160
      %v2954 = vld [vmem:[%s2953] sm:$0xff]
      %v2955 = vld [vmem:[%s2953 + $0x8] sm:$0xff]
      %v2956 = vld [vmem:[%s2953 + $0x10] sm:$0xff]
      %v2957 = vld [vmem:[%s2953 + $0x18] sm:$0xff]
      %v2959 = vsel %vm869, %v2921, 0
      %v2962 = vsel %vm869, %v2922, 0
      %v2965 = vsel %vm869, %v2923, 0
      %v2968 = vsel %vm869, %v2924, 0
      %v2971 = vsel %vm869, %v2925, 0
      %v2974 = vsel %vm869, %v2926, 0
      %v2977 = vsel %vm869, %v2927, 0
      %v2980 = vsel %vm869, %v2928, 0
      %v2983 = vsel %vm869, %v2929, 0
      %v2986 = vsel %vm869, %v2930, 0
      %v2989 = vsel %vm869, %v2931, 0
      %v2992 = vsel %vm869, %v2932, 0
      %v2995 = vsel %vm869, %v2933, 0
      %v2998 = vsel %vm869, %v2934, 0
      %v3001 = vsel %vm869, %v2935, 0
      %v3004 = vsel %vm869, %v2936, 0
      %v3007 = vsel %vm869, %v2937, 0
      %v3010 = vsel %vm869, %v2938, 0
      %v3013 = vsel %vm869, %v2939, 0
      %v3016 = vsel %vm869, %v2940, 0
      %v3019 = vsel %vm869, %v2941, 0
      %v3022 = vsel %vm869, %v2942, 0
      %v3025 = vsel %vm869, %v2943, 0
      %v3028 = vsel %vm869, %v2944, 0
      %v3031 = vsel %vm869, %v2945, 0
      %v3034 = vsel %vm869, %v2946, 0
      %v3037 = vsel %vm869, %v2947, 0
      %v3040 = vsel %vm869, %v2948, 0
      %v3043 = vsel %vm869, %v2949, 0
      %v3046 = vsel %vm869, %v2950, 0
      %v3049 = vsel %vm869, %v2951, 0
      %v3052 = vsel %vm869, %v2952, 0
      %3054 = vmatprep.subr.mxu0 0.0
      %3055 = vmatpush1.msra.mxu0 %v2954
      %3056 = vmatprep.subr.mxu0 0.0
      %3057 = vmatpush1.msra.mxu0 %v2955
      %3058 = vmatprep.subr.mxu0 0.0
      %3059 = vmatpush1.msra.mxu0 %v2956
      %3060 = vmatprep.subr.mxu0 0.0
      %3061 = vmatpush1.msra.mxu0 %v2957
      %3062 = vmatprep.subr.mxu0 0.0
      %3063 = vmatpush1.msra.mxu0 0.0
      %3064 = vmatprep.subr.mxu0 0.0
      %3065 = vmatpush1.msra.mxu0 0.0
      %3066 = vmatprep.subr.mxu0 0.0
      %3067 = vmatpush1.msra.mxu0 0.0
      %3068 = vmatprep.subr.mxu0 0.0
      %3069 = vmatpush1.msra.mxu0 0.0
      %3070 = vmatprep.subr.mxu0 0.0
      %3071 = vmatpush1.msra.mxu0 0.0
      %3072 = vmatprep.subr.mxu0 0.0
      %3073 = vmatpush1.msra.mxu0 0.0
      %3074 = vmatprep.subr.mxu0 0.0
      %3075 = vmatpush1.msra.mxu0 0.0
      %3076 = vmatprep.subr.mxu0 0.0
      %3077 = vmatpush1.msra.mxu0 0.0
      %3078 = vmatprep.subr.mxu0 0.0
      %3079 = vmatpush1.msra.mxu0 0.0
      %3080 = vmatprep.subr.mxu0 0.0
      %3081 = vmatpush1.msra.mxu0 0.0
      %3082 = vmatprep.subr.mxu0 0.0
      %3083 = vmatpush1.msra.mxu0 0.0
      %3084 = vmatprep.subr.mxu0 0.0
      %3085 = vmatpush1.msra.mxu0 0.0
      %3086 = vmatprep.subr.mxu0 0.0
      %3087 = vmatpush1.msra.mxu0 0.0
      %3088 = vmatprep.subr.mxu0 0.0
      %3089 = vmatpush1.msra.mxu0 0.0
      %3090 = vmatprep.subr.mxu0 0.0
      %3091 = vmatpush1.msra.mxu0 0.0
      %3092 = vmatprep.subr.mxu0 0.0
      %3093 = vmatpush1.msra.mxu0 0.0
      %3094 = vmatprep.subr.mxu0 0.0
      %3095 = vmatpush1.msra.mxu0 0.0
      %3096 = vmatprep.subr.mxu0 0.0
      %3097 = vmatpush1.msra.mxu0 0.0
      %3098 = vmatprep.subr.mxu0 0.0
      %3099 = vmatpush1.msra.mxu0 0.0
      %3100 = vmatprep.subr.mxu0 0.0
      %3101 = vmatpush1.msra.mxu0 0.0
      %3102 = vmatprep.subr.mxu0 0.0
      %3103 = vmatpush1.msra.mxu0 0.0
      %3104 = vmatprep.subr.mxu0 0.0
      %3105 = vmatpush1.msra.mxu0 0.0
      %3106 = vmatprep.subr.mxu0 0.0
      %3107 = vmatpush1.msra.mxu0 0.0
      %3108 = vmatprep.subr.mxu0 0.0
      %3109 = vmatpush1.msra.mxu0 0.0
      %3110 = vmatprep.subr.mxu0 0.0
      %3111 = vmatpush1.msra.mxu0 0.0
      %3112 = vmatprep.subr.mxu0 0.0
      %3113 = vmatpush1.msra.mxu0 0.0
      %3114 = vmatprep.subr.mxu0 0.0
      %3115 = vmatpush1.msra.mxu0 0.0
      %3116 = vmatprep.subr.mxu0 0.0
      %3117 = vmatpush1.msra.mxu0 0.0
      %3118 = vmatprep.mubr.f32.mxu0 0.0
      %3119 = vmatmul.mubr.f32.gmra.mrb[0].mxu0 %v2959
      %v3120 = vpop.f32.mrb[0].mxu0
      %v3121 = vadd.f32 0.0, %v3120
      %v3122 = vpop.f32.mrb[0].mxu0
      %3123 = vmatprep.mubr.f32.mxu0 0.0
      %3124 = vmatmul.mubr.f32.gmra.mrb[0].mxu0 %v2962
      %v3125 = vpop.f32.mrb[0].mxu0
      %v3126 = vadd.f32 0.0, %v3125
      %v3127 = vpop.f32.mrb[0].mxu0
      %3128 = vmatprep.mubr.f32.mxu0 0.0
      %3129 = vmatmul.mubr.f32.gmra.mrb[0].mxu0 %v2965
      %v3130 = vpop.f32.mrb[0].mxu0
      %v3131 = vadd.f32 0.0, %v3130
      %v3132 = vpop.f32.mrb[0].mxu0
      %3133 = vmatprep.mubr.f32.mxu0 0.0
      %3134 = vmatmul.mubr.f32.gmra.mrb[0].mxu0 %v2968
      %v3135 = vpop.f32.mrb[0].mxu0
      %v3136 = vadd.f32 0.0, %v3135
      %v3137 = vpop.f32.mrb[0].mxu0
      %3138 = vmatprep.mubr.f32.mxu0 0.0
      %3139 = vmatmul.mubr.f32.gmra.mrb[0].mxu0 %v2971
      %v3140 = vpop.f32.mrb[0].mxu0
      %v3141 = vadd.f32 0.0, %v3140
      %v3142 = vpop.f32.mrb[0].mxu0
      %3143 = vmatprep.mubr.f32.mxu0 0.0
      %3144 = vmatmul.mubr.f32.gmra.mrb[0].mxu0 %v2974
      %v3145 = vpop.f32.mrb[0].mxu0
      %v3146 = vadd.f32 0.0, %v3145
      %v3147 = vpop.f32.mrb[0].mxu0
      %3148 = vmatprep.mubr.f32.mxu0 0.0
      %3149 = vmatmul.mubr.f32.gmra.mrb[0].mxu0 %v2977
      %v3150 = vpop.f32.mrb[0].mxu0
      %v3151 = vadd.f32 0.0, %v3150
      %v3152 = vpop.f32.mrb[0].mxu0
      %3153 = vmatprep.mubr.f32.mxu0 0.0
      %3154 = vmatmul.mubr.f32.gmra.mrb[0].mxu0 %v2980
      %v3155 = vpop.f32.mrb[0].mxu0
      %v3156 = vadd.f32 0.0, %v3155
      %v3157 = vpop.f32.mrb[0].mxu0
      %3158 = vmatprep.mubr.f32.mxu0 0.0
      %3159 = vmatmul.mubr.f32.gmra.mrb[0].mxu0 %v2983
      %v3160 = vpop.f32.mrb[0].mxu0
      %v3161 = vadd.f32 0.0, %v3160
      %v3162 = vpop.f32.mrb[0].mxu0
      %3163 = vmatprep.mubr.f32.mxu0 0.0
      %3164 = vmatmul.mubr.f32.gmra.mrb[0].mxu0 %v2986
      %v3165 = vpop.f32.mrb[0].mxu0
      %v3166 = vadd.f32 0.0, %v3165
      %v3167 = vpop.f32.mrb[0].mxu0
      %3168 = vmatprep.mubr.f32.mxu0 0.0
      %3169 = vmatmul.mubr.f32.gmra.mrb[0].mxu0 %v2989
      %v3170 = vpop.f32.mrb[0].mxu0
      %v3171 = vadd.f32 0.0, %v3170
      %v3172 = vpop.f32.mrb[0].mxu0
      %3173 = vmatprep.mubr.f32.mxu0 0.0
      %3174 = vmatmul.mubr.f32.gmra.mrb[0].mxu0 %v2992
      %v3175 = vpop.f32.mrb[0].mxu0
      %v3176 = vadd.f32 0.0, %v3175
      %v3177 = vpop.f32.mrb[0].mxu0
      %3178 = vmatprep.mubr.f32.mxu0 0.0
      %3179 = vmatmul.mubr.f32.gmra.mrb[0].mxu0 %v2995
      %v3180 = vpop.f32.mrb[0].mxu0
      %v3181 = vadd.f32 0.0, %v3180
      %v3182 = vpop.f32.mrb[0].mxu0
      %3183 = vmatprep.mubr.f32.mxu0 0.0
      %3184 = vmatmul.mubr.f32.gmra.mrb[0].mxu0 %v2998
      %v3185 = vpop.f32.mrb[0].mxu0
      %v3186 = vadd.f32 0.0, %v3185
      %v3187 = vpop.f32.mrb[0].mxu0
      %3188 = vmatprep.mubr.f32.mxu0 0.0
      %3189 = vmatmul.mubr.f32.gmra.mrb[0].mxu0 %v3001
      %v3190 = vpop.f32.mrb[0].mxu0
      %v3191 = vadd.f32 0.0, %v3190
      %v3192 = vpop.f32.mrb[0].mxu0
      %3193 = vmatprep.mubr.f32.mxu0 0.0
      %3194 = vmatmul.mubr.f32.gmra.mrb[0].mxu0 %v3004
      %v3195 = vpop.f32.mrb[0].mxu0
      %v3196 = vadd.f32 0.0, %v3195
      %v3197 = vpop.f32.mrb[0].mxu0
      %3198 = vmatprep.mubr.f32.mxu0 0.0
      %3199 = vmatmul.mubr.f32.gmra.mrb[0].mxu0 %v3007
      %v3200 = vpop.f32.mrb[0].mxu0
      %v3201 = vadd.f32 0.0, %v3200
      %v3202 = vpop.f32.mrb[0].mxu0
      %3203 = vmatprep.mubr.f32.mxu0 0.0
      %3204 = vmatmul.mubr.f32.gmra.mrb[0].mxu0 %v3010
      %v3205 = vpop.f32.mrb[0].mxu0
      %v3206 = vadd.f32 0.0, %v3205
      %v3207 = vpop.f32.mrb[0].mxu0
      %3208 = vmatprep.mubr.f32.mxu0 0.0
      %3209 = vmatmul.mubr.f32.gmra.mrb[0].mxu0 %v3013
      %v3210 = vpop.f32.mrb[0].mxu0
      %v3211 = vadd.f32 0.0, %v3210
      %v3212 = vpop.f32.mrb[0].mxu0
      %3213 = vmatprep.mubr.f32.mxu0 0.0
      %3214 = vmatmul.mubr.f32.gmra.mrb[0].mxu0 %v3016
      %v3215 = vpop.f32.mrb[0].mxu0
      %v3216 = vadd.f32 0.0, %v3215
      %v3217 = vpop.f32.mrb[0].mxu0
      %3218 = vmatprep.mubr.f32.mxu0 0.0
      %3219 = vmatmul.mubr.f32.gmra.mrb[0].mxu0 %v3019
      %v3220 = vpop.f32.mrb[0].mxu0
      %v3221 = vadd.f32 0.0, %v3220
      %v3222 = vpop.f32.mrb[0].mxu0
      %3223 = vmatprep.mubr.f32.mxu0 0.0
      %3224 = vmatmul.mubr.f32.gmra.mrb[0].mxu0 %v3022
      %v3225 = vpop.f32.mrb[0].mxu0
      %v3226 = vadd.f32 0.0, %v3225
      %v3227 = vpop.f32.mrb[0].mxu0
      %3228 = vmatprep.mubr.f32.mxu0 0.0
      %3229 = vmatmul.mubr.f32.gmra.mrb[0].mxu0 %v3025
      %v3230 = vpop.f32.mrb[0].mxu0
      %v3231 = vadd.f32 0.0, %v3230
      %v3232 = vpop.f32.mrb[0].mxu0
      %3233 = vmatprep.mubr.f32.mxu0 0.0
      %3234 = vmatmul.mubr.f32.gmra.mrb[0].mxu0 %v3028
      %v3235 = vpop.f32.mrb[0].mxu0
      %v3236 = vadd.f32 0.0, %v3235
      %v3237 = vpop.f32.mrb[0].mxu0
      %3238 = vmatprep.mubr.f32.mxu0 0.0
      %3239 = vmatmul.mubr.f32.gmra.mrb[0].mxu0 %v3031
      %v3240 = vpop.f32.mrb[0].mxu0
      %v3241 = vadd.f32 0.0, %v3240
      %v3242 = vpop.f32.mrb[0].mxu0
      %3243 = vmatprep.mubr.f32.mxu0 0.0
      %3244 = vmatmul.mubr.f32.gmra.mrb[0].mxu0 %v3034
      %v3245 = vpop.f32.mrb[0].mxu0
      %v3246 = vadd.f32 0.0, %v3245
      %v3247 = vpop.f32.mrb[0].mxu0
      %3248 = vmatprep.mubr.f32.mxu0 0.0
      %3249 = vmatmul.mubr.f32.gmra.mrb[0].mxu0 %v3037
      %v3250 = vpop.f32.mrb[0].mxu0
      %v3251 = vadd.f32 0.0, %v3250
      %v3252 = vpop.f32.mrb[0].mxu0
      %3253 = vmatprep.mubr.f32.mxu0 0.0
      %3254 = vmatmul.mubr.f32.gmra.mrb[0].mxu0 %v3040
      %v3255 = vpop.f32.mrb[0].mxu0
      %v3256 = vadd.f32 0.0, %v3255
      %v3257 = vpop.f32.mrb[0].mxu0
      %3258 = vmatprep.mubr.f32.mxu0 0.0
      %3259 = vmatmul.mubr.f32.gmra.mrb[0].mxu0 %v3043
      %v3260 = vpop.f32.mrb[0].mxu0
      %v3261 = vadd.f32 0.0, %v3260
      %v3262 = vpop.f32.mrb[0].mxu0
      %3263 = vmatprep.mubr.f32.mxu0 0.0
      %3264 = vmatmul.mubr.f32.gmra.mrb[0].mxu0 %v3046
      %v3265 = vpop.f32.mrb[0].mxu0
      %v3266 = vadd.f32 0.0, %v3265
      %v3267 = vpop.f32.mrb[0].mxu0
      %3268 = vmatprep.mubr.f32.mxu0 0.0
      %3269 = vmatmul.mubr.f32.gmra.mrb[0].mxu0 %v3049
      %v3270 = vpop.f32.mrb[0].mxu0
      %v3271 = vadd.f32 0.0, %v3270
      %v3272 = vpop.f32.mrb[0].mxu0
      %3273 = vmatprep.mubr.f32.mxu0 0.0
      %3274 = vmatmul.mubr.f32.gmra.mrb[0].mxu0 %v3052
      %v3275 = vpop.f32.mrb[0].mxu0
      %v3276 = vadd.f32 0.0, %v3275
      %v3277 = vpop.f32.mrb[0].mxu0
      %3278 = vdwg.mxu0
      %v3279 = vadd.f32 %v2857, %v3121
      %v3280 = vadd.f32 %v2858, %v3126
      %v3281 = vadd.f32 %v2859, %v3131
      %v3282 = vadd.f32 %v2860, %v3136
      %v3283 = vadd.f32 %v2861, %v3141
      %v3284 = vadd.f32 %v2862, %v3146
      %v3285 = vadd.f32 %v2863, %v3151
      %v3286 = vadd.f32 %v2864, %v3156
      %v3287 = vadd.f32 %v2865, %v3161
      %v3288 = vadd.f32 %v2866, %v3166
      %v3289 = vadd.f32 %v2867, %v3171
      %v3290 = vadd.f32 %v2868, %v3176
      %v3291 = vadd.f32 %v2869, %v3181
      %v3292 = vadd.f32 %v2870, %v3186
      %v3293 = vadd.f32 %v2871, %v3191
      %v3294 = vadd.f32 %v2872, %v3196
      %v3295 = vadd.f32 %v2873, %v3201
      %v3296 = vadd.f32 %v2874, %v3206
      %v3297 = vadd.f32 %v2875, %v3211
      %v3298 = vadd.f32 %v2876, %v3216
      %v3299 = vadd.f32 %v2877, %v3221
      %v3300 = vadd.f32 %v2878, %v3226
      %v3301 = vadd.f32 %v2879, %v3231
      %v3302 = vadd.f32 %v2880, %v3236
      %v3303 = vadd.f32 %v2881, %v3241
      %v3304 = vadd.f32 %v2882, %v3246
      %v3305 = vadd.f32 %v2883, %v3251
      %v3306 = vadd.f32 %v2884, %v3256
      %v3307 = vadd.f32 %v2885, %v3261
      %v3308 = vadd.f32 %v2886, %v3266
      %v3309 = vadd.f32 %v2887, %v3271
      %v3310 = vadd.f32 %v2888, %v3276
      %v3311 = vld [vmem:[#allocation2 + $0x27] sm:$0xff]
      %v3312 = vld [vmem:[#allocation2 + $0x2f] sm:$0xff]
      %v3313 = vld [vmem:[#allocation2 + $0x37] sm:$0xff]
      %v3314 = vld [vmem:[#allocation2 + $0x3f] sm:$0xff]
      %v3315 = vld [vmem:[#allocation2 + $0x47] sm:$0xff]
      %v3316 = vld [vmem:[#allocation2 + $0x4f] sm:$0xff]
      %v3317 = vld [vmem:[#allocation2 + $0x57] sm:$0xff]
      %v3318 = vld [vmem:[#allocation2 + $0x5f] sm:$0xff]
      %v3319 = vld [vmem:[#allocation2 + $0x67] sm:$0xff]
      %v3320 = vld [vmem:[#allocation2 + $0x6f] sm:$0xff]
      %v3321 = vld [vmem:[#allocation2 + $0x77] sm:$0xff]
      %v3322 = vld [vmem:[#allocation2 + $0x7f] sm:$0xff]
      %v3323 = vld [vmem:[#allocation2 + $0x87] sm:$0xff]
      %v3324 = vld [vmem:[#allocation2 + $0x8f] sm:$0xff]
      %v3325 = vld [vmem:[#allocation2 + $0x97] sm:$0xff]
      %v3326 = vld [vmem:[#allocation2 + $0x9f] sm:$0xff]
      %v3327 = vld [vmem:[#allocation2 + $0xa7] sm:$0xff]
      %v3328 = vld [vmem:[#allocation2 + $0xaf] sm:$0xff]
      %v3329 = vld [vmem:[#allocation2 + $0xb7] sm:$0xff]
      %v3330 = vld [vmem:[#allocation2 + $0xbf] sm:$0xff]
      %v3331 = vld [vmem:[#allocation2 + $0xc7] sm:$0xff]
      %v3332 = vld [vmem:[#allocation2 + $0xcf] sm:$0xff]
      %v3333 = vld [vmem:[#allocation2 + $0xd7] sm:$0xff]
      %v3334 = vld [vmem:[#allocation2 + $0xdf] sm:$0xff]
      %v3335 = vld [vmem:[#allocation2 + $0xe7] sm:$0xff]
      %v3336 = vld [vmem:[#allocation2 + $0xef] sm:$0xff]
      %v3337 = vld [vmem:[#allocation2 + $0xf7] sm:$0xff]
      %v3338 = vld [vmem:[#allocation2 + $0xff] sm:$0xff]
      %v3339 = vld [vmem:[#allocation2 + $0x107] sm:$0xff]
      %v3340 = vld [vmem:[#allocation2 + $0x10f] sm:$0xff]
      %v3341 = vld [vmem:[#allocation2 + $0x117] sm:$0xff]
      %v3342 = vld [vmem:[#allocation2 + $0x11f] sm:$0xff]
      %v3343 = vmul.f32 %v3311, %v709
      %v3344 = vmul.f32 %v3312, %v710
      %v3345 = vmul.f32 %v3313, %v711
      %v3346 = vmul.f32 %v3314, %v712
      %v3347 = vmul.f32 %v3315, %v713
      %v3348 = vmul.f32 %v3316, %v714
      %v3349 = vmul.f32 %v3317, %v715
      %v3350 = vmul.f32 %v3318, %v716
      %v3351 = vmul.f32 %v3319, %v717
      %v3352 = vmul.f32 %v3320, %v718
      %v3353 = vmul.f32 %v3321, %v719
      %v3354 = vmul.f32 %v3322, %v720
      %v3355 = vmul.f32 %v3323, %v721
      %v3356 = vmul.f32 %v3324, %v722
      %v3357 = vmul.f32 %v3325, %v723
      %v3358 = vmul.f32 %v3326, %v724
      %v3359 = vmul.f32 %v3327, %v725
      %v3360 = vmul.f32 %v3328, %v726
      %v3361 = vmul.f32 %v3329, %v727
      %v3362 = vmul.f32 %v3330, %v728
      %v3363 = vmul.f32 %v3331, %v729
      %v3364 = vmul.f32 %v3332, %v730
      %v3365 = vmul.f32 %v3333, %v731
      %v3366 = vmul.f32 %v3334, %v732
      %v3367 = vmul.f32 %v3335, %v733
      %v3368 = vmul.f32 %v3336, %v734
      %v3369 = vmul.f32 %v3337, %v735
      %v3370 = vmul.f32 %v3338, %v736
      %v3371 = vmul.f32 %v3339, %v737
      %v3372 = vmul.f32 %v3340, %v738
      %v3373 = vmul.f32 %v3341, %v739
      %v3374 = vmul.f32 %v3342, %v740
      %s3375 = scalar_lea.vmem %s1, 192
      %v3376 = vld [vmem:[%s3375] sm:$0xff]
      %v3377 = vld [vmem:[%s3375 + $0x8] sm:$0xff]
      %v3378 = vld [vmem:[%s3375 + $0x10] sm:$0xff]
      %v3379 = vld [vmem:[%s3375 + $0x18] sm:$0xff]
      %v3381 = vsel %vm869, %v3343, 0
      %v3384 = vsel %vm869, %v3344, 0
      %v3387 = vsel %vm869, %v3345, 0
      %v3390 = vsel %vm869, %v3346, 0
      %v3393 = vsel %vm869, %v3347, 0
      %v3396 = vsel %vm869, %v3348, 0
      %v3399 = vsel %vm869, %v3349, 0
      %v3402 = vsel %vm869, %v3350, 0
      %v3405 = vsel %vm869, %v3351, 0
      %v3408 = vsel %vm869, %v3352, 0
      %v3411 = vsel %vm869, %v3353, 0
      %v3414 = vsel %vm869, %v3354, 0
      %v3417 = vsel %vm869, %v3355, 0
      %v3420 = vsel %vm869, %v3356, 0
      %v3423 = vsel %vm869, %v3357, 0
      %v3426 = vsel %vm869, %v3358, 0
      %v3429 = vsel %vm869, %v3359, 0
      %v3432 = vsel %vm869, %v3360, 0
      %v3435 = vsel %vm869, %v3361, 0
      %v3438 = vsel %vm869, %v3362, 0
      %v3441 = vsel %vm869, %v3363, 0
      %v3444 = vsel %vm869, %v3364, 0
      %v3447 = vsel %vm869, %v3365, 0
      %v3450 = vsel %vm869, %v3366, 0
      %v3453 = vsel %vm869, %v3367, 0
      %v3456 = vsel %vm869, %v3368, 0
      %v3459 = vsel %vm869, %v3369, 0
      %v3462 = vsel %vm869, %v3370, 0
      %v3465 = vsel %vm869, %v3371, 0
      %v3468 = vsel %vm869, %v3372, 0
      %v3471 = vsel %vm869, %v3373, 0
      %v3474 = vsel %vm869, %v3374, 0
      %3476 = vmatprep.subr.mxu0 0.0
      %3477 = vmatpush1.msra.mxu0 %v3376
      %3478 = vmatprep.subr.mxu0 0.0
      %3479 = vmatpush1.msra.mxu0 %v3377
      %3480 = vmatprep.subr.mxu0 0.0
      %3481 = vmatpush1.msra.mxu0 %v3378
      %3482 = vmatprep.subr.mxu0 0.0
      %3483 = vmatpush1.msra.mxu0 %v3379
      %3484 = vmatprep.subr.mxu0 0.0
      %3485 = vmatpush1.msra.mxu0 0.0
      %3486 = vmatprep.subr.mxu0 0.0
      %3487 = vmatpush1.msra.mxu0 0.0
      %3488 = vmatprep.subr.mxu0 0.0
      %3489 = vmatpush1.msra.mxu0 0.0
      %3490 = vmatprep.subr.mxu0 0.0
      %3491 = vmatpush1.msra.mxu0 0.0
      %3492 = vmatprep.subr.mxu0 0.0
      %3493 = vmatpush1.msra.mxu0 0.0
      %3494 = vmatprep.subr.mxu0 0.0
      %3495 = vmatpush1.msra.mxu0 0.0
      %3496 = vmatprep.subr.mxu0 0.0
      %3497 = vmatpush1.msra.mxu0 0.0
      %3498 = vmatprep.subr.mxu0 0.0
      %3499 = vmatpush1.msra.mxu0 0.0
      %3500 = vmatprep.subr.mxu0 0.0
      %3501 = vmatpush1.msra.mxu0 0.0
      %3502 = vmatprep.subr.mxu0 0.0
      %3503 = vmatpush1.msra.mxu0 0.0
      %3504 = vmatprep.subr.mxu0 0.0
      %3505 = vmatpush1.msra.mxu0 0.0
      %3506 = vmatprep.subr.mxu0 0.0
      %3507 = vmatpush1.msra.mxu0 0.0
      %3508 = vmatprep.subr.mxu0 0.0
      %3509 = vmatpush1.msra.mxu0 0.0
      %3510 = vmatprep.subr.mxu0 0.0
      %3511 = vmatpush1.msra.mxu0 0.0
      %3512 = vmatprep.subr.mxu0 0.0
      %3513 = vmatpush1.msra.mxu0 0.0
      %3514 = vmatprep.subr.mxu0 0.0
      %3515 = vmatpush1.msra.mxu0 0.0
      %3516 = vmatprep.subr.mxu0 0.0
      %3517 = vmatpush1.msra.mxu0 0.0
      %3518 = vmatprep.subr.mxu0 0.0
      %3519 = vmatpush1.msra.mxu0 0.0
      %3520 = vmatprep.subr.mxu0 0.0
      %3521 = vmatpush1.msra.mxu0 0.0
      %3522 = vmatprep.subr.mxu0 0.0
      %3523 = vmatpush1.msra.mxu0 0.0
      %3524 = vmatprep.subr.mxu0 0.0
      %3525 = vmatpush1.msra.mxu0 0.0
      %3526 = vmatprep.subr.mxu0 0.0
      %3527 = vmatpush1.msra.mxu0 0.0
      %3528 = vmatprep.subr.mxu0 0.0
      %3529 = vmatpush1.msra.mxu0 0.0
      %3530 = vmatprep.subr.mxu0 0.0
      %3531 = vmatpush1.msra.mxu0 0.0
      %3532 = vmatprep.subr.mxu0 0.0
      %3533 = vmatpush1.msra.mxu0 0.0
      %3534 = vmatprep.subr.mxu0 0.0
      %3535 = vmatpush1.msra.mxu0 0.0
      %3536 = vmatprep.subr.mxu0 0.0
      %3537 = vmatpush1.msra.mxu0 0.0
      %3538 = vmatprep.subr.mxu0 0.0
      %3539 = vmatpush1.msra.mxu0 0.0
      %3540 = vmatprep.mubr.f32.mxu0 0.0
      %3541 = vmatmul.mubr.f32.gmra.mrb[0].mxu0 %v3381
      %v3542 = vpop.f32.mrb[0].mxu0
      %v3543 = vadd.f32 0.0, %v3542
      %v3544 = vpop.f32.mrb[0].mxu0
      %3545 = vmatprep.mubr.f32.mxu0 0.0
      %3546 = vmatmul.mubr.f32.gmra.mrb[0].mxu0 %v3384
      %v3547 = vpop.f32.mrb[0].mxu0
      %v3548 = vadd.f32 0.0, %v3547
      %v3549 = vpop.f32.mrb[0].mxu0
      %3550 = vmatprep.mubr.f32.mxu0 0.0
      %3551 = vmatmul.mubr.f32.gmra.mrb[0].mxu0 %v3387
      %v3552 = vpop.f32.mrb[0].mxu0
      %v3553 = vadd.f32 0.0, %v3552
      %v3554 = vpop.f32.mrb[0].mxu0
      %3555 = vmatprep.mubr.f32.mxu0 0.0
      %3556 = vmatmul.mubr.f32.gmra.mrb[0].mxu0 %v3390
      %v3557 = vpop.f32.mrb[0].mxu0
      %v3558 = vadd.f32 0.0, %v3557
      %v3559 = vpop.f32.mrb[0].mxu0
      %3560 = vmatprep.mubr.f32.mxu0 0.0
      %3561 = vmatmul.mubr.f32.gmra.mrb[0].mxu0 %v3393
      %v3562 = vpop.f32.mrb[0].mxu0
      %v3563 = vadd.f32 0.0, %v3562
      %v3564 = vpop.f32.mrb[0].mxu0
      %3565 = vmatprep.mubr.f32.mxu0 0.0
      %3566 = vmatmul.mubr.f32.gmra.mrb[0].mxu0 %v3396
      %v3567 = vpop.f32.mrb[0].mxu0
      %v3568 = vadd.f32 0.0, %v3567
      %v3569 = vpop.f32.mrb[0].mxu0
      %3570 = vmatprep.mubr.f32.mxu0 0.0
      %3571 = vmatmul.mubr.f32.gmra.mrb[0].mxu0 %v3399
      %v3572 = vpop.f32.mrb[0].mxu0
      %v3573 = vadd.f32 0.0, %v3572
      %v3574 = vpop.f32.mrb[0].mxu0
      %3575 = vmatprep.mubr.f32.mxu0 0.0
      %3576 = vmatmul.mubr.f32.gmra.mrb[0].mxu0 %v3402
      %v3577 = vpop.f32.mrb[0].mxu0
      %v3578 = vadd.f32 0.0, %v3577
      %v3579 = vpop.f32.mrb[0].mxu0
      %3580 = vmatprep.mubr.f32.mxu0 0.0
      %3581 = vmatmul.mubr.f32.gmra.mrb[0].mxu0 %v3405
      %v3582 = vpop.f32.mrb[0].mxu0
      %v3583 = vadd.f32 0.0, %v3582
      %v3584 = vpop.f32.mrb[0].mxu0
      %3585 = vmatprep.mubr.f32.mxu0 0.0
      %3586 = vmatmul.mubr.f32.gmra.mrb[0].mxu0 %v3408
      %v3587 = vpop.f32.mrb[0].mxu0
      %v3588 = vadd.f32 0.0, %v3587
      %v3589 = vpop.f32.mrb[0].mxu0
      %3590 = vmatprep.mubr.f32.mxu0 0.0
      %3591 = vmatmul.mubr.f32.gmra.mrb[0].mxu0 %v3411
      %v3592 = vpop.f32.mrb[0].mxu0
      %v3593 = vadd.f32 0.0, %v3592
      %v3594 = vpop.f32.mrb[0].mxu0
      %3595 = vmatprep.mubr.f32.mxu0 0.0
      %3596 = vmatmul.mubr.f32.gmra.mrb[0].mxu0 %v3414
      %v3597 = vpop.f32.mrb[0].mxu0
      %v3598 = vadd.f32 0.0, %v3597
      %v3599 = vpop.f32.mrb[0].mxu0
      %3600 = vmatprep.mubr.f32.mxu0 0.0
      %3601 = vmatmul.mubr.f32.gmra.mrb[0].mxu0 %v3417
      %v3602 = vpop.f32.mrb[0].mxu0
      %v3603 = vadd.f32 0.0, %v3602
      %v3604 = vpop.f32.mrb[0].mxu0
      %3605 = vmatprep.mubr.f32.mxu0 0.0
      %3606 = vmatmul.mubr.f32.gmra.mrb[0].mxu0 %v3420
      %v3607 = vpop.f32.mrb[0].mxu0
      %v3608 = vadd.f32 0.0, %v3607
      %v3609 = vpop.f32.mrb[0].mxu0
      %3610 = vmatprep.mubr.f32.mxu0 0.0
      %3611 = vmatmul.mubr.f32.gmra.mrb[0].mxu0 %v3423
      %v3612 = vpop.f32.mrb[0].mxu0
      %v3613 = vadd.f32 0.0, %v3612
      %v3614 = vpop.f32.mrb[0].mxu0
      %3615 = vmatprep.mubr.f32.mxu0 0.0
      %3616 = vmatmul.mubr.f32.gmra.mrb[0].mxu0 %v3426
      %v3617 = vpop.f32.mrb[0].mxu0
      %v3618 = vadd.f32 0.0, %v3617
      %v3619 = vpop.f32.mrb[0].mxu0
      %3620 = vmatprep.mubr.f32.mxu0 0.0
      %3621 = vmatmul.mubr.f32.gmra.mrb[0].mxu0 %v3429
      %v3622 = vpop.f32.mrb[0].mxu0
      %v3623 = vadd.f32 0.0, %v3622
      %v3624 = vpop.f32.mrb[0].mxu0
      %3625 = vmatprep.mubr.f32.mxu0 0.0
      %3626 = vmatmul.mubr.f32.gmra.mrb[0].mxu0 %v3432
      %v3627 = vpop.f32.mrb[0].mxu0
      %v3628 = vadd.f32 0.0, %v3627
      %v3629 = vpop.f32.mrb[0].mxu0
      %3630 = vmatprep.mubr.f32.mxu0 0.0
      %3631 = vmatmul.mubr.f32.gmra.mrb[0].mxu0 %v3435
      %v3632 = vpop.f32.mrb[0].mxu0
      %v3633 = vadd.f32 0.0, %v3632
      %v3634 = vpop.f32.mrb[0].mxu0
      %3635 = vmatprep.mubr.f32.mxu0 0.0
      %3636 = vmatmul.mubr.f32.gmra.mrb[0].mxu0 %v3438
      %v3637 = vpop.f32.mrb[0].mxu0
      %v3638 = vadd.f32 0.0, %v3637
      %v3639 = vpop.f32.mrb[0].mxu0
      %3640 = vmatprep.mubr.f32.mxu0 0.0
      %3641 = vmatmul.mubr.f32.gmra.mrb[0].mxu0 %v3441
      %v3642 = vpop.f32.mrb[0].mxu0
      %v3643 = vadd.f32 0.0, %v3642
      %v3644 = vpop.f32.mrb[0].mxu0
      %3645 = vmatprep.mubr.f32.mxu0 0.0
      %3646 = vmatmul.mubr.f32.gmra.mrb[0].mxu0 %v3444
      %v3647 = vpop.f32.mrb[0].mxu0
      %v3648 = vadd.f32 0.0, %v3647
      %v3649 = vpop.f32.mrb[0].mxu0
      %3650 = vmatprep.mubr.f32.mxu0 0.0
      %3651 = vmatmul.mubr.f32.gmra.mrb[0].mxu0 %v3447
      %v3652 = vpop.f32.mrb[0].mxu0
      %v3653 = vadd.f32 0.0, %v3652
      %v3654 = vpop.f32.mrb[0].mxu0
      %3655 = vmatprep.mubr.f32.mxu0 0.0
      %3656 = vmatmul.mubr.f32.gmra.mrb[0].mxu0 %v3450
      %v3657 = vpop.f32.mrb[0].mxu0
      %v3658 = vadd.f32 0.0, %v3657
      %v3659 = vpop.f32.mrb[0].mxu0
      %3660 = vmatprep.mubr.f32.mxu0 0.0
      %3661 = vmatmul.mubr.f32.gmra.mrb[0].mxu0 %v3453
      %v3662 = vpop.f32.mrb[0].mxu0
      %v3663 = vadd.f32 0.0, %v3662
      %v3664 = vpop.f32.mrb[0].mxu0
      %3665 = vmatprep.mubr.f32.mxu0 0.0
      %3666 = vmatmul.mubr.f32.gmra.mrb[0].mxu0 %v3456
      %v3667 = vpop.f32.mrb[0].mxu0
      %v3668 = vadd.f32 0.0, %v3667
      %v3669 = vpop.f32.mrb[0].mxu0
      %3670 = vmatprep.mubr.f32.mxu0 0.0
      %3671 = vmatmul.mubr.f32.gmra.mrb[0].mxu0 %v3459
      %v3672 = vpop.f32.mrb[0].mxu0
      %v3673 = vadd.f32 0.0, %v3672
      %v3674 = vpop.f32.mrb[0].mxu0
      %3675 = vmatprep.mubr.f32.mxu0 0.0
      %3676 = vmatmul.mubr.f32.gmra.mrb[0].mxu0 %v3462
      %v3677 = vpop.f32.mrb[0].mxu0
      %v3678 = vadd.f32 0.0, %v3677
      %v3679 = vpop.f32.mrb[0].mxu0
      %3680 = vmatprep.mubr.f32.mxu0 0.0
      %3681 = vmatmul.mubr.f32.gmra.mrb[0].mxu0 %v3465
      %v3682 = vpop.f32.mrb[0].mxu0
      %v3683 = vadd.f32 0.0, %v3682
      %v3684 = vpop.f32.mrb[0].mxu0
      %3685 = vmatprep.mubr.f32.mxu0 0.0
      %3686 = vmatmul.mubr.f32.gmra.mrb[0].mxu0 %v3468
      %v3687 = vpop.f32.mrb[0].mxu0
      %v3688 = vadd.f32 0.0, %v3687
      %v3689 = vpop.f32.mrb[0].mxu0
      %3690 = vmatprep.mubr.f32.mxu0 0.0
      %3691 = vmatmul.mubr.f32.gmra.mrb[0].mxu0 %v3471
      %v3692 = vpop.f32.mrb[0].mxu0
      %v3693 = vadd.f32 0.0, %v3692
      %v3694 = vpop.f32.mrb[0].mxu0
      %3695 = vmatprep.mubr.f32.mxu0 0.0
      %3696 = vmatmul.mubr.f32.gmra.mrb[0].mxu0 %v3474
      %v3697 = vpop.f32.mrb[0].mxu0
      %v3698 = vadd.f32 0.0, %v3697
      %v3699 = vpop.f32.mrb[0].mxu0
      %3700 = vdwg.mxu0
      %v3701 = vadd.f32 %v3279, %v3543
      %v3702 = vadd.f32 %v3280, %v3548
      %v3703 = vadd.f32 %v3281, %v3553
      %v3704 = vadd.f32 %v3282, %v3558
      %v3705 = vadd.f32 %v3283, %v3563
      %v3706 = vadd.f32 %v3284, %v3568
      %v3707 = vadd.f32 %v3285, %v3573
      %v3708 = vadd.f32 %v3286, %v3578
      %v3709 = vadd.f32 %v3287, %v3583
      %v3710 = vadd.f32 %v3288, %v3588
      %v3711 = vadd.f32 %v3289, %v3593
      %v3712 = vadd.f32 %v3290, %v3598
      %v3713 = vadd.f32 %v3291, %v3603
      %v3714 = vadd.f32 %v3292, %v3608
      %v3715 = vadd.f32 %v3293, %v3613
      %v3716 = vadd.f32 %v3294, %v3618
      %v3717 = vadd.f32 %v3295, %v3623
      %v3718 = vadd.f32 %v3296, %v3628
      %v3719 = vadd.f32 %v3297, %v3633
      %v3720 = vadd.f32 %v3298, %v3638
      %v3721 = vadd.f32 %v3299, %v3643
      %v3722 = vadd.f32 %v3300, %v3648
      %v3723 = vadd.f32 %v3301, %v3653
      %v3724 = vadd.f32 %v3302, %v3658
      %v3725 = vadd.f32 %v3303, %v3663
      %v3726 = vadd.f32 %v3304, %v3668
      %v3727 = vadd.f32 %v3305, %v3673
      %v3728 = vadd.f32 %v3306, %v3678
      %v3729 = vadd.f32 %v3307, %v3683
      %v3730 = vadd.f32 %v3308, %v3688
      %v3731 = vadd.f32 %v3309, %v3693
      %v3732 = vadd.f32 %v3310, %v3698
      %v3733 = vld [vmem:[#allocation2 + $0x28] sm:$0xff]
      %v3734 = vld [vmem:[#allocation2 + $0x30] sm:$0xff]
      %v3735 = vld [vmem:[#allocation2 + $0x38] sm:$0xff]
      %v3736 = vld [vmem:[#allocation2 + $0x40] sm:$0xff]
      %v3737 = vld [vmem:[#allocation2 + $0x48] sm:$0xff]
      %v3738 = vld [vmem:[#allocation2 + $0x50] sm:$0xff]
      %v3739 = vld [vmem:[#allocation2 + $0x58] sm:$0xff]
      %v3740 = vld [vmem:[#allocation2 + $0x60] sm:$0xff]
      %v3741 = vld [vmem:[#allocation2 + $0x68] sm:$0xff]
      %v3742 = vld [vmem:[#allocation2 + $0x70] sm:$0xff]
      %v3743 = vld [vmem:[#allocation2 + $0x78] sm:$0xff]
      %v3744 = vld [vmem:[#allocation2 + $0x80] sm:$0xff]
      %v3745 = vld [vmem:[#allocation2 + $0x88] sm:$0xff]
      %v3746 = vld [vmem:[#allocation2 + $0x90] sm:$0xff]
      %v3747 = vld [vmem:[#allocation2 + $0x98] sm:$0xff]
      %v3748 = vld [vmem:[#allocation2 + $0xa0] sm:$0xff]
      %v3749 = vld [vmem:[#allocation2 + $0xa8] sm:$0xff]
      %v3750 = vld [vmem:[#allocation2 + $0xb0] sm:$0xff]
      %v3751 = vld [vmem:[#allocation2 + $0xb8] sm:$0xff]
      %v3752 = vld [vmem:[#allocation2 + $0xc0] sm:$0xff]
      %v3753 = vld [vmem:[#allocation2 + $0xc8] sm:$0xff]
      %v3754 = vld [vmem:[#allocation2 + $0xd0] sm:$0xff]
      %v3755 = vld [vmem:[#allocation2 + $0xd8] sm:$0xff]
      %v3756 = vld [vmem:[#allocation2 + $0xe0] sm:$0xff]
      %v3757 = vld [vmem:[#allocation2 + $0xe8] sm:$0xff]
      %v3758 = vld [vmem:[#allocation2 + $0xf0] sm:$0xff]
      %v3759 = vld [vmem:[#allocation2 + $0xf8] sm:$0xff]
      %v3760 = vld [vmem:[#allocation2 + $0x100] sm:$0xff]
      %v3761 = vld [vmem:[#allocation2 + $0x108] sm:$0xff]
      %v3762 = vld [vmem:[#allocation2 + $0x110] sm:$0xff]
      %v3763 = vld [vmem:[#allocation2 + $0x118] sm:$0xff]
      %v3764 = vld [vmem:[#allocation2 + $0x120] sm:$0xff]
      %s3765 = scalar_lea.vmem %s1, 224
      %v3766 = vld [vmem:[%s3765] sm:$0xff]
      %v3767 = vld [vmem:[%s3765 + $0x8] sm:$0xff]
      %v3768 = vld [vmem:[%s3765 + $0x10] sm:$0xff]
      %v3769 = vld [vmem:[%s3765 + $0x18] sm:$0xff]
      %v3771 = vsel %vm869, %v3733, 0
      %v3774 = vsel %vm869, %v3734, 0
      %v3777 = vsel %vm869, %v3735, 0
      %v3780 = vsel %vm869, %v3736, 0
      %v3783 = vsel %vm869, %v3737, 0
      %v3786 = vsel %vm869, %v3738, 0
      %v3789 = vsel %vm869, %v3739, 0
      %v3792 = vsel %vm869, %v3740, 0
      %v3795 = vsel %vm869, %v3741, 0
      %v3798 = vsel %vm869, %v3742, 0
      %v3801 = vsel %vm869, %v3743, 0
      %v3804 = vsel %vm869, %v3744, 0
      %v3807 = vsel %vm869, %v3745, 0
      %v3810 = vsel %vm869, %v3746, 0
      %v3813 = vsel %vm869, %v3747, 0
      %v3816 = vsel %vm869, %v3748, 0
      %v3819 = vsel %vm869, %v3749, 0
      %v3822 = vsel %vm869, %v3750, 0
      %v3825 = vsel %vm869, %v3751, 0
      %v3828 = vsel %vm869, %v3752, 0
      %v3831 = vsel %vm869, %v3753, 0
      %v3834 = vsel %vm869, %v3754, 0
      %v3837 = vsel %vm869, %v3755, 0
      %v3840 = vsel %vm869, %v3756, 0
      %v3843 = vsel %vm869, %v3757, 0
      %v3846 = vsel %vm869, %v3758, 0
      %v3849 = vsel %vm869, %v3759, 0
      %v3852 = vsel %vm869, %v3760, 0
      %v3855 = vsel %vm869, %v3761, 0
      %v3858 = vsel %vm869, %v3762, 0
      %v3861 = vsel %vm869, %v3763, 0
      %v3864 = vsel %vm869, %v3764, 0
      %3866 = vmatprep.subr.mxu0 0.0
      %3867 = vmatpush1.msra.mxu0 %v3766
      %3868 = vmatprep.subr.mxu0 0.0
      %3869 = vmatpush1.msra.mxu0 %v3767
      %3870 = vmatprep.subr.mxu0 0.0
      %3871 = vmatpush1.msra.mxu0 %v3768
      %3872 = vmatprep.subr.mxu0 0.0
      %3873 = vmatpush1.msra.mxu0 %v3769
      %3874 = vmatprep.subr.mxu0 0.0
      %3875 = vmatpush1.msra.mxu0 0.0
      %3876 = vmatprep.subr.mxu0 0.0
      %3877 = vmatpush1.msra.mxu0 0.0
      %3878 = vmatprep.subr.mxu0 0.0
      %3879 = vmatpush1.msra.mxu0 0.0
      %3880 = vmatprep.subr.mxu0 0.0
      %3881 = vmatpush1.msra.mxu0 0.0
      %3882 = vmatprep.subr.mxu0 0.0
      %3883 = vmatpush1.msra.mxu0 0.0
      %3884 = vmatprep.subr.mxu0 0.0
      %3885 = vmatpush1.msra.mxu0 0.0
      %3886 = vmatprep.subr.mxu0 0.0
      %3887 = vmatpush1.msra.mxu0 0.0
      %3888 = vmatprep.subr.mxu0 0.0
      %3889 = vmatpush1.msra.mxu0 0.0
      %3890 = vmatprep.subr.mxu0 0.0
      %3891 = vmatpush1.msra.mxu0 0.0
      %3892 = vmatprep.subr.mxu0 0.0
      %3893 = vmatpush1.msra.mxu0 0.0
      %3894 = vmatprep.subr.mxu0 0.0
      %3895 = vmatpush1.msra.mxu0 0.0
      %3896 = vmatprep.subr.mxu0 0.0
      %3897 = vmatpush1.msra.mxu0 0.0
      %3898 = vmatprep.subr.mxu0 0.0
      %3899 = vmatpush1.msra.mxu0 0.0
      %3900 = vmatprep.subr.mxu0 0.0
      %3901 = vmatpush1.msra.mxu0 0.0
      %3902 = vmatprep.subr.mxu0 0.0
      %3903 = vmatpush1.msra.mxu0 0.0
      %3904 = vmatprep.subr.mxu0 0.0
      %3905 = vmatpush1.msra.mxu0 0.0
      %3906 = vmatprep.subr.mxu0 0.0
      %3907 = vmatpush1.msra.mxu0 0.0
      %3908 = vmatprep.subr.mxu0 0.0
      %3909 = vmatpush1.msra.mxu0 0.0
      %3910 = vmatprep.subr.mxu0 0.0
      %3911 = vmatpush1.msra.mxu0 0.0
      %3912 = vmatprep.subr.mxu0 0.0
      %3913 = vmatpush1.msra.mxu0 0.0
      %3914 = vmatprep.subr.mxu0 0.0
      %3915 = vmatpush1.msra.mxu0 0.0
      %3916 = vmatprep.subr.mxu0 0.0
      %3917 = vmatpush1.msra.mxu0 0.0
      %3918 = vmatprep.subr.mxu0 0.0
      %3919 = vmatpush1.msra.mxu0 0.0
      %3920 = vmatprep.subr.mxu0 0.0
      %3921 = vmatpush1.msra.mxu0 0.0
      %3922 = vmatprep.subr.mxu0 0.0
      %3923 = vmatpush1.msra.mxu0 0.0
      %3924 = vmatprep.subr.mxu0 0.0
      %3925 = vmatpush1.msra.mxu0 0.0
      %3926 = vmatprep.subr.mxu0 0.0
      %3927 = vmatpush1.msra.mxu0 0.0
      %3928 = vmatprep.subr.mxu0 0.0
      %3929 = vmatpush1.msra.mxu0 0.0
      %3930 = vmatprep.mubr.f32.mxu0 0.0
      %3931 = vmatmul.mubr.f32.gmra.mrb[0].mxu0 %v3771
      %v3932 = vpop.f32.mrb[0].mxu0
      %v3933 = vadd.f32 0.0, %v3932
      %v3934 = vpop.f32.mrb[0].mxu0
      %3935 = vmatprep.mubr.f32.mxu0 0.0
      %3936 = vmatmul.mubr.f32.gmra.mrb[0].mxu0 %v3774
      %v3937 = vpop.f32.mrb[0].mxu0
      %v3938 = vadd.f32 0.0, %v3937
      %v3939 = vpop.f32.mrb[0].mxu0
      %3940 = vmatprep.mubr.f32.mxu0 0.0
      %3941 = vmatmul.mubr.f32.gmra.mrb[0].mxu0 %v3777
      %v3942 = vpop.f32.mrb[0].mxu0
      %v3943 = vadd.f32 0.0, %v3942
      %v3944 = vpop.f32.mrb[0].mxu0
      %3945 = vmatprep.mubr.f32.mxu0 0.0
      %3946 = vmatmul.mubr.f32.gmra.mrb[0].mxu0 %v3780
      %v3947 = vpop.f32.mrb[0].mxu0
      %v3948 = vadd.f32 0.0, %v3947
      %v3949 = vpop.f32.mrb[0].mxu0
      %3950 = vmatprep.mubr.f32.mxu0 0.0
      %3951 = vmatmul.mubr.f32.gmra.mrb[0].mxu0 %v3783
      %v3952 = vpop.f32.mrb[0].mxu0
      %v3953 = vadd.f32 0.0, %v3952
      %v3954 = vpop.f32.mrb[0].mxu0
      %3955 = vmatprep.mubr.f32.mxu0 0.0
      %3956 = vmatmul.mubr.f32.gmra.mrb[0].mxu0 %v3786
      %v3957 = vpop.f32.mrb[0].mxu0
      %v3958 = vadd.f32 0.0, %v3957
      %v3959 = vpop.f32.mrb[0].mxu0
      %3960 = vmatprep.mubr.f32.mxu0 0.0
      %3961 = vmatmul.mubr.f32.gmra.mrb[0].mxu0 %v3789
      %v3962 = vpop.f32.mrb[0].mxu0
      %v3963 = vadd.f32 0.0, %v3962
      %v3964 = vpop.f32.mrb[0].mxu0
      %3965 = vmatprep.mubr.f32.mxu0 0.0
      %3966 = vmatmul.mubr.f32.gmra.mrb[0].mxu0 %v3792
      %v3967 = vpop.f32.mrb[0].mxu0
      %v3968 = vadd.f32 0.0, %v3967
      %v3969 = vpop.f32.mrb[0].mxu0
      %3970 = vmatprep.mubr.f32.mxu0 0.0
      %3971 = vmatmul.mubr.f32.gmra.mrb[0].mxu0 %v3795
      %v3972 = vpop.f32.mrb[0].mxu0
      %v3973 = vadd.f32 0.0, %v3972
      %v3974 = vpop.f32.mrb[0].mxu0
      %3975 = vmatprep.mubr.f32.mxu0 0.0
      %3976 = vmatmul.mubr.f32.gmra.mrb[0].mxu0 %v3798
      %v3977 = vpop.f32.mrb[0].mxu0
      %v3978 = vadd.f32 0.0, %v3977
      %v3979 = vpop.f32.mrb[0].mxu0
      %3980 = vmatprep.mubr.f32.mxu0 0.0
      %3981 = vmatmul.mubr.f32.gmra.mrb[0].mxu0 %v3801
      %v3982 = vpop.f32.mrb[0].mxu0
      %v3983 = vadd.f32 0.0, %v3982
      %v3984 = vpop.f32.mrb[0].mxu0
      %3985 = vmatprep.mubr.f32.mxu0 0.0
      %3986 = vmatmul.mubr.f32.gmra.mrb[0].mxu0 %v3804
      %v3987 = vpop.f32.mrb[0].mxu0
      %v3988 = vadd.f32 0.0, %v3987
      %v3989 = vpop.f32.mrb[0].mxu0
      %3990 = vmatprep.mubr.f32.mxu0 0.0
      %3991 = vmatmul.mubr.f32.gmra.mrb[0].mxu0 %v3807
      %v3992 = vpop.f32.mrb[0].mxu0
      %v3993 = vadd.f32 0.0, %v3992
      %v3994 = vpop.f32.mrb[0].mxu0
      %3995 = vmatprep.mubr.f32.mxu0 0.0
      %3996 = vmatmul.mubr.f32.gmra.mrb[0].mxu0 %v3810
      %v3997 = vpop.f32.mrb[0].mxu0
      %v3998 = vadd.f32 0.0, %v3997
      %v3999 = vpop.f32.mrb[0].mxu0
      %4000 = vmatprep.mubr.f32.mxu0 0.0
      %4001 = vmatmul.mubr.f32.gmra.mrb[0].mxu0 %v3813
      %v4002 = vpop.f32.mrb[0].mxu0
      %v4003 = vadd.f32 0.0, %v4002
      %v4004 = vpop.f32.mrb[0].mxu0
      %4005 = vmatprep.mubr.f32.mxu0 0.0
      %4006 = vmatmul.mubr.f32.gmra.mrb[0].mxu0 %v3816
      %v4007 = vpop.f32.mrb[0].mxu0
      %v4008 = vadd.f32 0.0, %v4007
      %v4009 = vpop.f32.mrb[0].mxu0
      %4010 = vmatprep.mubr.f32.mxu0 0.0
      %4011 = vmatmul.mubr.f32.gmra.mrb[0].mxu0 %v3819
      %v4012 = vpop.f32.mrb[0].mxu0
      %v4013 = vadd.f32 0.0, %v4012
      %v4014 = vpop.f32.mrb[0].mxu0
      %4015 = vmatprep.mubr.f32.mxu0 0.0
      %4016 = vmatmul.mubr.f32.gmra.mrb[0].mxu0 %v3822
      %v4017 = vpop.f32.mrb[0].mxu0
      %v4018 = vadd.f32 0.0, %v4017
      %v4019 = vpop.f32.mrb[0].mxu0
      %4020 = vmatprep.mubr.f32.mxu0 0.0
      %4021 = vmatmul.mubr.f32.gmra.mrb[0].mxu0 %v3825
      %v4022 = vpop.f32.mrb[0].mxu0
      %v4023 = vadd.f32 0.0, %v4022
      %v4024 = vpop.f32.mrb[0].mxu0
      %4025 = vmatprep.mubr.f32.mxu0 0.0
      %4026 = vmatmul.mubr.f32.gmra.mrb[0].mxu0 %v3828
      %v4027 = vpop.f32.mrb[0].mxu0
      %v4028 = vadd.f32 0.0, %v4027
      %v4029 = vpop.f32.mrb[0].mxu0
      %4030 = vmatprep.mubr.f32.mxu0 0.0
      %4031 = vmatmul.mubr.f32.gmra.mrb[0].mxu0 %v3831
      %v4032 = vpop.f32.mrb[0].mxu0
      %v4033 = vadd.f32 0.0, %v4032
      %v4034 = vpop.f32.mrb[0].mxu0
      %4035 = vmatprep.mubr.f32.mxu0 0.0
      %4036 = vmatmul.mubr.f32.gmra.mrb[0].mxu0 %v3834
      %v4037 = vpop.f32.mrb[0].mxu0
      %v4038 = vadd.f32 0.0, %v4037
      %v4039 = vpop.f32.mrb[0].mxu0
      %4040 = vmatprep.mubr.f32.mxu0 0.0
      %4041 = vmatmul.mubr.f32.gmra.mrb[0].mxu0 %v3837
      %v4042 = vpop.f32.mrb[0].mxu0
      %v4043 = vadd.f32 0.0, %v4042
      %v4044 = vpop.f32.mrb[0].mxu0
      %4045 = vmatprep.mubr.f32.mxu0 0.0
      %4046 = vmatmul.mubr.f32.gmra.mrb[0].mxu0 %v3840
      %v4047 = vpop.f32.mrb[0].mxu0
      %v4048 = vadd.f32 0.0, %v4047
      %v4049 = vpop.f32.mrb[0].mxu0
      %4050 = vmatprep.mubr.f32.mxu0 0.0
      %4051 = vmatmul.mubr.f32.gmra.mrb[0].mxu0 %v3843
      %v4052 = vpop.f32.mrb[0].mxu0
      %v4053 = vadd.f32 0.0, %v4052
      %v4054 = vpop.f32.mrb[0].mxu0
      %4055 = vmatprep.mubr.f32.mxu0 0.0
      %4056 = vmatmul.mubr.f32.gmra.mrb[0].mxu0 %v3846
      %v4057 = vpop.f32.mrb[0].mxu0
      %v4058 = vadd.f32 0.0, %v4057
      %v4059 = vpop.f32.mrb[0].mxu0
      %4060 = vmatprep.mubr.f32.mxu0 0.0
      %4061 = vmatmul.mubr.f32.gmra.mrb[0].mxu0 %v3849
      %v4062 = vpop.f32.mrb[0].mxu0
      %v4063 = vadd.f32 0.0, %v4062
      %v4064 = vpop.f32.mrb[0].mxu0
      %4065 = vmatprep.mubr.f32.mxu0 0.0
      %4066 = vmatmul.mubr.f32.gmra.mrb[0].mxu0 %v3852
      %v4067 = vpop.f32.mrb[0].mxu0
      %v4068 = vadd.f32 0.0, %v4067
      %v4069 = vpop.f32.mrb[0].mxu0
      %4070 = vmatprep.mubr.f32.mxu0 0.0
      %4071 = vmatmul.mubr.f32.gmra.mrb[0].mxu0 %v3855
      %v4072 = vpop.f32.mrb[0].mxu0
      %v4073 = vadd.f32 0.0, %v4072
      %v4074 = vpop.f32.mrb[0].mxu0
      %4075 = vmatprep.mubr.f32.mxu0 0.0
      %4076 = vmatmul.mubr.f32.gmra.mrb[0].mxu0 %v3858
      %v4077 = vpop.f32.mrb[0].mxu0
      %v4078 = vadd.f32 0.0, %v4077
      %v4079 = vpop.f32.mrb[0].mxu0
      %4080 = vmatprep.mubr.f32.mxu0 0.0
      %4081 = vmatmul.mubr.f32.gmra.mrb[0].mxu0 %v3861
      %v4082 = vpop.f32.mrb[0].mxu0
      %v4083 = vadd.f32 0.0, %v4082
      %v4084 = vpop.f32.mrb[0].mxu0
      %4085 = vmatprep.mubr.f32.mxu0 0.0
      %4086 = vmatmul.mubr.f32.gmra.mrb[0].mxu0 %v3864
      %v4087 = vpop.f32.mrb[0].mxu0
      %v4088 = vadd.f32 0.0, %v4087
      %v4089 = vpop.f32.mrb[0].mxu0
      %4090 = vdwg.mxu0
      %v4091 = vadd.f32 %v3701, %v3933
      %v4092 = vadd.f32 %v3702, %v3938
      %v4093 = vadd.f32 %v3703, %v3943
      %v4094 = vadd.f32 %v3704, %v3948
      %v4095 = vadd.f32 %v3705, %v3953
      %v4096 = vadd.f32 %v3706, %v3958
      %v4097 = vadd.f32 %v3707, %v3963
      %v4098 = vadd.f32 %v3708, %v3968
      %v4099 = vadd.f32 %v3709, %v3973
      %v4100 = vadd.f32 %v3710, %v3978
      %v4101 = vadd.f32 %v3711, %v3983
      %v4102 = vadd.f32 %v3712, %v3988
      %v4103 = vadd.f32 %v3713, %v3993
      %v4104 = vadd.f32 %v3714, %v3998
      %v4105 = vadd.f32 %v3715, %v4003
      %v4106 = vadd.f32 %v3716, %v4008
      %v4107 = vadd.f32 %v3717, %v4013
      %v4108 = vadd.f32 %v3718, %v4018
      %v4109 = vadd.f32 %v3719, %v4023
      %v4110 = vadd.f32 %v3720, %v4028
      %v4111 = vadd.f32 %v3721, %v4033
      %v4112 = vadd.f32 %v3722, %v4038
      %v4113 = vadd.f32 %v3723, %v4043
      %v4114 = vadd.f32 %v3724, %v4048
      %v4115 = vadd.f32 %v3725, %v4053
      %v4116 = vadd.f32 %v3726, %v4058
      %v4117 = vadd.f32 %v3727, %v4063
      %v4118 = vadd.f32 %v3728, %v4068
      %v4119 = vadd.f32 %v3729, %v4073
      %v4120 = vadd.f32 %v3730, %v4078
      %v4121 = vadd.f32 %v3731, %v4083
      %v4122 = vadd.f32 %v3732, %v4088
      %v4123 = vld [vmem:[#allocation2 + $0x29] sm:$0xff]
      %v4124 = vld [vmem:[#allocation2 + $0x31] sm:$0xff]
      %v4125 = vld [vmem:[#allocation2 + $0x39] sm:$0xff]
      %v4126 = vld [vmem:[#allocation2 + $0x41] sm:$0xff]
      %v4127 = vld [vmem:[#allocation2 + $0x49] sm:$0xff]
      %v4128 = vld [vmem:[#allocation2 + $0x51] sm:$0xff]
      %v4129 = vld [vmem:[#allocation2 + $0x59] sm:$0xff]
      %v4130 = vld [vmem:[#allocation2 + $0x61] sm:$0xff]
      %v4131 = vld [vmem:[#allocation2 + $0x69] sm:$0xff]
      %v4132 = vld [vmem:[#allocation2 + $0x71] sm:$0xff]
      %v4133 = vld [vmem:[#allocation2 + $0x79] sm:$0xff]
      %v4134 = vld [vmem:[#allocation2 + $0x81] sm:$0xff]
      %v4135 = vld [vmem:[#allocation2 + $0x89] sm:$0xff]
      %v4136 = vld [vmem:[#allocation2 + $0x91] sm:$0xff]
      %v4137 = vld [vmem:[#allocation2 + $0x99] sm:$0xff]
      %v4138 = vld [vmem:[#allocation2 + $0xa1] sm:$0xff]
      %v4139 = vld [vmem:[#allocation2 + $0xa9] sm:$0xff]
      %v4140 = vld [vmem:[#allocation2 + $0xb1] sm:$0xff]
      %v4141 = vld [vmem:[#allocation2 + $0xb9] sm:$0xff]
      %v4142 = vld [vmem:[#allocation2 + $0xc1] sm:$0xff]
      %v4143 = vld [vmem:[#allocation2 + $0xc9] sm:$0xff]
      %v4144 = vld [vmem:[#allocation2 + $0xd1] sm:$0xff]
      %v4145 = vld [vmem:[#allocation2 + $0xd9] sm:$0xff]
      %v4146 = vld [vmem:[#allocation2 + $0xe1] sm:$0xff]
      %v4147 = vld [vmem:[#allocation2 + $0xe9] sm:$0xff]
      %v4148 = vld [vmem:[#allocation2 + $0xf1] sm:$0xff]
      %v4149 = vld [vmem:[#allocation2 + $0xf9] sm:$0xff]
      %v4150 = vld [vmem:[#allocation2 + $0x101] sm:$0xff]
      %v4151 = vld [vmem:[#allocation2 + $0x109] sm:$0xff]
      %v4152 = vld [vmem:[#allocation2 + $0x111] sm:$0xff]
      %v4153 = vld [vmem:[#allocation2 + $0x119] sm:$0xff]
      %v4154 = vld [vmem:[#allocation2 + $0x121] sm:$0xff]
      %v4155 = vmul.f32 %v4123, %v805
      %v4156 = vmul.f32 %v4124, %v806
      %v4157 = vmul.f32 %v4125, %v807
      %v4158 = vmul.f32 %v4126, %v808
      %v4159 = vmul.f32 %v4127, %v809
      %v4160 = vmul.f32 %v4128, %v810
      %v4161 = vmul.f32 %v4129, %v811
      %v4162 = vmul.f32 %v4130, %v812
      %v4163 = vmul.f32 %v4131, %v813
      %v4164 = vmul.f32 %v4132, %v814
      %v4165 = vmul.f32 %v4133, %v815
      %v4166 = vmul.f32 %v4134, %v816
      %v4167 = vmul.f32 %v4135, %v817
      %v4168 = vmul.f32 %v4136, %v818
      %v4169 = vmul.f32 %v4137, %v819
      %v4170 = vmul.f32 %v4138, %v820
      %v4171 = vmul.f32 %v4139, %v821
      %v4172 = vmul.f32 %v4140, %v822
      %v4173 = vmul.f32 %v4141, %v823
      %v4174 = vmul.f32 %v4142, %v824
      %v4175 = vmul.f32 %v4143, %v825
      %v4176 = vmul.f32 %v4144, %v826
      %v4177 = vmul.f32 %v4145, %v827
      %v4178 = vmul.f32 %v4146, %v828
      %v4179 = vmul.f32 %v4147, %v829
      %v4180 = vmul.f32 %v4148, %v830
      %v4181 = vmul.f32 %v4149, %v831
      %v4182 = vmul.f32 %v4150, %v832
      %v4183 = vmul.f32 %v4151, %v833
      %v4184 = vmul.f32 %v4152, %v834
      %v4185 = vmul.f32 %v4153, %v835
      %v4186 = vmul.f32 %v4154, %v836
      %s4187 = scalar_lea.vmem %s1, 256
      %v4188 = vld [vmem:[%s4187] sm:$0xff]
      %v4189 = vld [vmem:[%s4187 + $0x8] sm:$0xff]
      %v4190 = vld [vmem:[%s4187 + $0x10] sm:$0xff]
      %v4191 = vld [vmem:[%s4187 + $0x18] sm:$0xff]
      %v4193 = vsel %vm869, %v4155, 0
      %v4196 = vsel %vm869, %v4156, 0
      %v4199 = vsel %vm869, %v4157, 0
      %v4202 = vsel %vm869, %v4158, 0
      %v4205 = vsel %vm869, %v4159, 0
      %v4208 = vsel %vm869, %v4160, 0
      %v4211 = vsel %vm869, %v4161, 0
      %v4214 = vsel %vm869, %v4162, 0
      %v4217 = vsel %vm869, %v4163, 0
      %v4220 = vsel %vm869, %v4164, 0
      %v4223 = vsel %vm869, %v4165, 0
      %v4226 = vsel %vm869, %v4166, 0
      %v4229 = vsel %vm869, %v4167, 0
      %v4232 = vsel %vm869, %v4168, 0
      %v4235 = vsel %vm869, %v4169, 0
      %v4238 = vsel %vm869, %v4170, 0
      %v4241 = vsel %vm869, %v4171, 0
      %v4244 = vsel %vm869, %v4172, 0
      %v4247 = vsel %vm869, %v4173, 0
      %v4250 = vsel %vm869, %v4174, 0
      %v4253 = vsel %vm869, %v4175, 0
      %v4256 = vsel %vm869, %v4176, 0
      %v4259 = vsel %vm869, %v4177, 0
      %v4262 = vsel %vm869, %v4178, 0
      %v4265 = vsel %vm869, %v4179, 0
      %v4268 = vsel %vm869, %v4180, 0
      %v4271 = vsel %vm869, %v4181, 0
      %v4274 = vsel %vm869, %v4182, 0
      %v4277 = vsel %vm869, %v4183, 0
      %v4280 = vsel %vm869, %v4184, 0
      %v4283 = vsel %vm869, %v4185, 0
      %v4286 = vsel %vm869, %v4186, 0
      %4288 = vmatprep.subr.mxu0 0.0
      %4289 = vmatpush1.msra.mxu0 %v4188
      %4290 = vmatprep.subr.mxu0 0.0
      %4291 = vmatpush1.msra.mxu0 %v4189
      %4292 = vmatprep.subr.mxu0 0.0
      %4293 = vmatpush1.msra.mxu0 %v4190
      %4294 = vmatprep.subr.mxu0 0.0
      %4295 = vmatpush1.msra.mxu0 %v4191
      %4296 = vmatprep.subr.mxu0 0.0
      %4297 = vmatpush1.msra.mxu0 0.0
      %4298 = vmatprep.subr.mxu0 0.0
      %4299 = vmatpush1.msra.mxu0 0.0
      %4300 = vmatprep.subr.mxu0 0.0
      %4301 = vmatpush1.msra.mxu0 0.0
      %4302 = vmatprep.subr.mxu0 0.0
      %4303 = vmatpush1.msra.mxu0 0.0
      %4304 = vmatprep.subr.mxu0 0.0
      %4305 = vmatpush1.msra.mxu0 0.0
      %4306 = vmatprep.subr.mxu0 0.0
      %4307 = vmatpush1.msra.mxu0 0.0
      %4308 = vmatprep.subr.mxu0 0.0
      %4309 = vmatpush1.msra.mxu0 0.0
      %4310 = vmatprep.subr.mxu0 0.0
      %4311 = vmatpush1.msra.mxu0 0.0
      %4312 = vmatprep.subr.mxu0 0.0
      %4313 = vmatpush1.msra.mxu0 0.0
      %4314 = vmatprep.subr.mxu0 0.0
      %4315 = vmatpush1.msra.mxu0 0.0
      %4316 = vmatprep.subr.mxu0 0.0
      %4317 = vmatpush1.msra.mxu0 0.0
      %4318 = vmatprep.subr.mxu0 0.0
      %4319 = vmatpush1.msra.mxu0 0.0
      %4320 = vmatprep.subr.mxu0 0.0
      %4321 = vmatpush1.msra.mxu0 0.0
      %4322 = vmatprep.subr.mxu0 0.0
      %4323 = vmatpush1.msra.mxu0 0.0
      %4324 = vmatprep.subr.mxu0 0.0
      %4325 = vmatpush1.msra.mxu0 0.0
      %4326 = vmatprep.subr.mxu0 0.0
      %4327 = vmatpush1.msra.mxu0 0.0
      %4328 = vmatprep.subr.mxu0 0.0
      %4329 = vmatpush1.msra.mxu0 0.0
      %4330 = vmatprep.subr.mxu0 0.0
      %4331 = vmatpush1.msra.mxu0 0.0
      %4332 = vmatprep.subr.mxu0 0.0
      %4333 = vmatpush1.msra.mxu0 0.0
      %4334 = vmatprep.subr.mxu0 0.0
      %4335 = vmatpush1.msra.mxu0 0.0
      %4336 = vmatprep.subr.mxu0 0.0
      %4337 = vmatpush1.msra.mxu0 0.0
      %4338 = vmatprep.subr.mxu0 0.0
      %4339 = vmatpush1.msra.mxu0 0.0
      %4340 = vmatprep.subr.mxu0 0.0
      %4341 = vmatpush1.msra.mxu0 0.0
      %4342 = vmatprep.subr.mxu0 0.0
      %4343 = vmatpush1.msra.mxu0 0.0
      %4344 = vmatprep.subr.mxu0 0.0
      %4345 = vmatpush1.msra.mxu0 0.0
      %4346 = vmatprep.subr.mxu0 0.0
      %4347 = vmatpush1.msra.mxu0 0.0
      %4348 = vmatprep.subr.mxu0 0.0
      %4349 = vmatpush1.msra.mxu0 0.0
      %4350 = vmatprep.subr.mxu0 0.0
      %4351 = vmatpush1.msra.mxu0 0.0
      %4352 = vmatprep.mubr.f32.mxu0 0.0
      %4353 = vmatmul.mubr.f32.gmra.mrb[0].mxu0 %v4193
      %v4354 = vpop.f32.mrb[0].mxu0
      %v4355 = vadd.f32 0.0, %v4354
      %v4356 = vpop.f32.mrb[0].mxu0
      %4357 = vmatprep.mubr.f32.mxu0 0.0
      %4358 = vmatmul.mubr.f32.gmra.mrb[0].mxu0 %v4196
      %v4359 = vpop.f32.mrb[0].mxu0
      %v4360 = vadd.f32 0.0, %v4359
      %v4361 = vpop.f32.mrb[0].mxu0
      %4362 = vmatprep.mubr.f32.mxu0 0.0
      %4363 = vmatmul.mubr.f32.gmra.mrb[0].mxu0 %v4199
      %v4364 = vpop.f32.mrb[0].mxu0
      %v4365 = vadd.f32 0.0, %v4364
      %v4366 = vpop.f32.mrb[0].mxu0
      %4367 = vmatprep.mubr.f32.mxu0 0.0
      %4368 = vmatmul.mubr.f32.gmra.mrb[0].mxu0 %v4202
      %v4369 = vpop.f32.mrb[0].mxu0
      %v4370 = vadd.f32 0.0, %v4369
      %v4371 = vpop.f32.mrb[0].mxu0
      %4372 = vmatprep.mubr.f32.mxu0 0.0
      %4373 = vmatmul.mubr.f32.gmra.mrb[0].mxu0 %v4205
      %v4374 = vpop.f32.mrb[0].mxu0
      %v4375 = vadd.f32 0.0, %v4374
      %v4376 = vpop.f32.mrb[0].mxu0
      %4377 = vmatprep.mubr.f32.mxu0 0.0
      %4378 = vmatmul.mubr.f32.gmra.mrb[0].mxu0 %v4208
      %v4379 = vpop.f32.mrb[0].mxu0
      %v4380 = vadd.f32 0.0, %v4379
      %v4381 = vpop.f32.mrb[0].mxu0
      %4382 = vmatprep.mubr.f32.mxu0 0.0
      %4383 = vmatmul.mubr.f32.gmra.mrb[0].mxu0 %v4211
      %v4384 = vpop.f32.mrb[0].mxu0
      %v4385 = vadd.f32 0.0, %v4384
      %v4386 = vpop.f32.mrb[0].mxu0
      %4387 = vmatprep.mubr.f32.mxu0 0.0
      %4388 = vmatmul.mubr.f32.gmra.mrb[0].mxu0 %v4214
      %v4389 = vpop.f32.mrb[0].mxu0
      %v4390 = vadd.f32 0.0, %v4389
      %v4391 = vpop.f32.mrb[0].mxu0
      %4392 = vmatprep.mubr.f32.mxu0 0.0
      %4393 = vmatmul.mubr.f32.gmra.mrb[0].mxu0 %v4217
      %v4394 = vpop.f32.mrb[0].mxu0
      %v4395 = vadd.f32 0.0, %v4394
      %v4396 = vpop.f32.mrb[0].mxu0
      %4397 = vmatprep.mubr.f32.mxu0 0.0
      %4398 = vmatmul.mubr.f32.gmra.mrb[0].mxu0 %v4220
      %v4399 = vpop.f32.mrb[0].mxu0
      %v4400 = vadd.f32 0.0, %v4399
      %v4401 = vpop.f32.mrb[0].mxu0
      %4402 = vmatprep.mubr.f32.mxu0 0.0
      %4403 = vmatmul.mubr.f32.gmra.mrb[0].mxu0 %v4223
      %v4404 = vpop.f32.mrb[0].mxu0
      %v4405 = vadd.f32 0.0, %v4404
      %v4406 = vpop.f32.mrb[0].mxu0
      %4407 = vmatprep.mubr.f32.mxu0 0.0
      %4408 = vmatmul.mubr.f32.gmra.mrb[0].mxu0 %v4226
      %v4409 = vpop.f32.mrb[0].mxu0
      %v4410 = vadd.f32 0.0, %v4409
      %v4411 = vpop.f32.mrb[0].mxu0
      %4412 = vmatprep.mubr.f32.mxu0 0.0
      %4413 = vmatmul.mubr.f32.gmra.mrb[0].mxu0 %v4229
      %v4414 = vpop.f32.mrb[0].mxu0
      %v4415 = vadd.f32 0.0, %v4414
      %v4416 = vpop.f32.mrb[0].mxu0
      %4417 = vmatprep.mubr.f32.mxu0 0.0
      %4418 = vmatmul.mubr.f32.gmra.mrb[0].mxu0 %v4232
      %v4419 = vpop.f32.mrb[0].mxu0
      %v4420 = vadd.f32 0.0, %v4419
      %v4421 = vpop.f32.mrb[0].mxu0
      %4422 = vmatprep.mubr.f32.mxu0 0.0
      %4423 = vmatmul.mubr.f32.gmra.mrb[0].mxu0 %v4235
      %v4424 = vpop.f32.mrb[0].mxu0
      %v4425 = vadd.f32 0.0, %v4424
      %v4426 = vpop.f32.mrb[0].mxu0
      %4427 = vmatprep.mubr.f32.mxu0 0.0
      %4428 = vmatmul.mubr.f32.gmra.mrb[0].mxu0 %v4238
      %v4429 = vpop.f32.mrb[0].mxu0
      %v4430 = vadd.f32 0.0, %v4429
      %v4431 = vpop.f32.mrb[0].mxu0
      %4432 = vmatprep.mubr.f32.mxu0 0.0
      %4433 = vmatmul.mubr.f32.gmra.mrb[0].mxu0 %v4241
      %v4434 = vpop.f32.mrb[0].mxu0
      %v4435 = vadd.f32 0.0, %v4434
      %v4436 = vpop.f32.mrb[0].mxu0
      %4437 = vmatprep.mubr.f32.mxu0 0.0
      %4438 = vmatmul.mubr.f32.gmra.mrb[0].mxu0 %v4244
      %v4439 = vpop.f32.mrb[0].mxu0
      %v4440 = vadd.f32 0.0, %v4439
      %v4441 = vpop.f32.mrb[0].mxu0
      %4442 = vmatprep.mubr.f32.mxu0 0.0
      %4443 = vmatmul.mubr.f32.gmra.mrb[0].mxu0 %v4247
      %v4444 = vpop.f32.mrb[0].mxu0
      %v4445 = vadd.f32 0.0, %v4444
      %v4446 = vpop.f32.mrb[0].mxu0
      %4447 = vmatprep.mubr.f32.mxu0 0.0
      %4448 = vmatmul.mubr.f32.gmra.mrb[0].mxu0 %v4250
      %v4449 = vpop.f32.mrb[0].mxu0
      %v4450 = vadd.f32 0.0, %v4449
      %v4451 = vpop.f32.mrb[0].mxu0
      %4452 = vmatprep.mubr.f32.mxu0 0.0
      %4453 = vmatmul.mubr.f32.gmra.mrb[0].mxu0 %v4253
      %v4454 = vpop.f32.mrb[0].mxu0
      %v4455 = vadd.f32 0.0, %v4454
      %v4456 = vpop.f32.mrb[0].mxu0
      %4457 = vmatprep.mubr.f32.mxu0 0.0
      %4458 = vmatmul.mubr.f32.gmra.mrb[0].mxu0 %v4256
      %v4459 = vpop.f32.mrb[0].mxu0
      %v4460 = vadd.f32 0.0, %v4459
      %v4461 = vpop.f32.mrb[0].mxu0
      %4462 = vmatprep.mubr.f32.mxu0 0.0
      %4463 = vmatmul.mubr.f32.gmra.mrb[0].mxu0 %v4259
      %v4464 = vpop.f32.mrb[0].mxu0
      %v4465 = vadd.f32 0.0, %v4464
      %v4466 = vpop.f32.mrb[0].mxu0
      %4467 = vmatprep.mubr.f32.mxu0 0.0
      %4468 = vmatmul.mubr.f32.gmra.mrb[0].mxu0 %v4262
      %v4469 = vpop.f32.mrb[0].mxu0
      %v4470 = vadd.f32 0.0, %v4469
      %v4471 = vpop.f32.mrb[0].mxu0
      %4472 = vmatprep.mubr.f32.mxu0 0.0
      %4473 = vmatmul.mubr.f32.gmra.mrb[0].mxu0 %v4265
      %v4474 = vpop.f32.mrb[0].mxu0
      %v4475 = vadd.f32 0.0, %v4474
      %v4476 = vpop.f32.mrb[0].mxu0
      %4477 = vmatprep.mubr.f32.mxu0 0.0
      %4478 = vmatmul.mubr.f32.gmra.mrb[0].mxu0 %v4268
      %v4479 = vpop.f32.mrb[0].mxu0
      %v4480 = vadd.f32 0.0, %v4479
      %v4481 = vpop.f32.mrb[0].mxu0
      %4482 = vmatprep.mubr.f32.mxu0 0.0
      %4483 = vmatmul.mubr.f32.gmra.mrb[0].mxu0 %v4271
      %v4484 = vpop.f32.mrb[0].mxu0
      %v4485 = vadd.f32 0.0, %v4484
      %v4486 = vpop.f32.mrb[0].mxu0
      %4487 = vmatprep.mubr.f32.mxu0 0.0
      %4488 = vmatmul.mubr.f32.gmra.mrb[0].mxu0 %v4274
      %v4489 = vpop.f32.mrb[0].mxu0
      %v4490 = vadd.f32 0.0, %v4489
      %v4491 = vpop.f32.mrb[0].mxu0
      %4492 = vmatprep.mubr.f32.mxu0 0.0
      %4493 = vmatmul.mubr.f32.gmra.mrb[0].mxu0 %v4277
      %v4494 = vpop.f32.mrb[0].mxu0
      %v4495 = vadd.f32 0.0, %v4494
      %v4496 = vpop.f32.mrb[0].mxu0
      %4497 = vmatprep.mubr.f32.mxu0 0.0
      %4498 = vmatmul.mubr.f32.gmra.mrb[0].mxu0 %v4280
      %v4499 = vpop.f32.mrb[0].mxu0
      %v4500 = vadd.f32 0.0, %v4499
      %v4501 = vpop.f32.mrb[0].mxu0
      %4502 = vmatprep.mubr.f32.mxu0 0.0
      %4503 = vmatmul.mubr.f32.gmra.mrb[0].mxu0 %v4283
      %v4504 = vpop.f32.mrb[0].mxu0
      %v4505 = vadd.f32 0.0, %v4504
      %v4506 = vpop.f32.mrb[0].mxu0
      %4507 = vmatprep.mubr.f32.mxu0 0.0
      %4508 = vmatmul.mubr.f32.gmra.mrb[0].mxu0 %v4286
      %v4509 = vpop.f32.mrb[0].mxu0
      %v4510 = vadd.f32 0.0, %v4509
      %v4511 = vpop.f32.mrb[0].mxu0
      %4512 = vdwg.mxu0
      %v4513 = vadd.f32 %v4091, %v4355
      %v4514 = vadd.f32 %v4092, %v4360
      %v4515 = vadd.f32 %v4093, %v4365
      %v4516 = vadd.f32 %v4094, %v4370
      %v4517 = vadd.f32 %v4095, %v4375
      %v4518 = vadd.f32 %v4096, %v4380
      %v4519 = vadd.f32 %v4097, %v4385
      %v4520 = vadd.f32 %v4098, %v4390
      %v4521 = vadd.f32 %v4099, %v4395
      %v4522 = vadd.f32 %v4100, %v4400
      %v4523 = vadd.f32 %v4101, %v4405
      %v4524 = vadd.f32 %v4102, %v4410
      %v4525 = vadd.f32 %v4103, %v4415
      %v4526 = vadd.f32 %v4104, %v4420
      %v4527 = vadd.f32 %v4105, %v4425
      %v4528 = vadd.f32 %v4106, %v4430
      %v4529 = vadd.f32 %v4107, %v4435
      %v4530 = vadd.f32 %v4108, %v4440
      %v4531 = vadd.f32 %v4109, %v4445
      %v4532 = vadd.f32 %v4110, %v4450
      %v4533 = vadd.f32 %v4111, %v4455
      %v4534 = vadd.f32 %v4112, %v4460
      %v4535 = vadd.f32 %v4113, %v4465
      %v4536 = vadd.f32 %v4114, %v4470
      %v4537 = vadd.f32 %v4115, %v4475
      %v4538 = vadd.f32 %v4116, %v4480
      %v4539 = vadd.f32 %v4117, %v4485
      %v4540 = vadd.f32 %v4118, %v4490
      %v4541 = vadd.f32 %v4119, %v4495
      %v4542 = vadd.f32 %v4120, %v4500
      %v4543 = vadd.f32 %v4121, %v4505
      %v4544 = vadd.f32 %v4122, %v4510
      %v4545 = vld [vmem:[%s2] sm:$0x1]
      %v4547 = vlaneseq
      %v4548 = vshrl.u32 %v4547, 7
      %v4549 = vsub.s32 0, %v4548
      %v4550 = vrot.slane %v4545, %v4549
      %v4552 = vadd.f32 %v4513, %v4550
      %v4553 = vadd.f32 %v4514, %v4550
      %v4554 = vadd.f32 %v4515, %v4550
      %v4555 = vadd.f32 %v4516, %v4550
      %v4556 = vadd.f32 %v4517, %v4550
      %v4557 = vadd.f32 %v4518, %v4550
      %v4558 = vadd.f32 %v4519, %v4550
      %v4559 = vadd.f32 %v4520, %v4550
      %v4560 = vadd.f32 %v4521, %v4550
      %v4561 = vadd.f32 %v4522, %v4550
      %v4562 = vadd.f32 %v4523, %v4550
      %v4563 = vadd.f32 %v4524, %v4550
      %v4564 = vadd.f32 %v4525, %v4550
      %v4565 = vadd.f32 %v4526, %v4550
      %v4566 = vadd.f32 %v4527, %v4550
      %v4567 = vadd.f32 %v4528, %v4550
      %v4568 = vadd.f32 %v4529, %v4550
      %v4569 = vadd.f32 %v4530, %v4550
      %v4570 = vadd.f32 %v4531, %v4550
      %v4571 = vadd.f32 %v4532, %v4550
      %v4572 = vadd.f32 %v4533, %v4550
      %v4573 = vadd.f32 %v4534, %v4550
      %v4574 = vadd.f32 %v4535, %v4550
      %v4575 = vadd.f32 %v4536, %v4550
      %v4576 = vadd.f32 %v4537, %v4550
      %v4577 = vadd.f32 %v4538, %v4550
      %v4578 = vadd.f32 %v4539, %v4550
      %v4579 = vadd.f32 %v4540, %v4550
      %v4580 = vadd.f32 %v4541, %v4550
      %v4581 = vadd.f32 %v4542, %v4550
      %v4582 = vadd.f32 %v4543, %v4550
      %v4583 = vadd.f32 %v4544, %v4550
      %v4584 = vmax.f32 %v4552, 0.0
      %v4585 = vmax.f32 %v4553, 0.0
      %v4586 = vmax.f32 %v4554, 0.0
      %v4587 = vmax.f32 %v4555, 0.0
      %v4588 = vmax.f32 %v4556, 0.0
      %v4589 = vmax.f32 %v4557, 0.0
      %v4590 = vmax.f32 %v4558, 0.0
      %v4591 = vmax.f32 %v4559, 0.0
      %v4592 = vmax.f32 %v4560, 0.0
      %v4593 = vmax.f32 %v4561, 0.0
      %v4594 = vmax.f32 %v4562, 0.0
      %v4595 = vmax.f32 %v4563, 0.0
      %v4596 = vmax.f32 %v4564, 0.0
      %v4597 = vmax.f32 %v4565, 0.0
      %v4598 = vmax.f32 %v4566, 0.0
      %v4599 = vmax.f32 %v4567, 0.0
      %v4600 = vmax.f32 %v4568, 0.0
      %v4601 = vmax.f32 %v4569, 0.0
      %v4602 = vmax.f32 %v4570, 0.0
      %v4603 = vmax.f32 %v4571, 0.0
      %v4604 = vmax.f32 %v4572, 0.0
      %v4605 = vmax.f32 %v4573, 0.0
      %v4606 = vmax.f32 %v4574, 0.0
      %v4607 = vmax.f32 %v4575, 0.0
      %v4608 = vmax.f32 %v4576, 0.0
      %v4609 = vmax.f32 %v4577, 0.0
      %v4610 = vmax.f32 %v4578, 0.0
      %v4611 = vmax.f32 %v4579, 0.0
      %v4612 = vmax.f32 %v4580, 0.0
      %v4613 = vmax.f32 %v4581, 0.0
      %v4614 = vmax.f32 %v4582, 0.0
      %v4615 = vmax.f32 %v4583, 0.0
      %4616 = vst.msk [vmem:[#allocation2] sm:$0xff] %vm869, 0.0
      %4617 = vst.msk [vmem:[#allocation2 + $0x8] sm:$0xff] %vm869, 0.0
      %4618 = vst.msk [vmem:[#allocation2 + $0x10] sm:$0xff] %vm869, 0.0
      %4619 = vst.msk [vmem:[#allocation2 + $0x18] sm:$0xff] %vm869, %v4584
      %4620 = vst.msk [vmem:[#allocation2 + $0x20] sm:$0xff] %vm869, %v4585
      %4621 = vst.msk [vmem:[#allocation2 + $0x28] sm:$0xff] %vm869, %v4586
      %4622 = vst.msk [vmem:[#allocation2 + $0x30] sm:$0xff] %vm869, %v4587
      %4623 = vst.msk [vmem:[#allocation2 + $0x38] sm:$0xff] %vm869, %v4588
      %4624 = vst.msk [vmem:[#allocation2 + $0x40] sm:$0xff] %vm869, %v4589
      %4625 = vst.msk [vmem:[#allocation2 + $0x48] sm:$0xff] %vm869, %v4590
      %4626 = vst.msk [vmem:[#allocation2 + $0x50] sm:$0xff] %vm869, %v4591
      %4627 = vst.msk [vmem:[#allocation2 + $0x58] sm:$0xff] %vm869, %v4592
      %4628 = vst.msk [vmem:[#allocation2 + $0x60] sm:$0xff] %vm869, %v4593
      %4629 = vst.msk [vmem:[#allocation2 + $0x68] sm:$0xff] %vm869, %v4594
      %4630 = vst.msk [vmem:[#allocation2 + $0x70] sm:$0xff] %vm869, %v4595
      %4631 = vst.msk [vmem:[#allocation2 + $0x78] sm:$0xff] %vm869, %v4596
      %4632 = vst.msk [vmem:[#allocation2 + $0x80] sm:$0xff] %vm869, %v4597
      %4633 = vst.msk [vmem:[#allocation2 + $0x88] sm:$0xff] %vm869, %v4598
      %4634 = vst.msk [vmem:[#allocation2 + $0x90] sm:$0xff] %vm869, %v4599
      %4635 = vst.msk [vmem:[#allocation2 + $0x98] sm:$0xff] %vm869, %v4600
      %4636 = vst.msk [vmem:[#allocation2 + $0xa0] sm:$0xff] %vm869, %v4601
      %4637 = vst.msk [vmem:[#allocation2 + $0xa8] sm:$0xff] %vm869, %v4602
      %4638 = vst.msk [vmem:[#allocation2 + $0xb0] sm:$0xff] %vm869, %v4603
      %4639 = vst.msk [vmem:[#allocation2 + $0xb8] sm:$0xff] %vm869, %v4604
      %4640 = vst.msk [vmem:[#allocation2 + $0xc0] sm:$0xff] %vm869, %v4605
      %4641 = vst.msk [vmem:[#allocation2 + $0xc8] sm:$0xff] %vm869, %v4606
      %4642 = vst.msk [vmem:[#allocation2 + $0xd0] sm:$0xff] %vm869, %v4607
      %4643 = vst.msk [vmem:[#allocation2 + $0xd8] sm:$0xff] %vm869, %v4608
      %4644 = vst.msk [vmem:[#allocation2 + $0xe0] sm:$0xff] %vm869, %v4609
      %4645 = vst.msk [vmem:[#allocation2 + $0xe8] sm:$0xff] %vm869, %v4610
      %4646 = vst.msk [vmem:[#allocation2 + $0xf0] sm:$0xff] %vm869, %v4611
      %4647 = vst.msk [vmem:[#allocation2 + $0xf8] sm:$0xff] %vm869, %v4612
      %4648 = vst.msk [vmem:[#allocation2 + $0x100] sm:$0xff] %vm869, %v4613
      %4649 = vst.msk [vmem:[#allocation2 + $0x108] sm:$0xff] %vm869, %v4614
      %4650 = vst.msk [vmem:[#allocation2 + $0x110] sm:$0xff] %vm869, %v4615
      %4651 = vst.msk [vmem:[#allocation2 + $0x118] sm:$0xff] %vm869, 0.0
      %4652 = vst.msk [vmem:[#allocation2 + $0x120] sm:$0xff] %vm869, 0.0
      %4653 = vst.msk [vmem:[#allocation2 + $0x128] sm:$0xff] %vm869, 0.0
      %v4654 = vld [vmem:[#allocation2 + $0x7] sm:$0xff]
      %v4655 = vld [vmem:[#allocation2 + $0xf] sm:$0xff]
      %v4656 = vld [vmem:[#allocation2 + $0x17] sm:$0xff]
      %v4657 = vld [vmem:[#allocation2 + $0x1f] sm:$0xff]
      %v4658 = vld [vmem:[#allocation2 + $0x27] sm:$0xff]
      %v4659 = vld [vmem:[#allocation2 + $0x2f] sm:$0xff]
      %v4660 = vld [vmem:[#allocation2 + $0x37] sm:$0xff]
      %v4661 = vld [vmem:[#allocation2 + $0x3f] sm:$0xff]
      %v4662 = vld [vmem:[#allocation2 + $0x47] sm:$0xff]
      %v4663 = vld [vmem:[#allocation2 + $0x4f] sm:$0xff]
      %v4664 = vld [vmem:[#allocation2 + $0x57] sm:$0xff]
      %v4665 = vld [vmem:[#allocation2 + $0x5f] sm:$0xff]
      %v4666 = vld [vmem:[#allocation2 + $0x67] sm:$0xff]
      %v4667 = vld [vmem:[#allocation2 + $0x6f] sm:$0xff]
      %v4668 = vld [vmem:[#allocation2 + $0x77] sm:$0xff]
      %v4669 = vld [vmem:[#allocation2 + $0x7f] sm:$0xff]
      %v4670 = vld [vmem:[#allocation2 + $0x87] sm:$0xff]
      %v4671 = vld [vmem:[#allocation2 + $0x8f] sm:$0xff]
      %v4672 = vld [vmem:[#allocation2 + $0x97] sm:$0xff]
      %v4673 = vld [vmem:[#allocation2 + $0x9f] sm:$0xff]
      %v4674 = vld [vmem:[#allocation2 + $0xa7] sm:$0xff]
      %v4675 = vld [vmem:[#allocation2 + $0xaf] sm:$0xff]
      %v4676 = vld [vmem:[#allocation2 + $0xb7] sm:$0xff]
      %v4677 = vld [vmem:[#allocation2 + $0xbf] sm:$0xff]
      %v4678 = vld [vmem:[#allocation2 + $0xc7] sm:$0xff]
      %v4679 = vld [vmem:[#allocation2 + $0xcf] sm:$0xff]
      %v4680 = vld [vmem:[#allocation2 + $0xd7] sm:$0xff]
      %v4681 = vld [vmem:[#allocation2 + $0xdf] sm:$0xff]
      %v4682 = vld [vmem:[#allocation2 + $0xe7] sm:$0xff]
      %v4683 = vld [vmem:[#allocation2 + $0xef] sm:$0xff]
      %v4684 = vld [vmem:[#allocation2 + $0xf7] sm:$0xff]
      %v4685 = vld [vmem:[#allocation2 + $0xff] sm:$0xff]
      %v4686 = vmul.f32 %v4654, %v709
      %v4687 = vmul.f32 %v4655, %v710
      %v4688 = vmul.f32 %v4656, %v711
      %v4689 = vmul.f32 %v4657, %v712
      %v4690 = vmul.f32 %v4658, %v713
      %v4691 = vmul.f32 %v4659, %v714
      %v4692 = vmul.f32 %v4660, %v715
      %v4693 = vmul.f32 %v4661, %v716
      %v4694 = vmul.f32 %v4662, %v717
      %v4695 = vmul.f32 %v4663, %v718
      %v4696 = vmul.f32 %v4664, %v719
      %v4697 = vmul.f32 %v4665, %v720
      %v4698 = vmul.f32 %v4666, %v721
      %v4699 = vmul.f32 %v4667, %v722
      %v4700 = vmul.f32 %v4668, %v723
      %v4701 = vmul.f32 %v4669, %v724
      %v4702 = vmul.f32 %v4670, %v725
      %v4703 = vmul.f32 %v4671, %v726
      %v4704 = vmul.f32 %v4672, %v727
      %v4705 = vmul.f32 %v4673, %v728
      %v4706 = vmul.f32 %v4674, %v729
      %v4707 = vmul.f32 %v4675, %v730
      %v4708 = vmul.f32 %v4676, %v731
      %v4709 = vmul.f32 %v4677, %v732
      %v4710 = vmul.f32 %v4678, %v733
      %v4711 = vmul.f32 %v4679, %v734
      %v4712 = vmul.f32 %v4680, %v735
      %v4713 = vmul.f32 %v4681, %v736
      %v4714 = vmul.f32 %v4682, %v737
      %v4715 = vmul.f32 %v4683, %v738
      %v4716 = vmul.f32 %v4684, %v739
      %v4717 = vmul.f32 %v4685, %v740
      %v4718 = vld [vmem:[%s3] sm:$0xff]
      %v4719 = vld [vmem:[%s3 + $0x8] sm:$0xff]
      %v4720 = vld [vmem:[%s3 + $0x10] sm:$0xff]
      %v4721 = vld [vmem:[%s3 + $0x18] sm:$0xff]
      %v4722 = vld [vmem:[#allocation2 + $0x8] sm:$0xff]
      %v4723 = vld [vmem:[#allocation2 + $0x10] sm:$0xff]
      %v4724 = vld [vmem:[#allocation2 + $0x18] sm:$0xff]
      %v4725 = vld [vmem:[#allocation2 + $0x20] sm:$0xff]
      %v4726 = vld [vmem:[#allocation2 + $0x28] sm:$0xff]
      %v4727 = vld [vmem:[#allocation2 + $0x30] sm:$0xff]
      %v4728 = vld [vmem:[#allocation2 + $0x38] sm:$0xff]
      %v4729 = vld [vmem:[#allocation2 + $0x40] sm:$0xff]
      %v4730 = vld [vmem:[#allocation2 + $0x48] sm:$0xff]
      %v4731 = vld [vmem:[#allocation2 + $0x50] sm:$0xff]
      %v4732 = vld [vmem:[#allocation2 + $0x58] sm:$0xff]
      %v4733 = vld [vmem:[#allocation2 + $0x60] sm:$0xff]
      %v4734 = vld [vmem:[#allocation2 + $0x68] sm:$0xff]
      %v4735 = vld [vmem:[#allocation2 + $0x70] sm:$0xff]
      %v4736 = vld [vmem:[#allocation2 + $0x78] sm:$0xff]
      %v4737 = vld [vmem:[#allocation2 + $0x80] sm:$0xff]
      %v4738 = vld [vmem:[#allocation2 + $0x88] sm:$0xff]
      %v4739 = vld [vmem:[#allocation2 + $0x90] sm:$0xff]
      %v4740 = vld [vmem:[#allocation2 + $0x98] sm:$0xff]
      %v4741 = vld [vmem:[#allocation2 + $0xa0] sm:$0xff]
      %v4742 = vld [vmem:[#allocation2 + $0xa8] sm:$0xff]
      %v4743 = vld [vmem:[#allocation2 + $0xb0] sm:$0xff]
      %v4744 = vld [vmem:[#allocation2 + $0xb8] sm:$0xff]
      %v4745 = vld [vmem:[#allocation2 + $0xc0] sm:$0xff]
      %v4746 = vld [vmem:[#allocation2 + $0xc8] sm:$0xff]
      %v4747 = vld [vmem:[#allocation2 + $0xd0] sm:$0xff]
      %v4748 = vld [vmem:[#allocation2 + $0xd8] sm:$0xff]
      %v4749 = vld [vmem:[#allocation2 + $0xe0] sm:$0xff]
      %v4750 = vld [vmem:[#allocation2 + $0xe8] sm:$0xff]
      %v4751 = vld [vmem:[#allocation2 + $0xf0] sm:$0xff]
      %v4752 = vld [vmem:[#allocation2 + $0xf8] sm:$0xff]
      %v4753 = vld [vmem:[#allocation2 + $0x100] sm:$0xff]
      %s4754 = scalar_lea.vmem %s3, 32
      %v4755 = vld [vmem:[%s4754] sm:$0xff]
      %v4756 = vld [vmem:[%s4754 + $0x8] sm:$0xff]
      %v4757 = vld [vmem:[%s4754 + $0x10] sm:$0xff]
      %v4758 = vld [vmem:[%s4754 + $0x18] sm:$0xff]
      %v4760 = vsel %vm869, %v4722, 0
      %v4763 = vsel %vm869, %v4723, 0
      %v4766 = vsel %vm869, %v4724, 0
      %v4769 = vsel %vm869, %v4725, 0
      %v4772 = vsel %vm869, %v4726, 0
      %v4775 = vsel %vm869, %v4727, 0
      %v4778 = vsel %vm869, %v4728, 0
      %v4781 = vsel %vm869, %v4729, 0
      %v4784 = vsel %vm869, %v4730, 0
      %v4787 = vsel %vm869, %v4731, 0
      %v4790 = vsel %vm869, %v4732, 0
      %v4793 = vsel %vm869, %v4733, 0
      %v4796 = vsel %vm869, %v4734, 0
      %v4799 = vsel %vm869, %v4735, 0
      %v4802 = vsel %vm869, %v4736, 0
      %v4805 = vsel %vm869, %v4737, 0
      %v4808 = vsel %vm869, %v4738, 0
      %v4811 = vsel %vm869, %v4739, 0
      %v4814 = vsel %vm869, %v4740, 0
      %v4817 = vsel %vm869, %v4741, 0
      %v4820 = vsel %vm869, %v4742, 0
      %v4823 = vsel %vm869, %v4743, 0
      %v4826 = vsel %vm869, %v4744, 0
      %v4829 = vsel %vm869, %v4745, 0
      %v4832 = vsel %vm869, %v4746, 0
      %v4835 = vsel %vm869, %v4747, 0
      %v4838 = vsel %vm869, %v4748, 0
      %v4841 = vsel %vm869, %v4749, 0
      %v4844 = vsel %vm869, %v4750, 0
      %v4847 = vsel %vm869, %v4751, 0
      %v4850 = vsel %vm869, %v4752, 0
      %v4853 = vsel %vm869, %v4753, 0
      %4855 = vmatprep.subr.mxu0 0.0
      %4856 = vmatpush1.msra.mxu0 %v4755
      %4857 = vmatprep.subr.mxu0 0.0
      %4858 = vmatpush1.msra.mxu0 %v4756
      %4859 = vmatprep.subr.mxu0 0.0
      %4860 = vmatpush1.msra.mxu0 %v4757
      %4861 = vmatprep.subr.mxu0 0.0
      %4862 = vmatpush1.msra.mxu0 %v4758
      %4863 = vmatprep.subr.mxu0 0.0
      %4864 = vmatpush1.msra.mxu0 0.0
      %4865 = vmatprep.subr.mxu0 0.0
      %4866 = vmatpush1.msra.mxu0 0.0
      %4867 = vmatprep.subr.mxu0 0.0
      %4868 = vmatpush1.msra.mxu0 0.0
      %4869 = vmatprep.subr.mxu0 0.0
      %4870 = vmatpush1.msra.mxu0 0.0
      %4871 = vmatprep.subr.mxu0 0.0
      %4872 = vmatpush1.msra.mxu0 0.0
      %4873 = vmatprep.subr.mxu0 0.0
      %4874 = vmatpush1.msra.mxu0 0.0
      %4875 = vmatprep.subr.mxu0 0.0
      %4876 = vmatpush1.msra.mxu0 0.0
      %4877 = vmatprep.subr.mxu0 0.0
      %4878 = vmatpush1.msra.mxu0 0.0
      %4879 = vmatprep.subr.mxu0 0.0
      %4880 = vmatpush1.msra.mxu0 0.0
      %4881 = vmatprep.subr.mxu0 0.0
      %4882 = vmatpush1.msra.mxu0 0.0
      %4883 = vmatprep.subr.mxu0 0.0
      %4884 = vmatpush1.msra.mxu0 0.0
      %4885 = vmatprep.subr.mxu0 0.0
      %4886 = vmatpush1.msra.mxu0 0.0
      %4887 = vmatprep.subr.mxu0 0.0
      %4888 = vmatpush1.msra.mxu0 0.0
      %4889 = vmatprep.subr.mxu0 0.0
      %4890 = vmatpush1.msra.mxu0 0.0
      %4891 = vmatprep.subr.mxu0 0.0
      %4892 = vmatpush1.msra.mxu0 0.0
      %4893 = vmatprep.subr.mxu0 0.0
      %4894 = vmatpush1.msra.mxu0 0.0
      %4895 = vmatprep.subr.mxu0 0.0
      %4896 = vmatpush1.msra.mxu0 0.0
      %4897 = vmatprep.subr.mxu0 0.0
      %4898 = vmatpush1.msra.mxu0 0.0
      %4899 = vmatprep.subr.mxu0 0.0
      %4900 = vmatpush1.msra.mxu0 0.0
      %4901 = vmatprep.subr.mxu0 0.0
      %4902 = vmatpush1.msra.mxu0 0.0
      %4903 = vmatprep.subr.mxu0 0.0
      %4904 = vmatpush1.msra.mxu0 0.0
      %4905 = vmatprep.subr.mxu0 0.0
      %4906 = vmatpush1.msra.mxu0 0.0
      %4907 = vmatprep.subr.mxu0 0.0
      %4908 = vmatpush1.msra.mxu0 0.0
      %4909 = vmatprep.subr.mxu0 0.0
      %4910 = vmatpush1.msra.mxu0 0.0
      %4911 = vmatprep.subr.mxu0 0.0
      %4912 = vmatpush1.msra.mxu0 0.0
      %4913 = vmatprep.subr.mxu0 0.0
      %4914 = vmatpush1.msra.mxu0 0.0
      %4915 = vmatprep.subr.mxu0 0.0
      %4916 = vmatpush1.msra.mxu0 0.0
      %4917 = vmatprep.subr.mxu0 0.0
      %4918 = vmatpush1.msra.mxu0 0.0
      %4919 = vmatprep.mubr.f32.mxu0 0.0
      %4920 = vmatmul.mubr.f32.gmra.mrb[0].mxu0 %v4760
      %v4921 = vpop.f32.mrb[0].mxu0
      %v4922 = vadd.f32 0.0, %v4921
      %v4923 = vpop.f32.mrb[0].mxu0
      %4924 = vmatprep.mubr.f32.mxu0 0.0
      %4925 = vmatmul.mubr.f32.gmra.mrb[0].mxu0 %v4763
      %v4926 = vpop.f32.mrb[0].mxu0
      %v4927 = vadd.f32 0.0, %v4926
      %v4928 = vpop.f32.mrb[0].mxu0
      %4929 = vmatprep.mubr.f32.mxu0 0.0
      %4930 = vmatmul.mubr.f32.gmra.mrb[0].mxu0 %v4766
      %v4931 = vpop.f32.mrb[0].mxu0
      %v4932 = vadd.f32 0.0, %v4931
      %v4933 = vpop.f32.mrb[0].mxu0
      %4934 = vmatprep.mubr.f32.mxu0 0.0
      %4935 = vmatmul.mubr.f32.gmra.mrb[0].mxu0 %v4769
      %v4936 = vpop.f32.mrb[0].mxu0
      %v4937 = vadd.f32 0.0, %v4936
      %v4938 = vpop.f32.mrb[0].mxu0
      %4939 = vmatprep.mubr.f32.mxu0 0.0
      %4940 = vmatmul.mubr.f32.gmra.mrb[0].mxu0 %v4772
      %v4941 = vpop.f32.mrb[0].mxu0
      %v4942 = vadd.f32 0.0, %v4941
      %v4943 = vpop.f32.mrb[0].mxu0
      %4944 = vmatprep.mubr.f32.mxu0 0.0
      %4945 = vmatmul.mubr.f32.gmra.mrb[0].mxu0 %v4775
      %v4946 = vpop.f32.mrb[0].mxu0
      %v4947 = vadd.f32 0.0, %v4946
      %v4948 = vpop.f32.mrb[0].mxu0
      %4949 = vmatprep.mubr.f32.mxu0 0.0
      %4950 = vmatmul.mubr.f32.gmra.mrb[0].mxu0 %v4778
      %v4951 = vpop.f32.mrb[0].mxu0
      %v4952 = vadd.f32 0.0, %v4951
      %v4953 = vpop.f32.mrb[0].mxu0
      %4954 = vmatprep.mubr.f32.mxu0 0.0
      %4955 = vmatmul.mubr.f32.gmra.mrb[0].mxu0 %v4781
      %v4956 = vpop.f32.mrb[0].mxu0
      %v4957 = vadd.f32 0.0, %v4956
      %v4958 = vpop.f32.mrb[0].mxu0
      %4959 = vmatprep.mubr.f32.mxu0 0.0
      %4960 = vmatmul.mubr.f32.gmra.mrb[0].mxu0 %v4784
      %v4961 = vpop.f32.mrb[0].mxu0
      %v4962 = vadd.f32 0.0, %v4961
      %v4963 = vpop.f32.mrb[0].mxu0
      %4964 = vmatprep.mubr.f32.mxu0 0.0
      %4965 = vmatmul.mubr.f32.gmra.mrb[0].mxu0 %v4787
      %v4966 = vpop.f32.mrb[0].mxu0
      %v4967 = vadd.f32 0.0, %v4966
      %v4968 = vpop.f32.mrb[0].mxu0
      %4969 = vmatprep.mubr.f32.mxu0 0.0
      %4970 = vmatmul.mubr.f32.gmra.mrb[0].mxu0 %v4790
      %v4971 = vpop.f32.mrb[0].mxu0
      %v4972 = vadd.f32 0.0, %v4971
      %v4973 = vpop.f32.mrb[0].mxu0
      %4974 = vmatprep.mubr.f32.mxu0 0.0
      %4975 = vmatmul.mubr.f32.gmra.mrb[0].mxu0 %v4793
      %v4976 = vpop.f32.mrb[0].mxu0
      %v4977 = vadd.f32 0.0, %v4976
      %v4978 = vpop.f32.mrb[0].mxu0
      %4979 = vmatprep.mubr.f32.mxu0 0.0
      %4980 = vmatmul.mubr.f32.gmra.mrb[0].mxu0 %v4796
      %v4981 = vpop.f32.mrb[0].mxu0
      %v4982 = vadd.f32 0.0, %v4981
      %v4983 = vpop.f32.mrb[0].mxu0
      %4984 = vmatprep.mubr.f32.mxu0 0.0
      %4985 = vmatmul.mubr.f32.gmra.mrb[0].mxu0 %v4799
      %v4986 = vpop.f32.mrb[0].mxu0
      %v4987 = vadd.f32 0.0, %v4986
      %v4988 = vpop.f32.mrb[0].mxu0
      %4989 = vmatprep.mubr.f32.mxu0 0.0
      %4990 = vmatmul.mubr.f32.gmra.mrb[0].mxu0 %v4802
      %v4991 = vpop.f32.mrb[0].mxu0
      %v4992 = vadd.f32 0.0, %v4991
      %v4993 = vpop.f32.mrb[0].mxu0
      %4994 = vmatprep.mubr.f32.mxu0 0.0
      %4995 = vmatmul.mubr.f32.gmra.mrb[0].mxu0 %v4805
      %v4996 = vpop.f32.mrb[0].mxu0
      %v4997 = vadd.f32 0.0, %v4996
      %v4998 = vpop.f32.mrb[0].mxu0
      %4999 = vmatprep.mubr.f32.mxu0 0.0
      %5000 = vmatmul.mubr.f32.gmra.mrb[0].mxu0 %v4808
      %v5001 = vpop.f32.mrb[0].mxu0
      %v5002 = vadd.f32 0.0, %v5001
      %v5003 = vpop.f32.mrb[0].mxu0
      %5004 = vmatprep.mubr.f32.mxu0 0.0
      %5005 = vmatmul.mubr.f32.gmra.mrb[0].mxu0 %v4811
      %v5006 = vpop.f32.mrb[0].mxu0
      %v5007 = vadd.f32 0.0, %v5006
      %v5008 = vpop.f32.mrb[0].mxu0
      %5009 = vmatprep.mubr.f32.mxu0 0.0
      %5010 = vmatmul.mubr.f32.gmra.mrb[0].mxu0 %v4814
      %v5011 = vpop.f32.mrb[0].mxu0
      %v5012 = vadd.f32 0.0, %v5011
      %v5013 = vpop.f32.mrb[0].mxu0
      %5014 = vmatprep.mubr.f32.mxu0 0.0
      %5015 = vmatmul.mubr.f32.gmra.mrb[0].mxu0 %v4817
      %v5016 = vpop.f32.mrb[0].mxu0
      %v5017 = vadd.f32 0.0, %v5016
      %v5018 = vpop.f32.mrb[0].mxu0
      %5019 = vmatprep.mubr.f32.mxu0 0.0
      %5020 = vmatmul.mubr.f32.gmra.mrb[0].mxu0 %v4820
      %v5021 = vpop.f32.mrb[0].mxu0
      %v5022 = vadd.f32 0.0, %v5021
      %v5023 = vpop.f32.mrb[0].mxu0
      %5024 = vmatprep.mubr.f32.mxu0 0.0
      %5025 = vmatmul.mubr.f32.gmra.mrb[0].mxu0 %v4823
      %v5026 = vpop.f32.mrb[0].mxu0
      %v5027 = vadd.f32 0.0, %v5026
      %v5028 = vpop.f32.mrb[0].mxu0
      %5029 = vmatprep.mubr.f32.mxu0 0.0
      %5030 = vmatmul.mubr.f32.gmra.mrb[0].mxu0 %v4826
      %v5031 = vpop.f32.mrb[0].mxu0
      %v5032 = vadd.f32 0.0, %v5031
      %v5033 = vpop.f32.mrb[0].mxu0
      %5034 = vmatprep.mubr.f32.mxu0 0.0
      %5035 = vmatmul.mubr.f32.gmra.mrb[0].mxu0 %v4829
      %v5036 = vpop.f32.mrb[0].mxu0
      %v5037 = vadd.f32 0.0, %v5036
      %v5038 = vpop.f32.mrb[0].mxu0
      %5039 = vmatprep.mubr.f32.mxu0 0.0
      %5040 = vmatmul.mubr.f32.gmra.mrb[0].mxu0 %v4832
      %v5041 = vpop.f32.mrb[0].mxu0
      %v5042 = vadd.f32 0.0, %v5041
      %v5043 = vpop.f32.mrb[0].mxu0
      %5044 = vmatprep.mubr.f32.mxu0 0.0
      %5045 = vmatmul.mubr.f32.gmra.mrb[0].mxu0 %v4835
      %v5046 = vpop.f32.mrb[0].mxu0
      %v5047 = vadd.f32 0.0, %v5046
      %v5048 = vpop.f32.mrb[0].mxu0
      %5049 = vmatprep.mubr.f32.mxu0 0.0
      %5050 = vmatmul.mubr.f32.gmra.mrb[0].mxu0 %v4838
      %v5051 = vpop.f32.mrb[0].mxu0
      %v5052 = vadd.f32 0.0, %v5051
      %v5053 = vpop.f32.mrb[0].mxu0
      %5054 = vmatprep.mubr.f32.mxu0 0.0
      %5055 = vmatmul.mubr.f32.gmra.mrb[0].mxu0 %v4841
      %v5056 = vpop.f32.mrb[0].mxu0
      %v5057 = vadd.f32 0.0, %v5056
      %v5058 = vpop.f32.mrb[0].mxu0
      %5059 = vmatprep.mubr.f32.mxu0 0.0
      %5060 = vmatmul.mubr.f32.gmra.mrb[0].mxu0 %v4844
      %v5061 = vpop.f32.mrb[0].mxu0
      %v5062 = vadd.f32 0.0, %v5061
      %v5063 = vpop.f32.mrb[0].mxu0
      %5064 = vmatprep.mubr.f32.mxu0 0.0
      %5065 = vmatmul.mubr.f32.gmra.mrb[0].mxu0 %v4847
      %v5066 = vpop.f32.mrb[0].mxu0
      %v5067 = vadd.f32 0.0, %v5066
      %v5068 = vpop.f32.mrb[0].mxu0
      %5069 = vmatprep.mubr.f32.mxu0 0.0
      %5070 = vmatmul.mubr.f32.gmra.mrb[0].mxu0 %v4850
      %v5071 = vpop.f32.mrb[0].mxu0
      %v5072 = vadd.f32 0.0, %v5071
      %v5073 = vpop.f32.mrb[0].mxu0
      %5074 = vmatprep.mubr.f32.mxu0 0.0
      %5075 = vmatmul.mubr.f32.gmra.mrb[0].mxu0 %v4853
      %v5076 = vpop.f32.mrb[0].mxu0
      %v5077 = vadd.f32 0.0, %v5076
      %v5078 = vpop.f32.mrb[0].mxu0
      %5079 = vdwg.mxu0
      %v5081 = vsel %vm869, %v4686, 0
      %v5084 = vsel %vm869, %v4687, 0
      %v5087 = vsel %vm869, %v4688, 0
      %v5090 = vsel %vm869, %v4689, 0
      %v5093 = vsel %vm869, %v4690, 0
      %v5096 = vsel %vm869, %v4691, 0
      %v5099 = vsel %vm869, %v4692, 0
      %v5102 = vsel %vm869, %v4693, 0
      %v5105 = vsel %vm869, %v4694, 0
      %v5108 = vsel %vm869, %v4695, 0
      %v5111 = vsel %vm869, %v4696, 0
      %v5114 = vsel %vm869, %v4697, 0
      %v5117 = vsel %vm869, %v4698, 0
      %v5120 = vsel %vm869, %v4699, 0
      %v5123 = vsel %vm869, %v4700, 0
      %v5126 = vsel %vm869, %v4701, 0
      %v5129 = vsel %vm869, %v4702, 0
      %v5132 = vsel %vm869, %v4703, 0
      %v5135 = vsel %vm869, %v4704, 0
      %v5138 = vsel %vm869, %v4705, 0
      %v5141 = vsel %vm869, %v4706, 0
      %v5144 = vsel %vm869, %v4707, 0
      %v5147 = vsel %vm869, %v4708, 0
      %v5150 = vsel %vm869, %v4709, 0
      %v5153 = vsel %vm869, %v4710, 0
      %v5156 = vsel %vm869, %v4711, 0
      %v5159 = vsel %vm869, %v4712, 0
      %v5162 = vsel %vm869, %v4713, 0
      %v5165 = vsel %vm869, %v4714, 0
      %v5168 = vsel %vm869, %v4715, 0
      %v5171 = vsel %vm869, %v4716, 0
      %v5174 = vsel %vm869, %v4717, 0
      %5176 = vmatprep.subr.mxu0 0.0
      %5177 = vmatpush1.msra.mxu0 %v4718
      %5178 = vmatprep.subr.mxu0 0.0
      %5179 = vmatpush1.msra.mxu0 %v4719
      %5180 = vmatprep.subr.mxu0 0.0
      %5181 = vmatpush1.msra.mxu0 %v4720
      %5182 = vmatprep.subr.mxu0 0.0
      %5183 = vmatpush1.msra.mxu0 %v4721
      %5184 = vmatprep.subr.mxu0 0.0
      %5185 = vmatpush1.msra.mxu0 0.0
      %5186 = vmatprep.subr.mxu0 0.0
      %5187 = vmatpush1.msra.mxu0 0.0
      %5188 = vmatprep.subr.mxu0 0.0
      %5189 = vmatpush1.msra.mxu0 0.0
      %5190 = vmatprep.subr.mxu0 0.0
      %5191 = vmatpush1.msra.mxu0 0.0
      %5192 = vmatprep.subr.mxu0 0.0
      %5193 = vmatpush1.msra.mxu0 0.0
      %5194 = vmatprep.subr.mxu0 0.0
      %5195 = vmatpush1.msra.mxu0 0.0
      %5196 = vmatprep.subr.mxu0 0.0
      %5197 = vmatpush1.msra.mxu0 0.0
      %5198 = vmatprep.subr.mxu0 0.0
      %5199 = vmatpush1.msra.mxu0 0.0
      %5200 = vmatprep.subr.mxu0 0.0
      %5201 = vmatpush1.msra.mxu0 0.0
      %5202 = vmatprep.subr.mxu0 0.0
      %5203 = vmatpush1.msra.mxu0 0.0
      %5204 = vmatprep.subr.mxu0 0.0
      %5205 = vmatpush1.msra.mxu0 0.0
      %5206 = vmatprep.subr.mxu0 0.0
      %5207 = vmatpush1.msra.mxu0 0.0
      %5208 = vmatprep.subr.mxu0 0.0
      %5209 = vmatpush1.msra.mxu0 0.0
      %5210 = vmatprep.subr.mxu0 0.0
      %5211 = vmatpush1.msra.mxu0 0.0
      %5212 = vmatprep.subr.mxu0 0.0
      %5213 = vmatpush1.msra.mxu0 0.0
      %5214 = vmatprep.subr.mxu0 0.0
      %5215 = vmatpush1.msra.mxu0 0.0
      %5216 = vmatprep.subr.mxu0 0.0
      %5217 = vmatpush1.msra.mxu0 0.0
      %5218 = vmatprep.subr.mxu0 0.0
      %5219 = vmatpush1.msra.mxu0 0.0
      %5220 = vmatprep.subr.mxu0 0.0
      %5221 = vmatpush1.msra.mxu0 0.0
      %5222 = vmatprep.subr.mxu0 0.0
      %5223 = vmatpush1.msra.mxu0 0.0
      %5224 = vmatprep.subr.mxu0 0.0
      %5225 = vmatpush1.msra.mxu0 0.0
      %5226 = vmatprep.subr.mxu0 0.0
      %5227 = vmatpush1.msra.mxu0 0.0
      %5228 = vmatprep.subr.mxu0 0.0
      %5229 = vmatpush1.msra.mxu0 0.0
      %5230 = vmatprep.subr.mxu0 0.0
      %5231 = vmatpush1.msra.mxu0 0.0
      %5232 = vmatprep.subr.mxu0 0.0
      %5233 = vmatpush1.msra.mxu0 0.0
      %5234 = vmatprep.subr.mxu0 0.0
      %5235 = vmatpush1.msra.mxu0 0.0
      %5236 = vmatprep.subr.mxu0 0.0
      %5237 = vmatpush1.msra.mxu0 0.0
      %5238 = vmatprep.subr.mxu0 0.0
      %5239 = vmatpush1.msra.mxu0 0.0
      %5240 = vmatprep.mubr.f32.mxu0 0.0
      %5241 = vmatmul.mubr.f32.gmra.mrb[0].mxu0 %v5081
      %v5242 = vpop.f32.mrb[0].mxu0
      %v5243 = vadd.f32 %v4922, %v5242
      %v5244 = vpop.f32.mrb[0].mxu0
      %5245 = vmatprep.mubr.f32.mxu0 0.0
      %5246 = vmatmul.mubr.f32.gmra.mrb[0].mxu0 %v5084
      %v5247 = vpop.f32.mrb[0].mxu0
      %v5248 = vadd.f32 %v4927, %v5247
      %v5249 = vpop.f32.mrb[0].mxu0
      %5250 = vmatprep.mubr.f32.mxu0 0.0
      %5251 = vmatmul.mubr.f32.gmra.mrb[0].mxu0 %v5087
      %v5252 = vpop.f32.mrb[0].mxu0
      %v5253 = vadd.f32 %v4932, %v5252
      %v5254 = vpop.f32.mrb[0].mxu0
      %5255 = vmatprep.mubr.f32.mxu0 0.0
      %5256 = vmatmul.mubr.f32.gmra.mrb[0].mxu0 %v5090
      %v5257 = vpop.f32.mrb[0].mxu0
      %v5258 = vadd.f32 %v4937, %v5257
      %v5259 = vpop.f32.mrb[0].mxu0
      %5260 = vmatprep.mubr.f32.mxu0 0.0
      %5261 = vmatmul.mubr.f32.gmra.mrb[0].mxu0 %v5093
      %v5262 = vpop.f32.mrb[0].mxu0
      %v5263 = vadd.f32 %v4942, %v5262
      %v5264 = vpop.f32.mrb[0].mxu0
      %5265 = vmatprep.mubr.f32.mxu0 0.0
      %5266 = vmatmul.mubr.f32.gmra.mrb[0].mxu0 %v5096
      %v5267 = vpop.f32.mrb[0].mxu0
      %v5268 = vadd.f32 %v4947, %v5267
      %v5269 = vpop.f32.mrb[0].mxu0
      %5270 = vmatprep.mubr.f32.mxu0 0.0
      %5271 = vmatmul.mubr.f32.gmra.mrb[0].mxu0 %v5099
      %v5272 = vpop.f32.mrb[0].mxu0
      %v5273 = vadd.f32 %v4952, %v5272
      %v5274 = vpop.f32.mrb[0].mxu0
      %5275 = vmatprep.mubr.f32.mxu0 0.0
      %5276 = vmatmul.mubr.f32.gmra.mrb[0].mxu0 %v5102
      %v5277 = vpop.f32.mrb[0].mxu0
      %v5278 = vadd.f32 %v4957, %v5277
      %v5279 = vpop.f32.mrb[0].mxu0
      %5280 = vmatprep.mubr.f32.mxu0 0.0
      %5281 = vmatmul.mubr.f32.gmra.mrb[0].mxu0 %v5105
      %v5282 = vpop.f32.mrb[0].mxu0
      %v5283 = vadd.f32 %v4962, %v5282
      %v5284 = vpop.f32.mrb[0].mxu0
      %5285 = vmatprep.mubr.f32.mxu0 0.0
      %5286 = vmatmul.mubr.f32.gmra.mrb[0].mxu0 %v5108
      %v5287 = vpop.f32.mrb[0].mxu0
      %v5288 = vadd.f32 %v4967, %v5287
      %v5289 = vpop.f32.mrb[0].mxu0
      %5290 = vmatprep.mubr.f32.mxu0 0.0
      %5291 = vmatmul.mubr.f32.gmra.mrb[0].mxu0 %v5111
      %v5292 = vpop.f32.mrb[0].mxu0
      %v5293 = vadd.f32 %v4972, %v5292
      %v5294 = vpop.f32.mrb[0].mxu0
      %5295 = vmatprep.mubr.f32.mxu0 0.0
      %5296 = vmatmul.mubr.f32.gmra.mrb[0].mxu0 %v5114
      %v5297 = vpop.f32.mrb[0].mxu0
      %v5298 = vadd.f32 %v4977, %v5297
      %v5299 = vpop.f32.mrb[0].mxu0
      %5300 = vmatprep.mubr.f32.mxu0 0.0
      %5301 = vmatmul.mubr.f32.gmra.mrb[0].mxu0 %v5117
      %v5302 = vpop.f32.mrb[0].mxu0
      %v5303 = vadd.f32 %v4982, %v5302
      %v5304 = vpop.f32.mrb[0].mxu0
      %5305 = vmatprep.mubr.f32.mxu0 0.0
      %5306 = vmatmul.mubr.f32.gmra.mrb[0].mxu0 %v5120
      %v5307 = vpop.f32.mrb[0].mxu0
      %v5308 = vadd.f32 %v4987, %v5307
      %v5309 = vpop.f32.mrb[0].mxu0
      %5310 = vmatprep.mubr.f32.mxu0 0.0
      %5311 = vmatmul.mubr.f32.gmra.mrb[0].mxu0 %v5123
      %v5312 = vpop.f32.mrb[0].mxu0
      %v5313 = vadd.f32 %v4992, %v5312
      %v5314 = vpop.f32.mrb[0].mxu0
      %5315 = vmatprep.mubr.f32.mxu0 0.0
      %5316 = vmatmul.mubr.f32.gmra.mrb[0].mxu0 %v5126
      %v5317 = vpop.f32.mrb[0].mxu0
      %v5318 = vadd.f32 %v4997, %v5317
      %v5319 = vpop.f32.mrb[0].mxu0
      %5320 = vmatprep.mubr.f32.mxu0 0.0
      %5321 = vmatmul.mubr.f32.gmra.mrb[0].mxu0 %v5129
      %v5322 = vpop.f32.mrb[0].mxu0
      %v5323 = vadd.f32 %v5002, %v5322
      %v5324 = vpop.f32.mrb[0].mxu0
      %5325 = vmatprep.mubr.f32.mxu0 0.0
      %5326 = vmatmul.mubr.f32.gmra.mrb[0].mxu0 %v5132
      %v5327 = vpop.f32.mrb[0].mxu0
      %v5328 = vadd.f32 %v5007, %v5327
      %v5329 = vpop.f32.mrb[0].mxu0
      %5330 = vmatprep.mubr.f32.mxu0 0.0
      %5331 = vmatmul.mubr.f32.gmra.mrb[0].mxu0 %v5135
      %v5332 = vpop.f32.mrb[0].mxu0
      %v5333 = vadd.f32 %v5012, %v5332
      %v5334 = vpop.f32.mrb[0].mxu0
      %5335 = vmatprep.mubr.f32.mxu0 0.0
      %5336 = vmatmul.mubr.f32.gmra.mrb[0].mxu0 %v5138
      %v5337 = vpop.f32.mrb[0].mxu0
      %v5338 = vadd.f32 %v5017, %v5337
      %v5339 = vpop.f32.mrb[0].mxu0
      %5340 = vmatprep.mubr.f32.mxu0 0.0
      %5341 = vmatmul.mubr.f32.gmra.mrb[0].mxu0 %v5141
      %v5342 = vpop.f32.mrb[0].mxu0
      %v5343 = vadd.f32 %v5022, %v5342
      %v5344 = vpop.f32.mrb[0].mxu0
      %5345 = vmatprep.mubr.f32.mxu0 0.0
      %5346 = vmatmul.mubr.f32.gmra.mrb[0].mxu0 %v5144
      %v5347 = vpop.f32.mrb[0].mxu0
      %v5348 = vadd.f32 %v5027, %v5347
      %v5349 = vpop.f32.mrb[0].mxu0
      %5350 = vmatprep.mubr.f32.mxu0 0.0
      %5351 = vmatmul.mubr.f32.gmra.mrb[0].mxu0 %v5147
      %v5352 = vpop.f32.mrb[0].mxu0
      %v5353 = vadd.f32 %v5032, %v5352
      %v5354 = vpop.f32.mrb[0].mxu0
      %5355 = vmatprep.mubr.f32.mxu0 0.0
      %5356 = vmatmul.mubr.f32.gmra.mrb[0].mxu0 %v5150
      %v5357 = vpop.f32.mrb[0].mxu0
      %v5358 = vadd.f32 %v5037, %v5357
      %v5359 = vpop.f32.mrb[0].mxu0
      %5360 = vmatprep.mubr.f32.mxu0 0.0
      %5361 = vmatmul.mubr.f32.gmra.mrb[0].mxu0 %v5153
      %v5362 = vpop.f32.mrb[0].mxu0
      %v5363 = vadd.f32 %v5042, %v5362
      %v5364 = vpop.f32.mrb[0].mxu0
      %5365 = vmatprep.mubr.f32.mxu0 0.0
      %5366 = vmatmul.mubr.f32.gmra.mrb[0].mxu0 %v5156
      %v5367 = vpop.f32.mrb[0].mxu0
      %v5368 = vadd.f32 %v5047, %v5367
      %v5369 = vpop.f32.mrb[0].mxu0
      %5370 = vmatprep.mubr.f32.mxu0 0.0
      %5371 = vmatmul.mubr.f32.gmra.mrb[0].mxu0 %v5159
      %v5372 = vpop.f32.mrb[0].mxu0
      %v5373 = vadd.f32 %v5052, %v5372
      %v5374 = vpop.f32.mrb[0].mxu0
      %5375 = vmatprep.mubr.f32.mxu0 0.0
      %5376 = vmatmul.mubr.f32.gmra.mrb[0].mxu0 %v5162
      %v5377 = vpop.f32.mrb[0].mxu0
      %v5378 = vadd.f32 %v5057, %v5377
      %v5379 = vpop.f32.mrb[0].mxu0
      %5380 = vmatprep.mubr.f32.mxu0 0.0
      %5381 = vmatmul.mubr.f32.gmra.mrb[0].mxu0 %v5165
      %v5382 = vpop.f32.mrb[0].mxu0
      %v5383 = vadd.f32 %v5062, %v5382
      %v5384 = vpop.f32.mrb[0].mxu0
      %5385 = vmatprep.mubr.f32.mxu0 0.0
      %5386 = vmatmul.mubr.f32.gmra.mrb[0].mxu0 %v5168
      %v5387 = vpop.f32.mrb[0].mxu0
      %v5388 = vadd.f32 %v5067, %v5387
      %v5389 = vpop.f32.mrb[0].mxu0
      %5390 = vmatprep.mubr.f32.mxu0 0.0
      %5391 = vmatmul.mubr.f32.gmra.mrb[0].mxu0 %v5171
      %v5392 = vpop.f32.mrb[0].mxu0
      %v5393 = vadd.f32 %v5072, %v5392
      %v5394 = vpop.f32.mrb[0].mxu0
      %5395 = vmatprep.mubr.f32.mxu0 0.0
      %5396 = vmatmul.mubr.f32.gmra.mrb[0].mxu0 %v5174
      %v5397 = vpop.f32.mrb[0].mxu0
      %v5398 = vadd.f32 %v5077, %v5397
      %v5399 = vpop.f32.mrb[0].mxu0
      %5400 = vdwg.mxu0
      %v5401 = vld [vmem:[#allocation2 + $0x9] sm:$0xff]
      %v5402 = vld [vmem:[#allocation2 + $0x11] sm:$0xff]
      %v5403 = vld [vmem:[#allocation2 + $0x19] sm:$0xff]
      %v5404 = vld [vmem:[#allocation2 + $0x21] sm:$0xff]
      %v5405 = vld [vmem:[#allocation2 + $0x29] sm:$0xff]
      %v5406 = vld [vmem:[#allocation2 + $0x31] sm:$0xff]
      %v5407 = vld [vmem:[#allocation2 + $0x39] sm:$0xff]
      %v5408 = vld [vmem:[#allocation2 + $0x41] sm:$0xff]
      %v5409 = vld [vmem:[#allocation2 + $0x49] sm:$0xff]
      %v5410 = vld [vmem:[#allocation2 + $0x51] sm:$0xff]
      %v5411 = vld [vmem:[#allocation2 + $0x59] sm:$0xff]
      %v5412 = vld [vmem:[#allocation2 + $0x61] sm:$0xff]
      %v5413 = vld [vmem:[#allocation2 + $0x69] sm:$0xff]
      %v5414 = vld [vmem:[#allocation2 + $0x71] sm:$0xff]
      %v5415 = vld [vmem:[#allocation2 + $0x79] sm:$0xff]
      %v5416 = vld [vmem:[#allocation2 + $0x81] sm:$0xff]
      %v5417 = vld [vmem:[#allocation2 + $0x89] sm:$0xff]
      %v5418 = vld [vmem:[#allocation2 + $0x91] sm:$0xff]
      %v5419 = vld [vmem:[#allocation2 + $0x99] sm:$0xff]
      %v5420 = vld [vmem:[#allocation2 + $0xa1] sm:$0xff]
      %v5421 = vld [vmem:[#allocation2 + $0xa9] sm:$0xff]
      %v5422 = vld [vmem:[#allocation2 + $0xb1] sm:$0xff]
      %v5423 = vld [vmem:[#allocation2 + $0xb9] sm:$0xff]
      %v5424 = vld [vmem:[#allocation2 + $0xc1] sm:$0xff]
      %v5425 = vld [vmem:[#allocation2 + $0xc9] sm:$0xff]
      %v5426 = vld [vmem:[#allocation2 + $0xd1] sm:$0xff]
      %v5427 = vld [vmem:[#allocation2 + $0xd9] sm:$0xff]
      %v5428 = vld [vmem:[#allocation2 + $0xe1] sm:$0xff]
      %v5429 = vld [vmem:[#allocation2 + $0xe9] sm:$0xff]
      %v5430 = vld [vmem:[#allocation2 + $0xf1] sm:$0xff]
      %v5431 = vld [vmem:[#allocation2 + $0xf9] sm:$0xff]
      %v5432 = vld [vmem:[#allocation2 + $0x101] sm:$0xff]
      %v5433 = vmul.f32 %v5401, %v805
      %v5434 = vmul.f32 %v5402, %v806
      %v5435 = vmul.f32 %v5403, %v807
      %v5436 = vmul.f32 %v5404, %v808
      %v5437 = vmul.f32 %v5405, %v809
      %v5438 = vmul.f32 %v5406, %v810
      %v5439 = vmul.f32 %v5407, %v811
      %v5440 = vmul.f32 %v5408, %v812
      %v5441 = vmul.f32 %v5409, %v813
      %v5442 = vmul.f32 %v5410, %v814
      %v5443 = vmul.f32 %v5411, %v815
      %v5444 = vmul.f32 %v5412, %v816
      %v5445 = vmul.f32 %v5413, %v817
      %v5446 = vmul.f32 %v5414, %v818
      %v5447 = vmul.f32 %v5415, %v819
      %v5448 = vmul.f32 %v5416, %v820
      %v5449 = vmul.f32 %v5417, %v821
      %v5450 = vmul.f32 %v5418, %v822
      %v5451 = vmul.f32 %v5419, %v823
      %v5452 = vmul.f32 %v5420, %v824
      %v5453 = vmul.f32 %v5421, %v825
      %v5454 = vmul.f32 %v5422, %v826
      %v5455 = vmul.f32 %v5423, %v827
      %v5456 = vmul.f32 %v5424, %v828
      %v5457 = vmul.f32 %v5425, %v829
      %v5458 = vmul.f32 %v5426, %v830
      %v5459 = vmul.f32 %v5427, %v831
      %v5460 = vmul.f32 %v5428, %v832
      %v5461 = vmul.f32 %v5429, %v833
      %v5462 = vmul.f32 %v5430, %v834
      %v5463 = vmul.f32 %v5431, %v835
      %v5464 = vmul.f32 %v5432, %v836
      %s5465 = scalar_lea.vmem %s3, 64
      %v5466 = vld [vmem:[%s5465] sm:$0xff]
      %v5467 = vld [vmem:[%s5465 + $0x8] sm:$0xff]
      %v5468 = vld [vmem:[%s5465 + $0x10] sm:$0xff]
      %v5469 = vld [vmem:[%s5465 + $0x18] sm:$0xff]
      %v5471 = vsel %vm869, %v5433, 0
      %v5474 = vsel %vm869, %v5434, 0
      %v5477 = vsel %vm869, %v5435, 0
      %v5480 = vsel %vm869, %v5436, 0
      %v5483 = vsel %vm869, %v5437, 0
      %v5486 = vsel %vm869, %v5438, 0
      %v5489 = vsel %vm869, %v5439, 0
      %v5492 = vsel %vm869, %v5440, 0
      %v5495 = vsel %vm869, %v5441, 0
      %v5498 = vsel %vm869, %v5442, 0
      %v5501 = vsel %vm869, %v5443, 0
      %v5504 = vsel %vm869, %v5444, 0
      %v5507 = vsel %vm869, %v5445, 0
      %v5510 = vsel %vm869, %v5446, 0
      %v5513 = vsel %vm869, %v5447, 0
      %v5516 = vsel %vm869, %v5448, 0
      %v5519 = vsel %vm869, %v5449, 0
      %v5522 = vsel %vm869, %v5450, 0
      %v5525 = vsel %vm869, %v5451, 0
      %v5528 = vsel %vm869, %v5452, 0
      %v5531 = vsel %vm869, %v5453, 0
      %v5534 = vsel %vm869, %v5454, 0
      %v5537 = vsel %vm869, %v5455, 0
      %v5540 = vsel %vm869, %v5456, 0
      %v5543 = vsel %vm869, %v5457, 0
      %v5546 = vsel %vm869, %v5458, 0
      %v5549 = vsel %vm869, %v5459, 0
      %v5552 = vsel %vm869, %v5460, 0
      %v5555 = vsel %vm869, %v5461, 0
      %v5558 = vsel %vm869, %v5462, 0
      %v5561 = vsel %vm869, %v5463, 0
      %v5564 = vsel %vm869, %v5464, 0
      %5566 = vmatprep.subr.mxu0 0.0
      %5567 = vmatpush1.msra.mxu0 %v5466
      %5568 = vmatprep.subr.mxu0 0.0
      %5569 = vmatpush1.msra.mxu0 %v5467
      %5570 = vmatprep.subr.mxu0 0.0
      %5571 = vmatpush1.msra.mxu0 %v5468
      %5572 = vmatprep.subr.mxu0 0.0
      %5573 = vmatpush1.msra.mxu0 %v5469
      %5574 = vmatprep.subr.mxu0 0.0
      %5575 = vmatpush1.msra.mxu0 0.0
      %5576 = vmatprep.subr.mxu0 0.0
      %5577 = vmatpush1.msra.mxu0 0.0
      %5578 = vmatprep.subr.mxu0 0.0
      %5579 = vmatpush1.msra.mxu0 0.0
      %5580 = vmatprep.subr.mxu0 0.0
      %5581 = vmatpush1.msra.mxu0 0.0
      %5582 = vmatprep.subr.mxu0 0.0
      %5583 = vmatpush1.msra.mxu0 0.0
      %5584 = vmatprep.subr.mxu0 0.0
      %5585 = vmatpush1.msra.mxu0 0.0
      %5586 = vmatprep.subr.mxu0 0.0
      %5587 = vmatpush1.msra.mxu0 0.0
      %5588 = vmatprep.subr.mxu0 0.0
      %5589 = vmatpush1.msra.mxu0 0.0
      %5590 = vmatprep.subr.mxu0 0.0
      %5591 = vmatpush1.msra.mxu0 0.0
      %5592 = vmatprep.subr.mxu0 0.0
      %5593 = vmatpush1.msra.mxu0 0.0
      %5594 = vmatprep.subr.mxu0 0.0
      %5595 = vmatpush1.msra.mxu0 0.0
      %5596 = vmatprep.subr.mxu0 0.0
      %5597 = vmatpush1.msra.mxu0 0.0
      %5598 = vmatprep.subr.mxu0 0.0
      %5599 = vmatpush1.msra.mxu0 0.0
      %5600 = vmatprep.subr.mxu0 0.0
      %5601 = vmatpush1.msra.mxu0 0.0
      %5602 = vmatprep.subr.mxu0 0.0
      %5603 = vmatpush1.msra.mxu0 0.0
      %5604 = vmatprep.subr.mxu0 0.0
      %5605 = vmatpush1.msra.mxu0 0.0
      %5606 = vmatprep.subr.mxu0 0.0
      %5607 = vmatpush1.msra.mxu0 0.0
      %5608 = vmatprep.subr.mxu0 0.0
      %5609 = vmatpush1.msra.mxu0 0.0
      %5610 = vmatprep.subr.mxu0 0.0
      %5611 = vmatpush1.msra.mxu0 0.0
      %5612 = vmatprep.subr.mxu0 0.0
      %5613 = vmatpush1.msra.mxu0 0.0
      %5614 = vmatprep.subr.mxu0 0.0
      %5615 = vmatpush1.msra.mxu0 0.0
      %5616 = vmatprep.subr.mxu0 0.0
      %5617 = vmatpush1.msra.mxu0 0.0
      %5618 = vmatprep.subr.mxu0 0.0
      %5619 = vmatpush1.msra.mxu0 0.0
      %5620 = vmatprep.subr.mxu0 0.0
      %5621 = vmatpush1.msra.mxu0 0.0
      %5622 = vmatprep.subr.mxu0 0.0
      %5623 = vmatpush1.msra.mxu0 0.0
      %5624 = vmatprep.subr.mxu0 0.0
      %5625 = vmatpush1.msra.mxu0 0.0
      %5626 = vmatprep.subr.mxu0 0.0
      %5627 = vmatpush1.msra.mxu0 0.0
      %5628 = vmatprep.subr.mxu0 0.0
      %5629 = vmatpush1.msra.mxu0 0.0
      %5630 = vmatprep.mubr.f32.mxu0 0.0
      %5631 = vmatmul.mubr.f32.gmra.mrb[0].mxu0 %v5471
      %v5632 = vpop.f32.mrb[0].mxu0
      %v5633 = vadd.f32 0.0, %v5632
      %v5634 = vpop.f32.mrb[0].mxu0
      %5635 = vmatprep.mubr.f32.mxu0 0.0
      %5636 = vmatmul.mubr.f32.gmra.mrb[0].mxu0 %v5474
      %v5637 = vpop.f32.mrb[0].mxu0
      %v5638 = vadd.f32 0.0, %v5637
      %v5639 = vpop.f32.mrb[0].mxu0
      %5640 = vmatprep.mubr.f32.mxu0 0.0
      %5641 = vmatmul.mubr.f32.gmra.mrb[0].mxu0 %v5477
      %v5642 = vpop.f32.mrb[0].mxu0
      %v5643 = vadd.f32 0.0, %v5642
      %v5644 = vpop.f32.mrb[0].mxu0
      %5645 = vmatprep.mubr.f32.mxu0 0.0
      %5646 = vmatmul.mubr.f32.gmra.mrb[0].mxu0 %v5480
      %v5647 = vpop.f32.mrb[0].mxu0
      %v5648 = vadd.f32 0.0, %v5647
      %v5649 = vpop.f32.mrb[0].mxu0
      %5650 = vmatprep.mubr.f32.mxu0 0.0
      %5651 = vmatmul.mubr.f32.gmra.mrb[0].mxu0 %v5483
      %v5652 = vpop.f32.mrb[0].mxu0
      %v5653 = vadd.f32 0.0, %v5652
      %v5654 = vpop.f32.mrb[0].mxu0
      %5655 = vmatprep.mubr.f32.mxu0 0.0
      %5656 = vmatmul.mubr.f32.gmra.mrb[0].mxu0 %v5486
      %v5657 = vpop.f32.mrb[0].mxu0
      %v5658 = vadd.f32 0.0, %v5657
      %v5659 = vpop.f32.mrb[0].mxu0
      %5660 = vmatprep.mubr.f32.mxu0 0.0
      %5661 = vmatmul.mubr.f32.gmra.mrb[0].mxu0 %v5489
      %v5662 = vpop.f32.mrb[0].mxu0
      %v5663 = vadd.f32 0.0, %v5662
      %v5664 = vpop.f32.mrb[0].mxu0
      %5665 = vmatprep.mubr.f32.mxu0 0.0
      %5666 = vmatmul.mubr.f32.gmra.mrb[0].mxu0 %v5492
      %v5667 = vpop.f32.mrb[0].mxu0
      %v5668 = vadd.f32 0.0, %v5667
      %v5669 = vpop.f32.mrb[0].mxu0
      %5670 = vmatprep.mubr.f32.mxu0 0.0
      %5671 = vmatmul.mubr.f32.gmra.mrb[0].mxu0 %v5495
      %v5672 = vpop.f32.mrb[0].mxu0
      %v5673 = vadd.f32 0.0, %v5672
      %v5674 = vpop.f32.mrb[0].mxu0
      %5675 = vmatprep.mubr.f32.mxu0 0.0
      %5676 = vmatmul.mubr.f32.gmra.mrb[0].mxu0 %v5498
      %v5677 = vpop.f32.mrb[0].mxu0
      %v5678 = vadd.f32 0.0, %v5677
      %v5679 = vpop.f32.mrb[0].mxu0
      %5680 = vmatprep.mubr.f32.mxu0 0.0
      %5681 = vmatmul.mubr.f32.gmra.mrb[0].mxu0 %v5501
      %v5682 = vpop.f32.mrb[0].mxu0
      %v5683 = vadd.f32 0.0, %v5682
      %v5684 = vpop.f32.mrb[0].mxu0
      %5685 = vmatprep.mubr.f32.mxu0 0.0
      %5686 = vmatmul.mubr.f32.gmra.mrb[0].mxu0 %v5504
      %v5687 = vpop.f32.mrb[0].mxu0
      %v5688 = vadd.f32 0.0, %v5687
      %v5689 = vpop.f32.mrb[0].mxu0
      %5690 = vmatprep.mubr.f32.mxu0 0.0
      %5691 = vmatmul.mubr.f32.gmra.mrb[0].mxu0 %v5507
      %v5692 = vpop.f32.mrb[0].mxu0
      %v5693 = vadd.f32 0.0, %v5692
      %v5694 = vpop.f32.mrb[0].mxu0
      %5695 = vmatprep.mubr.f32.mxu0 0.0
      %5696 = vmatmul.mubr.f32.gmra.mrb[0].mxu0 %v5510
      %v5697 = vpop.f32.mrb[0].mxu0
      %v5698 = vadd.f32 0.0, %v5697
      %v5699 = vpop.f32.mrb[0].mxu0
      %5700 = vmatprep.mubr.f32.mxu0 0.0
      %5701 = vmatmul.mubr.f32.gmra.mrb[0].mxu0 %v5513
      %v5702 = vpop.f32.mrb[0].mxu0
      %v5703 = vadd.f32 0.0, %v5702
      %v5704 = vpop.f32.mrb[0].mxu0
      %5705 = vmatprep.mubr.f32.mxu0 0.0
      %5706 = vmatmul.mubr.f32.gmra.mrb[0].mxu0 %v5516
      %v5707 = vpop.f32.mrb[0].mxu0
      %v5708 = vadd.f32 0.0, %v5707
      %v5709 = vpop.f32.mrb[0].mxu0
      %5710 = vmatprep.mubr.f32.mxu0 0.0
      %5711 = vmatmul.mubr.f32.gmra.mrb[0].mxu0 %v5519
      %v5712 = vpop.f32.mrb[0].mxu0
      %v5713 = vadd.f32 0.0, %v5712
      %v5714 = vpop.f32.mrb[0].mxu0
      %5715 = vmatprep.mubr.f32.mxu0 0.0
      %5716 = vmatmul.mubr.f32.gmra.mrb[0].mxu0 %v5522
      %v5717 = vpop.f32.mrb[0].mxu0
      %v5718 = vadd.f32 0.0, %v5717
      %v5719 = vpop.f32.mrb[0].mxu0
      %5720 = vmatprep.mubr.f32.mxu0 0.0
      %5721 = vmatmul.mubr.f32.gmra.mrb[0].mxu0 %v5525
      %v5722 = vpop.f32.mrb[0].mxu0
      %v5723 = vadd.f32 0.0, %v5722
      %v5724 = vpop.f32.mrb[0].mxu0
      %5725 = vmatprep.mubr.f32.mxu0 0.0
      %5726 = vmatmul.mubr.f32.gmra.mrb[0].mxu0 %v5528
      %v5727 = vpop.f32.mrb[0].mxu0
      %v5728 = vadd.f32 0.0, %v5727
      %v5729 = vpop.f32.mrb[0].mxu0
      %5730 = vmatprep.mubr.f32.mxu0 0.0
      %5731 = vmatmul.mubr.f32.gmra.mrb[0].mxu0 %v5531
      %v5732 = vpop.f32.mrb[0].mxu0
      %v5733 = vadd.f32 0.0, %v5732
      %v5734 = vpop.f32.mrb[0].mxu0
      %5735 = vmatprep.mubr.f32.mxu0 0.0
      %5736 = vmatmul.mubr.f32.gmra.mrb[0].mxu0 %v5534
      %v5737 = vpop.f32.mrb[0].mxu0
      %v5738 = vadd.f32 0.0, %v5737
      %v5739 = vpop.f32.mrb[0].mxu0
      %5740 = vmatprep.mubr.f32.mxu0 0.0
      %5741 = vmatmul.mubr.f32.gmra.mrb[0].mxu0 %v5537
      %v5742 = vpop.f32.mrb[0].mxu0
      %v5743 = vadd.f32 0.0, %v5742
      %v5744 = vpop.f32.mrb[0].mxu0
      %5745 = vmatprep.mubr.f32.mxu0 0.0
      %5746 = vmatmul.mubr.f32.gmra.mrb[0].mxu0 %v5540
      %v5747 = vpop.f32.mrb[0].mxu0
      %v5748 = vadd.f32 0.0, %v5747
      %v5749 = vpop.f32.mrb[0].mxu0
      %5750 = vmatprep.mubr.f32.mxu0 0.0
      %5751 = vmatmul.mubr.f32.gmra.mrb[0].mxu0 %v5543
      %v5752 = vpop.f32.mrb[0].mxu0
      %v5753 = vadd.f32 0.0, %v5752
      %v5754 = vpop.f32.mrb[0].mxu0
      %5755 = vmatprep.mubr.f32.mxu0 0.0
      %5756 = vmatmul.mubr.f32.gmra.mrb[0].mxu0 %v5546
      %v5757 = vpop.f32.mrb[0].mxu0
      %v5758 = vadd.f32 0.0, %v5757
      %v5759 = vpop.f32.mrb[0].mxu0
      %5760 = vmatprep.mubr.f32.mxu0 0.0
      %5761 = vmatmul.mubr.f32.gmra.mrb[0].mxu0 %v5549
      %v5762 = vpop.f32.mrb[0].mxu0
      %v5763 = vadd.f32 0.0, %v5762
      %v5764 = vpop.f32.mrb[0].mxu0
      %5765 = vmatprep.mubr.f32.mxu0 0.0
      %5766 = vmatmul.mubr.f32.gmra.mrb[0].mxu0 %v5552
      %v5767 = vpop.f32.mrb[0].mxu0
      %v5768 = vadd.f32 0.0, %v5767
      %v5769 = vpop.f32.mrb[0].mxu0
      %5770 = vmatprep.mubr.f32.mxu0 0.0
      %5771 = vmatmul.mubr.f32.gmra.mrb[0].mxu0 %v5555
      %v5772 = vpop.f32.mrb[0].mxu0
      %v5773 = vadd.f32 0.0, %v5772
      %v5774 = vpop.f32.mrb[0].mxu0
      %5775 = vmatprep.mubr.f32.mxu0 0.0
      %5776 = vmatmul.mubr.f32.gmra.mrb[0].mxu0 %v5558
      %v5777 = vpop.f32.mrb[0].mxu0
      %v5778 = vadd.f32 0.0, %v5777
      %v5779 = vpop.f32.mrb[0].mxu0
      %5780 = vmatprep.mubr.f32.mxu0 0.0
      %5781 = vmatmul.mubr.f32.gmra.mrb[0].mxu0 %v5561
      %v5782 = vpop.f32.mrb[0].mxu0
      %v5783 = vadd.f32 0.0, %v5782
      %v5784 = vpop.f32.mrb[0].mxu0
      %5785 = vmatprep.mubr.f32.mxu0 0.0
      %5786 = vmatmul.mubr.f32.gmra.mrb[0].mxu0 %v5564
      %v5787 = vpop.f32.mrb[0].mxu0
      %v5788 = vadd.f32 0.0, %v5787
      %v5789 = vpop.f32.mrb[0].mxu0
      %5790 = vdwg.mxu0
      %v5791 = vadd.f32 %v5243, %v5633
      %v5792 = vadd.f32 %v5248, %v5638
      %v5793 = vadd.f32 %v5253, %v5643
      %v5794 = vadd.f32 %v5258, %v5648
      %v5795 = vadd.f32 %v5263, %v5653
      %v5796 = vadd.f32 %v5268, %v5658
      %v5797 = vadd.f32 %v5273, %v5663
      %v5798 = vadd.f32 %v5278, %v5668
      %v5799 = vadd.f32 %v5283, %v5673
      %v5800 = vadd.f32 %v5288, %v5678
      %v5801 = vadd.f32 %v5293, %v5683
      %v5802 = vadd.f32 %v5298, %v5688
      %v5803 = vadd.f32 %v5303, %v5693
      %v5804 = vadd.f32 %v5308, %v5698
      %v5805 = vadd.f32 %v5313, %v5703
      %v5806 = vadd.f32 %v5318, %v5708
      %v5807 = vadd.f32 %v5323, %v5713
      %v5808 = vadd.f32 %v5328, %v5718
      %v5809 = vadd.f32 %v5333, %v5723
      %v5810 = vadd.f32 %v5338, %v5728
      %v5811 = vadd.f32 %v5343, %v5733
      %v5812 = vadd.f32 %v5348, %v5738
      %v5813 = vadd.f32 %v5353, %v5743
      %v5814 = vadd.f32 %v5358, %v5748
      %v5815 = vadd.f32 %v5363, %v5753
      %v5816 = vadd.f32 %v5368, %v5758
      %v5817 = vadd.f32 %v5373, %v5763
      %v5818 = vadd.f32 %v5378, %v5768
      %v5819 = vadd.f32 %v5383, %v5773
      %v5820 = vadd.f32 %v5388, %v5778
      %v5821 = vadd.f32 %v5393, %v5783
      %v5822 = vadd.f32 %v5398, %v5788
      %v5823 = vld [vmem:[#allocation2 + $0x17] sm:$0xff]
      %v5824 = vld [vmem:[#allocation2 + $0x1f] sm:$0xff]
      %v5825 = vld [vmem:[#allocation2 + $0x27] sm:$0xff]
      %v5826 = vld [vmem:[#allocation2 + $0x2f] sm:$0xff]
      %v5827 = vld [vmem:[#allocation2 + $0x37] sm:$0xff]
      %v5828 = vld [vmem:[#allocation2 + $0x3f] sm:$0xff]
      %v5829 = vld [vmem:[#allocation2 + $0x47] sm:$0xff]
      %v5830 = vld [vmem:[#allocation2 + $0x4f] sm:$0xff]
      %v5831 = vld [vmem:[#allocation2 + $0x57] sm:$0xff]
      %v5832 = vld [vmem:[#allocation2 + $0x5f] sm:$0xff]
      %v5833 = vld [vmem:[#allocation2 + $0x67] sm:$0xff]
      %v5834 = vld [vmem:[#allocation2 + $0x6f] sm:$0xff]
      %v5835 = vld [vmem:[#allocation2 + $0x77] sm:$0xff]
      %v5836 = vld [vmem:[#allocation2 + $0x7f] sm:$0xff]
      %v5837 = vld [vmem:[#allocation2 + $0x87] sm:$0xff]
      %v5838 = vld [vmem:[#allocation2 + $0x8f] sm:$0xff]
      %v5839 = vld [vmem:[#allocation2 + $0x97] sm:$0xff]
      %v5840 = vld [vmem:[#allocation2 + $0x9f] sm:$0xff]
      %v5841 = vld [vmem:[#allocation2 + $0xa7] sm:$0xff]
      %v5842 = vld [vmem:[#allocation2 + $0xaf] sm:$0xff]
      %v5843 = vld [vmem:[#allocation2 + $0xb7] sm:$0xff]
      %v5844 = vld [vmem:[#allocation2 + $0xbf] sm:$0xff]
      %v5845 = vld [vmem:[#allocation2 + $0xc7] sm:$0xff]
      %v5846 = vld [vmem:[#allocation2 + $0xcf] sm:$0xff]
      %v5847 = vld [vmem:[#allocation2 + $0xd7] sm:$0xff]
      %v5848 = vld [vmem:[#allocation2 + $0xdf] sm:$0xff]
      %v5849 = vld [vmem:[#allocation2 + $0xe7] sm:$0xff]
      %v5850 = vld [vmem:[#allocation2 + $0xef] sm:$0xff]
      %v5851 = vld [vmem:[#allocation2 + $0xf7] sm:$0xff]
      %v5852 = vld [vmem:[#allocation2 + $0xff] sm:$0xff]
      %v5853 = vld [vmem:[#allocation2 + $0x107] sm:$0xff]
      %v5854 = vld [vmem:[#allocation2 + $0x10f] sm:$0xff]
      %v5855 = vmul.f32 %v5823, %v709
      %v5856 = vmul.f32 %v5824, %v710
      %v5857 = vmul.f32 %v5825, %v711
      %v5858 = vmul.f32 %v5826, %v712
      %v5859 = vmul.f32 %v5827, %v713
      %v5860 = vmul.f32 %v5828, %v714
      %v5861 = vmul.f32 %v5829, %v715
      %v5862 = vmul.f32 %v5830, %v716
      %v5863 = vmul.f32 %v5831, %v717
      %v5864 = vmul.f32 %v5832, %v718
      %v5865 = vmul.f32 %v5833, %v719
      %v5866 = vmul.f32 %v5834, %v720
      %v5867 = vmul.f32 %v5835, %v721
      %v5868 = vmul.f32 %v5836, %v722
      %v5869 = vmul.f32 %v5837, %v723
      %v5870 = vmul.f32 %v5838, %v724
      %v5871 = vmul.f32 %v5839, %v725
      %v5872 = vmul.f32 %v5840, %v726
      %v5873 = vmul.f32 %v5841, %v727
      %v5874 = vmul.f32 %v5842, %v728
      %v5875 = vmul.f32 %v5843, %v729
      %v5876 = vmul.f32 %v5844, %v730
      %v5877 = vmul.f32 %v5845, %v731
      %v5878 = vmul.f32 %v5846, %v732
      %v5879 = vmul.f32 %v5847, %v733
      %v5880 = vmul.f32 %v5848, %v734
      %v5881 = vmul.f32 %v5849, %v735
      %v5882 = vmul.f32 %v5850, %v736
      %v5883 = vmul.f32 %v5851, %v737
      %v5884 = vmul.f32 %v5852, %v738
      %v5885 = vmul.f32 %v5853, %v739
      %v5886 = vmul.f32 %v5854, %v740
      %s5887 = scalar_lea.vmem %s3, 96
      %v5888 = vld [vmem:[%s5887] sm:$0xff]
      %v5889 = vld [vmem:[%s5887 + $0x8] sm:$0xff]
      %v5890 = vld [vmem:[%s5887 + $0x10] sm:$0xff]
      %v5891 = vld [vmem:[%s5887 + $0x18] sm:$0xff]
      %v5893 = vsel %vm869, %v5855, 0
      %v5896 = vsel %vm869, %v5856, 0
      %v5899 = vsel %vm869, %v5857, 0
      %v5902 = vsel %vm869, %v5858, 0
      %v5905 = vsel %vm869, %v5859, 0
      %v5908 = vsel %vm869, %v5860, 0
      %v5911 = vsel %vm869, %v5861, 0
      %v5914 = vsel %vm869, %v5862, 0
      %v5917 = vsel %vm869, %v5863, 0
      %v5920 = vsel %vm869, %v5864, 0
      %v5923 = vsel %vm869, %v5865, 0
      %v5926 = vsel %vm869, %v5866, 0
      %v5929 = vsel %vm869, %v5867, 0
      %v5932 = vsel %vm869, %v5868, 0
      %v5935 = vsel %vm869, %v5869, 0
      %v5938 = vsel %vm869, %v5870, 0
      %v5941 = vsel %vm869, %v5871, 0
      %v5944 = vsel %vm869, %v5872, 0
      %v5947 = vsel %vm869, %v5873, 0
      %v5950 = vsel %vm869, %v5874, 0
      %v5953 = vsel %vm869, %v5875, 0
      %v5956 = vsel %vm869, %v5876, 0
      %v5959 = vsel %vm869, %v5877, 0
      %v5962 = vsel %vm869, %v5878, 0
      %v5965 = vsel %vm869, %v5879, 0
      %v5968 = vsel %vm869, %v5880, 0
      %v5971 = vsel %vm869, %v5881, 0
      %v5974 = vsel %vm869, %v5882, 0
      %v5977 = vsel %vm869, %v5883, 0
      %v5980 = vsel %vm869, %v5884, 0
      %v5983 = vsel %vm869, %v5885, 0
      %v5986 = vsel %vm869, %v5886, 0
      %5988 = vmatprep.subr.mxu0 0.0
      %5989 = vmatpush1.msra.mxu0 %v5888
      %5990 = vmatprep.subr.mxu0 0.0
      %5991 = vmatpush1.msra.mxu0 %v5889
      %5992 = vmatprep.subr.mxu0 0.0
      %5993 = vmatpush1.msra.mxu0 %v5890
      %5994 = vmatprep.subr.mxu0 0.0
      %5995 = vmatpush1.msra.mxu0 %v5891
      %5996 = vmatprep.subr.mxu0 0.0
      %5997 = vmatpush1.msra.mxu0 0.0
      %5998 = vmatprep.subr.mxu0 0.0
      %5999 = vmatpush1.msra.mxu0 0.0
      %6000 = vmatprep.subr.mxu0 0.0
      %6001 = vmatpush1.msra.mxu0 0.0
      %6002 = vmatprep.subr.mxu0 0.0
      %6003 = vmatpush1.msra.mxu0 0.0
      %6004 = vmatprep.subr.mxu0 0.0
      %6005 = vmatpush1.msra.mxu0 0.0
      %6006 = vmatprep.subr.mxu0 0.0
      %6007 = vmatpush1.msra.mxu0 0.0
      %6008 = vmatprep.subr.mxu0 0.0
      %6009 = vmatpush1.msra.mxu0 0.0
      %6010 = vmatprep.subr.mxu0 0.0
      %6011 = vmatpush1.msra.mxu0 0.0
      %6012 = vmatprep.subr.mxu0 0.0
      %6013 = vmatpush1.msra.mxu0 0.0
      %6014 = vmatprep.subr.mxu0 0.0
      %6015 = vmatpush1.msra.mxu0 0.0
      %6016 = vmatprep.subr.mxu0 0.0
      %6017 = vmatpush1.msra.mxu0 0.0
      %6018 = vmatprep.subr.mxu0 0.0
      %6019 = vmatpush1.msra.mxu0 0.0
      %6020 = vmatprep.subr.mxu0 0.0
      %6021 = vmatpush1.msra.mxu0 0.0
      %6022 = vmatprep.subr.mxu0 0.0
      %6023 = vmatpush1.msra.mxu0 0.0
      %6024 = vmatprep.subr.mxu0 0.0
      %6025 = vmatpush1.msra.mxu0 0.0
      %6026 = vmatprep.subr.mxu0 0.0
      %6027 = vmatpush1.msra.mxu0 0.0
      %6028 = vmatprep.subr.mxu0 0.0
      %6029 = vmatpush1.msra.mxu0 0.0
      %6030 = vmatprep.subr.mxu0 0.0
      %6031 = vmatpush1.msra.mxu0 0.0
      %6032 = vmatprep.subr.mxu0 0.0
      %6033 = vmatpush1.msra.mxu0 0.0
      %6034 = vmatprep.subr.mxu0 0.0
      %6035 = vmatpush1.msra.mxu0 0.0
      %6036 = vmatprep.subr.mxu0 0.0
      %6037 = vmatpush1.msra.mxu0 0.0
      %6038 = vmatprep.subr.mxu0 0.0
      %6039 = vmatpush1.msra.mxu0 0.0
      %6040 = vmatprep.subr.mxu0 0.0
      %6041 = vmatpush1.msra.mxu0 0.0
      %6042 = vmatprep.subr.mxu0 0.0
      %6043 = vmatpush1.msra.mxu0 0.0
      %6044 = vmatprep.subr.mxu0 0.0
      %6045 = vmatpush1.msra.mxu0 0.0
      %6046 = vmatprep.subr.mxu0 0.0
      %6047 = vmatpush1.msra.mxu0 0.0
      %6048 = vmatprep.subr.mxu0 0.0
      %6049 = vmatpush1.msra.mxu0 0.0
      %6050 = vmatprep.subr.mxu0 0.0
      %6051 = vmatpush1.msra.mxu0 0.0
      %6052 = vmatprep.mubr.f32.mxu0 0.0
      %6053 = vmatmul.mubr.f32.gmra.mrb[0].mxu0 %v5893
      %v6054 = vpop.f32.mrb[0].mxu0
      %v6055 = vadd.f32 0.0, %v6054
      %v6056 = vpop.f32.mrb[0].mxu0
      %6057 = vmatprep.mubr.f32.mxu0 0.0
      %6058 = vmatmul.mubr.f32.gmra.mrb[0].mxu0 %v5896
      %v6059 = vpop.f32.mrb[0].mxu0
      %v6060 = vadd.f32 0.0, %v6059
      %v6061 = vpop.f32.mrb[0].mxu0
      %6062 = vmatprep.mubr.f32.mxu0 0.0
      %6063 = vmatmul.mubr.f32.gmra.mrb[0].mxu0 %v5899
      %v6064 = vpop.f32.mrb[0].mxu0
      %v6065 = vadd.f32 0.0, %v6064
      %v6066 = vpop.f32.mrb[0].mxu0
      %6067 = vmatprep.mubr.f32.mxu0 0.0
      %6068 = vmatmul.mubr.f32.gmra.mrb[0].mxu0 %v5902
      %v6069 = vpop.f32.mrb[0].mxu0
      %v6070 = vadd.f32 0.0, %v6069
      %v6071 = vpop.f32.mrb[0].mxu0
      %6072 = vmatprep.mubr.f32.mxu0 0.0
      %6073 = vmatmul.mubr.f32.gmra.mrb[0].mxu0 %v5905
      %v6074 = vpop.f32.mrb[0].mxu0
      %v6075 = vadd.f32 0.0, %v6074
      %v6076 = vpop.f32.mrb[0].mxu0
      %6077 = vmatprep.mubr.f32.mxu0 0.0
      %6078 = vmatmul.mubr.f32.gmra.mrb[0].mxu0 %v5908
      %v6079 = vpop.f32.mrb[0].mxu0
      %v6080 = vadd.f32 0.0, %v6079
      %v6081 = vpop.f32.mrb[0].mxu0
      %6082 = vmatprep.mubr.f32.mxu0 0.0
      %6083 = vmatmul.mubr.f32.gmra.mrb[0].mxu0 %v5911
      %v6084 = vpop.f32.mrb[0].mxu0
      %v6085 = vadd.f32 0.0, %v6084
      %v6086 = vpop.f32.mrb[0].mxu0
      %6087 = vmatprep.mubr.f32.mxu0 0.0
      %6088 = vmatmul.mubr.f32.gmra.mrb[0].mxu0 %v5914
      %v6089 = vpop.f32.mrb[0].mxu0
      %v6090 = vadd.f32 0.0, %v6089
      %v6091 = vpop.f32.mrb[0].mxu0
      %6092 = vmatprep.mubr.f32.mxu0 0.0
      %6093 = vmatmul.mubr.f32.gmra.mrb[0].mxu0 %v5917
      %v6094 = vpop.f32.mrb[0].mxu0
      %v6095 = vadd.f32 0.0, %v6094
      %v6096 = vpop.f32.mrb[0].mxu0
      %6097 = vmatprep.mubr.f32.mxu0 0.0
      %6098 = vmatmul.mubr.f32.gmra.mrb[0].mxu0 %v5920
      %v6099 = vpop.f32.mrb[0].mxu0
      %v6100 = vadd.f32 0.0, %v6099
      %v6101 = vpop.f32.mrb[0].mxu0
      %6102 = vmatprep.mubr.f32.mxu0 0.0
      %6103 = vmatmul.mubr.f32.gmra.mrb[0].mxu0 %v5923
      %v6104 = vpop.f32.mrb[0].mxu0
      %v6105 = vadd.f32 0.0, %v6104
      %v6106 = vpop.f32.mrb[0].mxu0
      %6107 = vmatprep.mubr.f32.mxu0 0.0
      %6108 = vmatmul.mubr.f32.gmra.mrb[0].mxu0 %v5926
      %v6109 = vpop.f32.mrb[0].mxu0
      %v6110 = vadd.f32 0.0, %v6109
      %v6111 = vpop.f32.mrb[0].mxu0
      %6112 = vmatprep.mubr.f32.mxu0 0.0
      %6113 = vmatmul.mubr.f32.gmra.mrb[0].mxu0 %v5929
      %v6114 = vpop.f32.mrb[0].mxu0
      %v6115 = vadd.f32 0.0, %v6114
      %v6116 = vpop.f32.mrb[0].mxu0
      %6117 = vmatprep.mubr.f32.mxu0 0.0
      %6118 = vmatmul.mubr.f32.gmra.mrb[0].mxu0 %v5932
      %v6119 = vpop.f32.mrb[0].mxu0
      %v6120 = vadd.f32 0.0, %v6119
      %v6121 = vpop.f32.mrb[0].mxu0
      %6122 = vmatprep.mubr.f32.mxu0 0.0
      %6123 = vmatmul.mubr.f32.gmra.mrb[0].mxu0 %v5935
      %v6124 = vpop.f32.mrb[0].mxu0
      %v6125 = vadd.f32 0.0, %v6124
      %v6126 = vpop.f32.mrb[0].mxu0
      %6127 = vmatprep.mubr.f32.mxu0 0.0
      %6128 = vmatmul.mubr.f32.gmra.mrb[0].mxu0 %v5938
      %v6129 = vpop.f32.mrb[0].mxu0
      %v6130 = vadd.f32 0.0, %v6129
      %v6131 = vpop.f32.mrb[0].mxu0
      %6132 = vmatprep.mubr.f32.mxu0 0.0
      %6133 = vmatmul.mubr.f32.gmra.mrb[0].mxu0 %v5941
      %v6134 = vpop.f32.mrb[0].mxu0
      %v6135 = vadd.f32 0.0, %v6134
      %v6136 = vpop.f32.mrb[0].mxu0
      %6137 = vmatprep.mubr.f32.mxu0 0.0
      %6138 = vmatmul.mubr.f32.gmra.mrb[0].mxu0 %v5944
      %v6139 = vpop.f32.mrb[0].mxu0
      %v6140 = vadd.f32 0.0, %v6139
      %v6141 = vpop.f32.mrb[0].mxu0
      %6142 = vmatprep.mubr.f32.mxu0 0.0
      %6143 = vmatmul.mubr.f32.gmra.mrb[0].mxu0 %v5947
      %v6144 = vpop.f32.mrb[0].mxu0
      %v6145 = vadd.f32 0.0, %v6144
      %v6146 = vpop.f32.mrb[0].mxu0
      %6147 = vmatprep.mubr.f32.mxu0 0.0
      %6148 = vmatmul.mubr.f32.gmra.mrb[0].mxu0 %v5950
      %v6149 = vpop.f32.mrb[0].mxu0
      %v6150 = vadd.f32 0.0, %v6149
      %v6151 = vpop.f32.mrb[0].mxu0
      %6152 = vmatprep.mubr.f32.mxu0 0.0
      %6153 = vmatmul.mubr.f32.gmra.mrb[0].mxu0 %v5953
      %v6154 = vpop.f32.mrb[0].mxu0
      %v6155 = vadd.f32 0.0, %v6154
      %v6156 = vpop.f32.mrb[0].mxu0
      %6157 = vmatprep.mubr.f32.mxu0 0.0
      %6158 = vmatmul.mubr.f32.gmra.mrb[0].mxu0 %v5956
      %v6159 = vpop.f32.mrb[0].mxu0
      %v6160 = vadd.f32 0.0, %v6159
      %v6161 = vpop.f32.mrb[0].mxu0
      %6162 = vmatprep.mubr.f32.mxu0 0.0
      %6163 = vmatmul.mubr.f32.gmra.mrb[0].mxu0 %v5959
      %v6164 = vpop.f32.mrb[0].mxu0
      %v6165 = vadd.f32 0.0, %v6164
      %v6166 = vpop.f32.mrb[0].mxu0
      %6167 = vmatprep.mubr.f32.mxu0 0.0
      %6168 = vmatmul.mubr.f32.gmra.mrb[0].mxu0 %v5962
      %v6169 = vpop.f32.mrb[0].mxu0
      %v6170 = vadd.f32 0.0, %v6169
      %v6171 = vpop.f32.mrb[0].mxu0
      %6172 = vmatprep.mubr.f32.mxu0 0.0
      %6173 = vmatmul.mubr.f32.gmra.mrb[0].mxu0 %v5965
      %v6174 = vpop.f32.mrb[0].mxu0
      %v6175 = vadd.f32 0.0, %v6174
      %v6176 = vpop.f32.mrb[0].mxu0
      %6177 = vmatprep.mubr.f32.mxu0 0.0
      %6178 = vmatmul.mubr.f32.gmra.mrb[0].mxu0 %v5968
      %v6179 = vpop.f32.mrb[0].mxu0
      %v6180 = vadd.f32 0.0, %v6179
      %v6181 = vpop.f32.mrb[0].mxu0
      %6182 = vmatprep.mubr.f32.mxu0 0.0
      %6183 = vmatmul.mubr.f32.gmra.mrb[0].mxu0 %v5971
      %v6184 = vpop.f32.mrb[0].mxu0
      %v6185 = vadd.f32 0.0, %v6184
      %v6186 = vpop.f32.mrb[0].mxu0
      %6187 = vmatprep.mubr.f32.mxu0 0.0
      %6188 = vmatmul.mubr.f32.gmra.mrb[0].mxu0 %v5974
      %v6189 = vpop.f32.mrb[0].mxu0
      %v6190 = vadd.f32 0.0, %v6189
      %v6191 = vpop.f32.mrb[0].mxu0
      %6192 = vmatprep.mubr.f32.mxu0 0.0
      %6193 = vmatmul.mubr.f32.gmra.mrb[0].mxu0 %v5977
      %v6194 = vpop.f32.mrb[0].mxu0
      %v6195 = vadd.f32 0.0, %v6194
      %v6196 = vpop.f32.mrb[0].mxu0
      %6197 = vmatprep.mubr.f32.mxu0 0.0
      %6198 = vmatmul.mubr.f32.gmra.mrb[0].mxu0 %v5980
      %v6199 = vpop.f32.mrb[0].mxu0
      %v6200 = vadd.f32 0.0, %v6199
      %v6201 = vpop.f32.mrb[0].mxu0
      %6202 = vmatprep.mubr.f32.mxu0 0.0
      %6203 = vmatmul.mubr.f32.gmra.mrb[0].mxu0 %v5983
      %v6204 = vpop.f32.mrb[0].mxu0
      %v6205 = vadd.f32 0.0, %v6204
      %v6206 = vpop.f32.mrb[0].mxu0
      %6207 = vmatprep.mubr.f32.mxu0 0.0
      %6208 = vmatmul.mubr.f32.gmra.mrb[0].mxu0 %v5986
      %v6209 = vpop.f32.mrb[0].mxu0
      %v6210 = vadd.f32 0.0, %v6209
      %v6211 = vpop.f32.mrb[0].mxu0
      %6212 = vdwg.mxu0
      %v6213 = vadd.f32 %v5791, %v6055
      %v6214 = vadd.f32 %v5792, %v6060
      %v6215 = vadd.f32 %v5793, %v6065
      %v6216 = vadd.f32 %v5794, %v6070
      %v6217 = vadd.f32 %v5795, %v6075
      %v6218 = vadd.f32 %v5796, %v6080
      %v6219 = vadd.f32 %v5797, %v6085
      %v6220 = vadd.f32 %v5798, %v6090
      %v6221 = vadd.f32 %v5799, %v6095
      %v6222 = vadd.f32 %v5800, %v6100
      %v6223 = vadd.f32 %v5801, %v6105
      %v6224 = vadd.f32 %v5802, %v6110
      %v6225 = vadd.f32 %v5803, %v6115
      %v6226 = vadd.f32 %v5804, %v6120
      %v6227 = vadd.f32 %v5805, %v6125
      %v6228 = vadd.f32 %v5806, %v6130
      %v6229 = vadd.f32 %v5807, %v6135
      %v6230 = vadd.f32 %v5808, %v6140
      %v6231 = vadd.f32 %v5809, %v6145
      %v6232 = vadd.f32 %v5810, %v6150
      %v6233 = vadd.f32 %v5811, %v6155
      %v6234 = vadd.f32 %v5812, %v6160
      %v6235 = vadd.f32 %v5813, %v6165
      %v6236 = vadd.f32 %v5814, %v6170
      %v6237 = vadd.f32 %v5815, %v6175
      %v6238 = vadd.f32 %v5816, %v6180
      %v6239 = vadd.f32 %v5817, %v6185
      %v6240 = vadd.f32 %v5818, %v6190
      %v6241 = vadd.f32 %v5819, %v6195
      %v6242 = vadd.f32 %v5820, %v6200
      %v6243 = vadd.f32 %v5821, %v6205
      %v6244 = vadd.f32 %v5822, %v6210
      %v6245 = vld [vmem:[#allocation2 + $0x18] sm:$0xff]
      %v6246 = vld [vmem:[#allocation2 + $0x20] sm:$0xff]
      %v6247 = vld [vmem:[#allocation2 + $0x28] sm:$0xff]
      %v6248 = vld [vmem:[#allocation2 + $0x30] sm:$0xff]
      %v6249 = vld [vmem:[#allocation2 + $0x38] sm:$0xff]
      %v6250 = vld [vmem:[#allocation2 + $0x40] sm:$0xff]
      %v6251 = vld [vmem:[#allocation2 + $0x48] sm:$0xff]
      %v6252 = vld [vmem:[#allocation2 + $0x50] sm:$0xff]
      %v6253 = vld [vmem:[#allocation2 + $0x58] sm:$0xff]
      %v6254 = vld [vmem:[#allocation2 + $0x60] sm:$0xff]
      %v6255 = vld [vmem:[#allocation2 + $0x68] sm:$0xff]
      %v6256 = vld [vmem:[#allocation2 + $0x70] sm:$0xff]
      %v6257 = vld [vmem:[#allocation2 + $0x78] sm:$0xff]
      %v6258 = vld [vmem:[#allocation2 + $0x80] sm:$0xff]
      %v6259 = vld [vmem:[#allocation2 + $0x88] sm:$0xff]
      %v6260 = vld [vmem:[#allocation2 + $0x90] sm:$0xff]
      %v6261 = vld [vmem:[#allocation2 + $0x98] sm:$0xff]
      %v6262 = vld [vmem:[#allocation2 + $0xa0] sm:$0xff]
      %v6263 = vld [vmem:[#allocation2 + $0xa8] sm:$0xff]
      %v6264 = vld [vmem:[#allocation2 + $0xb0] sm:$0xff]
      %v6265 = vld [vmem:[#allocation2 + $0xb8] sm:$0xff]
      %v6266 = vld [vmem:[#allocation2 + $0xc0] sm:$0xff]
      %v6267 = vld [vmem:[#allocation2 + $0xc8] sm:$0xff]
      %v6268 = vld [vmem:[#allocation2 + $0xd0] sm:$0xff]
      %v6269 = vld [vmem:[#allocation2 + $0xd8] sm:$0xff]
      %v6270 = vld [vmem:[#allocation2 + $0xe0] sm:$0xff]
      %v6271 = vld [vmem:[#allocation2 + $0xe8] sm:$0xff]
      %v6272 = vld [vmem:[#allocation2 + $0xf0] sm:$0xff]
      %v6273 = vld [vmem:[#allocation2 + $0xf8] sm:$0xff]
      %v6274 = vld [vmem:[#allocation2 + $0x100] sm:$0xff]
      %v6275 = vld [vmem:[#allocation2 + $0x108] sm:$0xff]
      %v6276 = vld [vmem:[#allocation2 + $0x110] sm:$0xff]
      %s6277 = scalar_lea.vmem %s3, 128
      %v6278 = vld [vmem:[%s6277] sm:$0xff]
      %v6279 = vld [vmem:[%s6277 + $0x8] sm:$0xff]
      %v6280 = vld [vmem:[%s6277 + $0x10] sm:$0xff]
      %v6281 = vld [vmem:[%s6277 + $0x18] sm:$0xff]
      %v6283 = vsel %vm869, %v6245, 0
      %v6286 = vsel %vm869, %v6246, 0
      %v6289 = vsel %vm869, %v6247, 0
      %v6292 = vsel %vm869, %v6248, 0
      %v6295 = vsel %vm869, %v6249, 0
      %v6298 = vsel %vm869, %v6250, 0
      %v6301 = vsel %vm869, %v6251, 0
      %v6304 = vsel %vm869, %v6252, 0
      %v6307 = vsel %vm869, %v6253, 0
      %v6310 = vsel %vm869, %v6254, 0
      %v6313 = vsel %vm869, %v6255, 0
      %v6316 = vsel %vm869, %v6256, 0
      %v6319 = vsel %vm869, %v6257, 0
      %v6322 = vsel %vm869, %v6258, 0
      %v6325 = vsel %vm869, %v6259, 0
      %v6328 = vsel %vm869, %v6260, 0
      %v6331 = vsel %vm869, %v6261, 0
      %v6334 = vsel %vm869, %v6262, 0
      %v6337 = vsel %vm869, %v6263, 0
      %v6340 = vsel %vm869, %v6264, 0
      %v6343 = vsel %vm869, %v6265, 0
      %v6346 = vsel %vm869, %v6266, 0
      %v6349 = vsel %vm869, %v6267, 0
      %v6352 = vsel %vm869, %v6268, 0
      %v6355 = vsel %vm869, %v6269, 0
      %v6358 = vsel %vm869, %v6270, 0
      %v6361 = vsel %vm869, %v6271, 0
      %v6364 = vsel %vm869, %v6272, 0
      %v6367 = vsel %vm869, %v6273, 0
      %v6370 = vsel %vm869, %v6274, 0
      %v6373 = vsel %vm869, %v6275, 0
      %v6376 = vsel %vm869, %v6276, 0
      %6378 = vmatprep.subr.mxu0 0.0
      %6379 = vmatpush1.msra.mxu0 %v6278
      %6380 = vmatprep.subr.mxu0 0.0
      %6381 = vmatpush1.msra.mxu0 %v6279
      %6382 = vmatprep.subr.mxu0 0.0
      %6383 = vmatpush1.msra.mxu0 %v6280
      %6384 = vmatprep.subr.mxu0 0.0
      %6385 = vmatpush1.msra.mxu0 %v6281
      %6386 = vmatprep.subr.mxu0 0.0
      %6387 = vmatpush1.msra.mxu0 0.0
      %6388 = vmatprep.subr.mxu0 0.0
      %6389 = vmatpush1.msra.mxu0 0.0
      %6390 = vmatprep.subr.mxu0 0.0
      %6391 = vmatpush1.msra.mxu0 0.0
      %6392 = vmatprep.subr.mxu0 0.0
      %6393 = vmatpush1.msra.mxu0 0.0
      %6394 = vmatprep.subr.mxu0 0.0
      %6395 = vmatpush1.msra.mxu0 0.0
      %6396 = vmatprep.subr.mxu0 0.0
      %6397 = vmatpush1.msra.mxu0 0.0
      %6398 = vmatprep.subr.mxu0 0.0
      %6399 = vmatpush1.msra.mxu0 0.0
      %6400 = vmatprep.subr.mxu0 0.0
      %6401 = vmatpush1.msra.mxu0 0.0
      %6402 = vmatprep.subr.mxu0 0.0
      %6403 = vmatpush1.msra.mxu0 0.0
      %6404 = vmatprep.subr.mxu0 0.0
      %6405 = vmatpush1.msra.mxu0 0.0
      %6406 = vmatprep.subr.mxu0 0.0
      %6407 = vmatpush1.msra.mxu0 0.0
      %6408 = vmatprep.subr.mxu0 0.0
      %6409 = vmatpush1.msra.mxu0 0.0
      %6410 = vmatprep.subr.mxu0 0.0
      %6411 = vmatpush1.msra.mxu0 0.0
      %6412 = vmatprep.subr.mxu0 0.0
      %6413 = vmatpush1.msra.mxu0 0.0
      %6414 = vmatprep.subr.mxu0 0.0
      %6415 = vmatpush1.msra.mxu0 0.0
      %6416 = vmatprep.subr.mxu0 0.0
      %6417 = vmatpush1.msra.mxu0 0.0
      %6418 = vmatprep.subr.mxu0 0.0
      %6419 = vmatpush1.msra.mxu0 0.0
      %6420 = vmatprep.subr.mxu0 0.0
      %6421 = vmatpush1.msra.mxu0 0.0
      %6422 = vmatprep.subr.mxu0 0.0
      %6423 = vmatpush1.msra.mxu0 0.0
      %6424 = vmatprep.subr.mxu0 0.0
      %6425 = vmatpush1.msra.mxu0 0.0
      %6426 = vmatprep.subr.mxu0 0.0
      %6427 = vmatpush1.msra.mxu0 0.0
      %6428 = vmatprep.subr.mxu0 0.0
      %6429 = vmatpush1.msra.mxu0 0.0
      %6430 = vmatprep.subr.mxu0 0.0
      %6431 = vmatpush1.msra.mxu0 0.0
      %6432 = vmatprep.subr.mxu0 0.0
      %6433 = vmatpush1.msra.mxu0 0.0
      %6434 = vmatprep.subr.mxu0 0.0
      %6435 = vmatpush1.msra.mxu0 0.0
      %6436 = vmatprep.subr.mxu0 0.0
      %6437 = vmatpush1.msra.mxu0 0.0
      %6438 = vmatprep.subr.mxu0 0.0
      %6439 = vmatpush1.msra.mxu0 0.0
      %6440 = vmatprep.subr.mxu0 0.0
      %6441 = vmatpush1.msra.mxu0 0.0
      %6442 = vmatprep.mubr.f32.mxu0 0.0
      %6443 = vmatmul.mubr.f32.gmra.mrb[0].mxu0 %v6283
      %v6444 = vpop.f32.mrb[0].mxu0
      %v6445 = vadd.f32 0.0, %v6444
      %v6446 = vpop.f32.mrb[0].mxu0
      %6447 = vmatprep.mubr.f32.mxu0 0.0
      %6448 = vmatmul.mubr.f32.gmra.mrb[0].mxu0 %v6286
      %v6449 = vpop.f32.mrb[0].mxu0
      %v6450 = vadd.f32 0.0, %v6449
      %v6451 = vpop.f32.mrb[0].mxu0
      %6452 = vmatprep.mubr.f32.mxu0 0.0
      %6453 = vmatmul.mubr.f32.gmra.mrb[0].mxu0 %v6289
      %v6454 = vpop.f32.mrb[0].mxu0
      %v6455 = vadd.f32 0.0, %v6454
      %v6456 = vpop.f32.mrb[0].mxu0
      %6457 = vmatprep.mubr.f32.mxu0 0.0
      %6458 = vmatmul.mubr.f32.gmra.mrb[0].mxu0 %v6292
      %v6459 = vpop.f32.mrb[0].mxu0
      %v6460 = vadd.f32 0.0, %v6459
      %v6461 = vpop.f32.mrb[0].mxu0
      %6462 = vmatprep.mubr.f32.mxu0 0.0
      %6463 = vmatmul.mubr.f32.gmra.mrb[0].mxu0 %v6295
      %v6464 = vpop.f32.mrb[0].mxu0
      %v6465 = vadd.f32 0.0, %v6464
      %v6466 = vpop.f32.mrb[0].mxu0
      %6467 = vmatprep.mubr.f32.mxu0 0.0
      %6468 = vmatmul.mubr.f32.gmra.mrb[0].mxu0 %v6298
      %v6469 = vpop.f32.mrb[0].mxu0
      %v6470 = vadd.f32 0.0, %v6469
      %v6471 = vpop.f32.mrb[0].mxu0
      %6472 = vmatprep.mubr.f32.mxu0 0.0
      %6473 = vmatmul.mubr.f32.gmra.mrb[0].mxu0 %v6301
      %v6474 = vpop.f32.mrb[0].mxu0
      %v6475 = vadd.f32 0.0, %v6474
      %v6476 = vpop.f32.mrb[0].mxu0
      %6477 = vmatprep.mubr.f32.mxu0 0.0
      %6478 = vmatmul.mubr.f32.gmra.mrb[0].mxu0 %v6304
      %v6479 = vpop.f32.mrb[0].mxu0
      %v6480 = vadd.f32 0.0, %v6479
      %v6481 = vpop.f32.mrb[0].mxu0
      %6482 = vmatprep.mubr.f32.mxu0 0.0
      %6483 = vmatmul.mubr.f32.gmra.mrb[0].mxu0 %v6307
      %v6484 = vpop.f32.mrb[0].mxu0
      %v6485 = vadd.f32 0.0, %v6484
      %v6486 = vpop.f32.mrb[0].mxu0
      %6487 = vmatprep.mubr.f32.mxu0 0.0
      %6488 = vmatmul.mubr.f32.gmra.mrb[0].mxu0 %v6310
      %v6489 = vpop.f32.mrb[0].mxu0
      %v6490 = vadd.f32 0.0, %v6489
      %v6491 = vpop.f32.mrb[0].mxu0
      %6492 = vmatprep.mubr.f32.mxu0 0.0
      %6493 = vmatmul.mubr.f32.gmra.mrb[0].mxu0 %v6313
      %v6494 = vpop.f32.mrb[0].mxu0
      %v6495 = vadd.f32 0.0, %v6494
      %v6496 = vpop.f32.mrb[0].mxu0
      %6497 = vmatprep.mubr.f32.mxu0 0.0
      %6498 = vmatmul.mubr.f32.gmra.mrb[0].mxu0 %v6316
      %v6499 = vpop.f32.mrb[0].mxu0
      %v6500 = vadd.f32 0.0, %v6499
      %v6501 = vpop.f32.mrb[0].mxu0
      %6502 = vmatprep.mubr.f32.mxu0 0.0
      %6503 = vmatmul.mubr.f32.gmra.mrb[0].mxu0 %v6319
      %v6504 = vpop.f32.mrb[0].mxu0
      %v6505 = vadd.f32 0.0, %v6504
      %v6506 = vpop.f32.mrb[0].mxu0
      %6507 = vmatprep.mubr.f32.mxu0 0.0
      %6508 = vmatmul.mubr.f32.gmra.mrb[0].mxu0 %v6322
      %v6509 = vpop.f32.mrb[0].mxu0
      %v6510 = vadd.f32 0.0, %v6509
      %v6511 = vpop.f32.mrb[0].mxu0
      %6512 = vmatprep.mubr.f32.mxu0 0.0
      %6513 = vmatmul.mubr.f32.gmra.mrb[0].mxu0 %v6325
      %v6514 = vpop.f32.mrb[0].mxu0
      %v6515 = vadd.f32 0.0, %v6514
      %v6516 = vpop.f32.mrb[0].mxu0
      %6517 = vmatprep.mubr.f32.mxu0 0.0
      %6518 = vmatmul.mubr.f32.gmra.mrb[0].mxu0 %v6328
      %v6519 = vpop.f32.mrb[0].mxu0
      %v6520 = vadd.f32 0.0, %v6519
      %v6521 = vpop.f32.mrb[0].mxu0
      %6522 = vmatprep.mubr.f32.mxu0 0.0
      %6523 = vmatmul.mubr.f32.gmra.mrb[0].mxu0 %v6331
      %v6524 = vpop.f32.mrb[0].mxu0
      %v6525 = vadd.f32 0.0, %v6524
      %v6526 = vpop.f32.mrb[0].mxu0
      %6527 = vmatprep.mubr.f32.mxu0 0.0
      %6528 = vmatmul.mubr.f32.gmra.mrb[0].mxu0 %v6334
      %v6529 = vpop.f32.mrb[0].mxu0
      %v6530 = vadd.f32 0.0, %v6529
      %v6531 = vpop.f32.mrb[0].mxu0
      %6532 = vmatprep.mubr.f32.mxu0 0.0
      %6533 = vmatmul.mubr.f32.gmra.mrb[0].mxu0 %v6337
      %v6534 = vpop.f32.mrb[0].mxu0
      %v6535 = vadd.f32 0.0, %v6534
      %v6536 = vpop.f32.mrb[0].mxu0
      %6537 = vmatprep.mubr.f32.mxu0 0.0
      %6538 = vmatmul.mubr.f32.gmra.mrb[0].mxu0 %v6340
      %v6539 = vpop.f32.mrb[0].mxu0
      %v6540 = vadd.f32 0.0, %v6539
      %v6541 = vpop.f32.mrb[0].mxu0
      %6542 = vmatprep.mubr.f32.mxu0 0.0
      %6543 = vmatmul.mubr.f32.gmra.mrb[0].mxu0 %v6343
      %v6544 = vpop.f32.mrb[0].mxu0
      %v6545 = vadd.f32 0.0, %v6544
      %v6546 = vpop.f32.mrb[0].mxu0
      %6547 = vmatprep.mubr.f32.mxu0 0.0
      %6548 = vmatmul.mubr.f32.gmra.mrb[0].mxu0 %v6346
      %v6549 = vpop.f32.mrb[0].mxu0
      %v6550 = vadd.f32 0.0, %v6549
      %v6551 = vpop.f32.mrb[0].mxu0
      %6552 = vmatprep.mubr.f32.mxu0 0.0
      %6553 = vmatmul.mubr.f32.gmra.mrb[0].mxu0 %v6349
      %v6554 = vpop.f32.mrb[0].mxu0
      %v6555 = vadd.f32 0.0, %v6554
      %v6556 = vpop.f32.mrb[0].mxu0
      %6557 = vmatprep.mubr.f32.mxu0 0.0
      %6558 = vmatmul.mubr.f32.gmra.mrb[0].mxu0 %v6352
      %v6559 = vpop.f32.mrb[0].mxu0
      %v6560 = vadd.f32 0.0, %v6559
      %v6561 = vpop.f32.mrb[0].mxu0
      %6562 = vmatprep.mubr.f32.mxu0 0.0
      %6563 = vmatmul.mubr.f32.gmra.mrb[0].mxu0 %v6355
      %v6564 = vpop.f32.mrb[0].mxu0
      %v6565 = vadd.f32 0.0, %v6564
      %v6566 = vpop.f32.mrb[0].mxu0
      %6567 = vmatprep.mubr.f32.mxu0 0.0
      %6568 = vmatmul.mubr.f32.gmra.mrb[0].mxu0 %v6358
      %v6569 = vpop.f32.mrb[0].mxu0
      %v6570 = vadd.f32 0.0, %v6569
      %v6571 = vpop.f32.mrb[0].mxu0
      %6572 = vmatprep.mubr.f32.mxu0 0.0
      %6573 = vmatmul.mubr.f32.gmra.mrb[0].mxu0 %v6361
      %v6574 = vpop.f32.mrb[0].mxu0
      %v6575 = vadd.f32 0.0, %v6574
      %v6576 = vpop.f32.mrb[0].mxu0
      %6577 = vmatprep.mubr.f32.mxu0 0.0
      %6578 = vmatmul.mubr.f32.gmra.mrb[0].mxu0 %v6364
      %v6579 = vpop.f32.mrb[0].mxu0
      %v6580 = vadd.f32 0.0, %v6579
      %v6581 = vpop.f32.mrb[0].mxu0
      %6582 = vmatprep.mubr.f32.mxu0 0.0
      %6583 = vmatmul.mubr.f32.gmra.mrb[0].mxu0 %v6367
      %v6584 = vpop.f32.mrb[0].mxu0
      %v6585 = vadd.f32 0.0, %v6584
      %v6586 = vpop.f32.mrb[0].mxu0
      %6587 = vmatprep.mubr.f32.mxu0 0.0
      %6588 = vmatmul.mubr.f32.gmra.mrb[0].mxu0 %v6370
      %v6589 = vpop.f32.mrb[0].mxu0
      %v6590 = vadd.f32 0.0, %v6589
      %v6591 = vpop.f32.mrb[0].mxu0
      %6592 = vmatprep.mubr.f32.mxu0 0.0
      %6593 = vmatmul.mubr.f32.gmra.mrb[0].mxu0 %v6373
      %v6594 = vpop.f32.mrb[0].mxu0
      %v6595 = vadd.f32 0.0, %v6594
      %v6596 = vpop.f32.mrb[0].mxu0
      %6597 = vmatprep.mubr.f32.mxu0 0.0
      %6598 = vmatmul.mubr.f32.gmra.mrb[0].mxu0 %v6376
      %v6599 = vpop.f32.mrb[0].mxu0
      %v6600 = vadd.f32 0.0, %v6599
      %v6601 = vpop.f32.mrb[0].mxu0
      %6602 = vdwg.mxu0
      %v6603 = vadd.f32 %v6213, %v6445
      %v6604 = vadd.f32 %v6214, %v6450
      %v6605 = vadd.f32 %v6215, %v6455
      %v6606 = vadd.f32 %v6216, %v6460
      %v6607 = vadd.f32 %v6217, %v6465
      %v6608 = vadd.f32 %v6218, %v6470
      %v6609 = vadd.f32 %v6219, %v6475
      %v6610 = vadd.f32 %v6220, %v6480
      %v6611 = vadd.f32 %v6221, %v6485
      %v6612 = vadd.f32 %v6222, %v6490
      %v6613 = vadd.f32 %v6223, %v6495
      %v6614 = vadd.f32 %v6224, %v6500
      %v6615 = vadd.f32 %v6225, %v6505
      %v6616 = vadd.f32 %v6226, %v6510
      %v6617 = vadd.f32 %v6227, %v6515
      %v6618 = vadd.f32 %v6228, %v6520
      %v6619 = vadd.f32 %v6229, %v6525
      %v6620 = vadd.f32 %v6230, %v6530
      %v6621 = vadd.f32 %v6231, %v6535
      %v6622 = vadd.f32 %v6232, %v6540
      %v6623 = vadd.f32 %v6233, %v6545
      %v6624 = vadd.f32 %v6234, %v6550
      %v6625 = vadd.f32 %v6235, %v6555
      %v6626 = vadd.f32 %v6236, %v6560
      %v6627 = vadd.f32 %v6237, %v6565
      %v6628 = vadd.f32 %v6238, %v6570
      %v6629 = vadd.f32 %v6239, %v6575
      %v6630 = vadd.f32 %v6240, %v6580
      %v6631 = vadd.f32 %v6241, %v6585
      %v6632 = vadd.f32 %v6242, %v6590
      %v6633 = vadd.f32 %v6243, %v6595
      %v6634 = vadd.f32 %v6244, %v6600
      %v6635 = vld [vmem:[#allocation2 + $0x19] sm:$0xff]
      %v6636 = vld [vmem:[#allocation2 + $0x21] sm:$0xff]
      %v6637 = vld [vmem:[#allocation2 + $0x29] sm:$0xff]
      %v6638 = vld [vmem:[#allocation2 + $0x31] sm:$0xff]
      %v6639 = vld [vmem:[#allocation2 + $0x39] sm:$0xff]
      %v6640 = vld [vmem:[#allocation2 + $0x41] sm:$0xff]
      %v6641 = vld [vmem:[#allocation2 + $0x49] sm:$0xff]
      %v6642 = vld [vmem:[#allocation2 + $0x51] sm:$0xff]
      %v6643 = vld [vmem:[#allocation2 + $0x59] sm:$0xff]
      %v6644 = vld [vmem:[#allocation2 + $0x61] sm:$0xff]
      %v6645 = vld [vmem:[#allocation2 + $0x69] sm:$0xff]
      %v6646 = vld [vmem:[#allocation2 + $0x71] sm:$0xff]
      %v6647 = vld [vmem:[#allocation2 + $0x79] sm:$0xff]
      %v6648 = vld [vmem:[#allocation2 + $0x81] sm:$0xff]
      %v6649 = vld [vmem:[#allocation2 + $0x89] sm:$0xff]
      %v6650 = vld [vmem:[#allocation2 + $0x91] sm:$0xff]
      %v6651 = vld [vmem:[#allocation2 + $0x99] sm:$0xff]
      %v6652 = vld [vmem:[#allocation2 + $0xa1] sm:$0xff]
      %v6653 = vld [vmem:[#allocation2 + $0xa9] sm:$0xff]
      %v6654 = vld [vmem:[#allocation2 + $0xb1] sm:$0xff]
      %v6655 = vld [vmem:[#allocation2 + $0xb9] sm:$0xff]
      %v6656 = vld [vmem:[#allocation2 + $0xc1] sm:$0xff]
      %v6657 = vld [vmem:[#allocation2 + $0xc9] sm:$0xff]
      %v6658 = vld [vmem:[#allocation2 + $0xd1] sm:$0xff]
      %v6659 = vld [vmem:[#allocation2 + $0xd9] sm:$0xff]
      %v6660 = vld [vmem:[#allocation2 + $0xe1] sm:$0xff]
      %v6661 = vld [vmem:[#allocation2 + $0xe9] sm:$0xff]
      %v6662 = vld [vmem:[#allocation2 + $0xf1] sm:$0xff]
      %v6663 = vld [vmem:[#allocation2 + $0xf9] sm:$0xff]
      %v6664 = vld [vmem:[#allocation2 + $0x101] sm:$0xff]
      %v6665 = vld [vmem:[#allocation2 + $0x109] sm:$0xff]
      %v6666 = vld [vmem:[#allocation2 + $0x111] sm:$0xff]
      %v6667 = vmul.f32 %v6635, %v805
      %v6668 = vmul.f32 %v6636, %v806
      %v6669 = vmul.f32 %v6637, %v807
      %v6670 = vmul.f32 %v6638, %v808
      %v6671 = vmul.f32 %v6639, %v809
      %v6672 = vmul.f32 %v6640, %v810
      %v6673 = vmul.f32 %v6641, %v811
      %v6674 = vmul.f32 %v6642, %v812
      %v6675 = vmul.f32 %v6643, %v813
      %v6676 = vmul.f32 %v6644, %v814
      %v6677 = vmul.f32 %v6645, %v815
      %v6678 = vmul.f32 %v6646, %v816
      %v6679 = vmul.f32 %v6647, %v817
      %v6680 = vmul.f32 %v6648, %v818
      %v6681 = vmul.f32 %v6649, %v819
      %v6682 = vmul.f32 %v6650, %v820
      %v6683 = vmul.f32 %v6651, %v821
      %v6684 = vmul.f32 %v6652, %v822
      %v6685 = vmul.f32 %v6653, %v823
      %v6686 = vmul.f32 %v6654, %v824
      %v6687 = vmul.f32 %v6655, %v825
      %v6688 = vmul.f32 %v6656, %v826
      %v6689 = vmul.f32 %v6657, %v827
      %v6690 = vmul.f32 %v6658, %v828
      %v6691 = vmul.f32 %v6659, %v829
      %v6692 = vmul.f32 %v6660, %v830
      %v6693 = vmul.f32 %v6661, %v831
      %v6694 = vmul.f32 %v6662, %v832
      %v6695 = vmul.f32 %v6663, %v833
      %v6696 = vmul.f32 %v6664, %v834
      %v6697 = vmul.f32 %v6665, %v835
      %v6698 = vmul.f32 %v6666, %v836
      %s6699 = scalar_lea.vmem %s3, 160
      %v6700 = vld [vmem:[%s6699] sm:$0xff]
      %v6701 = vld [vmem:[%s6699 + $0x8] sm:$0xff]
      %v6702 = vld [vmem:[%s6699 + $0x10] sm:$0xff]
      %v6703 = vld [vmem:[%s6699 + $0x18] sm:$0xff]
      %v6705 = vsel %vm869, %v6667, 0
      %v6708 = vsel %vm869, %v6668, 0
      %v6711 = vsel %vm869, %v6669, 0
      %v6714 = vsel %vm869, %v6670, 0
      %v6717 = vsel %vm869, %v6671, 0
      %v6720 = vsel %vm869, %v6672, 0
      %v6723 = vsel %vm869, %v6673, 0
      %v6726 = vsel %vm869, %v6674, 0
      %v6729 = vsel %vm869, %v6675, 0
      %v6732 = vsel %vm869, %v6676, 0
      %v6735 = vsel %vm869, %v6677, 0
      %v6738 = vsel %vm869, %v6678, 0
      %v6741 = vsel %vm869, %v6679, 0
      %v6744 = vsel %vm869, %v6680, 0
      %v6747 = vsel %vm869, %v6681, 0
      %v6750 = vsel %vm869, %v6682, 0
      %v6753 = vsel %vm869, %v6683, 0
      %v6756 = vsel %vm869, %v6684, 0
      %v6759 = vsel %vm869, %v6685, 0
      %v6762 = vsel %vm869, %v6686, 0
      %v6765 = vsel %vm869, %v6687, 0
      %v6768 = vsel %vm869, %v6688, 0
      %v6771 = vsel %vm869, %v6689, 0
      %v6774 = vsel %vm869, %v6690, 0
      %v6777 = vsel %vm869, %v6691, 0
      %v6780 = vsel %vm869, %v6692, 0
      %v6783 = vsel %vm869, %v6693, 0
      %v6786 = vsel %vm869, %v6694, 0
      %v6789 = vsel %vm869, %v6695, 0
      %v6792 = vsel %vm869, %v6696, 0
      %v6795 = vsel %vm869, %v6697, 0
      %v6798 = vsel %vm869, %v6698, 0
      %6800 = vmatprep.subr.mxu0 0.0
      %6801 = vmatpush1.msra.mxu0 %v6700
      %6802 = vmatprep.subr.mxu0 0.0
      %6803 = vmatpush1.msra.mxu0 %v6701
      %6804 = vmatprep.subr.mxu0 0.0
      %6805 = vmatpush1.msra.mxu0 %v6702
      %6806 = vmatprep.subr.mxu0 0.0
      %6807 = vmatpush1.msra.mxu0 %v6703
      %6808 = vmatprep.subr.mxu0 0.0
      %6809 = vmatpush1.msra.mxu0 0.0
      %6810 = vmatprep.subr.mxu0 0.0
      %6811 = vmatpush1.msra.mxu0 0.0
      %6812 = vmatprep.subr.mxu0 0.0
      %6813 = vmatpush1.msra.mxu0 0.0
      %6814 = vmatprep.subr.mxu0 0.0
      %6815 = vmatpush1.msra.mxu0 0.0
      %6816 = vmatprep.subr.mxu0 0.0
      %6817 = vmatpush1.msra.mxu0 0.0
      %6818 = vmatprep.subr.mxu0 0.0
      %6819 = vmatpush1.msra.mxu0 0.0
      %6820 = vmatprep.subr.mxu0 0.0
      %6821 = vmatpush1.msra.mxu0 0.0
      %6822 = vmatprep.subr.mxu0 0.0
      %6823 = vmatpush1.msra.mxu0 0.0
      %6824 = vmatprep.subr.mxu0 0.0
      %6825 = vmatpush1.msra.mxu0 0.0
      %6826 = vmatprep.subr.mxu0 0.0
      %6827 = vmatpush1.msra.mxu0 0.0
      %6828 = vmatprep.subr.mxu0 0.0
      %6829 = vmatpush1.msra.mxu0 0.0
      %6830 = vmatprep.subr.mxu0 0.0
      %6831 = vmatpush1.msra.mxu0 0.0
      %6832 = vmatprep.subr.mxu0 0.0
      %6833 = vmatpush1.msra.mxu0 0.0
      %6834 = vmatprep.subr.mxu0 0.0
      %6835 = vmatpush1.msra.mxu0 0.0
      %6836 = vmatprep.subr.mxu0 0.0
      %6837 = vmatpush1.msra.mxu0 0.0
      %6838 = vmatprep.subr.mxu0 0.0
      %6839 = vmatpush1.msra.mxu0 0.0
      %6840 = vmatprep.subr.mxu0 0.0
      %6841 = vmatpush1.msra.mxu0 0.0
      %6842 = vmatprep.subr.mxu0 0.0
      %6843 = vmatpush1.msra.mxu0 0.0
      %6844 = vmatprep.subr.mxu0 0.0
      %6845 = vmatpush1.msra.mxu0 0.0
      %6846 = vmatprep.subr.mxu0 0.0
      %6847 = vmatpush1.msra.mxu0 0.0
      %6848 = vmatprep.subr.mxu0 0.0
      %6849 = vmatpush1.msra.mxu0 0.0
      %6850 = vmatprep.subr.mxu0 0.0
      %6851 = vmatpush1.msra.mxu0 0.0
      %6852 = vmatprep.subr.mxu0 0.0
      %6853 = vmatpush1.msra.mxu0 0.0
      %6854 = vmatprep.subr.mxu0 0.0
      %6855 = vmatpush1.msra.mxu0 0.0
      %6856 = vmatprep.subr.mxu0 0.0
      %6857 = vmatpush1.msra.mxu0 0.0
      %6858 = vmatprep.subr.mxu0 0.0
      %6859 = vmatpush1.msra.mxu0 0.0
      %6860 = vmatprep.subr.mxu0 0.0
      %6861 = vmatpush1.msra.mxu0 0.0
      %6862 = vmatprep.subr.mxu0 0.0
      %6863 = vmatpush1.msra.mxu0 0.0
      %6864 = vmatprep.mubr.f32.mxu0 0.0
      %6865 = vmatmul.mubr.f32.gmra.mrb[0].mxu0 %v6705
      %v6866 = vpop.f32.mrb[0].mxu0
      %v6867 = vadd.f32 0.0, %v6866
      %v6868 = vpop.f32.mrb[0].mxu0
      %6869 = vmatprep.mubr.f32.mxu0 0.0
      %6870 = vmatmul.mubr.f32.gmra.mrb[0].mxu0 %v6708
      %v6871 = vpop.f32.mrb[0].mxu0
      %v6872 = vadd.f32 0.0, %v6871
      %v6873 = vpop.f32.mrb[0].mxu0
      %6874 = vmatprep.mubr.f32.mxu0 0.0
      %6875 = vmatmul.mubr.f32.gmra.mrb[0].mxu0 %v6711
      %v6876 = vpop.f32.mrb[0].mxu0
      %v6877 = vadd.f32 0.0, %v6876
      %v6878 = vpop.f32.mrb[0].mxu0
      %6879 = vmatprep.mubr.f32.mxu0 0.0
      %6880 = vmatmul.mubr.f32.gmra.mrb[0].mxu0 %v6714
      %v6881 = vpop.f32.mrb[0].mxu0
      %v6882 = vadd.f32 0.0, %v6881
      %v6883 = vpop.f32.mrb[0].mxu0
      %6884 = vmatprep.mubr.f32.mxu0 0.0
      %6885 = vmatmul.mubr.f32.gmra.mrb[0].mxu0 %v6717
      %v6886 = vpop.f32.mrb[0].mxu0
      %v6887 = vadd.f32 0.0, %v6886
      %v6888 = vpop.f32.mrb[0].mxu0
      %6889 = vmatprep.mubr.f32.mxu0 0.0
      %6890 = vmatmul.mubr.f32.gmra.mrb[0].mxu0 %v6720
      %v6891 = vpop.f32.mrb[0].mxu0
      %v6892 = vadd.f32 0.0, %v6891
      %v6893 = vpop.f32.mrb[0].mxu0
      %6894 = vmatprep.mubr.f32.mxu0 0.0
      %6895 = vmatmul.mubr.f32.gmra.mrb[0].mxu0 %v6723
      %v6896 = vpop.f32.mrb[0].mxu0
      %v6897 = vadd.f32 0.0, %v6896
      %v6898 = vpop.f32.mrb[0].mxu0
      %6899 = vmatprep.mubr.f32.mxu0 0.0
      %6900 = vmatmul.mubr.f32.gmra.mrb[0].mxu0 %v6726
      %v6901 = vpop.f32.mrb[0].mxu0
      %v6902 = vadd.f32 0.0, %v6901
      %v6903 = vpop.f32.mrb[0].mxu0
      %6904 = vmatprep.mubr.f32.mxu0 0.0
      %6905 = vmatmul.mubr.f32.gmra.mrb[0].mxu0 %v6729
      %v6906 = vpop.f32.mrb[0].mxu0
      %v6907 = vadd.f32 0.0, %v6906
      %v6908 = vpop.f32.mrb[0].mxu0
      %6909 = vmatprep.mubr.f32.mxu0 0.0
      %6910 = vmatmul.mubr.f32.gmra.mrb[0].mxu0 %v6732
      %v6911 = vpop.f32.mrb[0].mxu0
      %v6912 = vadd.f32 0.0, %v6911
      %v6913 = vpop.f32.mrb[0].mxu0
      %6914 = vmatprep.mubr.f32.mxu0 0.0
      %6915 = vmatmul.mubr.f32.gmra.mrb[0].mxu0 %v6735
      %v6916 = vpop.f32.mrb[0].mxu0
      %v6917 = vadd.f32 0.0, %v6916
      %v6918 = vpop.f32.mrb[0].mxu0
      %6919 = vmatprep.mubr.f32.mxu0 0.0
      %6920 = vmatmul.mubr.f32.gmra.mrb[0].mxu0 %v6738
      %v6921 = vpop.f32.mrb[0].mxu0
      %v6922 = vadd.f32 0.0, %v6921
      %v6923 = vpop.f32.mrb[0].mxu0
      %6924 = vmatprep.mubr.f32.mxu0 0.0
      %6925 = vmatmul.mubr.f32.gmra.mrb[0].mxu0 %v6741
      %v6926 = vpop.f32.mrb[0].mxu0
      %v6927 = vadd.f32 0.0, %v6926
      %v6928 = vpop.f32.mrb[0].mxu0
      %6929 = vmatprep.mubr.f32.mxu0 0.0
      %6930 = vmatmul.mubr.f32.gmra.mrb[0].mxu0 %v6744
      %v6931 = vpop.f32.mrb[0].mxu0
      %v6932 = vadd.f32 0.0, %v6931
      %v6933 = vpop.f32.mrb[0].mxu0
      %6934 = vmatprep.mubr.f32.mxu0 0.0
      %6935 = vmatmul.mubr.f32.gmra.mrb[0].mxu0 %v6747
      %v6936 = vpop.f32.mrb[0].mxu0
      %v6937 = vadd.f32 0.0, %v6936
      %v6938 = vpop.f32.mrb[0].mxu0
      %6939 = vmatprep.mubr.f32.mxu0 0.0
      %6940 = vmatmul.mubr.f32.gmra.mrb[0].mxu0 %v6750
      %v6941 = vpop.f32.mrb[0].mxu0
      %v6942 = vadd.f32 0.0, %v6941
      %v6943 = vpop.f32.mrb[0].mxu0
      %6944 = vmatprep.mubr.f32.mxu0 0.0
      %6945 = vmatmul.mubr.f32.gmra.mrb[0].mxu0 %v6753
      %v6946 = vpop.f32.mrb[0].mxu0
      %v6947 = vadd.f32 0.0, %v6946
      %v6948 = vpop.f32.mrb[0].mxu0
      %6949 = vmatprep.mubr.f32.mxu0 0.0
      %6950 = vmatmul.mubr.f32.gmra.mrb[0].mxu0 %v6756
      %v6951 = vpop.f32.mrb[0].mxu0
      %v6952 = vadd.f32 0.0, %v6951
      %v6953 = vpop.f32.mrb[0].mxu0
      %6954 = vmatprep.mubr.f32.mxu0 0.0
      %6955 = vmatmul.mubr.f32.gmra.mrb[0].mxu0 %v6759
      %v6956 = vpop.f32.mrb[0].mxu0
      %v6957 = vadd.f32 0.0, %v6956
      %v6958 = vpop.f32.mrb[0].mxu0
      %6959 = vmatprep.mubr.f32.mxu0 0.0
      %6960 = vmatmul.mubr.f32.gmra.mrb[0].mxu0 %v6762
      %v6961 = vpop.f32.mrb[0].mxu0
      %v6962 = vadd.f32 0.0, %v6961
      %v6963 = vpop.f32.mrb[0].mxu0
      %6964 = vmatprep.mubr.f32.mxu0 0.0
      %6965 = vmatmul.mubr.f32.gmra.mrb[0].mxu0 %v6765
      %v6966 = vpop.f32.mrb[0].mxu0
      %v6967 = vadd.f32 0.0, %v6966
      %v6968 = vpop.f32.mrb[0].mxu0
      %6969 = vmatprep.mubr.f32.mxu0 0.0
      %6970 = vmatmul.mubr.f32.gmra.mrb[0].mxu0 %v6768
      %v6971 = vpop.f32.mrb[0].mxu0
      %v6972 = vadd.f32 0.0, %v6971
      %v6973 = vpop.f32.mrb[0].mxu0
      %6974 = vmatprep.mubr.f32.mxu0 0.0
      %6975 = vmatmul.mubr.f32.gmra.mrb[0].mxu0 %v6771
      %v6976 = vpop.f32.mrb[0].mxu0
      %v6977 = vadd.f32 0.0, %v6976
      %v6978 = vpop.f32.mrb[0].mxu0
      %6979 = vmatprep.mubr.f32.mxu0 0.0
      %6980 = vmatmul.mubr.f32.gmra.mrb[0].mxu0 %v6774
      %v6981 = vpop.f32.mrb[0].mxu0
      %v6982 = vadd.f32 0.0, %v6981
      %v6983 = vpop.f32.mrb[0].mxu0
      %6984 = vmatprep.mubr.f32.mxu0 0.0
      %6985 = vmatmul.mubr.f32.gmra.mrb[0].mxu0 %v6777
      %v6986 = vpop.f32.mrb[0].mxu0
      %v6987 = vadd.f32 0.0, %v6986
      %v6988 = vpop.f32.mrb[0].mxu0
      %6989 = vmatprep.mubr.f32.mxu0 0.0
      %6990 = vmatmul.mubr.f32.gmra.mrb[0].mxu0 %v6780
      %v6991 = vpop.f32.mrb[0].mxu0
      %v6992 = vadd.f32 0.0, %v6991
      %v6993 = vpop.f32.mrb[0].mxu0
      %6994 = vmatprep.mubr.f32.mxu0 0.0
      %6995 = vmatmul.mubr.f32.gmra.mrb[0].mxu0 %v6783
      %v6996 = vpop.f32.mrb[0].mxu0
      %v6997 = vadd.f32 0.0, %v6996
      %v6998 = vpop.f32.mrb[0].mxu0
      %6999 = vmatprep.mubr.f32.mxu0 0.0
      %7000 = vmatmul.mubr.f32.gmra.mrb[0].mxu0 %v6786
      %v7001 = vpop.f32.mrb[0].mxu0
      %v7002 = vadd.f32 0.0, %v7001
      %v7003 = vpop.f32.mrb[0].mxu0
      %7004 = vmatprep.mubr.f32.mxu0 0.0
      %7005 = vmatmul.mubr.f32.gmra.mrb[0].mxu0 %v6789
      %v7006 = vpop.f32.mrb[0].mxu0
      %v7007 = vadd.f32 0.0, %v7006
      %v7008 = vpop.f32.mrb[0].mxu0
      %7009 = vmatprep.mubr.f32.mxu0 0.0
      %7010 = vmatmul.mubr.f32.gmra.mrb[0].mxu0 %v6792
      %v7011 = vpop.f32.mrb[0].mxu0
      %v7012 = vadd.f32 0.0, %v7011
      %v7013 = vpop.f32.mrb[0].mxu0
      %7014 = vmatprep.mubr.f32.mxu0 0.0
      %7015 = vmatmul.mubr.f32.gmra.mrb[0].mxu0 %v6795
      %v7016 = vpop.f32.mrb[0].mxu0
      %v7017 = vadd.f32 0.0, %v7016
      %v7018 = vpop.f32.mrb[0].mxu0
      %7019 = vmatprep.mubr.f32.mxu0 0.0
      %7020 = vmatmul.mubr.f32.gmra.mrb[0].mxu0 %v6798
      %v7021 = vpop.f32.mrb[0].mxu0
      %v7022 = vadd.f32 0.0, %v7021
      %v7023 = vpop.f32.mrb[0].mxu0
      %7024 = vdwg.mxu0
      %v7025 = vadd.f32 %v6603, %v6867
      %v7026 = vadd.f32 %v6604, %v6872
      %v7027 = vadd.f32 %v6605, %v6877
      %v7028 = vadd.f32 %v6606, %v6882
      %v7029 = vadd.f32 %v6607, %v6887
      %v7030 = vadd.f32 %v6608, %v6892
      %v7031 = vadd.f32 %v6609, %v6897
      %v7032 = vadd.f32 %v6610, %v6902
      %v7033 = vadd.f32 %v6611, %v6907
      %v7034 = vadd.f32 %v6612, %v6912
      %v7035 = vadd.f32 %v6613, %v6917
      %v7036 = vadd.f32 %v6614, %v6922
      %v7037 = vadd.f32 %v6615, %v6927
      %v7038 = vadd.f32 %v6616, %v6932
      %v7039 = vadd.f32 %v6617, %v6937
      %v7040 = vadd.f32 %v6618, %v6942
      %v7041 = vadd.f32 %v6619, %v6947
      %v7042 = vadd.f32 %v6620, %v6952
      %v7043 = vadd.f32 %v6621, %v6957
      %v7044 = vadd.f32 %v6622, %v6962
      %v7045 = vadd.f32 %v6623, %v6967
      %v7046 = vadd.f32 %v6624, %v6972
      %v7047 = vadd.f32 %v6625, %v6977
      %v7048 = vadd.f32 %v6626, %v6982
      %v7049 = vadd.f32 %v6627, %v6987
      %v7050 = vadd.f32 %v6628, %v6992
      %v7051 = vadd.f32 %v6629, %v6997
      %v7052 = vadd.f32 %v6630, %v7002
      %v7053 = vadd.f32 %v6631, %v7007
      %v7054 = vadd.f32 %v6632, %v7012
      %v7055 = vadd.f32 %v6633, %v7017
      %v7056 = vadd.f32 %v6634, %v7022
      %v7057 = vld [vmem:[#allocation2 + $0x27] sm:$0xff]
      %v7058 = vld [vmem:[#allocation2 + $0x2f] sm:$0xff]
      %v7059 = vld [vmem:[#allocation2 + $0x37] sm:$0xff]
      %v7060 = vld [vmem:[#allocation2 + $0x3f] sm:$0xff]
      %v7061 = vld [vmem:[#allocation2 + $0x47] sm:$0xff]
      %v7062 = vld [vmem:[#allocation2 + $0x4f] sm:$0xff]
      %v7063 = vld [vmem:[#allocation2 + $0x57] sm:$0xff]
      %v7064 = vld [vmem:[#allocation2 + $0x5f] sm:$0xff]
      %v7065 = vld [vmem:[#allocation2 + $0x67] sm:$0xff]
      %v7066 = vld [vmem:[#allocation2 + $0x6f] sm:$0xff]
      %v7067 = vld [vmem:[#allocation2 + $0x77] sm:$0xff]
      %v7068 = vld [vmem:[#allocation2 + $0x7f] sm:$0xff]
      %v7069 = vld [vmem:[#allocation2 + $0x87] sm:$0xff]
      %v7070 = vld [vmem:[#allocation2 + $0x8f] sm:$0xff]
      %v7071 = vld [vmem:[#allocation2 + $0x97] sm:$0xff]
      %v7072 = vld [vmem:[#allocation2 + $0x9f] sm:$0xff]
      %v7073 = vld [vmem:[#allocation2 + $0xa7] sm:$0xff]
      %v7074 = vld [vmem:[#allocation2 + $0xaf] sm:$0xff]
      %v7075 = vld [vmem:[#allocation2 + $0xb7] sm:$0xff]
      %v7076 = vld [vmem:[#allocation2 + $0xbf] sm:$0xff]
      %v7077 = vld [vmem:[#allocation2 + $0xc7] sm:$0xff]
      %v7078 = vld [vmem:[#allocation2 + $0xcf] sm:$0xff]
      %v7079 = vld [vmem:[#allocation2 + $0xd7] sm:$0xff]
      %v7080 = vld [vmem:[#allocation2 + $0xdf] sm:$0xff]
      %v7081 = vld [vmem:[#allocation2 + $0xe7] sm:$0xff]
      %v7082 = vld [vmem:[#allocation2 + $0xef] sm:$0xff]
      %v7083 = vld [vmem:[#allocation2 + $0xf7] sm:$0xff]
      %v7084 = vld [vmem:[#allocation2 + $0xff] sm:$0xff]
      %v7085 = vld [vmem:[#allocation2 + $0x107] sm:$0xff]
      %v7086 = vld [vmem:[#allocation2 + $0x10f] sm:$0xff]
      %v7087 = vld [vmem:[#allocation2 + $0x117] sm:$0xff]
      %v7088 = vld [vmem:[#allocation2 + $0x11f] sm:$0xff]
      %v7089 = vmul.f32 %v7057, %v709
      %v7090 = vmul.f32 %v7058, %v710
      %v7091 = vmul.f32 %v7059, %v711
      %v7092 = vmul.f32 %v7060, %v712
      %v7093 = vmul.f32 %v7061, %v713
      %v7094 = vmul.f32 %v7062, %v714
      %v7095 = vmul.f32 %v7063, %v715
      %v7096 = vmul.f32 %v7064, %v716
      %v7097 = vmul.f32 %v7065, %v717
      %v7098 = vmul.f32 %v7066, %v718
      %v7099 = vmul.f32 %v7067, %v719
      %v7100 = vmul.f32 %v7068, %v720
      %v7101 = vmul.f32 %v7069, %v721
      %v7102 = vmul.f32 %v7070, %v722
      %v7103 = vmul.f32 %v7071, %v723
      %v7104 = vmul.f32 %v7072, %v724
      %v7105 = vmul.f32 %v7073, %v725
      %v7106 = vmul.f32 %v7074, %v726
      %v7107 = vmul.f32 %v7075, %v727
      %v7108 = vmul.f32 %v7076, %v728
      %v7109 = vmul.f32 %v7077, %v729
      %v7110 = vmul.f32 %v7078, %v730
      %v7111 = vmul.f32 %v7079, %v731
      %v7112 = vmul.f32 %v7080, %v732
      %v7113 = vmul.f32 %v7081, %v733
      %v7114 = vmul.f32 %v7082, %v734
      %v7115 = vmul.f32 %v7083, %v735
      %v7116 = vmul.f32 %v7084, %v736
      %v7117 = vmul.f32 %v7085, %v737
      %v7118 = vmul.f32 %v7086, %v738
      %v7119 = vmul.f32 %v7087, %v739
      %v7120 = vmul.f32 %v7088, %v740
      %s7121 = scalar_lea.vmem %s3, 192
      %v7122 = vld [vmem:[%s7121] sm:$0xff]
      %v7123 = vld [vmem:[%s7121 + $0x8] sm:$0xff]
      %v7124 = vld [vmem:[%s7121 + $0x10] sm:$0xff]
      %v7125 = vld [vmem:[%s7121 + $0x18] sm:$0xff]
      %v7127 = vsel %vm869, %v7089, 0
      %v7130 = vsel %vm869, %v7090, 0
      %v7133 = vsel %vm869, %v7091, 0
      %v7136 = vsel %vm869, %v7092, 0
      %v7139 = vsel %vm869, %v7093, 0
      %v7142 = vsel %vm869, %v7094, 0
      %v7145 = vsel %vm869, %v7095, 0
      %v7148 = vsel %vm869, %v7096, 0
      %v7151 = vsel %vm869, %v7097, 0
      %v7154 = vsel %vm869, %v7098, 0
      %v7157 = vsel %vm869, %v7099, 0
      %v7160 = vsel %vm869, %v7100, 0
      %v7163 = vsel %vm869, %v7101, 0
      %v7166 = vsel %vm869, %v7102, 0
      %v7169 = vsel %vm869, %v7103, 0
      %v7172 = vsel %vm869, %v7104, 0
      %v7175 = vsel %vm869, %v7105, 0
      %v7178 = vsel %vm869, %v7106, 0
      %v7181 = vsel %vm869, %v7107, 0
      %v7184 = vsel %vm869, %v7108, 0
      %v7187 = vsel %vm869, %v7109, 0
      %v7190 = vsel %vm869, %v7110, 0
      %v7193 = vsel %vm869, %v7111, 0
      %v7196 = vsel %vm869, %v7112, 0
      %v7199 = vsel %vm869, %v7113, 0
      %v7202 = vsel %vm869, %v7114, 0
      %v7205 = vsel %vm869, %v7115, 0
      %v7208 = vsel %vm869, %v7116, 0
      %v7211 = vsel %vm869, %v7117, 0
      %v7214 = vsel %vm869, %v7118, 0
      %v7217 = vsel %vm869, %v7119, 0
      %v7220 = vsel %vm869, %v7120, 0
      %7222 = vmatprep.subr.mxu0 0.0
      %7223 = vmatpush1.msra.mxu0 %v7122
      %7224 = vmatprep.subr.mxu0 0.0
      %7225 = vmatpush1.msra.mxu0 %v7123
      %7226 = vmatprep.subr.mxu0 0.0
      %7227 = vmatpush1.msra.mxu0 %v7124
      %7228 = vmatprep.subr.mxu0 0.0
      %7229 = vmatpush1.msra.mxu0 %v7125
      %7230 = vmatprep.subr.mxu0 0.0
      %7231 = vmatpush1.msra.mxu0 0.0
      %7232 = vmatprep.subr.mxu0 0.0
      %7233 = vmatpush1.msra.mxu0 0.0
      %7234 = vmatprep.subr.mxu0 0.0
      %7235 = vmatpush1.msra.mxu0 0.0
      %7236 = vmatprep.subr.mxu0 0.0
      %7237 = vmatpush1.msra.mxu0 0.0
      %7238 = vmatprep.subr.mxu0 0.0
      %7239 = vmatpush1.msra.mxu0 0.0
      %7240 = vmatprep.subr.mxu0 0.0
      %7241 = vmatpush1.msra.mxu0 0.0
      %7242 = vmatprep.subr.mxu0 0.0
      %7243 = vmatpush1.msra.mxu0 0.0
      %7244 = vmatprep.subr.mxu0 0.0
      %7245 = vmatpush1.msra.mxu0 0.0
      %7246 = vmatprep.subr.mxu0 0.0
      %7247 = vmatpush1.msra.mxu0 0.0
      %7248 = vmatprep.subr.mxu0 0.0
      %7249 = vmatpush1.msra.mxu0 0.0
      %7250 = vmatprep.subr.mxu0 0.0
      %7251 = vmatpush1.msra.mxu0 0.0
      %7252 = vmatprep.subr.mxu0 0.0
      %7253 = vmatpush1.msra.mxu0 0.0
      %7254 = vmatprep.subr.mxu0 0.0
      %7255 = vmatpush1.msra.mxu0 0.0
      %7256 = vmatprep.subr.mxu0 0.0
      %7257 = vmatpush1.msra.mxu0 0.0
      %7258 = vmatprep.subr.mxu0 0.0
      %7259 = vmatpush1.msra.mxu0 0.0
      %7260 = vmatprep.subr.mxu0 0.0
      %7261 = vmatpush1.msra.mxu0 0.0
      %7262 = vmatprep.subr.mxu0 0.0
      %7263 = vmatpush1.msra.mxu0 0.0
      %7264 = vmatprep.subr.mxu0 0.0
      %7265 = vmatpush1.msra.mxu0 0.0
      %7266 = vmatprep.subr.mxu0 0.0
      %7267 = vmatpush1.msra.mxu0 0.0
      %7268 = vmatprep.subr.mxu0 0.0
      %7269 = vmatpush1.msra.mxu0 0.0
      %7270 = vmatprep.subr.mxu0 0.0
      %7271 = vmatpush1.msra.mxu0 0.0
      %7272 = vmatprep.subr.mxu0 0.0
      %7273 = vmatpush1.msra.mxu0 0.0
      %7274 = vmatprep.subr.mxu0 0.0
      %7275 = vmatpush1.msra.mxu0 0.0
      %7276 = vmatprep.subr.mxu0 0.0
      %7277 = vmatpush1.msra.mxu0 0.0
      %7278 = vmatprep.subr.mxu0 0.0
      %7279 = vmatpush1.msra.mxu0 0.0
      %7280 = vmatprep.subr.mxu0 0.0
      %7281 = vmatpush1.msra.mxu0 0.0
      %7282 = vmatprep.subr.mxu0 0.0
      %7283 = vmatpush1.msra.mxu0 0.0
      %7284 = vmatprep.subr.mxu0 0.0
      %7285 = vmatpush1.msra.mxu0 0.0
      %7286 = vmatprep.mubr.f32.mxu0 0.0
      %7287 = vmatmul.mubr.f32.gmra.mrb[0].mxu0 %v7127
      %v7288 = vpop.f32.mrb[0].mxu0
      %v7289 = vadd.f32 0.0, %v7288
      %v7290 = vpop.f32.mrb[0].mxu0
      %7291 = vmatprep.mubr.f32.mxu0 0.0
      %7292 = vmatmul.mubr.f32.gmra.mrb[0].mxu0 %v7130
      %v7293 = vpop.f32.mrb[0].mxu0
      %v7294 = vadd.f32 0.0, %v7293
      %v7295 = vpop.f32.mrb[0].mxu0
      %7296 = vmatprep.mubr.f32.mxu0 0.0
      %7297 = vmatmul.mubr.f32.gmra.mrb[0].mxu0 %v7133
      %v7298 = vpop.f32.mrb[0].mxu0
      %v7299 = vadd.f32 0.0, %v7298
      %v7300 = vpop.f32.mrb[0].mxu0
      %7301 = vmatprep.mubr.f32.mxu0 0.0
      %7302 = vmatmul.mubr.f32.gmra.mrb[0].mxu0 %v7136
      %v7303 = vpop.f32.mrb[0].mxu0
      %v7304 = vadd.f32 0.0, %v7303
      %v7305 = vpop.f32.mrb[0].mxu0
      %7306 = vmatprep.mubr.f32.mxu0 0.0
      %7307 = vmatmul.mubr.f32.gmra.mrb[0].mxu0 %v7139
      %v7308 = vpop.f32.mrb[0].mxu0
      %v7309 = vadd.f32 0.0, %v7308
      %v7310 = vpop.f32.mrb[0].mxu0
      %7311 = vmatprep.mubr.f32.mxu0 0.0
      %7312 = vmatmul.mubr.f32.gmra.mrb[0].mxu0 %v7142
      %v7313 = vpop.f32.mrb[0].mxu0
      %v7314 = vadd.f32 0.0, %v7313
      %v7315 = vpop.f32.mrb[0].mxu0
      %7316 = vmatprep.mubr.f32.mxu0 0.0
      %7317 = vmatmul.mubr.f32.gmra.mrb[0].mxu0 %v7145
      %v7318 = vpop.f32.mrb[0].mxu0
      %v7319 = vadd.f32 0.0, %v7318
      %v7320 = vpop.f32.mrb[0].mxu0
      %7321 = vmatprep.mubr.f32.mxu0 0.0
      %7322 = vmatmul.mubr.f32.gmra.mrb[0].mxu0 %v7148
      %v7323 = vpop.f32.mrb[0].mxu0
      %v7324 = vadd.f32 0.0, %v7323
      %v7325 = vpop.f32.mrb[0].mxu0
      %7326 = vmatprep.mubr.f32.mxu0 0.0
      %7327 = vmatmul.mubr.f32.gmra.mrb[0].mxu0 %v7151
      %v7328 = vpop.f32.mrb[0].mxu0
      %v7329 = vadd.f32 0.0, %v7328
      %v7330 = vpop.f32.mrb[0].mxu0
      %7331 = vmatprep.mubr.f32.mxu0 0.0
      %7332 = vmatmul.mubr.f32.gmra.mrb[0].mxu0 %v7154
      %v7333 = vpop.f32.mrb[0].mxu0
      %v7334 = vadd.f32 0.0, %v7333
      %v7335 = vpop.f32.mrb[0].mxu0
      %7336 = vmatprep.mubr.f32.mxu0 0.0
      %7337 = vmatmul.mubr.f32.gmra.mrb[0].mxu0 %v7157
      %v7338 = vpop.f32.mrb[0].mxu0
      %v7339 = vadd.f32 0.0, %v7338
      %v7340 = vpop.f32.mrb[0].mxu0
      %7341 = vmatprep.mubr.f32.mxu0 0.0
      %7342 = vmatmul.mubr.f32.gmra.mrb[0].mxu0 %v7160
      %v7343 = vpop.f32.mrb[0].mxu0
      %v7344 = vadd.f32 0.0, %v7343
      %v7345 = vpop.f32.mrb[0].mxu0
      %7346 = vmatprep.mubr.f32.mxu0 0.0
      %7347 = vmatmul.mubr.f32.gmra.mrb[0].mxu0 %v7163
      %v7348 = vpop.f32.mrb[0].mxu0
      %v7349 = vadd.f32 0.0, %v7348
      %v7350 = vpop.f32.mrb[0].mxu0
      %7351 = vmatprep.mubr.f32.mxu0 0.0
      %7352 = vmatmul.mubr.f32.gmra.mrb[0].mxu0 %v7166
      %v7353 = vpop.f32.mrb[0].mxu0
      %v7354 = vadd.f32 0.0, %v7353
      %v7355 = vpop.f32.mrb[0].mxu0
      %7356 = vmatprep.mubr.f32.mxu0 0.0
      %7357 = vmatmul.mubr.f32.gmra.mrb[0].mxu0 %v7169
      %v7358 = vpop.f32.mrb[0].mxu0
      %v7359 = vadd.f32 0.0, %v7358
      %v7360 = vpop.f32.mrb[0].mxu0
      %7361 = vmatprep.mubr.f32.mxu0 0.0
      %7362 = vmatmul.mubr.f32.gmra.mrb[0].mxu0 %v7172
      %v7363 = vpop.f32.mrb[0].mxu0
      %v7364 = vadd.f32 0.0, %v7363
      %v7365 = vpop.f32.mrb[0].mxu0
      %7366 = vmatprep.mubr.f32.mxu0 0.0
      %7367 = vmatmul.mubr.f32.gmra.mrb[0].mxu0 %v7175
      %v7368 = vpop.f32.mrb[0].mxu0
      %v7369 = vadd.f32 0.0, %v7368
      %v7370 = vpop.f32.mrb[0].mxu0
      %7371 = vmatprep.mubr.f32.mxu0 0.0
      %7372 = vmatmul.mubr.f32.gmra.mrb[0].mxu0 %v7178
      %v7373 = vpop.f32.mrb[0].mxu0
      %v7374 = vadd.f32 0.0, %v7373
      %v7375 = vpop.f32.mrb[0].mxu0
      %7376 = vmatprep.mubr.f32.mxu0 0.0
      %7377 = vmatmul.mubr.f32.gmra.mrb[0].mxu0 %v7181
      %v7378 = vpop.f32.mrb[0].mxu0
      %v7379 = vadd.f32 0.0, %v7378
      %v7380 = vpop.f32.mrb[0].mxu0
      %7381 = vmatprep.mubr.f32.mxu0 0.0
      %7382 = vmatmul.mubr.f32.gmra.mrb[0].mxu0 %v7184
      %v7383 = vpop.f32.mrb[0].mxu0
      %v7384 = vadd.f32 0.0, %v7383
      %v7385 = vpop.f32.mrb[0].mxu0
      %7386 = vmatprep.mubr.f32.mxu0 0.0
      %7387 = vmatmul.mubr.f32.gmra.mrb[0].mxu0 %v7187
      %v7388 = vpop.f32.mrb[0].mxu0
      %v7389 = vadd.f32 0.0, %v7388
      %v7390 = vpop.f32.mrb[0].mxu0
      %7391 = vmatprep.mubr.f32.mxu0 0.0
      %7392 = vmatmul.mubr.f32.gmra.mrb[0].mxu0 %v7190
      %v7393 = vpop.f32.mrb[0].mxu0
      %v7394 = vadd.f32 0.0, %v7393
      %v7395 = vpop.f32.mrb[0].mxu0
      %7396 = vmatprep.mubr.f32.mxu0 0.0
      %7397 = vmatmul.mubr.f32.gmra.mrb[0].mxu0 %v7193
      %v7398 = vpop.f32.mrb[0].mxu0
      %v7399 = vadd.f32 0.0, %v7398
      %v7400 = vpop.f32.mrb[0].mxu0
      %7401 = vmatprep.mubr.f32.mxu0 0.0
      %7402 = vmatmul.mubr.f32.gmra.mrb[0].mxu0 %v7196
      %v7403 = vpop.f32.mrb[0].mxu0
      %v7404 = vadd.f32 0.0, %v7403
      %v7405 = vpop.f32.mrb[0].mxu0
      %7406 = vmatprep.mubr.f32.mxu0 0.0
      %7407 = vmatmul.mubr.f32.gmra.mrb[0].mxu0 %v7199
      %v7408 = vpop.f32.mrb[0].mxu0
      %v7409 = vadd.f32 0.0, %v7408
      %v7410 = vpop.f32.mrb[0].mxu0
      %7411 = vmatprep.mubr.f32.mxu0 0.0
      %7412 = vmatmul.mubr.f32.gmra.mrb[0].mxu0 %v7202
      %v7413 = vpop.f32.mrb[0].mxu0
      %v7414 = vadd.f32 0.0, %v7413
      %v7415 = vpop.f32.mrb[0].mxu0
      %7416 = vmatprep.mubr.f32.mxu0 0.0
      %7417 = vmatmul.mubr.f32.gmra.mrb[0].mxu0 %v7205
      %v7418 = vpop.f32.mrb[0].mxu0
      %v7419 = vadd.f32 0.0, %v7418
      %v7420 = vpop.f32.mrb[0].mxu0
      %7421 = vmatprep.mubr.f32.mxu0 0.0
      %7422 = vmatmul.mubr.f32.gmra.mrb[0].mxu0 %v7208
      %v7423 = vpop.f32.mrb[0].mxu0
      %v7424 = vadd.f32 0.0, %v7423
      %v7425 = vpop.f32.mrb[0].mxu0
      %7426 = vmatprep.mubr.f32.mxu0 0.0
      %7427 = vmatmul.mubr.f32.gmra.mrb[0].mxu0 %v7211
      %v7428 = vpop.f32.mrb[0].mxu0
      %v7429 = vadd.f32 0.0, %v7428
      %v7430 = vpop.f32.mrb[0].mxu0
      %7431 = vmatprep.mubr.f32.mxu0 0.0
      %7432 = vmatmul.mubr.f32.gmra.mrb[0].mxu0 %v7214
      %v7433 = vpop.f32.mrb[0].mxu0
      %v7434 = vadd.f32 0.0, %v7433
      %v7435 = vpop.f32.mrb[0].mxu0
      %7436 = vmatprep.mubr.f32.mxu0 0.0
      %7437 = vmatmul.mubr.f32.gmra.mrb[0].mxu0 %v7217
      %v7438 = vpop.f32.mrb[0].mxu0
      %v7439 = vadd.f32 0.0, %v7438
      %v7440 = vpop.f32.mrb[0].mxu0
      %7441 = vmatprep.mubr.f32.mxu0 0.0
      %7442 = vmatmul.mubr.f32.gmra.mrb[0].mxu0 %v7220
      %v7443 = vpop.f32.mrb[0].mxu0
      %v7444 = vadd.f32 0.0, %v7443
      %v7445 = vpop.f32.mrb[0].mxu0
      %7446 = vdwg.mxu0
      %v7447 = vadd.f32 %v7025, %v7289
      %v7448 = vadd.f32 %v7026, %v7294
      %v7449 = vadd.f32 %v7027, %v7299
      %v7450 = vadd.f32 %v7028, %v7304
      %v7451 = vadd.f32 %v7029, %v7309
      %v7452 = vadd.f32 %v7030, %v7314
      %v7453 = vadd.f32 %v7031, %v7319
      %v7454 = vadd.f32 %v7032, %v7324
      %v7455 = vadd.f32 %v7033, %v7329
      %v7456 = vadd.f32 %v7034, %v7334
      %v7457 = vadd.f32 %v7035, %v7339
      %v7458 = vadd.f32 %v7036, %v7344
      %v7459 = vadd.f32 %v7037, %v7349
      %v7460 = vadd.f32 %v7038, %v7354
      %v7461 = vadd.f32 %v7039, %v7359
      %v7462 = vadd.f32 %v7040, %v7364
      %v7463 = vadd.f32 %v7041, %v7369
      %v7464 = vadd.f32 %v7042, %v7374
      %v7465 = vadd.f32 %v7043, %v7379
      %v7466 = vadd.f32 %v7044, %v7384
      %v7467 = vadd.f32 %v7045, %v7389
      %v7468 = vadd.f32 %v7046, %v7394
      %v7469 = vadd.f32 %v7047, %v7399
      %v7470 = vadd.f32 %v7048, %v7404
      %v7471 = vadd.f32 %v7049, %v7409
      %v7472 = vadd.f32 %v7050, %v7414
      %v7473 = vadd.f32 %v7051, %v7419
      %v7474 = vadd.f32 %v7052, %v7424
      %v7475 = vadd.f32 %v7053, %v7429
      %v7476 = vadd.f32 %v7054, %v7434
      %v7477 = vadd.f32 %v7055, %v7439
      %v7478 = vadd.f32 %v7056, %v7444
      %v7479 = vld [vmem:[#allocation2 + $0x28] sm:$0xff]
      %v7480 = vld [vmem:[#allocation2 + $0x30] sm:$0xff]
      %v7481 = vld [vmem:[#allocation2 + $0x38] sm:$0xff]
      %v7482 = vld [vmem:[#allocation2 + $0x40] sm:$0xff]
      %v7483 = vld [vmem:[#allocation2 + $0x48] sm:$0xff]
      %v7484 = vld [vmem:[#allocation2 + $0x50] sm:$0xff]
      %v7485 = vld [vmem:[#allocation2 + $0x58] sm:$0xff]
      %v7486 = vld [vmem:[#allocation2 + $0x60] sm:$0xff]
      %v7487 = vld [vmem:[#allocation2 + $0x68] sm:$0xff]
      %v7488 = vld [vmem:[#allocation2 + $0x70] sm:$0xff]
      %v7489 = vld [vmem:[#allocation2 + $0x78] sm:$0xff]
      %v7490 = vld [vmem:[#allocation2 + $0x80] sm:$0xff]
      %v7491 = vld [vmem:[#allocation2 + $0x88] sm:$0xff]
      %v7492 = vld [vmem:[#allocation2 + $0x90] sm:$0xff]
      %v7493 = vld [vmem:[#allocation2 + $0x98] sm:$0xff]
      %v7494 = vld [vmem:[#allocation2 + $0xa0] sm:$0xff]
      %v7495 = vld [vmem:[#allocation2 + $0xa8] sm:$0xff]
      %v7496 = vld [vmem:[#allocation2 + $0xb0] sm:$0xff]
      %v7497 = vld [vmem:[#allocation2 + $0xb8] sm:$0xff]
      %v7498 = vld [vmem:[#allocation2 + $0xc0] sm:$0xff]
      %v7499 = vld [vmem:[#allocation2 + $0xc8] sm:$0xff]
      %v7500 = vld [vmem:[#allocation2 + $0xd0] sm:$0xff]
      %v7501 = vld [vmem:[#allocation2 + $0xd8] sm:$0xff]
      %v7502 = vld [vmem:[#allocation2 + $0xe0] sm:$0xff]
      %v7503 = vld [vmem:[#allocation2 + $0xe8] sm:$0xff]
      %v7504 = vld [vmem:[#allocation2 + $0xf0] sm:$0xff]
      %v7505 = vld [vmem:[#allocation2 + $0xf8] sm:$0xff]
      %v7506 = vld [vmem:[#allocation2 + $0x100] sm:$0xff]
      %v7507 = vld [vmem:[#allocation2 + $0x108] sm:$0xff]
      %v7508 = vld [vmem:[#allocation2 + $0x110] sm:$0xff]
      %v7509 = vld [vmem:[#allocation2 + $0x118] sm:$0xff]
      %v7510 = vld [vmem:[#allocation2 + $0x120] sm:$0xff]
      %s7511 = scalar_lea.vmem %s3, 224
      %v7512 = vld [vmem:[%s7511] sm:$0xff]
      %v7513 = vld [vmem:[%s7511 + $0x8] sm:$0xff]
      %v7514 = vld [vmem:[%s7511 + $0x10] sm:$0xff]
      %v7515 = vld [vmem:[%s7511 + $0x18] sm:$0xff]
      %v7517 = vsel %vm869, %v7479, 0
      %v7520 = vsel %vm869, %v7480, 0
      %v7523 = vsel %vm869, %v7481, 0
      %v7526 = vsel %vm869, %v7482, 0
      %v7529 = vsel %vm869, %v7483, 0
      %v7532 = vsel %vm869, %v7484, 0
      %v7535 = vsel %vm869, %v7485, 0
      %v7538 = vsel %vm869, %v7486, 0
      %v7541 = vsel %vm869, %v7487, 0
      %v7544 = vsel %vm869, %v7488, 0
      %v7547 = vsel %vm869, %v7489, 0
      %v7550 = vsel %vm869, %v7490, 0
      %v7553 = vsel %vm869, %v7491, 0
      %v7556 = vsel %vm869, %v7492, 0
      %v7559 = vsel %vm869, %v7493, 0
      %v7562 = vsel %vm869, %v7494, 0
      %v7565 = vsel %vm869, %v7495, 0
      %v7568 = vsel %vm869, %v7496, 0
      %v7571 = vsel %vm869, %v7497, 0
      %v7574 = vsel %vm869, %v7498, 0
      %v7577 = vsel %vm869, %v7499, 0
      %v7580 = vsel %vm869, %v7500, 0
      %v7583 = vsel %vm869, %v7501, 0
      %v7586 = vsel %vm869, %v7502, 0
      %v7589 = vsel %vm869, %v7503, 0
      %v7592 = vsel %vm869, %v7504, 0
      %v7595 = vsel %vm869, %v7505, 0
      %v7598 = vsel %vm869, %v7506, 0
      %v7601 = vsel %vm869, %v7507, 0
      %v7604 = vsel %vm869, %v7508, 0
      %v7607 = vsel %vm869, %v7509, 0
      %v7610 = vsel %vm869, %v7510, 0
      %7612 = vmatprep.subr.mxu0 0.0
      %7613 = vmatpush1.msra.mxu0 %v7512
      %7614 = vmatprep.subr.mxu0 0.0
      %7615 = vmatpush1.msra.mxu0 %v7513
      %7616 = vmatprep.subr.mxu0 0.0
      %7617 = vmatpush1.msra.mxu0 %v7514
      %7618 = vmatprep.subr.mxu0 0.0
      %7619 = vmatpush1.msra.mxu0 %v7515
      %7620 = vmatprep.subr.mxu0 0.0
      %7621 = vmatpush1.msra.mxu0 0.0
      %7622 = vmatprep.subr.mxu0 0.0
      %7623 = vmatpush1.msra.mxu0 0.0
      %7624 = vmatprep.subr.mxu0 0.0
      %7625 = vmatpush1.msra.mxu0 0.0
      %7626 = vmatprep.subr.mxu0 0.0
      %7627 = vmatpush1.msra.mxu0 0.0
      %7628 = vmatprep.subr.mxu0 0.0
      %7629 = vmatpush1.msra.mxu0 0.0
      %7630 = vmatprep.subr.mxu0 0.0
      %7631 = vmatpush1.msra.mxu0 0.0
      %7632 = vmatprep.subr.mxu0 0.0
      %7633 = vmatpush1.msra.mxu0 0.0
      %7634 = vmatprep.subr.mxu0 0.0
      %7635 = vmatpush1.msra.mxu0 0.0
      %7636 = vmatprep.subr.mxu0 0.0
      %7637 = vmatpush1.msra.mxu0 0.0
      %7638 = vmatprep.subr.mxu0 0.0
      %7639 = vmatpush1.msra.mxu0 0.0
      %7640 = vmatprep.subr.mxu0 0.0
      %7641 = vmatpush1.msra.mxu0 0.0
      %7642 = vmatprep.subr.mxu0 0.0
      %7643 = vmatpush1.msra.mxu0 0.0
      %7644 = vmatprep.subr.mxu0 0.0
      %7645 = vmatpush1.msra.mxu0 0.0
      %7646 = vmatprep.subr.mxu0 0.0
      %7647 = vmatpush1.msra.mxu0 0.0
      %7648 = vmatprep.subr.mxu0 0.0
      %7649 = vmatpush1.msra.mxu0 0.0
      %7650 = vmatprep.subr.mxu0 0.0
      %7651 = vmatpush1.msra.mxu0 0.0
      %7652 = vmatprep.subr.mxu0 0.0
      %7653 = vmatpush1.msra.mxu0 0.0
      %7654 = vmatprep.subr.mxu0 0.0
      %7655 = vmatpush1.msra.mxu0 0.0
      %7656 = vmatprep.subr.mxu0 0.0
      %7657 = vmatpush1.msra.mxu0 0.0
      %7658 = vmatprep.subr.mxu0 0.0
      %7659 = vmatpush1.msra.mxu0 0.0
      %7660 = vmatprep.subr.mxu0 0.0
      %7661 = vmatpush1.msra.mxu0 0.0
      %7662 = vmatprep.subr.mxu0 0.0
      %7663 = vmatpush1.msra.mxu0 0.0
      %7664 = vmatprep.subr.mxu0 0.0
      %7665 = vmatpush1.msra.mxu0 0.0
      %7666 = vmatprep.subr.mxu0 0.0
      %7667 = vmatpush1.msra.mxu0 0.0
      %7668 = vmatprep.subr.mxu0 0.0
      %7669 = vmatpush1.msra.mxu0 0.0
      %7670 = vmatprep.subr.mxu0 0.0
      %7671 = vmatpush1.msra.mxu0 0.0
      %7672 = vmatprep.subr.mxu0 0.0
      %7673 = vmatpush1.msra.mxu0 0.0
      %7674 = vmatprep.subr.mxu0 0.0
      %7675 = vmatpush1.msra.mxu0 0.0
      %7676 = vmatprep.mubr.f32.mxu0 0.0
      %7677 = vmatmul.mubr.f32.gmra.mrb[0].mxu0 %v7517
      %v7678 = vpop.f32.mrb[0].mxu0
      %v7679 = vadd.f32 0.0, %v7678
      %v7680 = vpop.f32.mrb[0].mxu0
      %7681 = vmatprep.mubr.f32.mxu0 0.0
      %7682 = vmatmul.mubr.f32.gmra.mrb[0].mxu0 %v7520
      %v7683 = vpop.f32.mrb[0].mxu0
      %v7684 = vadd.f32 0.0, %v7683
      %v7685 = vpop.f32.mrb[0].mxu0
      %7686 = vmatprep.mubr.f32.mxu0 0.0
      %7687 = vmatmul.mubr.f32.gmra.mrb[0].mxu0 %v7523
      %v7688 = vpop.f32.mrb[0].mxu0
      %v7689 = vadd.f32 0.0, %v7688
      %v7690 = vpop.f32.mrb[0].mxu0
      %7691 = vmatprep.mubr.f32.mxu0 0.0
      %7692 = vmatmul.mubr.f32.gmra.mrb[0].mxu0 %v7526
      %v7693 = vpop.f32.mrb[0].mxu0
      %v7694 = vadd.f32 0.0, %v7693
      %v7695 = vpop.f32.mrb[0].mxu0
      %7696 = vmatprep.mubr.f32.mxu0 0.0
      %7697 = vmatmul.mubr.f32.gmra.mrb[0].mxu0 %v7529
      %v7698 = vpop.f32.mrb[0].mxu0
      %v7699 = vadd.f32 0.0, %v7698
      %v7700 = vpop.f32.mrb[0].mxu0
      %7701 = vmatprep.mubr.f32.mxu0 0.0
      %7702 = vmatmul.mubr.f32.gmra.mrb[0].mxu0 %v7532
      %v7703 = vpop.f32.mrb[0].mxu0
      %v7704 = vadd.f32 0.0, %v7703
      %v7705 = vpop.f32.mrb[0].mxu0
      %7706 = vmatprep.mubr.f32.mxu0 0.0
      %7707 = vmatmul.mubr.f32.gmra.mrb[0].mxu0 %v7535
      %v7708 = vpop.f32.mrb[0].mxu0
      %v7709 = vadd.f32 0.0, %v7708
      %v7710 = vpop.f32.mrb[0].mxu0
      %7711 = vmatprep.mubr.f32.mxu0 0.0
      %7712 = vmatmul.mubr.f32.gmra.mrb[0].mxu0 %v7538
      %v7713 = vpop.f32.mrb[0].mxu0
      %v7714 = vadd.f32 0.0, %v7713
      %v7715 = vpop.f32.mrb[0].mxu0
      %7716 = vmatprep.mubr.f32.mxu0 0.0
      %7717 = vmatmul.mubr.f32.gmra.mrb[0].mxu0 %v7541
      %v7718 = vpop.f32.mrb[0].mxu0
      %v7719 = vadd.f32 0.0, %v7718
      %v7720 = vpop.f32.mrb[0].mxu0
      %7721 = vmatprep.mubr.f32.mxu0 0.0
      %7722 = vmatmul.mubr.f32.gmra.mrb[0].mxu0 %v7544
      %v7723 = vpop.f32.mrb[0].mxu0
      %v7724 = vadd.f32 0.0, %v7723
      %v7725 = vpop.f32.mrb[0].mxu0
      %7726 = vmatprep.mubr.f32.mxu0 0.0
      %7727 = vmatmul.mubr.f32.gmra.mrb[0].mxu0 %v7547
      %v7728 = vpop.f32.mrb[0].mxu0
      %v7729 = vadd.f32 0.0, %v7728
      %v7730 = vpop.f32.mrb[0].mxu0
      %7731 = vmatprep.mubr.f32.mxu0 0.0
      %7732 = vmatmul.mubr.f32.gmra.mrb[0].mxu0 %v7550
      %v7733 = vpop.f32.mrb[0].mxu0
      %v7734 = vadd.f32 0.0, %v7733
      %v7735 = vpop.f32.mrb[0].mxu0
      %7736 = vmatprep.mubr.f32.mxu0 0.0
      %7737 = vmatmul.mubr.f32.gmra.mrb[0].mxu0 %v7553
      %v7738 = vpop.f32.mrb[0].mxu0
      %v7739 = vadd.f32 0.0, %v7738
      %v7740 = vpop.f32.mrb[0].mxu0
      %7741 = vmatprep.mubr.f32.mxu0 0.0
      %7742 = vmatmul.mubr.f32.gmra.mrb[0].mxu0 %v7556
      %v7743 = vpop.f32.mrb[0].mxu0
      %v7744 = vadd.f32 0.0, %v7743
      %v7745 = vpop.f32.mrb[0].mxu0
      %7746 = vmatprep.mubr.f32.mxu0 0.0
      %7747 = vmatmul.mubr.f32.gmra.mrb[0].mxu0 %v7559
      %v7748 = vpop.f32.mrb[0].mxu0
      %v7749 = vadd.f32 0.0, %v7748
      %v7750 = vpop.f32.mrb[0].mxu0
      %7751 = vmatprep.mubr.f32.mxu0 0.0
      %7752 = vmatmul.mubr.f32.gmra.mrb[0].mxu0 %v7562
      %v7753 = vpop.f32.mrb[0].mxu0
      %v7754 = vadd.f32 0.0, %v7753
      %v7755 = vpop.f32.mrb[0].mxu0
      %7756 = vmatprep.mubr.f32.mxu0 0.0
      %7757 = vmatmul.mubr.f32.gmra.mrb[0].mxu0 %v7565
      %v7758 = vpop.f32.mrb[0].mxu0
      %v7759 = vadd.f32 0.0, %v7758
      %v7760 = vpop.f32.mrb[0].mxu0
      %7761 = vmatprep.mubr.f32.mxu0 0.0
      %7762 = vmatmul.mubr.f32.gmra.mrb[0].mxu0 %v7568
      %v7763 = vpop.f32.mrb[0].mxu0
      %v7764 = vadd.f32 0.0, %v7763
      %v7765 = vpop.f32.mrb[0].mxu0
      %7766 = vmatprep.mubr.f32.mxu0 0.0
      %7767 = vmatmul.mubr.f32.gmra.mrb[0].mxu0 %v7571
      %v7768 = vpop.f32.mrb[0].mxu0
      %v7769 = vadd.f32 0.0, %v7768
      %v7770 = vpop.f32.mrb[0].mxu0
      %7771 = vmatprep.mubr.f32.mxu0 0.0
      %7772 = vmatmul.mubr.f32.gmra.mrb[0].mxu0 %v7574
      %v7773 = vpop.f32.mrb[0].mxu0
      %v7774 = vadd.f32 0.0, %v7773
      %v7775 = vpop.f32.mrb[0].mxu0
      %7776 = vmatprep.mubr.f32.mxu0 0.0
      %7777 = vmatmul.mubr.f32.gmra.mrb[0].mxu0 %v7577
      %v7778 = vpop.f32.mrb[0].mxu0
      %v7779 = vadd.f32 0.0, %v7778
      %v7780 = vpop.f32.mrb[0].mxu0
      %7781 = vmatprep.mubr.f32.mxu0 0.0
      %7782 = vmatmul.mubr.f32.gmra.mrb[0].mxu0 %v7580
      %v7783 = vpop.f32.mrb[0].mxu0
      %v7784 = vadd.f32 0.0, %v7783
      %v7785 = vpop.f32.mrb[0].mxu0
      %7786 = vmatprep.mubr.f32.mxu0 0.0
      %7787 = vmatmul.mubr.f32.gmra.mrb[0].mxu0 %v7583
      %v7788 = vpop.f32.mrb[0].mxu0
      %v7789 = vadd.f32 0.0, %v7788
      %v7790 = vpop.f32.mrb[0].mxu0
      %7791 = vmatprep.mubr.f32.mxu0 0.0
      %7792 = vmatmul.mubr.f32.gmra.mrb[0].mxu0 %v7586
      %v7793 = vpop.f32.mrb[0].mxu0
      %v7794 = vadd.f32 0.0, %v7793
      %v7795 = vpop.f32.mrb[0].mxu0
      %7796 = vmatprep.mubr.f32.mxu0 0.0
      %7797 = vmatmul.mubr.f32.gmra.mrb[0].mxu0 %v7589
      %v7798 = vpop.f32.mrb[0].mxu0
      %v7799 = vadd.f32 0.0, %v7798
      %v7800 = vpop.f32.mrb[0].mxu0
      %7801 = vmatprep.mubr.f32.mxu0 0.0
      %7802 = vmatmul.mubr.f32.gmra.mrb[0].mxu0 %v7592
      %v7803 = vpop.f32.mrb[0].mxu0
      %v7804 = vadd.f32 0.0, %v7803
      %v7805 = vpop.f32.mrb[0].mxu0
      %7806 = vmatprep.mubr.f32.mxu0 0.0
      %7807 = vmatmul.mubr.f32.gmra.mrb[0].mxu0 %v7595
      %v7808 = vpop.f32.mrb[0].mxu0
      %v7809 = vadd.f32 0.0, %v7808
      %v7810 = vpop.f32.mrb[0].mxu0
      %7811 = vmatprep.mubr.f32.mxu0 0.0
      %7812 = vmatmul.mubr.f32.gmra.mrb[0].mxu0 %v7598
      %v7813 = vpop.f32.mrb[0].mxu0
      %v7814 = vadd.f32 0.0, %v7813
      %v7815 = vpop.f32.mrb[0].mxu0
      %7816 = vmatprep.mubr.f32.mxu0 0.0
      %7817 = vmatmul.mubr.f32.gmra.mrb[0].mxu0 %v7601
      %v7818 = vpop.f32.mrb[0].mxu0
      %v7819 = vadd.f32 0.0, %v7818
      %v7820 = vpop.f32.mrb[0].mxu0
      %7821 = vmatprep.mubr.f32.mxu0 0.0
      %7822 = vmatmul.mubr.f32.gmra.mrb[0].mxu0 %v7604
      %v7823 = vpop.f32.mrb[0].mxu0
      %v7824 = vadd.f32 0.0, %v7823
      %v7825 = vpop.f32.mrb[0].mxu0
      %7826 = vmatprep.mubr.f32.mxu0 0.0
      %7827 = vmatmul.mubr.f32.gmra.mrb[0].mxu0 %v7607
      %v7828 = vpop.f32.mrb[0].mxu0
      %v7829 = vadd.f32 0.0, %v7828
      %v7830 = vpop.f32.mrb[0].mxu0
      %7831 = vmatprep.mubr.f32.mxu0 0.0
      %7832 = vmatmul.mubr.f32.gmra.mrb[0].mxu0 %v7610
      %v7833 = vpop.f32.mrb[0].mxu0
      %v7834 = vadd.f32 0.0, %v7833
      %v7835 = vpop.f32.mrb[0].mxu0
      %7836 = vdwg.mxu0
      %v7837 = vadd.f32 %v7447, %v7679
      %v7838 = vadd.f32 %v7448, %v7684
      %v7839 = vadd.f32 %v7449, %v7689
      %v7840 = vadd.f32 %v7450, %v7694
      %v7841 = vadd.f32 %v7451, %v7699
      %v7842 = vadd.f32 %v7452, %v7704
      %v7843 = vadd.f32 %v7453, %v7709
      %v7844 = vadd.f32 %v7454, %v7714
      %v7845 = vadd.f32 %v7455, %v7719
      %v7846 = vadd.f32 %v7456, %v7724
      %v7847 = vadd.f32 %v7457, %v7729
      %v7848 = vadd.f32 %v7458, %v7734
      %v7849 = vadd.f32 %v7459, %v7739
      %v7850 = vadd.f32 %v7460, %v7744
      %v7851 = vadd.f32 %v7461, %v7749
      %v7852 = vadd.f32 %v7462, %v7754
      %v7853 = vadd.f32 %v7463, %v7759
      %v7854 = vadd.f32 %v7464, %v7764
      %v7855 = vadd.f32 %v7465, %v7769
      %v7856 = vadd.f32 %v7466, %v7774
      %v7857 = vadd.f32 %v7467, %v7779
      %v7858 = vadd.f32 %v7468, %v7784
      %v7859 = vadd.f32 %v7469, %v7789
      %v7860 = vadd.f32 %v7470, %v7794
      %v7861 = vadd.f32 %v7471, %v7799
      %v7862 = vadd.f32 %v7472, %v7804
      %v7863 = vadd.f32 %v7473, %v7809
      %v7864 = vadd.f32 %v7474, %v7814
      %v7865 = vadd.f32 %v7475, %v7819
      %v7866 = vadd.f32 %v7476, %v7824
      %v7867 = vadd.f32 %v7477, %v7829
      %v7868 = vadd.f32 %v7478, %v7834
      %v7869 = vld [vmem:[#allocation2 + $0x29] sm:$0xff]
      %v7870 = vld [vmem:[#allocation2 + $0x31] sm:$0xff]
      %v7871 = vld [vmem:[#allocation2 + $0x39] sm:$0xff]
      %v7872 = vld [vmem:[#allocation2 + $0x41] sm:$0xff]
      %v7873 = vld [vmem:[#allocation2 + $0x49] sm:$0xff]
      %v7874 = vld [vmem:[#allocation2 + $0x51] sm:$0xff]
      %v7875 = vld [vmem:[#allocation2 + $0x59] sm:$0xff]
      %v7876 = vld [vmem:[#allocation2 + $0x61] sm:$0xff]
      %v7877 = vld [vmem:[#allocation2 + $0x69] sm:$0xff]
      %v7878 = vld [vmem:[#allocation2 + $0x71] sm:$0xff]
      %v7879 = vld [vmem:[#allocation2 + $0x79] sm:$0xff]
      %v7880 = vld [vmem:[#allocation2 + $0x81] sm:$0xff]
      %v7881 = vld [vmem:[#allocation2 + $0x89] sm:$0xff]
      %v7882 = vld [vmem:[#allocation2 + $0x91] sm:$0xff]
      %v7883 = vld [vmem:[#allocation2 + $0x99] sm:$0xff]
      %v7884 = vld [vmem:[#allocation2 + $0xa1] sm:$0xff]
      %v7885 = vld [vmem:[#allocation2 + $0xa9] sm:$0xff]
      %v7886 = vld [vmem:[#allocation2 + $0xb1] sm:$0xff]
      %v7887 = vld [vmem:[#allocation2 + $0xb9] sm:$0xff]
      %v7888 = vld [vmem:[#allocation2 + $0xc1] sm:$0xff]
      %v7889 = vld [vmem:[#allocation2 + $0xc9] sm:$0xff]
      %v7890 = vld [vmem:[#allocation2 + $0xd1] sm:$0xff]
      %v7891 = vld [vmem:[#allocation2 + $0xd9] sm:$0xff]
      %v7892 = vld [vmem:[#allocation2 + $0xe1] sm:$0xff]
      %v7893 = vld [vmem:[#allocation2 + $0xe9] sm:$0xff]
      %v7894 = vld [vmem:[#allocation2 + $0xf1] sm:$0xff]
      %v7895 = vld [vmem:[#allocation2 + $0xf9] sm:$0xff]
      %v7896 = vld [vmem:[#allocation2 + $0x101] sm:$0xff]
      %v7897 = vld [vmem:[#allocation2 + $0x109] sm:$0xff]
      %v7898 = vld [vmem:[#allocation2 + $0x111] sm:$0xff]
      %v7899 = vld [vmem:[#allocation2 + $0x119] sm:$0xff]
      %v7900 = vld [vmem:[#allocation2 + $0x121] sm:$0xff]
      %v7901 = vmul.f32 %v7869, %v805
      %v7902 = vmul.f32 %v7870, %v806
      %v7903 = vmul.f32 %v7871, %v807
      %v7904 = vmul.f32 %v7872, %v808
      %v7905 = vmul.f32 %v7873, %v809
      %v7906 = vmul.f32 %v7874, %v810
      %v7907 = vmul.f32 %v7875, %v811
      %v7908 = vmul.f32 %v7876, %v812
      %v7909 = vmul.f32 %v7877, %v813
      %v7910 = vmul.f32 %v7878, %v814
      %v7911 = vmul.f32 %v7879, %v815
      %v7912 = vmul.f32 %v7880, %v816
      %v7913 = vmul.f32 %v7881, %v817
      %v7914 = vmul.f32 %v7882, %v818
      %v7915 = vmul.f32 %v7883, %v819
      %v7916 = vmul.f32 %v7884, %v820
      %v7917 = vmul.f32 %v7885, %v821
      %v7918 = vmul.f32 %v7886, %v822
      %v7919 = vmul.f32 %v7887, %v823
      %v7920 = vmul.f32 %v7888, %v824
      %v7921 = vmul.f32 %v7889, %v825
      %v7922 = vmul.f32 %v7890, %v826
      %v7923 = vmul.f32 %v7891, %v827
      %v7924 = vmul.f32 %v7892, %v828
      %v7925 = vmul.f32 %v7893, %v829
      %v7926 = vmul.f32 %v7894, %v830
      %v7927 = vmul.f32 %v7895, %v831
      %v7928 = vmul.f32 %v7896, %v832
      %v7929 = vmul.f32 %v7897, %v833
      %v7930 = vmul.f32 %v7898, %v834
      %v7931 = vmul.f32 %v7899, %v835
      %v7932 = vmul.f32 %v7900, %v836
      %s7933 = scalar_lea.vmem %s3, 256
      %v7934 = vld [vmem:[%s7933] sm:$0xff]
      %v7935 = vld [vmem:[%s7933 + $0x8] sm:$0xff]
      %v7936 = vld [vmem:[%s7933 + $0x10] sm:$0xff]
      %v7937 = vld [vmem:[%s7933 + $0x18] sm:$0xff]
      %v7939 = vsel %vm869, %v7901, 0
      %v7942 = vsel %vm869, %v7902, 0
      %v7945 = vsel %vm869, %v7903, 0
      %v7948 = vsel %vm869, %v7904, 0
      %v7951 = vsel %vm869, %v7905, 0
      %v7954 = vsel %vm869, %v7906, 0
      %v7957 = vsel %vm869, %v7907, 0
      %v7960 = vsel %vm869, %v7908, 0
      %v7963 = vsel %vm869, %v7909, 0
      %v7966 = vsel %vm869, %v7910, 0
      %v7969 = vsel %vm869, %v7911, 0
      %v7972 = vsel %vm869, %v7912, 0
      %v7975 = vsel %vm869, %v7913, 0
      %v7978 = vsel %vm869, %v7914, 0
      %v7981 = vsel %vm869, %v7915, 0
      %v7984 = vsel %vm869, %v7916, 0
      %v7987 = vsel %vm869, %v7917, 0
      %v7990 = vsel %vm869, %v7918, 0
      %v7993 = vsel %vm869, %v7919, 0
      %v7996 = vsel %vm869, %v7920, 0
      %v7999 = vsel %vm869, %v7921, 0
      %v8002 = vsel %vm869, %v7922, 0
      %v8005 = vsel %vm869, %v7923, 0
      %v8008 = vsel %vm869, %v7924, 0
      %v8011 = vsel %vm869, %v7925, 0
      %v8014 = vsel %vm869, %v7926, 0
      %v8017 = vsel %vm869, %v7927, 0
      %v8020 = vsel %vm869, %v7928, 0
      %v8023 = vsel %vm869, %v7929, 0
      %v8026 = vsel %vm869, %v7930, 0
      %v8029 = vsel %vm869, %v7931, 0
      %v8032 = vsel %vm869, %v7932, 0
      %8034 = vmatprep.subr.mxu0 0.0
      %8035 = vmatpush1.msra.mxu0 %v7934
      %8036 = vmatprep.subr.mxu0 0.0
      %8037 = vmatpush1.msra.mxu0 %v7935
      %8038 = vmatprep.subr.mxu0 0.0
      %8039 = vmatpush1.msra.mxu0 %v7936
      %8040 = vmatprep.subr.mxu0 0.0
      %8041 = vmatpush1.msra.mxu0 %v7937
      %8042 = vmatprep.subr.mxu0 0.0
      %8043 = vmatpush1.msra.mxu0 0.0
      %8044 = vmatprep.subr.mxu0 0.0
      %8045 = vmatpush1.msra.mxu0 0.0
      %8046 = vmatprep.subr.mxu0 0.0
      %8047 = vmatpush1.msra.mxu0 0.0
      %8048 = vmatprep.subr.mxu0 0.0
      %8049 = vmatpush1.msra.mxu0 0.0
      %8050 = vmatprep.subr.mxu0 0.0
      %8051 = vmatpush1.msra.mxu0 0.0
      %8052 = vmatprep.subr.mxu0 0.0
      %8053 = vmatpush1.msra.mxu0 0.0
      %8054 = vmatprep.subr.mxu0 0.0
      %8055 = vmatpush1.msra.mxu0 0.0
      %8056 = vmatprep.subr.mxu0 0.0
      %8057 = vmatpush1.msra.mxu0 0.0
      %8058 = vmatprep.subr.mxu0 0.0
      %8059 = vmatpush1.msra.mxu0 0.0
      %8060 = vmatprep.subr.mxu0 0.0
      %8061 = vmatpush1.msra.mxu0 0.0
      %8062 = vmatprep.subr.mxu0 0.0
      %8063 = vmatpush1.msra.mxu0 0.0
      %8064 = vmatprep.subr.mxu0 0.0
      %8065 = vmatpush1.msra.mxu0 0.0
      %8066 = vmatprep.subr.mxu0 0.0
      %8067 = vmatpush1.msra.mxu0 0.0
      %8068 = vmatprep.subr.mxu0 0.0
      %8069 = vmatpush1.msra.mxu0 0.0
      %8070 = vmatprep.subr.mxu0 0.0
      %8071 = vmatpush1.msra.mxu0 0.0
      %8072 = vmatprep.subr.mxu0 0.0
      %8073 = vmatpush1.msra.mxu0 0.0
      %8074 = vmatprep.subr.mxu0 0.0
      %8075 = vmatpush1.msra.mxu0 0.0
      %8076 = vmatprep.subr.mxu0 0.0
      %8077 = vmatpush1.msra.mxu0 0.0
      %8078 = vmatprep.subr.mxu0 0.0
      %8079 = vmatpush1.msra.mxu0 0.0
      %8080 = vmatprep.subr.mxu0 0.0
      %8081 = vmatpush1.msra.mxu0 0.0
      %8082 = vmatprep.subr.mxu0 0.0
      %8083 = vmatpush1.msra.mxu0 0.0
      %8084 = vmatprep.subr.mxu0 0.0
      %8085 = vmatpush1.msra.mxu0 0.0
      %8086 = vmatprep.subr.mxu0 0.0
      %8087 = vmatpush1.msra.mxu0 0.0
      %8088 = vmatprep.subr.mxu0 0.0
      %8089 = vmatpush1.msra.mxu0 0.0
      %8090 = vmatprep.subr.mxu0 0.0
      %8091 = vmatpush1.msra.mxu0 0.0
      %8092 = vmatprep.subr.mxu0 0.0
      %8093 = vmatpush1.msra.mxu0 0.0
      %8094 = vmatprep.subr.mxu0 0.0
      %8095 = vmatpush1.msra.mxu0 0.0
      %8096 = vmatprep.subr.mxu0 0.0
      %8097 = vmatpush1.msra.mxu0 0.0
      %8098 = vmatprep.mubr.f32.mxu0 0.0
      %8099 = vmatmul.mubr.f32.gmra.mrb[0].mxu0 %v7939
      %v8100 = vpop.f32.mrb[0].mxu0
      %v8101 = vadd.f32 0.0, %v8100
      %v8102 = vpop.f32.mrb[0].mxu0
      %8103 = vmatprep.mubr.f32.mxu0 0.0
      %8104 = vmatmul.mubr.f32.gmra.mrb[0].mxu0 %v7942
      %v8105 = vpop.f32.mrb[0].mxu0
      %v8106 = vadd.f32 0.0, %v8105
      %v8107 = vpop.f32.mrb[0].mxu0
      %8108 = vmatprep.mubr.f32.mxu0 0.0
      %8109 = vmatmul.mubr.f32.gmra.mrb[0].mxu0 %v7945
      %v8110 = vpop.f32.mrb[0].mxu0
      %v8111 = vadd.f32 0.0, %v8110
      %v8112 = vpop.f32.mrb[0].mxu0
      %8113 = vmatprep.mubr.f32.mxu0 0.0
      %8114 = vmatmul.mubr.f32.gmra.mrb[0].mxu0 %v7948
      %v8115 = vpop.f32.mrb[0].mxu0
      %v8116 = vadd.f32 0.0, %v8115
      %v8117 = vpop.f32.mrb[0].mxu0
      %8118 = vmatprep.mubr.f32.mxu0 0.0
      %8119 = vmatmul.mubr.f32.gmra.mrb[0].mxu0 %v7951
      %v8120 = vpop.f32.mrb[0].mxu0
      %v8121 = vadd.f32 0.0, %v8120
      %v8122 = vpop.f32.mrb[0].mxu0
      %8123 = vmatprep.mubr.f32.mxu0 0.0
      %8124 = vmatmul.mubr.f32.gmra.mrb[0].mxu0 %v7954
      %v8125 = vpop.f32.mrb[0].mxu0
      %v8126 = vadd.f32 0.0, %v8125
      %v8127 = vpop.f32.mrb[0].mxu0
      %8128 = vmatprep.mubr.f32.mxu0 0.0
      %8129 = vmatmul.mubr.f32.gmra.mrb[0].mxu0 %v7957
      %v8130 = vpop.f32.mrb[0].mxu0
      %v8131 = vadd.f32 0.0, %v8130
      %v8132 = vpop.f32.mrb[0].mxu0
      %8133 = vmatprep.mubr.f32.mxu0 0.0
      %8134 = vmatmul.mubr.f32.gmra.mrb[0].mxu0 %v7960
      %v8135 = vpop.f32.mrb[0].mxu0
      %v8136 = vadd.f32 0.0, %v8135
      %v8137 = vpop.f32.mrb[0].mxu0
      %8138 = vmatprep.mubr.f32.mxu0 0.0
      %8139 = vmatmul.mubr.f32.gmra.mrb[0].mxu0 %v7963
      %v8140 = vpop.f32.mrb[0].mxu0
      %v8141 = vadd.f32 0.0, %v8140
      %v8142 = vpop.f32.mrb[0].mxu0
      %8143 = vmatprep.mubr.f32.mxu0 0.0
      %8144 = vmatmul.mubr.f32.gmra.mrb[0].mxu0 %v7966
      %v8145 = vpop.f32.mrb[0].mxu0
      %v8146 = vadd.f32 0.0, %v8145
      %v8147 = vpop.f32.mrb[0].mxu0
      %8148 = vmatprep.mubr.f32.mxu0 0.0
      %8149 = vmatmul.mubr.f32.gmra.mrb[0].mxu0 %v7969
      %v8150 = vpop.f32.mrb[0].mxu0
      %v8151 = vadd.f32 0.0, %v8150
      %v8152 = vpop.f32.mrb[0].mxu0
      %8153 = vmatprep.mubr.f32.mxu0 0.0
      %8154 = vmatmul.mubr.f32.gmra.mrb[0].mxu0 %v7972
      %v8155 = vpop.f32.mrb[0].mxu0
      %v8156 = vadd.f32 0.0, %v8155
      %v8157 = vpop.f32.mrb[0].mxu0
      %8158 = vmatprep.mubr.f32.mxu0 0.0
      %8159 = vmatmul.mubr.f32.gmra.mrb[0].mxu0 %v7975
      %v8160 = vpop.f32.mrb[0].mxu0
      %v8161 = vadd.f32 0.0, %v8160
      %v8162 = vpop.f32.mrb[0].mxu0
      %8163 = vmatprep.mubr.f32.mxu0 0.0
      %8164 = vmatmul.mubr.f32.gmra.mrb[0].mxu0 %v7978
      %v8165 = vpop.f32.mrb[0].mxu0
      %v8166 = vadd.f32 0.0, %v8165
      %v8167 = vpop.f32.mrb[0].mxu0
      %8168 = vmatprep.mubr.f32.mxu0 0.0
      %8169 = vmatmul.mubr.f32.gmra.mrb[0].mxu0 %v7981
      %v8170 = vpop.f32.mrb[0].mxu0
      %v8171 = vadd.f32 0.0, %v8170
      %v8172 = vpop.f32.mrb[0].mxu0
      %8173 = vmatprep.mubr.f32.mxu0 0.0
      %8174 = vmatmul.mubr.f32.gmra.mrb[0].mxu0 %v7984
      %v8175 = vpop.f32.mrb[0].mxu0
      %v8176 = vadd.f32 0.0, %v8175
      %v8177 = vpop.f32.mrb[0].mxu0
      %8178 = vmatprep.mubr.f32.mxu0 0.0
      %8179 = vmatmul.mubr.f32.gmra.mrb[0].mxu0 %v7987
      %v8180 = vpop.f32.mrb[0].mxu0
      %v8181 = vadd.f32 0.0, %v8180
      %v8182 = vpop.f32.mrb[0].mxu0
      %8183 = vmatprep.mubr.f32.mxu0 0.0
      %8184 = vmatmul.mubr.f32.gmra.mrb[0].mxu0 %v7990
      %v8185 = vpop.f32.mrb[0].mxu0
      %v8186 = vadd.f32 0.0, %v8185
      %v8187 = vpop.f32.mrb[0].mxu0
      %8188 = vmatprep.mubr.f32.mxu0 0.0
      %8189 = vmatmul.mubr.f32.gmra.mrb[0].mxu0 %v7993
      %v8190 = vpop.f32.mrb[0].mxu0
      %v8191 = vadd.f32 0.0, %v8190
      %v8192 = vpop.f32.mrb[0].mxu0
      %8193 = vmatprep.mubr.f32.mxu0 0.0
      %8194 = vmatmul.mubr.f32.gmra.mrb[0].mxu0 %v7996
      %v8195 = vpop.f32.mrb[0].mxu0
      %v8196 = vadd.f32 0.0, %v8195
      %v8197 = vpop.f32.mrb[0].mxu0
      %8198 = vmatprep.mubr.f32.mxu0 0.0
      %8199 = vmatmul.mubr.f32.gmra.mrb[0].mxu0 %v7999
      %v8200 = vpop.f32.mrb[0].mxu0
      %v8201 = vadd.f32 0.0, %v8200
      %v8202 = vpop.f32.mrb[0].mxu0
      %8203 = vmatprep.mubr.f32.mxu0 0.0
      %8204 = vmatmul.mubr.f32.gmra.mrb[0].mxu0 %v8002
      %v8205 = vpop.f32.mrb[0].mxu0
      %v8206 = vadd.f32 0.0, %v8205
      %v8207 = vpop.f32.mrb[0].mxu0
      %8208 = vmatprep.mubr.f32.mxu0 0.0
      %8209 = vmatmul.mubr.f32.gmra.mrb[0].mxu0 %v8005
      %v8210 = vpop.f32.mrb[0].mxu0
      %v8211 = vadd.f32 0.0, %v8210
      %v8212 = vpop.f32.mrb[0].mxu0
      %8213 = vmatprep.mubr.f32.mxu0 0.0
      %8214 = vmatmul.mubr.f32.gmra.mrb[0].mxu0 %v8008
      %v8215 = vpop.f32.mrb[0].mxu0
      %v8216 = vadd.f32 0.0, %v8215
      %v8217 = vpop.f32.mrb[0].mxu0
      %8218 = vmatprep.mubr.f32.mxu0 0.0
      %8219 = vmatmul.mubr.f32.gmra.mrb[0].mxu0 %v8011
      %v8220 = vpop.f32.mrb[0].mxu0
      %v8221 = vadd.f32 0.0, %v8220
      %v8222 = vpop.f32.mrb[0].mxu0
      %8223 = vmatprep.mubr.f32.mxu0 0.0
      %8224 = vmatmul.mubr.f32.gmra.mrb[0].mxu0 %v8014
      %v8225 = vpop.f32.mrb[0].mxu0
      %v8226 = vadd.f32 0.0, %v8225
      %v8227 = vpop.f32.mrb[0].mxu0
      %8228 = vmatprep.mubr.f32.mxu0 0.0
      %8229 = vmatmul.mubr.f32.gmra.mrb[0].mxu0 %v8017
      %v8230 = vpop.f32.mrb[0].mxu0
      %v8231 = vadd.f32 0.0, %v8230
      %v8232 = vpop.f32.mrb[0].mxu0
      %8233 = vmatprep.mubr.f32.mxu0 0.0
      %8234 = vmatmul.mubr.f32.gmra.mrb[0].mxu0 %v8020
      %v8235 = vpop.f32.mrb[0].mxu0
      %v8236 = vadd.f32 0.0, %v8235
      %v8237 = vpop.f32.mrb[0].mxu0
      %8238 = vmatprep.mubr.f32.mxu0 0.0
      %8239 = vmatmul.mubr.f32.gmra.mrb[0].mxu0 %v8023
      %v8240 = vpop.f32.mrb[0].mxu0
      %v8241 = vadd.f32 0.0, %v8240
      %v8242 = vpop.f32.mrb[0].mxu0
      %8243 = vmatprep.mubr.f32.mxu0 0.0
      %8244 = vmatmul.mubr.f32.gmra.mrb[0].mxu0 %v8026
      %v8245 = vpop.f32.mrb[0].mxu0
      %v8246 = vadd.f32 0.0, %v8245
      %v8247 = vpop.f32.mrb[0].mxu0
      %8248 = vmatprep.mubr.f32.mxu0 0.0
      %8249 = vmatmul.mubr.f32.gmra.mrb[0].mxu0 %v8029
      %v8250 = vpop.f32.mrb[0].mxu0
      %v8251 = vadd.f32 0.0, %v8250
      %v8252 = vpop.f32.mrb[0].mxu0
      %8253 = vmatprep.mubr.f32.mxu0 0.0
      %8254 = vmatmul.mubr.f32.gmra.mrb[0].mxu0 %v8032
      %v8255 = vpop.f32.mrb[0].mxu0
      %v8256 = vadd.f32 0.0, %v8255
      %v8257 = vpop.f32.mrb[0].mxu0
      %8258 = vdwg.mxu0
      %v8259 = vadd.f32 %v7837, %v8101
      %v8260 = vadd.f32 %v7838, %v8106
      %v8261 = vadd.f32 %v7839, %v8111
      %v8262 = vadd.f32 %v7840, %v8116
      %v8263 = vadd.f32 %v7841, %v8121
      %v8264 = vadd.f32 %v7842, %v8126
      %v8265 = vadd.f32 %v7843, %v8131
      %v8266 = vadd.f32 %v7844, %v8136
      %v8267 = vadd.f32 %v7845, %v8141
      %v8268 = vadd.f32 %v7846, %v8146
      %v8269 = vadd.f32 %v7847, %v8151
      %v8270 = vadd.f32 %v7848, %v8156
      %v8271 = vadd.f32 %v7849, %v8161
      %v8272 = vadd.f32 %v7850, %v8166
      %v8273 = vadd.f32 %v7851, %v8171
      %v8274 = vadd.f32 %v7852, %v8176
      %v8275 = vadd.f32 %v7853, %v8181
      %v8276 = vadd.f32 %v7854, %v8186
      %v8277 = vadd.f32 %v7855, %v8191
      %v8278 = vadd.f32 %v7856, %v8196
      %v8279 = vadd.f32 %v7857, %v8201
      %v8280 = vadd.f32 %v7858, %v8206
      %v8281 = vadd.f32 %v7859, %v8211
      %v8282 = vadd.f32 %v7860, %v8216
      %v8283 = vadd.f32 %v7861, %v8221
      %v8284 = vadd.f32 %v7862, %v8226
      %v8285 = vadd.f32 %v7863, %v8231
      %v8286 = vadd.f32 %v7864, %v8236
      %v8287 = vadd.f32 %v7865, %v8241
      %v8288 = vadd.f32 %v7866, %v8246
      %v8289 = vadd.f32 %v7867, %v8251
      %v8290 = vadd.f32 %v7868, %v8256
      %v8291 = vld [vmem:[%s4] sm:$0x1]
      %v8293 = vlaneseq
      %v8294 = vshrl.u32 %v8293, 7
      %v8295 = vsub.s32 0, %v8294
      %v8296 = vrot.slane %v8291, %v8295
      %v8298 = vadd.f32 %v8259, %v8296
      %v8299 = vadd.f32 %v8260, %v8296
      %v8300 = vadd.f32 %v8261, %v8296
      %v8301 = vadd.f32 %v8262, %v8296
      %v8302 = vadd.f32 %v8263, %v8296
      %v8303 = vadd.f32 %v8264, %v8296
      %v8304 = vadd.f32 %v8265, %v8296
      %v8305 = vadd.f32 %v8266, %v8296
      %v8306 = vadd.f32 %v8267, %v8296
      %v8307 = vadd.f32 %v8268, %v8296
      %v8308 = vadd.f32 %v8269, %v8296
      %v8309 = vadd.f32 %v8270, %v8296
      %v8310 = vadd.f32 %v8271, %v8296
      %v8311 = vadd.f32 %v8272, %v8296
      %v8312 = vadd.f32 %v8273, %v8296
      %v8313 = vadd.f32 %v8274, %v8296
      %v8314 = vadd.f32 %v8275, %v8296
      %v8315 = vadd.f32 %v8276, %v8296
      %v8316 = vadd.f32 %v8277, %v8296
      %v8317 = vadd.f32 %v8278, %v8296
      %v8318 = vadd.f32 %v8279, %v8296
      %v8319 = vadd.f32 %v8280, %v8296
      %v8320 = vadd.f32 %v8281, %v8296
      %v8321 = vadd.f32 %v8282, %v8296
      %v8322 = vadd.f32 %v8283, %v8296
      %v8323 = vadd.f32 %v8284, %v8296
      %v8324 = vadd.f32 %v8285, %v8296
      %v8325 = vadd.f32 %v8286, %v8296
      %v8326 = vadd.f32 %v8287, %v8296
      %v8327 = vadd.f32 %v8288, %v8296
      %v8328 = vadd.f32 %v8289, %v8296
      %v8329 = vadd.f32 %v8290, %v8296
      %v8330 = vld [vmem:[%s220] sm:$0xff]
      %v8331 = vld [vmem:[%s220 + $0x8] sm:$0xff]
      %v8332 = vld [vmem:[%s220 + $0x10] sm:$0xff]
      %v8333 = vld [vmem:[%s220 + $0x18] sm:$0xff]
      %v8334 = vld [vmem:[%s220 + $0x20] sm:$0xff]
      %v8335 = vld [vmem:[%s220 + $0x28] sm:$0xff]
      %v8336 = vld [vmem:[%s220 + $0x30] sm:$0xff]
      %v8337 = vld [vmem:[%s220 + $0x38] sm:$0xff]
      %v8338 = vld [vmem:[%s220 + $0x40] sm:$0xff]
      %v8339 = vld [vmem:[%s220 + $0x48] sm:$0xff]
      %v8340 = vld [vmem:[%s220 + $0x50] sm:$0xff]
      %v8341 = vld [vmem:[%s220 + $0x58] sm:$0xff]
      %v8342 = vld [vmem:[%s220 + $0x60] sm:$0xff]
      %v8343 = vld [vmem:[%s220 + $0x68] sm:$0xff]
      %v8344 = vld [vmem:[%s220 + $0x70] sm:$0xff]
      %v8345 = vld [vmem:[%s220 + $0x78] sm:$0xff]
      %v8346 = vld [vmem:[%s220 + $0x80] sm:$0xff]
      %v8347 = vld [vmem:[%s220 + $0x88] sm:$0xff]
      %v8348 = vld [vmem:[%s220 + $0x90] sm:$0xff]
      %v8349 = vld [vmem:[%s220 + $0x98] sm:$0xff]
      %v8350 = vld [vmem:[%s220 + $0xa0] sm:$0xff]
      %v8351 = vld [vmem:[%s220 + $0xa8] sm:$0xff]
      %v8352 = vld [vmem:[%s220 + $0xb0] sm:$0xff]
      %v8353 = vld [vmem:[%s220 + $0xb8] sm:$0xff]
      %v8354 = vld [vmem:[%s220 + $0xc0] sm:$0xff]
      %v8355 = vld [vmem:[%s220 + $0xc8] sm:$0xff]
      %v8356 = vld [vmem:[%s220 + $0xd0] sm:$0xff]
      %v8357 = vld [vmem:[%s220 + $0xd8] sm:$0xff]
      %v8358 = vld [vmem:[%s220 + $0xe0] sm:$0xff]
      %v8359 = vld [vmem:[%s220 + $0xe8] sm:$0xff]
      %v8360 = vld [vmem:[%s220 + $0xf0] sm:$0xff]
      %v8361 = vld [vmem:[%s220 + $0xf8] sm:$0xff]
      %v8362 = vadd.f32 %v8298, %v8330
      %v8363 = vadd.f32 %v8299, %v8331
      %v8364 = vadd.f32 %v8300, %v8332
      %v8365 = vadd.f32 %v8301, %v8333
      %v8366 = vadd.f32 %v8302, %v8334
      %v8367 = vadd.f32 %v8303, %v8335
      %v8368 = vadd.f32 %v8304, %v8336
      %v8369 = vadd.f32 %v8305, %v8337
      %v8370 = vadd.f32 %v8306, %v8338
      %v8371 = vadd.f32 %v8307, %v8339
      %v8372 = vadd.f32 %v8308, %v8340
      %v8373 = vadd.f32 %v8309, %v8341
      %v8374 = vadd.f32 %v8310, %v8342
      %v8375 = vadd.f32 %v8311, %v8343
      %v8376 = vadd.f32 %v8312, %v8344
      %v8377 = vadd.f32 %v8313, %v8345
      %v8378 = vadd.f32 %v8314, %v8346
      %v8379 = vadd.f32 %v8315, %v8347
      %v8380 = vadd.f32 %v8316, %v8348
      %v8381 = vadd.f32 %v8317, %v8349
      %v8382 = vadd.f32 %v8318, %v8350
      %v8383 = vadd.f32 %v8319, %v8351
      %v8384 = vadd.f32 %v8320, %v8352
      %v8385 = vadd.f32 %v8321, %v8353
      %v8386 = vadd.f32 %v8322, %v8354
      %v8387 = vadd.f32 %v8323, %v8355
      %v8388 = vadd.f32 %v8324, %v8356
      %v8389 = vadd.f32 %v8325, %v8357
      %v8390 = vadd.f32 %v8326, %v8358
      %v8391 = vadd.f32 %v8327, %v8359
      %v8392 = vadd.f32 %v8328, %v8360
      %v8393 = vadd.f32 %v8329, %v8361
      %v8394 = vmax.f32 %v8362, 0.0
      %v8395 = vmax.f32 %v8363, 0.0
      %v8396 = vmax.f32 %v8364, 0.0
      %v8397 = vmax.f32 %v8365, 0.0
      %v8398 = vmax.f32 %v8366, 0.0
      %v8399 = vmax.f32 %v8367, 0.0
      %v8400 = vmax.f32 %v8368, 0.0
      %v8401 = vmax.f32 %v8369, 0.0
      %v8402 = vmax.f32 %v8370, 0.0
      %v8403 = vmax.f32 %v8371, 0.0
      %v8404 = vmax.f32 %v8372, 0.0
      %v8405 = vmax.f32 %v8373, 0.0
      %v8406 = vmax.f32 %v8374, 0.0
      %v8407 = vmax.f32 %v8375, 0.0
      %v8408 = vmax.f32 %v8376, 0.0
      %v8409 = vmax.f32 %v8377, 0.0
      %v8410 = vmax.f32 %v8378, 0.0
      %v8411 = vmax.f32 %v8379, 0.0
      %v8412 = vmax.f32 %v8380, 0.0
      %v8413 = vmax.f32 %v8381, 0.0
      %v8414 = vmax.f32 %v8382, 0.0
      %v8415 = vmax.f32 %v8383, 0.0
      %v8416 = vmax.f32 %v8384, 0.0
      %v8417 = vmax.f32 %v8385, 0.0
      %v8418 = vmax.f32 %v8386, 0.0
      %v8419 = vmax.f32 %v8387, 0.0
      %v8420 = vmax.f32 %v8388, 0.0
      %v8421 = vmax.f32 %v8389, 0.0
      %v8422 = vmax.f32 %v8390, 0.0
      %v8423 = vmax.f32 %v8391, 0.0
      %v8424 = vmax.f32 %v8392, 0.0
      %v8425 = vmax.f32 %v8393, 0.0
      %8426 = vst.msk [vmem:[%s226] sm:$0xff] %vm869, %v8394
      %8427 = vst.msk [vmem:[%s226 + $0x8] sm:$0xff] %vm869, %v8395
      %8428 = vst.msk [vmem:[%s226 + $0x10] sm:$0xff] %vm869, %v8396
      %8429 = vst.msk [vmem:[%s226 + $0x18] sm:$0xff] %vm869, %v8397
      %8430 = vst.msk [vmem:[%s226 + $0x20] sm:$0xff] %vm869, %v8398
      %8431 = vst.msk [vmem:[%s226 + $0x28] sm:$0xff] %vm869, %v8399
      %8432 = vst.msk [vmem:[%s226 + $0x30] sm:$0xff] %vm869, %v8400
      %8433 = vst.msk [vmem:[%s226 + $0x38] sm:$0xff] %vm869, %v8401
      %8434 = vst.msk [vmem:[%s226 + $0x40] sm:$0xff] %vm869, %v8402
      %8435 = vst.msk [vmem:[%s226 + $0x48] sm:$0xff] %vm869, %v8403
      %8436 = vst.msk [vmem:[%s226 + $0x50] sm:$0xff] %vm869, %v8404
      %8437 = vst.msk [vmem:[%s226 + $0x58] sm:$0xff] %vm869, %v8405
      %8438 = vst.msk [vmem:[%s226 + $0x60] sm:$0xff] %vm869, %v8406
      %8439 = vst.msk [vmem:[%s226 + $0x68] sm:$0xff] %vm869, %v8407
      %8440 = vst.msk [vmem:[%s226 + $0x70] sm:$0xff] %vm869, %v8408
      %8441 = vst.msk [vmem:[%s226 + $0x78] sm:$0xff] %vm869, %v8409
      %8442 = vst.msk [vmem:[%s226 + $0x80] sm:$0xff] %vm869, %v8410
      %8443 = vst.msk [vmem:[%s226 + $0x88] sm:$0xff] %vm869, %v8411
      %8444 = vst.msk [vmem:[%s226 + $0x90] sm:$0xff] %vm869, %v8412
      %8445 = vst.msk [vmem:[%s226 + $0x98] sm:$0xff] %vm869, %v8413
      %8446 = vst.msk [vmem:[%s226 + $0xa0] sm:$0xff] %vm869, %v8414
      %8447 = vst.msk [vmem:[%s226 + $0xa8] sm:$0xff] %vm869, %v8415
      %8448 = vst.msk [vmem:[%s226 + $0xb0] sm:$0xff] %vm869, %v8416
      %8449 = vst.msk [vmem:[%s226 + $0xb8] sm:$0xff] %vm869, %v8417
      %8450 = vst.msk [vmem:[%s226 + $0xc0] sm:$0xff] %vm869, %v8418
      %8451 = vst.msk [vmem:[%s226 + $0xc8] sm:$0xff] %vm869, %v8419
      %8452 = vst.msk [vmem:[%s226 + $0xd0] sm:$0xff] %vm869, %v8420
      %8453 = vst.msk [vmem:[%s226 + $0xd8] sm:$0xff] %vm869, %v8421
      %8454 = vst.msk [vmem:[%s226 + $0xe0] sm:$0xff] %vm869, %v8422
      %8455 = vst.msk [vmem:[%s226 + $0xe8] sm:$0xff] %vm869, %v8423
      %8456 = vst.msk [vmem:[%s226 + $0xf0] sm:$0xff] %vm869, %v8424
      %8457 = vst.msk [vmem:[%s226 + $0xf8] sm:$0xff] %vm869, %v8425
      %s8458 = smul.u32 32, %s16
      %p8459 = scmp.lt.s32.totalorder %s8458, 63
      %s8460 = scalar_select %p8459, %s8458, 63
      %s8461 = smul.addr %s8460, 8
      %s8462 = scalar_lea.vmem %s5, %s8461
      // Predicated region
      $region41: #{tpu_custom_call.1} parent=39 // pred_check
        %p8463 = pneg %p144
      $region42: #{tpu_custom_call.1} parent=39 // pred_check_branch
        %8465 = sbr.rel (%p8463) target = $region44
      $region43: #{tpu_custom_call.1} parent=39 // pred_region
        %s8466 = smul.u32 32, %s16
      $region44: #{tpu_custom_call.1} parent=39 // pred_fallthru
        _
    $region40: #{tpu_custom_call.1} parent=5 // pred_fallthru
      _
    %p8467 = scmp.le.s32.totalorder 2, %s11
    // Predicated region
    $region45: #{tpu_custom_call.1} parent=5 // pred_check
      %p8468 = pneg %p8467
    $region46: #{tpu_custom_call.1} parent=5 // pred_check_branch
      %8470 = sbr.rel (%p8468) target = $region48
    $region47: #{tpu_custom_call.1} parent=5 // pred_region
      %s8471 = ssub.s32 %s11, 2
      // Predicated region
      $region49: #{tpu_custom_call.1} parent=47 // pred_check
        %p8472 = pneg %p150
      $region50: #{tpu_custom_call.1} parent=47 // pred_check_branch
        %8474 = sbr.rel (%p8472) target = $region52
      $region51: #{tpu_custom_call.1} parent=47 // pred_region
        %s8475 = smul.u32 32, %s17
        %p8476 = scmp.lt.s32.totalorder %s8475, 63
        %s8477 = scalar_select %p8476, %s8475, 63
        %s8478 = smul.addr %s8477, 8
        %s8479 = scalar_lea.vmem %s5, %s8478
      $region52: #{tpu_custom_call.1} parent=47 // pred_fallthru
        _
    $region48: #{tpu_custom_call.1} parent=5 // pred_fallthru
      _
  $region6: #{tpu_custom_call.1} parent=0 // loop_footer
    %s15 = sadd.s32 1, %s11
  $region7: #{tpu_custom_call.1} parent=0 // loop_footer_branch
    %10 = sbr.rel target = $region3
  $region8: #{tpu_custom_call.1} parent=0 // loop_exit
    _

</llo_original>
